<compile_context>
chip_gen: v7x
topology: tpu7x:2x2x1
jax: 0.10.0
libtpu: 0.0.40
codegen_flags: <defaults>
</compile_context>

<pallas_src>
import math

import jax
import jax.numpy as jnp
from jax import lax
from jax.experimental import pallas as pl
from jax.experimental.pallas import tpu as pltpu

VMEM = pl.BlockSpec(memory_space=pltpu.MemorySpace.VMEM)
SMEM = pl.BlockSpec(memory_space=pltpu.MemorySpace.SMEM)
F32 = jnp.float32
BF16 = jnp.bfloat16


# --------------------------- fused forward kernel ------------------------------
def _memnn_fused_kernel(xe_ref, xd_ref,
                        gwih_ref, gwhh_ref, gbi_ref, gbn_ref,
                        lwih_ref, lwhh_ref, lb_ref,
                        S_ref, q_ref,
                        w1_ref, b1_ref, gam_ref, bet_ref, w2_ref, b2_ref,
                        shift_ref,
                        out_ref, u_ref):
    L, B, H = xe_ref.shape
    NL = gwih_ref.shape[0]
    LB = L * B

    # ------------- one GRU layer, lane-packed gates (r|z|n), PyTorch semantics -------------
    #   r = s(W_ir x + b_ir + W_hr h + b_hr)
    #   z = s(W_iz x + b_iz + W_hz h + b_hz)
    #   n = tanh(W_in x + b_in + r * (W_hn h + b_hn))
    #   h' = (1 - z) * n + z * h
    # gbi_ref[l] holds [b_ir+b_hr | b_iz+b_hz | b_in]; gbn_ref[l] = b_hn (stays inside r*(.)).
    def gru_layer(x_flat_bf, h0, l):
        gi = jnp.dot(x_flat_bf, gwih_ref[l], preferred_element_type=F32) + gbi_ref[l]
        gi = gi.reshape(L, B, 3 * H)
        gi_r, gi_z, gi_n = gi[..., :H], gi[..., H:2 * H], gi[..., 2 * H:]
        w_hh = gwhh_ref[l]                 # (H, 3H) bf16
        b_hn = gbn_ref[l]                  # (1, H)  f32
        h = h0
        outs = []
        for t in range(L):                 # L is small & static -> full unroll
            gh = jnp.dot(h.astype(BF16), w_hh, preferred_element_type=F32)   # (B, 3H)
            r = jax.nn.sigmoid(gi_r[t] + gh[:, :H])
            z = jax.nn.sigmoid(gi_z[t] + gh[:, H:2 * H])
            n = jnp.tanh(gi_n[t] + r * (gh[:, 2 * H:] + b_hn))
            h = (1.0 - z) * n + z * h
            outs.append(h)
        return h, outs

    # ------------- one LSTM layer, lane-packed gates (i|f|g|o), PyTorch semantics -----------
    # lb_ref[l] = b_ih + b_hh (all four gate biases add before the nonlinearity).
    def lstm_layer(x_flat_bf, h0, c0, l):
        gi = jnp.dot(x_flat_bf, lwih_ref[l], preferred_element_type=F32) + lb_ref[l]
        gi = gi.reshape(L, B, 4 * H)
        w_hh = lwhh_ref[l]                 # (H, 4H) bf16 -> 4H = 128 lane-dense
        h, c = h0, c0
        outs = []
        for t in range(L):
            g = gi[t] + jnp.dot(h.astype(BF16), w_hh, preferred_element_type=F32)  # (B, 4H)
            i_g = jax.nn.sigmoid(g[:, :H])
            f_g = jax.nn.sigmoid(g[:, H:2 * H])
            g_g = jnp.tanh(g[:, 2 * H:3 * H])
            o_g = jax.nn.sigmoid(g[:, 3 * H:])
            c = f_g * c + i_g * g_g
            h = o_g * jnp.tanh(c)
            outs.append(h)
        return h, c, outs

    def flat_bf(outs):
        # per-t hidden states as values; concat -> (L*B, H) bf16 for the next projection
        return jnp.concatenate(outs, axis=0).astype(BF16)

    h0 = jnp.zeros((B, H), F32)
    xe_bf = xe_ref[...].reshape(LB, H).astype(BF16)
    xd_bf = xd_ref[...].reshape(LB, H).astype(BF16)

    # ---- encoder GRU stack: u = gru(x)[1] (per-layer final hidden states) ----
    gru_hT = []
    inp = xe_bf
    for l in range(NL):
        hT, outs = gru_layer(inp, h0, l)
        gru_hT.append(hT)
        if l < NL - 1:                      # last layer's sequence output is unused
            inp = flat_bf(outs)

    # ---- encoder LSTM stack: x, (h, s) = lstm(x) (only (h, s) reused) ----------
    # Independent of the GRU chain -> no shared buffer -> scheduler can overlap them.
    lstm_hT, lstm_cT = [], []
    inp = xe_bf
    for l in range(NL):
        hT, cT, outs = lstm_layer(inp, h0, h0, l)
        lstm_hT.append(hT)
        lstm_cT.append(cT)
        if l < NL - 1:
            inp = flat_bf(outs)

    # ---- decoder GRU with encoder final hiddens: gru(x_dec, u)[0] --------------
    inp = xd_bf
    for l in range(NL):
        _, outs = gru_layer(inp, gru_hT[l], l)
        if l < NL - 1:
            inp = flat_bf(outs)
    g_seq = jnp.concatenate(outs, axis=0).reshape(L, B, H)    # last layer sequence (f32)

    # ---- memory read: c = g @ S^T ; a = softmax(c, -1) ; u = a @ q^T -----------
    c = jnp.einsum('tbh,tmh->tbm', g_seq.astype(BF16), S_ref[...],
                   preferred_element_type=F32)                 # (L, B, M)
    m = jnp.max(c, axis=-1, keepdims=True)
    e = jnp.exp(c - m)
    a = e / jnp.sum(e, axis=-1, keepdims=True)
    u = jnp.einsum('tbm,tmk->tbk', a, q_ref[...], preferred_element_type=F32)  # (L, B, 3)
    u_ref[...] = u.reshape(LB, 3)

    # ---- decoder LSTM with encoder (h, s): lstm(x_dec, (h, s))[0] --------------
    # Independent of the decoder-GRU/attention chain above.
    inp = xd_bf
    for l in range(NL):
        _, _, outs = lstm_layer(inp, lstm_hT[l], lstm_cT[l], l)
        if l < NL - 1:
            inp = flat_bf(outs)
    x_head_bf = jnp.concatenate(outs, axis=0).astype(BF16)     # (L*B, H)

    # ---- head: Linear(H,H) -> BatchNorm1d(train) -> ReLU -> Linear(H,O) --------
    z = jnp.dot(x_head_bf, w1_ref[...], preferred_element_type=F32) + b1_ref[...]
    mu = jnp.mean(z, axis=0, keepdims=True)
    var = jnp.mean(jnp.square(z - mu), axis=0, keepdims=True)
    zn = (z - mu) * lax.rsqrt(var + 1e-5) * gam_ref[...] + bet_ref[...]
    zr = jnp.maximum(zn, 0.0)
    o = jnp.dot(zr.astype(BF16), w2_ref[...], preferred_element_type=F32) + b2_ref[...]
    # shift * sum(u * [-1, 0, 1], -1, keepdims=True) == shift * (u[...,2] - u[...,0])
    du = (u[:, :, 2:3] - u[:, :, 0:1]).reshape(LB, 1)
    out_ref[...] = o + shift_ref[0] * du


# --------------------------- parameters ----------------------------------------
def make_params(key, H, M, O, L, num_layers):
    """PyTorch-equivalent parameters (per-gate layout, f32, W already transposed for x@W)."""
    ks = iter(jax.random.split(key, 24))

    def unif(shape, k):
        return jax.random.uniform(next(ks), shape, F32, -k, k)

    kH = 1.0 / math.sqrt(H)
    p = {}
    # self.fc = TimeDistributed(Linear(1, H))
    p['fc_w'] = unif((1, H), 1.0)
    p['fc_b'] = unif((H,), 1.0)
    # GRU per-layer, per-gate (r, z, n); input_size == hidden_size.
    p['gru_wih'] = unif((num_layers, 3, H, H), kH)
    p['gru_whh'] = unif((num_layers, 3, H, H), kH)
    p['gru_bih'] = unif((num_layers, 3, H), kH)
    p['gru_bhh'] = unif((num_layers, 3, H), kH)
    # LSTM per-layer, per-gate (i, f, g, o).
    p['lstm_wih'] = unif((num_layers, 4, H, H), kH)
    p['lstm_whh'] = unif((num_layers, 4, H, H), kH)
    p['lstm_bih'] = unif((num_layers, 4, H), kH)
    p['lstm_bhh'] = unif((num_layers, 4, H), kH)
    # forward1: Linear(H,H) -> BatchNorm1d(H) -> ReLU -> Linear(H,O)
    p['w1'] = unif((H, H), kH)
    p['b1'] = unif((H,), kH)
    p['gamma'] = jnp.ones((H,), F32)
    p['beta'] = jnp.zeros((H,), F32)
    p['w2'] = unif((H, O), kH)
    p['b2'] = unif((O,), kH)
    # __init__ uses zeros for shift/S/q; small deterministic non-zero values here so
    # the memory-read path is actually exercised.
    p['shift'] = jnp.array([0.1], F32)
    p['S'] = 0.1 * jax.random.normal(next(ks), (L, M, H), F32)
    p['q'] = 0.1 * jax.random.normal(next(ks), (M, L, 3), F32)
    return p


def pack_params(p):
    """Kernel layouts: lane-packed gate weights (bf16 MXU operands), folded f32 biases."""
    def pack_w(w):  # (NL, G, H, H) -> (NL, H, G*H) bf16
        return jnp.concatenate([w[:, g] for g in range(w.shape[1])], axis=-1).astype(BF16)

    kp = {}
    kp['fc_w'], kp['fc_b'] = p['fc_w'], p['fc_b']
    kp['gru_wih'] = pack_w(p['gru_wih'])                        # (NL, H, 3H)
    kp['gru_whh'] = pack_w(p['gru_whh'])                        # (NL, H, 3H)
    # Fold b_ih (all gates) and the r/z recurrent biases into the hoisted projection;
    # b_hn must stay inside r * (W_hn h + b_hn)  (PyTorch GRU semantics).
    kp['gru_bi'] = jnp.concatenate(
        [p['gru_bih'][:, 0] + p['gru_bhh'][:, 0],
         p['gru_bih'][:, 1] + p['gru_bhh'][:, 1],
         p['gru_bih'][:, 2]], axis=-1)[:, None, :]              # (NL, 1, 3H) f32
    kp['gru_bn'] = p['gru_bhh'][:, 2][:, None, :]               # (NL, 1, H)  f32
    kp['lstm_wih'] = pack_w(p['lstm_wih'])                      # (NL, H, 4H)
    kp['lstm_whh'] = pack_w(p['lstm_whh'])                      # (NL, H, 4H)
    kp['lstm_b'] = jnp.concatenate(
        [p['lstm_bih'][:, g] + p['lstm_bhh'][:, g] for g in range(4)],
        axis=-1)[:, None, :]                                    # (NL, 1, 4H) f32
    kp['w1'] = p['w1'].astype(BF16)
    kp['b1'] = p['b1'][None, :]
    kp['gamma'] = p['gamma'][None, :]
    kp['beta'] = p['beta'][None, :]
    kp['w2'] = p['w2'].astype(BF16)
    kp['b2'] = p['b2'][None, :]
    kp['shift'] = p['shift']
    kp['S'] = p['S'].astype(BF16)                               # (L, M, H)
    kp['q_t'] = jnp.transpose(p['q'], (1, 0, 2))                # (L, M, 3) f32
    return kp


# --------------------------- forward --------------------------------------------
def memnn_forward(kp, encoder_x, decoder_x=None):
    B, L, _ = encoder_x.shape
    H = kp['fc_w'].shape[1]
    O = kp['w2'].shape[-1]

    # x = rearrange(encoder_x, 'a b ... -> b a ...'); x = self.fc(x)   (tiny glue)
    xe = jnp.transpose(encoder_x, (1, 0, 2)) @ kp['fc_w'] + kp['fc_b']       # (L, B, H)
    if decoder_x is None:
        # fc(zeros_like(encoder_x)) == fc_b broadcast; constant over (t, b).
        xd = jnp.broadcast_to(kp['fc_b'].reshape(1, 1, H), (L, B, H))
    else:
        xd = jnp.transpose(decoder_x, (1, 0, 2)) @ kp['fc_w'] + kp['fc_b']   # (L, B, H)

    out_flat, u_flat = pl.pallas_call(
        _memnn_fused_kernel,
        out_shape=(jax.ShapeDtypeStruct((L * B, O), F32),
                   jax.ShapeDtypeStruct((L * B, 3), F32)),
        in_specs=[VMEM] * 17 + [SMEM],
        out_specs=(VMEM, VMEM),
    )(xe, xd,
      kp['gru_wih'], kp['gru_whh'], kp['gru_bi'], kp['gru_bn'],
      kp['lstm_wih'], kp['lstm_whh'], kp['lstm_b'],
      kp['S'], kp['q_t'],
      kp['w1'], kp['b1'], kp['gamma'], kp['beta'], kp['w2'], kp['b2'],
      kp['shift'])

    out = jnp.transpose(out_flat.reshape(L, B, O), (1, 0, 2))
    u = jnp.transpose(u_flat.reshape(L, B, 3), (1, 0, 2))
    return out, u


# --------------------------- main ------------------------------------------------
if __name__ == "__main__":
    # batch=2, time_step(seq)=8, hidden=32, memory_size=16, output_size=4, num_layers=2
    B, L, H, M, O, NL = 2, 8, 32, 16, 4, 2

    key = jax.random.PRNGKey(0)
    k_params, k_x = jax.random.split(key)
    params = make_params(k_params, H, M, O, L, NL)
    kparams = pack_params(params)

    encoder_x = jax.random.normal(k_x, (B, L, 1), F32)

    fwd = jax.jit(memnn_forward)
    out, u = fwd(kparams, encoder_x)   # decoder_x=None -> zeros_like(encoder_x)
    jax.block_until_ready((out, u))

    assert out.shape == (B, L, O), out.shape
    assert u.shape == (B, L, 3), u.shape
    assert bool(jnp.all(jnp.isfinite(out))) and bool(jnp.all(jnp.isfinite(u)))
    print("KERNEL_OK")
</pallas_src>

<mosaic_0001>
module attributes {stable_mosaic.version = 11 : i64} {
  func.func @_memnn_fused_kernel(%arg0: memref<8x2x32xf32, #tpu.memory_space<vmem>>, %arg1: memref<8x2x32xf32, #tpu.memory_space<vmem>>, %arg2: memref<2x32x96xbf16, #tpu.memory_space<vmem>>, %arg3: memref<2x32x96xbf16, #tpu.memory_space<vmem>>, %arg4: memref<2x1x96xf32, #tpu.memory_space<vmem>>, %arg5: memref<2x1x32xf32, #tpu.memory_space<vmem>>, %arg6: memref<2x32x128xbf16, #tpu.memory_space<vmem>>, %arg7: memref<2x32x128xbf16, #tpu.memory_space<vmem>>, %arg8: memref<2x1x128xf32, #tpu.memory_space<vmem>>, %arg9: memref<8x16x32xbf16, #tpu.memory_space<vmem>>, %arg10: memref<8x16x3xf32, #tpu.memory_space<vmem>>, %arg11: memref<32x32xbf16, #tpu.memory_space<vmem>>, %arg12: memref<1x32xf32, #tpu.memory_space<vmem>>, %arg13: memref<1x32xf32, #tpu.memory_space<vmem>>, %arg14: memref<1x32xf32, #tpu.memory_space<vmem>>, %arg15: memref<32x4xbf16, #tpu.memory_space<vmem>>, %arg16: memref<1x4xf32, #tpu.memory_space<vmem>>, %arg17: memref<1xf32, #tpu.memory_space<smem>>, %arg18: memref<16x4xf32, #tpu.memory_space<vmem>>, %arg19: memref<16x3xf32, #tpu.memory_space<vmem>>) attributes {dimension_semantics = [], scalar_prefetch = 0 : i64, scratch_operands = 0 : i64, tpu.core_type = #tpu.core_type<tc>} {
    %cst = arith.constant 0.000000e+00 : f32
    %0 = vector.broadcast %cst : f32 to vector<2x32xf32>
    %c0 = arith.constant 0 : index
    %c0_0 = arith.constant 0 : index
    %c0_1 = arith.constant 0 : index
    %1 = vector.load %arg0[%c0, %c0_0, %c0_1] : memref<8x2x32xf32, #tpu.memory_space<vmem>>, vector<8x2x32xf32>
    %2 = vector.shape_cast %1 : vector<8x2x32xf32> to vector<16x32xf32>
    %3 = arith.truncf %2 : vector<16x32xf32> to vector<16x32xbf16>
    %c0_2 = arith.constant 0 : index
    %c0_3 = arith.constant 0 : index
    %c0_4 = arith.constant 0 : index
    %4 = vector.load %arg1[%c0_2, %c0_3, %c0_4] : memref<8x2x32xf32, #tpu.memory_space<vmem>>, vector<8x2x32xf32>
    %5 = vector.shape_cast %4 : vector<8x2x32xf32> to vector<16x32xf32>
    %6 = arith.truncf %5 : vector<16x32xf32> to vector<16x32xbf16>
    %c0_5 = arith.constant 0 : index
    %c0_6 = arith.constant 0 : index
    %c0_7 = arith.constant 0 : index
    %7 = vector.load %arg2[%c0_5, %c0_6, %c0_7] : memref<2x32x96xbf16, #tpu.memory_space<vmem>>, vector<1x32x96xbf16>
    %8 = vector.shape_cast %7 : vector<1x32x96xbf16> to vector<32x96xbf16>
    %cst_8 = arith.constant dense<0.000000e+00> : vector<16x96xf32>
    %9 = tpu.matmul %3, %8, %cst_8 {dimension_numbers = #tpu.dot_dimension_numbers<[1], [0], [0], [1], [0, 0, 1, 1], [], []>} : vector<16x32xbf16>, vector<32x96xbf16>, vector<16x96xf32> -> vector<16x96xf32>
    %c0_9 = arith.constant 0 : index
    %c0_10 = arith.constant 0 : index
    %c0_11 = arith.constant 0 : index
    %10 = vector.load %arg4[%c0_9, %c0_10, %c0_11] : memref<2x1x96xf32, #tpu.memory_space<vmem>>, vector<1x1x96xf32>
    %11 = vector.shape_cast %10 : vector<1x1x96xf32> to vector<1x96xf32>
    %12 = vector.broadcast %11 : vector<1x96xf32> to vector<16x96xf32>
    %13 = arith.addf %9, %12 : vector<16x96xf32>
    %14 = vector.shape_cast %13 : vector<16x96xf32> to vector<8x2x96xf32>
    %15 = vector.extract_strided_slice %14 {offsets = [0, 0, 0], sizes = [8, 2, 32], strides = [1, 1, 1]} : vector<8x2x96xf32> to vector<8x2x32xf32>
    %16 = vector.extract_strided_slice %14 {offsets = [0, 0, 32], sizes = [8, 2, 32], strides = [1, 1, 1]} : vector<8x2x96xf32> to vector<8x2x32xf32>
    %17 = vector.extract_strided_slice %14 {offsets = [0, 0, 64], sizes = [8, 2, 32], strides = [1, 1, 1]} : vector<8x2x96xf32> to vector<8x2x32xf32>
    %c0_12 = arith.constant 0 : index
    %c0_13 = arith.constant 0 : index
    %c0_14 = arith.constant 0 : index
    %18 = vector.load %arg3[%c0_12, %c0_13, %c0_14] : memref<2x32x96xbf16, #tpu.memory_space<vmem>>, vector<1x32x96xbf16>
    %19 = vector.shape_cast %18 : vector<1x32x96xbf16> to vector<32x96xbf16>
    %c0_15 = arith.constant 0 : index
    %c0_16 = arith.constant 0 : index
    %c0_17 = arith.constant 0 : index
    %20 = vector.load %arg5[%c0_15, %c0_16, %c0_17] : memref<2x1x32xf32, #tpu.memory_space<vmem>>, vector<1x1x32xf32>
    %21 = vector.shape_cast %20 : vector<1x1x32xf32> to vector<1x32xf32>
    %22 = arith.truncf %0 : vector<2x32xf32> to vector<2x32xbf16>
    %cst_18 = arith.constant dense<0.000000e+00> : vector<2x96xf32>
    %23 = tpu.matmul %22, %19, %cst_18 {dimension_numbers = #tpu.dot_dimension_numbers<[1], [0], [0], [1], [0, 0, 1, 1], [], []>} : vector<2x32xbf16>, vector<32x96xbf16>, vector<2x96xf32> -> vector<2x96xf32>
    %24 = vector.extract_strided_slice %15 {offsets = [0, 0, 0], sizes = [1, 2, 32], strides = [1, 1, 1]} : vector<8x2x32xf32> to vector<1x2x32xf32>
    %25 = vector.shape_cast %24 : vector<1x2x32xf32> to vector<2x32xf32>
    %26 = vector.extract_strided_slice %23 {offsets = [0, 0], sizes = [2, 32], strides = [1, 1]} : vector<2x96xf32> to vector<2x32xf32>
    %27 = arith.addf %25, %26 : vector<2x32xf32>
    %28 = arith.negf %27 : vector<2x32xf32>
    %29 = math.exp %28 : vector<2x32xf32>
    %cst_19 = arith.constant 1.000000e+00 : f32
    %30 = vector.broadcast %cst_19 : f32 to vector<2x32xf32>
    %31 = arith.addf %30, %29 : vector<2x32xf32>
    %32 = arith.divf %30, %31 : vector<2x32xf32>
    %33 = vector.extract_strided_slice %16 {offsets = [0, 0, 0], sizes = [1, 2, 32], strides = [1, 1, 1]} : vector<8x2x32xf32> to vector<1x2x32xf32>
    %34 = vector.shape_cast %33 : vector<1x2x32xf32> to vector<2x32xf32>
    %35 = vector.extract_strided_slice %23 {offsets = [0, 32], sizes = [2, 32], strides = [1, 1]} : vector<2x96xf32> to vector<2x32xf32>
    %36 = arith.addf %34, %35 : vector<2x32xf32>
    %37 = arith.negf %36 : vector<2x32xf32>
    %38 = math.exp %37 : vector<2x32xf32>
    %cst_20 = arith.constant 1.000000e+00 : f32
    %39 = vector.broadcast %cst_20 : f32 to vector<2x32xf32>
    %40 = arith.addf %39, %38 : vector<2x32xf32>
    %41 = arith.divf %39, %40 : vector<2x32xf32>
    %42 = vector.extract_strided_slice %17 {offsets = [0, 0, 0], sizes = [1, 2, 32], strides = [1, 1, 1]} : vector<8x2x32xf32> to vector<1x2x32xf32>
    %43 = vector.shape_cast %42 : vector<1x2x32xf32> to vector<2x32xf32>
    %44 = vector.extract_strided_slice %23 {offsets = [0, 64], sizes = [2, 32], strides = [1, 1]} : vector<2x96xf32> to vector<2x32xf32>
    %45 = vector.broadcast %21 : vector<1x32xf32> to vector<2x32xf32>
    %46 = arith.addf %44, %45 : vector<2x32xf32>
    %47 = arith.mulf %32, %46 : vector<2x32xf32>
    %48 = arith.addf %43, %47 : vector<2x32xf32>
    %49 = math.tanh %48 : vector<2x32xf32>
    %cst_21 = arith.constant 1.000000e+00 : f32
    %50 = vector.broadcast %cst_21 : f32 to vector<2x32xf32>
    %51 = arith.subf %50, %41 : vector<2x32xf32>
    %52 = arith.mulf %51, %49 : vector<2x32xf32>
    %53 = arith.mulf %41, %0 : vector<2x32xf32>
    %54 = arith.addf %52, %53 : vector<2x32xf32>
    %55 = arith.truncf %54 : vector<2x32xf32> to vector<2x32xbf16>
    %cst_22 = arith.constant dense<0.000000e+00> : vector<2x96xf32>
    %56 = tpu.matmul %55, %19, %cst_22 {dimension_numbers = #tpu.dot_dimension_numbers<[1], [0], [0], [1], [0, 0, 1, 1], [], []>} : vector<2x32xbf16>, vector<32x96xbf16>, vector<2x96xf32> -> vector<2x96xf32>
    %57 = vector.extract_strided_slice %15 {offsets = [1, 0, 0], sizes = [1, 2, 32], strides = [1, 1, 1]} : vector<8x2x32xf32> to vector<1x2x32xf32>
    %58 = vector.shape_cast %57 : vector<1x2x32xf32> to vector<2x32xf32>
    %59 = vector.extract_strided_slice %56 {offsets = [0, 0], sizes = [2, 32], strides = [1, 1]} : vector<2x96xf32> to vector<2x32xf32>
    %60 = arith.addf %58, %59 : vector<2x32xf32>
    %61 = arith.negf %60 : vector<2x32xf32>
    %62 = math.exp %61 : vector<2x32xf32>
    %cst_23 = arith.constant 1.000000e+00 : f32
    %63 = vector.broadcast %cst_23 : f32 to vector<2x32xf32>
    %64 = arith.addf %63, %62 : vector<2x32xf32>
    %65 = arith.divf %63, %64 : vector<2x32xf32>
    %66 = vector.extract_strided_slice %16 {offsets = [1, 0, 0], sizes = [1, 2, 32], strides = [1, 1, 1]} : vector<8x2x32xf32> to vector<1x2x32xf32>
    %67 = vector.shape_cast %66 : vector<1x2x32xf32> to vector<2x32xf32>
    %68 = vector.extract_strided_slice %56 {offsets = [0, 32], sizes = [2, 32], strides = [1, 1]} : vector<2x96xf32> to vector<2x32xf32>
    %69 = arith.addf %67, %68 : vector<2x32xf32>
    %70 = arith.negf %69 : vector<2x32xf32>
    %71 = math.exp %70 : vector<2x32xf32>
    %cst_24 = arith.constant 1.000000e+00 : f32
    %72 = vector.broadcast %cst_24 : f32 to vector<2x32xf32>
    %73 = arith.addf %72, %71 : vector<2x32xf32>
    %74 = arith.divf %72, %73 : vector<2x32xf32>
    %75 = vector.extract_strided_slice %17 {offsets = [1, 0, 0], sizes = [1, 2, 32], strides = [1, 1, 1]} : vector<8x2x32xf32> to vector<1x2x32xf32>
    %76 = vector.shape_cast %75 : vector<1x2x32xf32> to vector<2x32xf32>
    %77 = vector.extract_strided_slice %56 {offsets = [0, 64], sizes = [2, 32], strides = [1, 1]} : vector<2x96xf32> to vector<2x32xf32>
    %78 = vector.broadcast %21 : vector<1x32xf32> to vector<2x32xf32>
    %79 = arith.addf %77, %78 : vector<2x32xf32>
    %80 = arith.mulf %65, %79 : vector<2x32xf32>
    %81 = arith.addf %76, %80 : vector<2x32xf32>
    %82 = math.tanh %81 : vector<2x32xf32>
    %cst_25 = arith.constant 1.000000e+00 : f32
    %83 = vector.broadcast %cst_25 : f32 to vector<2x32xf32>
    %84 = arith.subf %83, %74 : vector<2x32xf32>
    %85 = arith.mulf %84, %82 : vector<2x32xf32>
    %86 = arith.mulf %74, %54 : vector<2x32xf32>
    %87 = arith.addf %85, %86 : vector<2x32xf32>
    %88 = arith.truncf %87 : vector<2x32xf32> to vector<2x32xbf16>
    %cst_26 = arith.constant dense<0.000000e+00> : vector<2x96xf32>
    %89 = tpu.matmul %88, %19, %cst_26 {dimension_numbers = #tpu.dot_dimension_numbers<[1], [0], [0], [1], [0, 0, 1, 1], [], []>} : vector<2x32xbf16>, vector<32x96xbf16>, vector<2x96xf32> -> vector<2x96xf32>
    %90 = vector.extract_strided_slice %15 {offsets = [2, 0, 0], sizes = [1, 2, 32], strides = [1, 1, 1]} : vector<8x2x32xf32> to vector<1x2x32xf32>
    %91 = vector.shape_cast %90 : vector<1x2x32xf32> to vector<2x32xf32>
    %92 = vector.extract_strided_slice %89 {offsets = [0, 0], sizes = [2, 32], strides = [1, 1]} : vector<2x96xf32> to vector<2x32xf32>
    %93 = arith.addf %91, %92 : vector<2x32xf32>
    %94 = arith.negf %93 : vector<2x32xf32>
    %95 = math.exp %94 : vector<2x32xf32>
    %cst_27 = arith.constant 1.000000e+00 : f32
    %96 = vector.broadcast %cst_27 : f32 to vector<2x32xf32>
    %97 = arith.addf %96, %95 : vector<2x32xf32>
    %98 = arith.divf %96, %97 : vector<2x32xf32>
    %99 = vector.extract_strided_slice %16 {offsets = [2, 0, 0], sizes = [1, 2, 32], strides = [1, 1, 1]} : vector<8x2x32xf32> to vector<1x2x32xf32>
    %100 = vector.shape_cast %99 : vector<1x2x32xf32> to vector<2x32xf32>
    %101 = vector.extract_strided_slice %89 {offsets = [0, 32], sizes = [2, 32], strides = [1, 1]} : vector<2x96xf32> to vector<2x32xf32>
    %102 = arith.addf %100, %101 : vector<2x32xf32>
    %103 = arith.negf %102 : vector<2x32xf32>
    %104 = math.exp %103 : vector<2x32xf32>
    %cst_28 = arith.constant 1.000000e+00 : f32
    %105 = vector.broadcast %cst_28 : f32 to vector<2x32xf32>
    %106 = arith.addf %105, %104 : vector<2x32xf32>
    %107 = arith.divf %105, %106 : vector<2x32xf32>
    %108 = vector.extract_strided_slice %17 {offsets = [2, 0, 0], sizes = [1, 2, 32], strides = [1, 1, 1]} : vector<8x2x32xf32> to vector<1x2x32xf32>
    %109 = vector.shape_cast %108 : vector<1x2x32xf32> to vector<2x32xf32>
    %110 = vector.extract_strided_slice %89 {offsets = [0, 64], sizes = [2, 32], strides = [1, 1]} : vector<2x96xf32> to vector<2x32xf32>
    %111 = vector.broadcast %21 : vector<1x32xf32> to vector<2x32xf32>
    %112 = arith.addf %110, %111 : vector<2x32xf32>
    %113 = arith.mulf %98, %112 : vector<2x32xf32>
    %114 = arith.addf %109, %113 : vector<2x32xf32>
    %115 = math.tanh %114 : vector<2x32xf32>
    %cst_29 = arith.constant 1.000000e+00 : f32
    %116 = vector.broadcast %cst_29 : f32 to vector<2x32xf32>
    %117 = arith.subf %116, %107 : vector<2x32xf32>
    %118 = arith.mulf %117, %115 : vector<2x32xf32>
    %119 = arith.mulf %107, %87 : vector<2x32xf32>
    %120 = arith.addf %118, %119 : vector<2x32xf32>
    %121 = arith.truncf %120 : vector<2x32xf32> to vector<2x32xbf16>
    %cst_30 = arith.constant dense<0.000000e+00> : vector<2x96xf32>
    %122 = tpu.matmul %121, %19, %cst_30 {dimension_numbers = #tpu.dot_dimension_numbers<[1], [0], [0], [1], [0, 0, 1, 1], [], []>} : vector<2x32xbf16>, vector<32x96xbf16>, vector<2x96xf32> -> vector<2x96xf32>
    %123 = vector.extract_strided_slice %15 {offsets = [3, 0, 0], sizes = [1, 2, 32], strides = [1, 1, 1]} : vector<8x2x32xf32> to vector<1x2x32xf32>
    %124 = vector.shape_cast %123 : vector<1x2x32xf32> to vector<2x32xf32>
    %125 = vector.extract_strided_slice %122 {offsets = [0, 0], sizes = [2, 32], strides = [1, 1]} : vector<2x96xf32> to vector<2x32xf32>
    %126 = arith.addf %124, %125 : vector<2x32xf32>
    %127 = arith.negf %126 : vector<2x32xf32>
    %128 = math.exp %127 : vector<2x32xf32>
    %cst_31 = arith.constant 1.000000e+00 : f32
    %129 = vector.broadcast %cst_31 : f32 to vector<2x32xf32>
    %130 = arith.addf %129, %128 : vector<2x32xf32>
    %131 = arith.divf %129, %130 : vector<2x32xf32>
    %132 = vector.extract_strided_slice %16 {offsets = [3, 0, 0], sizes = [1, 2, 32], strides = [1, 1, 1]} : vector<8x2x32xf32> to vector<1x2x32xf32>
    %133 = vector.shape_cast %132 : vector<1x2x32xf32> to vector<2x32xf32>
    %134 = vector.extract_strided_slice %122 {offsets = [0, 32], sizes = [2, 32], strides = [1, 1]} : vector<2x96xf32> to vector<2x32xf32>
    %135 = arith.addf %133, %134 : vector<2x32xf32>
    %136 = arith.negf %135 : vector<2x32xf32>
    %137 = math.exp %136 : vector<2x32xf32>
    %cst_32 = arith.constant 1.000000e+00 : f32
    %138 = vector.broadcast %cst_32 : f32 to vector<2x32xf32>
    %139 = arith.addf %138, %137 : vector<2x32xf32>
    %140 = arith.divf %138, %139 : vector<2x32xf32>
    %141 = vector.extract_strided_slice %17 {offsets = [3, 0, 0], sizes = [1, 2, 32], strides = [1, 1, 1]} : vector<8x2x32xf32> to vector<1x2x32xf32>
    %142 = vector.shape_cast %141 : vector<1x2x32xf32> to vector<2x32xf32>
    %143 = vector.extract_strided_slice %122 {offsets = [0, 64], sizes = [2, 32], strides = [1, 1]} : vector<2x96xf32> to vector<2x32xf32>
    %144 = vector.broadcast %21 : vector<1x32xf32> to vector<2x32xf32>
    %145 = arith.addf %143, %144 : vector<2x32xf32>
    %146 = arith.mulf %131, %145 : vector<2x32xf32>
    %147 = arith.addf %142, %146 : vector<2x32xf32>
    %148 = math.tanh %147 : vector<2x32xf32>
    %cst_33 = arith.constant 1.000000e+00 : f32
    %149 = vector.broadcast %cst_33 : f32 to vector<2x32xf32>
    %150 = arith.subf %149, %140 : vector<2x32xf32>
    %151 = arith.mulf %150, %148 : vector<2x32xf32>
    %152 = arith.mulf %140, %120 : vector<2x32xf32>
    %153 = arith.addf %151, %152 : vector<2x32xf32>
    %154 = arith.truncf %153 : vector<2x32xf32> to vector<2x32xbf16>
    %cst_34 = arith.constant dense<0.000000e+00> : vector<2x96xf32>
    %155 = tpu.matmul %154, %19, %cst_34 {dimension_numbers = #tpu.dot_dimension_numbers<[1], [0], [0], [1], [0, 0, 1, 1], [], []>} : vector<2x32xbf16>, vector<32x96xbf16>, vector<2x96xf32> -> vector<2x96xf32>
    %156 = vector.extract_strided_slice %15 {offsets = [4, 0, 0], sizes = [1, 2, 32], strides = [1, 1, 1]} : vector<8x2x32xf32> to vector<1x2x32xf32>
    %157 = vector.shape_cast %156 : vector<1x2x32xf32> to vector<2x32xf32>
    %158 = vector.extract_strided_slice %155 {offsets = [0, 0], sizes = [2, 32], strides = [1, 1]} : vector<2x96xf32> to vector<2x32xf32>
    %159 = arith.addf %157, %158 : vector<2x32xf32>
    %160 = arith.negf %159 : vector<2x32xf32>
    %161 = math.exp %160 : vector<2x32xf32>
    %cst_35 = arith.constant 1.000000e+00 : f32
    %162 = vector.broadcast %cst_35 : f32 to vector<2x32xf32>
    %163 = arith.addf %162, %161 : vector<2x32xf32>
    %164 = arith.divf %162, %163 : vector<2x32xf32>
    %165 = vector.extract_strided_slice %16 {offsets = [4, 0, 0], sizes = [1, 2, 32], strides = [1, 1, 1]} : vector<8x2x32xf32> to vector<1x2x32xf32>
    %166 = vector.shape_cast %165 : vector<1x2x32xf32> to vector<2x32xf32>
    %167 = vector.extract_strided_slice %155 {offsets = [0, 32], sizes = [2, 32], strides = [1, 1]} : vector<2x96xf32> to vector<2x32xf32>
    %168 = arith.addf %166, %167 : vector<2x32xf32>
    %169 = arith.negf %168 : vector<2x32xf32>
    %170 = math.exp %169 : vector<2x32xf32>
    %cst_36 = arith.constant 1.000000e+00 : f32
    %171 = vector.broadcast %cst_36 : f32 to vector<2x32xf32>
    %172 = arith.addf %171, %170 : vector<2x32xf32>
    %173 = arith.divf %171, %172 : vector<2x32xf32>
    %174 = vector.extract_strided_slice %17 {offsets = [4, 0, 0], sizes = [1, 2, 32], strides = [1, 1, 1]} : vector<8x2x32xf32> to vector<1x2x32xf32>
    %175 = vector.shape_cast %174 : vector<1x2x32xf32> to vector<2x32xf32>
    %176 = vector.extract_strided_slice %155 {offsets = [0, 64], sizes = [2, 32], strides = [1, 1]} : vector<2x96xf32> to vector<2x32xf32>
    %177 = vector.broadcast %21 : vector<1x32xf32> to vector<2x32xf32>
    %178 = arith.addf %176, %177 : vector<2x32xf32>
    %179 = arith.mulf %164, %178 : vector<2x32xf32>
    %180 = arith.addf %175, %179 : vector<2x32xf32>
    %181 = math.tanh %180 : vector<2x32xf32>
    %cst_37 = arith.constant 1.000000e+00 : f32
    %182 = vector.broadcast %cst_37 : f32 to vector<2x32xf32>
    %183 = arith.subf %182, %173 : vector<2x32xf32>
    %184 = arith.mulf %183, %181 : vector<2x32xf32>
    %185 = arith.mulf %173, %153 : vector<2x32xf32>
    %186 = arith.addf %184, %185 : vector<2x32xf32>
    %187 = arith.truncf %186 : vector<2x32xf32> to vector<2x32xbf16>
    %cst_38 = arith.constant dense<0.000000e+00> : vector<2x96xf32>
    %188 = tpu.matmul %187, %19, %cst_38 {dimension_numbers = #tpu.dot_dimension_numbers<[1], [0], [0], [1], [0, 0, 1, 1], [], []>} : vector<2x32xbf16>, vector<32x96xbf16>, vector<2x96xf32> -> vector<2x96xf32>
    %189 = vector.extract_strided_slice %15 {offsets = [5, 0, 0], sizes = [1, 2, 32], strides = [1, 1, 1]} : vector<8x2x32xf32> to vector<1x2x32xf32>
    %190 = vector.shape_cast %189 : vector<1x2x32xf32> to vector<2x32xf32>
    %191 = vector.extract_strided_slice %188 {offsets = [0, 0], sizes = [2, 32], strides = [1, 1]} : vector<2x96xf32> to vector<2x32xf32>
    %192 = arith.addf %190, %191 : vector<2x32xf32>
    %193 = arith.negf %192 : vector<2x32xf32>
    %194 = math.exp %193 : vector<2x32xf32>
    %cst_39 = arith.constant 1.000000e+00 : f32
    %195 = vector.broadcast %cst_39 : f32 to vector<2x32xf32>
    %196 = arith.addf %195, %194 : vector<2x32xf32>
    %197 = arith.divf %195, %196 : vector<2x32xf32>
    %198 = vector.extract_strided_slice %16 {offsets = [5, 0, 0], sizes = [1, 2, 32], strides = [1, 1, 1]} : vector<8x2x32xf32> to vector<1x2x32xf32>
    %199 = vector.shape_cast %198 : vector<1x2x32xf32> to vector<2x32xf32>
    %200 = vector.extract_strided_slice %188 {offsets = [0, 32], sizes = [2, 32], strides = [1, 1]} : vector<2x96xf32> to vector<2x32xf32>
    %201 = arith.addf %199, %200 : vector<2x32xf32>
    %202 = arith.negf %201 : vector<2x32xf32>
    %203 = math.exp %202 : vector<2x32xf32>
    %cst_40 = arith.constant 1.000000e+00 : f32
    %204 = vector.broadcast %cst_40 : f32 to vector<2x32xf32>
    %205 = arith.addf %204, %203 : vector<2x32xf32>
    %206 = arith.divf %204, %205 : vector<2x32xf32>
    %207 = vector.extract_strided_slice %17 {offsets = [5, 0, 0], sizes = [1, 2, 32], strides = [1, 1, 1]} : vector<8x2x32xf32> to vector<1x2x32xf32>
    %208 = vector.shape_cast %207 : vector<1x2x32xf32> to vector<2x32xf32>
    %209 = vector.extract_strided_slice %188 {offsets = [0, 64], sizes = [2, 32], strides = [1, 1]} : vector<2x96xf32> to vector<2x32xf32>
    %210 = vector.broadcast %21 : vector<1x32xf32> to vector<2x32xf32>
    %211 = arith.addf %209, %210 : vector<2x32xf32>
    %212 = arith.mulf %197, %211 : vector<2x32xf32>
    %213 = arith.addf %208, %212 : vector<2x32xf32>
    %214 = math.tanh %213 : vector<2x32xf32>
    %cst_41 = arith.constant 1.000000e+00 : f32
    %215 = vector.broadcast %cst_41 : f32 to vector<2x32xf32>
    %216 = arith.subf %215, %206 : vector<2x32xf32>
    %217 = arith.mulf %216, %214 : vector<2x32xf32>
    %218 = arith.mulf %206, %186 : vector<2x32xf32>
    %219 = arith.addf %217, %218 : vector<2x32xf32>
    %220 = arith.truncf %219 : vector<2x32xf32> to vector<2x32xbf16>
    %cst_42 = arith.constant dense<0.000000e+00> : vector<2x96xf32>
    %221 = tpu.matmul %220, %19, %cst_42 {dimension_numbers = #tpu.dot_dimension_numbers<[1], [0], [0], [1], [0, 0, 1, 1], [], []>} : vector<2x32xbf16>, vector<32x96xbf16>, vector<2x96xf32> -> vector<2x96xf32>
    %222 = vector.extract_strided_slice %15 {offsets = [6, 0, 0], sizes = [1, 2, 32], strides = [1, 1, 1]} : vector<8x2x32xf32> to vector<1x2x32xf32>
    %223 = vector.shape_cast %222 : vector<1x2x32xf32> to vector<2x32xf32>
    %224 = vector.extract_strided_slice %221 {offsets = [0, 0], sizes = [2, 32], strides = [1, 1]} : vector<2x96xf32> to vector<2x32xf32>
    %225 = arith.addf %223, %224 : vector<2x32xf32>
    %226 = arith.negf %225 : vector<2x32xf32>
    %227 = math.exp %226 : vector<2x32xf32>
    %cst_43 = arith.constant 1.000000e+00 : f32
    %228 = vector.broadcast %cst_43 : f32 to vector<2x32xf32>
    %229 = arith.addf %228, %227 : vector<2x32xf32>
    %230 = arith.divf %228, %229 : vector<2x32xf32>
    %231 = vector.extract_strided_slice %16 {offsets = [6, 0, 0], sizes = [1, 2, 32], strides = [1, 1, 1]} : vector<8x2x32xf32> to vector<1x2x32xf32>
    %232 = vector.shape_cast %231 : vector<1x2x32xf32> to vector<2x32xf32>
    %233 = vector.extract_strided_slice %221 {offsets = [0, 32], sizes = [2, 32], strides = [1, 1]} : vector<2x96xf32> to vector<2x32xf32>
    %234 = arith.addf %232, %233 : vector<2x32xf32>
    %235 = arith.negf %234 : vector<2x32xf32>
    %236 = math.exp %235 : vector<2x32xf32>
    %cst_44 = arith.constant 1.000000e+00 : f32
    %237 = vector.broadcast %cst_44 : f32 to vector<2x32xf32>
    %238 = arith.addf %237, %236 : vector<2x32xf32>
    %239 = arith.divf %237, %238 : vector<2x32xf32>
    %240 = vector.extract_strided_slice %17 {offsets = [6, 0, 0], sizes = [1, 2, 32], strides = [1, 1, 1]} : vector<8x2x32xf32> to vector<1x2x32xf32>
    %241 = vector.shape_cast %240 : vector<1x2x32xf32> to vector<2x32xf32>
    %242 = vector.extract_strided_slice %221 {offsets = [0, 64], sizes = [2, 32], strides = [1, 1]} : vector<2x96xf32> to vector<2x32xf32>
    %243 = vector.broadcast %21 : vector<1x32xf32> to vector<2x32xf32>
    %244 = arith.addf %242, %243 : vector<2x32xf32>
    %245 = arith.mulf %230, %244 : vector<2x32xf32>
    %246 = arith.addf %241, %245 : vector<2x32xf32>
    %247 = math.tanh %246 : vector<2x32xf32>
    %cst_45 = arith.constant 1.000000e+00 : f32
    %248 = vector.broadcast %cst_45 : f32 to vector<2x32xf32>
    %249 = arith.subf %248, %239 : vector<2x32xf32>
    %250 = arith.mulf %249, %247 : vector<2x32xf32>
    %251 = arith.mulf %239, %219 : vector<2x32xf32>
    %252 = arith.addf %250, %251 : vector<2x32xf32>
    %253 = arith.truncf %252 : vector<2x32xf32> to vector<2x32xbf16>
    %cst_46 = arith.constant dense<0.000000e+00> : vector<2x96xf32>
    %254 = tpu.matmul %253, %19, %cst_46 {dimension_numbers = #tpu.dot_dimension_numbers<[1], [0], [0], [1], [0, 0, 1, 1], [], []>} : vector<2x32xbf16>, vector<32x96xbf16>, vector<2x96xf32> -> vector<2x96xf32>
    %255 = vector.extract_strided_slice %15 {offsets = [7, 0, 0], sizes = [1, 2, 32], strides = [1, 1, 1]} : vector<8x2x32xf32> to vector<1x2x32xf32>
    %256 = vector.shape_cast %255 : vector<1x2x32xf32> to vector<2x32xf32>
    %257 = vector.extract_strided_slice %254 {offsets = [0, 0], sizes = [2, 32], strides = [1, 1]} : vector<2x96xf32> to vector<2x32xf32>
    %258 = arith.addf %256, %257 : vector<2x32xf32>
    %259 = arith.negf %258 : vector<2x32xf32>
    %260 = math.exp %259 : vector<2x32xf32>
    %cst_47 = arith.constant 1.000000e+00 : f32
    %261 = vector.broadcast %cst_47 : f32 to vector<2x32xf32>
    %262 = arith.addf %261, %260 : vector<2x32xf32>
    %263 = arith.divf %261, %262 : vector<2x32xf32>
    %264 = vector.extract_strided_slice %16 {offsets = [7, 0, 0], sizes = [1, 2, 32], strides = [1, 1, 1]} : vector<8x2x32xf32> to vector<1x2x32xf32>
    %265 = vector.shape_cast %264 : vector<1x2x32xf32> to vector<2x32xf32>
    %266 = vector.extract_strided_slice %254 {offsets = [0, 32], sizes = [2, 32], strides = [1, 1]} : vector<2x96xf32> to vector<2x32xf32>
    %267 = arith.addf %265, %266 : vector<2x32xf32>
    %268 = arith.negf %267 : vector<2x32xf32>
    %269 = math.exp %268 : vector<2x32xf32>
    %cst_48 = arith.constant 1.000000e+00 : f32
    %270 = vector.broadcast %cst_48 : f32 to vector<2x32xf32>
    %271 = arith.addf %270, %269 : vector<2x32xf32>
    %272 = arith.divf %270, %271 : vector<2x32xf32>
    %273 = vector.extract_strided_slice %17 {offsets = [7, 0, 0], sizes = [1, 2, 32], strides = [1, 1, 1]} : vector<8x2x32xf32> to vector<1x2x32xf32>
    %274 = vector.shape_cast %273 : vector<1x2x32xf32> to vector<2x32xf32>
    %275 = vector.extract_strided_slice %254 {offsets = [0, 64], sizes = [2, 32], strides = [1, 1]} : vector<2x96xf32> to vector<2x32xf32>
    %276 = vector.broadcast %21 : vector<1x32xf32> to vector<2x32xf32>
    %277 = arith.addf %275, %276 : vector<2x32xf32>
    %278 = arith.mulf %263, %277 : vector<2x32xf32>
    %279 = arith.addf %274, %278 : vector<2x32xf32>
    %280 = math.tanh %279 : vector<2x32xf32>
    %cst_49 = arith.constant 1.000000e+00 : f32
    %281 = vector.broadcast %cst_49 : f32 to vector<2x32xf32>
    %282 = arith.subf %281, %272 : vector<2x32xf32>
    %283 = arith.mulf %282, %280 : vector<2x32xf32>
    %284 = arith.mulf %272, %252 : vector<2x32xf32>
    %285 = arith.addf %283, %284 : vector<2x32xf32>
    %286 = tpu.concatenate %54, %87, %120, %153, %186, %219, %252, %285 in 0 : vector<2x32xf32>, vector<2x32xf32>, vector<2x32xf32>, vector<2x32xf32>, vector<2x32xf32>, vector<2x32xf32>, vector<2x32xf32>, vector<2x32xf32> -> vector<16x32xf32>
    %287 = arith.truncf %286 : vector<16x32xf32> to vector<16x32xbf16>
    %c1 = arith.constant 1 : index
    %c0_50 = arith.constant 0 : index
    %c0_51 = arith.constant 0 : index
    %288 = vector.load %arg2[%c1, %c0_50, %c0_51] : memref<2x32x96xbf16, #tpu.memory_space<vmem>>, vector<1x32x96xbf16>
    %289 = vector.shape_cast %288 : vector<1x32x96xbf16> to vector<32x96xbf16>
    %cst_52 = arith.constant dense<0.000000e+00> : vector<16x96xf32>
    %290 = tpu.matmul %287, %289, %cst_52 {dimension_numbers = #tpu.dot_dimension_numbers<[1], [0], [0], [1], [0, 0, 1, 1], [], []>} : vector<16x32xbf16>, vector<32x96xbf16>, vector<16x96xf32> -> vector<16x96xf32>
    %c1_53 = arith.constant 1 : index
    %c0_54 = arith.constant 0 : index
    %c0_55 = arith.constant 0 : index
    %291 = vector.load %arg4[%c1_53, %c0_54, %c0_55] : memref<2x1x96xf32, #tpu.memory_space<vmem>>, vector<1x1x96xf32>
    %292 = vector.shape_cast %291 : vector<1x1x96xf32> to vector<1x96xf32>
    %293 = vector.broadcast %292 : vector<1x96xf32> to vector<16x96xf32>
    %294 = arith.addf %290, %293 : vector<16x96xf32>
    %295 = vector.shape_cast %294 : vector<16x96xf32> to vector<8x2x96xf32>
    %296 = vector.extract_strided_slice %295 {offsets = [0, 0, 0], sizes = [8, 2, 32], strides = [1, 1, 1]} : vector<8x2x96xf32> to vector<8x2x32xf32>
    %297 = vector.extract_strided_slice %295 {offsets = [0, 0, 32], sizes = [8, 2, 32], strides = [1, 1, 1]} : vector<8x2x96xf32> to vector<8x2x32xf32>
    %298 = vector.extract_strided_slice %295 {offsets = [0, 0, 64], sizes = [8, 2, 32], strides = [1, 1, 1]} : vector<8x2x96xf32> to vector<8x2x32xf32>
    %c1_56 = arith.constant 1 : index
    %c0_57 = arith.constant 0 : index
    %c0_58 = arith.constant 0 : index
    %299 = vector.load %arg3[%c1_56, %c0_57, %c0_58] : memref<2x32x96xbf16, #tpu.memory_space<vmem>>, vector<1x32x96xbf16>
    %300 = vector.shape_cast %299 : vector<1x32x96xbf16> to vector<32x96xbf16>
    %c1_59 = arith.constant 1 : index
    %c0_60 = arith.constant 0 : index
    %c0_61 = arith.constant 0 : index
    %301 = vector.load %arg5[%c1_59, %c0_60, %c0_61] : memref<2x1x32xf32, #tpu.memory_space<vmem>>, vector<1x1x32xf32>
    %302 = vector.shape_cast %301 : vector<1x1x32xf32> to vector<1x32xf32>
    %303 = arith.truncf %0 : vector<2x32xf32> to vector<2x32xbf16>
    %cst_62 = arith.constant dense<0.000000e+00> : vector<2x96xf32>
    %304 = tpu.matmul %303, %300, %cst_62 {dimension_numbers = #tpu.dot_dimension_numbers<[1], [0], [0], [1], [0, 0, 1, 1], [], []>} : vector<2x32xbf16>, vector<32x96xbf16>, vector<2x96xf32> -> vector<2x96xf32>
    %305 = vector.extract_strided_slice %296 {offsets = [0, 0, 0], sizes = [1, 2, 32], strides = [1, 1, 1]} : vector<8x2x32xf32> to vector<1x2x32xf32>
    %306 = vector.shape_cast %305 : vector<1x2x32xf32> to vector<2x32xf32>
    %307 = vector.extract_strided_slice %304 {offsets = [0, 0], sizes = [2, 32], strides = [1, 1]} : vector<2x96xf32> to vector<2x32xf32>
    %308 = arith.addf %306, %307 : vector<2x32xf32>
    %309 = arith.negf %308 : vector<2x32xf32>
    %310 = math.exp %309 : vector<2x32xf32>
    %cst_63 = arith.constant 1.000000e+00 : f32
    %311 = vector.broadcast %cst_63 : f32 to vector<2x32xf32>
    %312 = arith.addf %311, %310 : vector<2x32xf32>
    %313 = arith.divf %311, %312 : vector<2x32xf32>
    %314 = vector.extract_strided_slice %297 {offsets = [0, 0, 0], sizes = [1, 2, 32], strides = [1, 1, 1]} : vector<8x2x32xf32> to vector<1x2x32xf32>
    %315 = vector.shape_cast %314 : vector<1x2x32xf32> to vector<2x32xf32>
    %316 = vector.extract_strided_slice %304 {offsets = [0, 32], sizes = [2, 32], strides = [1, 1]} : vector<2x96xf32> to vector<2x32xf32>
    %317 = arith.addf %315, %316 : vector<2x32xf32>
    %318 = arith.negf %317 : vector<2x32xf32>
    %319 = math.exp %318 : vector<2x32xf32>
    %cst_64 = arith.constant 1.000000e+00 : f32
    %320 = vector.broadcast %cst_64 : f32 to vector<2x32xf32>
    %321 = arith.addf %320, %319 : vector<2x32xf32>
    %322 = arith.divf %320, %321 : vector<2x32xf32>
    %323 = vector.extract_strided_slice %298 {offsets = [0, 0, 0], sizes = [1, 2, 32], strides = [1, 1, 1]} : vector<8x2x32xf32> to vector<1x2x32xf32>
    %324 = vector.shape_cast %323 : vector<1x2x32xf32> to vector<2x32xf32>
    %325 = vector.extract_strided_slice %304 {offsets = [0, 64], sizes = [2, 32], strides = [1, 1]} : vector<2x96xf32> to vector<2x32xf32>
    %326 = vector.broadcast %302 : vector<1x32xf32> to vector<2x32xf32>
    %327 = arith.addf %325, %326 : vector<2x32xf32>
    %328 = arith.mulf %313, %327 : vector<2x32xf32>
    %329 = arith.addf %324, %328 : vector<2x32xf32>
    %330 = math.tanh %329 : vector<2x32xf32>
    %cst_65 = arith.constant 1.000000e+00 : f32
    %331 = vector.broadcast %cst_65 : f32 to vector<2x32xf32>
    %332 = arith.subf %331, %322 : vector<2x32xf32>
    %333 = arith.mulf %332, %330 : vector<2x32xf32>
    %334 = arith.mulf %322, %0 : vector<2x32xf32>
    %335 = arith.addf %333, %334 : vector<2x32xf32>
    %336 = arith.truncf %335 : vector<2x32xf32> to vector<2x32xbf16>
    %cst_66 = arith.constant dense<0.000000e+00> : vector<2x96xf32>
    %337 = tpu.matmul %336, %300, %cst_66 {dimension_numbers = #tpu.dot_dimension_numbers<[1], [0], [0], [1], [0, 0, 1, 1], [], []>} : vector<2x32xbf16>, vector<32x96xbf16>, vector<2x96xf32> -> vector<2x96xf32>
    %338 = vector.extract_strided_slice %296 {offsets = [1, 0, 0], sizes = [1, 2, 32], strides = [1, 1, 1]} : vector<8x2x32xf32> to vector<1x2x32xf32>
    %339 = vector.shape_cast %338 : vector<1x2x32xf32> to vector<2x32xf32>
    %340 = vector.extract_strided_slice %337 {offsets = [0, 0], sizes = [2, 32], strides = [1, 1]} : vector<2x96xf32> to vector<2x32xf32>
    %341 = arith.addf %339, %340 : vector<2x32xf32>
    %342 = arith.negf %341 : vector<2x32xf32>
    %343 = math.exp %342 : vector<2x32xf32>
    %cst_67 = arith.constant 1.000000e+00 : f32
    %344 = vector.broadcast %cst_67 : f32 to vector<2x32xf32>
    %345 = arith.addf %344, %343 : vector<2x32xf32>
    %346 = arith.divf %344, %345 : vector<2x32xf32>
    %347 = vector.extract_strided_slice %297 {offsets = [1, 0, 0], sizes = [1, 2, 32], strides = [1, 1, 1]} : vector<8x2x32xf32> to vector<1x2x32xf32>
    %348 = vector.shape_cast %347 : vector<1x2x32xf32> to vector<2x32xf32>
    %349 = vector.extract_strided_slice %337 {offsets = [0, 32], sizes = [2, 32], strides = [1, 1]} : vector<2x96xf32> to vector<2x32xf32>
    %350 = arith.addf %348, %349 : vector<2x32xf32>
    %351 = arith.negf %350 : vector<2x32xf32>
    %352 = math.exp %351 : vector<2x32xf32>
    %cst_68 = arith.constant 1.000000e+00 : f32
    %353 = vector.broadcast %cst_68 : f32 to vector<2x32xf32>
    %354 = arith.addf %353, %352 : vector<2x32xf32>
    %355 = arith.divf %353, %354 : vector<2x32xf32>
    %356 = vector.extract_strided_slice %298 {offsets = [1, 0, 0], sizes = [1, 2, 32], strides = [1, 1, 1]} : vector<8x2x32xf32> to vector<1x2x32xf32>
    %357 = vector.shape_cast %356 : vector<1x2x32xf32> to vector<2x32xf32>
    %358 = vector.extract_strided_slice %337 {offsets = [0, 64], sizes = [2, 32], strides = [1, 1]} : vector<2x96xf32> to vector<2x32xf32>
    %359 = vector.broadcast %302 : vector<1x32xf32> to vector<2x32xf32>
    %360 = arith.addf %358, %359 : vector<2x32xf32>
    %361 = arith.mulf %346, %360 : vector<2x32xf32>
    %362 = arith.addf %357, %361 : vector<2x32xf32>
    %363 = math.tanh %362 : vector<2x32xf32>
    %cst_69 = arith.constant 1.000000e+00 : f32
    %364 = vector.broadcast %cst_69 : f32 to vector<2x32xf32>
    %365 = arith.subf %364, %355 : vector<2x32xf32>
    %366 = arith.mulf %365, %363 : vector<2x32xf32>
    %367 = arith.mulf %355, %335 : vector<2x32xf32>
    %368 = arith.addf %366, %367 : vector<2x32xf32>
    %369 = arith.truncf %368 : vector<2x32xf32> to vector<2x32xbf16>
    %cst_70 = arith.constant dense<0.000000e+00> : vector<2x96xf32>
    %370 = tpu.matmul %369, %300, %cst_70 {dimension_numbers = #tpu.dot_dimension_numbers<[1], [0], [0], [1], [0, 0, 1, 1], [], []>} : vector<2x32xbf16>, vector<32x96xbf16>, vector<2x96xf32> -> vector<2x96xf32>
    %371 = vector.extract_strided_slice %296 {offsets = [2, 0, 0], sizes = [1, 2, 32], strides = [1, 1, 1]} : vector<8x2x32xf32> to vector<1x2x32xf32>
    %372 = vector.shape_cast %371 : vector<1x2x32xf32> to vector<2x32xf32>
    %373 = vector.extract_strided_slice %370 {offsets = [0, 0], sizes = [2, 32], strides = [1, 1]} : vector<2x96xf32> to vector<2x32xf32>
    %374 = arith.addf %372, %373 : vector<2x32xf32>
    %375 = arith.negf %374 : vector<2x32xf32>
    %376 = math.exp %375 : vector<2x32xf32>
    %cst_71 = arith.constant 1.000000e+00 : f32
    %377 = vector.broadcast %cst_71 : f32 to vector<2x32xf32>
    %378 = arith.addf %377, %376 : vector<2x32xf32>
    %379 = arith.divf %377, %378 : vector<2x32xf32>
    %380 = vector.extract_strided_slice %297 {offsets = [2, 0, 0], sizes = [1, 2, 32], strides = [1, 1, 1]} : vector<8x2x32xf32> to vector<1x2x32xf32>
    %381 = vector.shape_cast %380 : vector<1x2x32xf32> to vector<2x32xf32>
    %382 = vector.extract_strided_slice %370 {offsets = [0, 32], sizes = [2, 32], strides = [1, 1]} : vector<2x96xf32> to vector<2x32xf32>
    %383 = arith.addf %381, %382 : vector<2x32xf32>
    %384 = arith.negf %383 : vector<2x32xf32>
    %385 = math.exp %384 : vector<2x32xf32>
    %cst_72 = arith.constant 1.000000e+00 : f32
    %386 = vector.broadcast %cst_72 : f32 to vector<2x32xf32>
    %387 = arith.addf %386, %385 : vector<2x32xf32>
    %388 = arith.divf %386, %387 : vector<2x32xf32>
    %389 = vector.extract_strided_slice %298 {offsets = [2, 0, 0], sizes = [1, 2, 32], strides = [1, 1, 1]} : vector<8x2x32xf32> to vector<1x2x32xf32>
    %390 = vector.shape_cast %389 : vector<1x2x32xf32> to vector<2x32xf32>
    %391 = vector.extract_strided_slice %370 {offsets = [0, 64], sizes = [2, 32], strides = [1, 1]} : vector<2x96xf32> to vector<2x32xf32>
    %392 = vector.broadcast %302 : vector<1x32xf32> to vector<2x32xf32>
    %393 = arith.addf %391, %392 : vector<2x32xf32>
    %394 = arith.mulf %379, %393 : vector<2x32xf32>
    %395 = arith.addf %390, %394 : vector<2x32xf32>
    %396 = math.tanh %395 : vector<2x32xf32>
    %cst_73 = arith.constant 1.000000e+00 : f32
    %397 = vector.broadcast %cst_73 : f32 to vector<2x32xf32>
    %398 = arith.subf %397, %388 : vector<2x32xf32>
    %399 = arith.mulf %398, %396 : vector<2x32xf32>
    %400 = arith.mulf %388, %368 : vector<2x32xf32>
    %401 = arith.addf %399, %400 : vector<2x32xf32>
    %402 = arith.truncf %401 : vector<2x32xf32> to vector<2x32xbf16>
    %cst_74 = arith.constant dense<0.000000e+00> : vector<2x96xf32>
    %403 = tpu.matmul %402, %300, %cst_74 {dimension_numbers = #tpu.dot_dimension_numbers<[1], [0], [0], [1], [0, 0, 1, 1], [], []>} : vector<2x32xbf16>, vector<32x96xbf16>, vector<2x96xf32> -> vector<2x96xf32>
    %404 = vector.extract_strided_slice %296 {offsets = [3, 0, 0], sizes = [1, 2, 32], strides = [1, 1, 1]} : vector<8x2x32xf32> to vector<1x2x32xf32>
    %405 = vector.shape_cast %404 : vector<1x2x32xf32> to vector<2x32xf32>
    %406 = vector.extract_strided_slice %403 {offsets = [0, 0], sizes = [2, 32], strides = [1, 1]} : vector<2x96xf32> to vector<2x32xf32>
    %407 = arith.addf %405, %406 : vector<2x32xf32>
    %408 = arith.negf %407 : vector<2x32xf32>
    %409 = math.exp %408 : vector<2x32xf32>
    %cst_75 = arith.constant 1.000000e+00 : f32
    %410 = vector.broadcast %cst_75 : f32 to vector<2x32xf32>
    %411 = arith.addf %410, %409 : vector<2x32xf32>
    %412 = arith.divf %410, %411 : vector<2x32xf32>
    %413 = vector.extract_strided_slice %297 {offsets = [3, 0, 0], sizes = [1, 2, 32], strides = [1, 1, 1]} : vector<8x2x32xf32> to vector<1x2x32xf32>
    %414 = vector.shape_cast %413 : vector<1x2x32xf32> to vector<2x32xf32>
    %415 = vector.extract_strided_slice %403 {offsets = [0, 32], sizes = [2, 32], strides = [1, 1]} : vector<2x96xf32> to vector<2x32xf32>
    %416 = arith.addf %414, %415 : vector<2x32xf32>
    %417 = arith.negf %416 : vector<2x32xf32>
    %418 = math.exp %417 : vector<2x32xf32>
    %cst_76 = arith.constant 1.000000e+00 : f32
    %419 = vector.broadcast %cst_76 : f32 to vector<2x32xf32>
    %420 = arith.addf %419, %418 : vector<2x32xf32>
    %421 = arith.divf %419, %420 : vector<2x32xf32>
    %422 = vector.extract_strided_slice %298 {offsets = [3, 0, 0], sizes = [1, 2, 32], strides = [1, 1, 1]} : vector<8x2x32xf32> to vector<1x2x32xf32>
    %423 = vector.shape_cast %422 : vector<1x2x32xf32> to vector<2x32xf32>
    %424 = vector.extract_strided_slice %403 {offsets = [0, 64], sizes = [2, 32], strides = [1, 1]} : vector<2x96xf32> to vector<2x32xf32>
    %425 = vector.broadcast %302 : vector<1x32xf32> to vector<2x32xf32>
    %426 = arith.addf %424, %425 : vector<2x32xf32>
    %427 = arith.mulf %412, %426 : vector<2x32xf32>
    %428 = arith.addf %423, %427 : vector<2x32xf32>
    %429 = math.tanh %428 : vector<2x32xf32>
    %cst_77 = arith.constant 1.000000e+00 : f32
    %430 = vector.broadcast %cst_77 : f32 to vector<2x32xf32>
    %431 = arith.subf %430, %421 : vector<2x32xf32>
    %432 = arith.mulf %431, %429 : vector<2x32xf32>
    %433 = arith.mulf %421, %401 : vector<2x32xf32>
    %434 = arith.addf %432, %433 : vector<2x32xf32>
    %435 = arith.truncf %434 : vector<2x32xf32> to vector<2x32xbf16>
    %cst_78 = arith.constant dense<0.000000e+00> : vector<2x96xf32>
    %436 = tpu.matmul %435, %300, %cst_78 {dimension_numbers = #tpu.dot_dimension_numbers<[1], [0], [0], [1], [0, 0, 1, 1], [], []>} : vector<2x32xbf16>, vector<32x96xbf16>, vector<2x96xf32> -> vector<2x96xf32>
    %437 = vector.extract_strided_slice %296 {offsets = [4, 0, 0], sizes = [1, 2, 32], strides = [1, 1, 1]} : vector<8x2x32xf32> to vector<1x2x32xf32>
    %438 = vector.shape_cast %437 : vector<1x2x32xf32> to vector<2x32xf32>
    %439 = vector.extract_strided_slice %436 {offsets = [0, 0], sizes = [2, 32], strides = [1, 1]} : vector<2x96xf32> to vector<2x32xf32>
    %440 = arith.addf %438, %439 : vector<2x32xf32>
    %441 = arith.negf %440 : vector<2x32xf32>
    %442 = math.exp %441 : vector<2x32xf32>
    %cst_79 = arith.constant 1.000000e+00 : f32
    %443 = vector.broadcast %cst_79 : f32 to vector<2x32xf32>
    %444 = arith.addf %443, %442 : vector<2x32xf32>
    %445 = arith.divf %443, %444 : vector<2x32xf32>
    %446 = vector.extract_strided_slice %297 {offsets = [4, 0, 0], sizes = [1, 2, 32], strides = [1, 1, 1]} : vector<8x2x32xf32> to vector<1x2x32xf32>
    %447 = vector.shape_cast %446 : vector<1x2x32xf32> to vector<2x32xf32>
    %448 = vector.extract_strided_slice %436 {offsets = [0, 32], sizes = [2, 32], strides = [1, 1]} : vector<2x96xf32> to vector<2x32xf32>
    %449 = arith.addf %447, %448 : vector<2x32xf32>
    %450 = arith.negf %449 : vector<2x32xf32>
    %451 = math.exp %450 : vector<2x32xf32>
    %cst_80 = arith.constant 1.000000e+00 : f32
    %452 = vector.broadcast %cst_80 : f32 to vector<2x32xf32>
    %453 = arith.addf %452, %451 : vector<2x32xf32>
    %454 = arith.divf %452, %453 : vector<2x32xf32>
    %455 = vector.extract_strided_slice %298 {offsets = [4, 0, 0], sizes = [1, 2, 32], strides = [1, 1, 1]} : vector<8x2x32xf32> to vector<1x2x32xf32>
    %456 = vector.shape_cast %455 : vector<1x2x32xf32> to vector<2x32xf32>
    %457 = vector.extract_strided_slice %436 {offsets = [0, 64], sizes = [2, 32], strides = [1, 1]} : vector<2x96xf32> to vector<2x32xf32>
    %458 = vector.broadcast %302 : vector<1x32xf32> to vector<2x32xf32>
    %459 = arith.addf %457, %458 : vector<2x32xf32>
    %460 = arith.mulf %445, %459 : vector<2x32xf32>
    %461 = arith.addf %456, %460 : vector<2x32xf32>
    %462 = math.tanh %461 : vector<2x32xf32>
    %cst_81 = arith.constant 1.000000e+00 : f32
    %463 = vector.broadcast %cst_81 : f32 to vector<2x32xf32>
    %464 = arith.subf %463, %454 : vector<2x32xf32>
    %465 = arith.mulf %464, %462 : vector<2x32xf32>
    %466 = arith.mulf %454, %434 : vector<2x32xf32>
    %467 = arith.addf %465, %466 : vector<2x32xf32>
    %468 = arith.truncf %467 : vector<2x32xf32> to vector<2x32xbf16>
    %cst_82 = arith.constant dense<0.000000e+00> : vector<2x96xf32>
    %469 = tpu.matmul %468, %300, %cst_82 {dimension_numbers = #tpu.dot_dimension_numbers<[1], [0], [0], [1], [0, 0, 1, 1], [], []>} : vector<2x32xbf16>, vector<32x96xbf16>, vector<2x96xf32> -> vector<2x96xf32>
    %470 = vector.extract_strided_slice %296 {offsets = [5, 0, 0], sizes = [1, 2, 32], strides = [1, 1, 1]} : vector<8x2x32xf32> to vector<1x2x32xf32>
    %471 = vector.shape_cast %470 : vector<1x2x32xf32> to vector<2x32xf32>
    %472 = vector.extract_strided_slice %469 {offsets = [0, 0], sizes = [2, 32], strides = [1, 1]} : vector<2x96xf32> to vector<2x32xf32>
    %473 = arith.addf %471, %472 : vector<2x32xf32>
    %474 = arith.negf %473 : vector<2x32xf32>
    %475 = math.exp %474 : vector<2x32xf32>
    %cst_83 = arith.constant 1.000000e+00 : f32
    %476 = vector.broadcast %cst_83 : f32 to vector<2x32xf32>
    %477 = arith.addf %476, %475 : vector<2x32xf32>
    %478 = arith.divf %476, %477 : vector<2x32xf32>
    %479 = vector.extract_strided_slice %297 {offsets = [5, 0, 0], sizes = [1, 2, 32], strides = [1, 1, 1]} : vector<8x2x32xf32> to vector<1x2x32xf32>
    %480 = vector.shape_cast %479 : vector<1x2x32xf32> to vector<2x32xf32>
    %481 = vector.extract_strided_slice %469 {offsets = [0, 32], sizes = [2, 32], strides = [1, 1]} : vector<2x96xf32> to vector<2x32xf32>
    %482 = arith.addf %480, %481 : vector<2x32xf32>
    %483 = arith.negf %482 : vector<2x32xf32>
    %484 = math.exp %483 : vector<2x32xf32>
    %cst_84 = arith.constant 1.000000e+00 : f32
    %485 = vector.broadcast %cst_84 : f32 to vector<2x32xf32>
    %486 = arith.addf %485, %484 : vector<2x32xf32>
    %487 = arith.divf %485, %486 : vector<2x32xf32>
    %488 = vector.extract_strided_slice %298 {offsets = [5, 0, 0], sizes = [1, 2, 32], strides = [1, 1, 1]} : vector<8x2x32xf32> to vector<1x2x32xf32>
    %489 = vector.shape_cast %488 : vector<1x2x32xf32> to vector<2x32xf32>
    %490 = vector.extract_strided_slice %469 {offsets = [0, 64], sizes = [2, 32], strides = [1, 1]} : vector<2x96xf32> to vector<2x32xf32>
    %491 = vector.broadcast %302 : vector<1x32xf32> to vector<2x32xf32>
    %492 = arith.addf %490, %491 : vector<2x32xf32>
    %493 = arith.mulf %478, %492 : vector<2x32xf32>
    %494 = arith.addf %489, %493 : vector<2x32xf32>
    %495 = math.tanh %494 : vector<2x32xf32>
    %cst_85 = arith.constant 1.000000e+00 : f32
    %496 = vector.broadcast %cst_85 : f32 to vector<2x32xf32>
    %497 = arith.subf %496, %487 : vector<2x32xf32>
    %498 = arith.mulf %497, %495 : vector<2x32xf32>
    %499 = arith.mulf %487, %467 : vector<2x32xf32>
    %500 = arith.addf %498, %499 : vector<2x32xf32>
    %501 = arith.truncf %500 : vector<2x32xf32> to vector<2x32xbf16>
    %cst_86 = arith.constant dense<0.000000e+00> : vector<2x96xf32>
    %502 = tpu.matmul %501, %300, %cst_86 {dimension_numbers = #tpu.dot_dimension_numbers<[1], [0], [0], [1], [0, 0, 1, 1], [], []>} : vector<2x32xbf16>, vector<32x96xbf16>, vector<2x96xf32> -> vector<2x96xf32>
    %503 = vector.extract_strided_slice %296 {offsets = [6, 0, 0], sizes = [1, 2, 32], strides = [1, 1, 1]} : vector<8x2x32xf32> to vector<1x2x32xf32>
    %504 = vector.shape_cast %503 : vector<1x2x32xf32> to vector<2x32xf32>
    %505 = vector.extract_strided_slice %502 {offsets = [0, 0], sizes = [2, 32], strides = [1, 1]} : vector<2x96xf32> to vector<2x32xf32>
    %506 = arith.addf %504, %505 : vector<2x32xf32>
    %507 = arith.negf %506 : vector<2x32xf32>
    %508 = math.exp %507 : vector<2x32xf32>
    %cst_87 = arith.constant 1.000000e+00 : f32
    %509 = vector.broadcast %cst_87 : f32 to vector<2x32xf32>
    %510 = arith.addf %509, %508 : vector<2x32xf32>
    %511 = arith.divf %509, %510 : vector<2x32xf32>
    %512 = vector.extract_strided_slice %297 {offsets = [6, 0, 0], sizes = [1, 2, 32], strides = [1, 1, 1]} : vector<8x2x32xf32> to vector<1x2x32xf32>
    %513 = vector.shape_cast %512 : vector<1x2x32xf32> to vector<2x32xf32>
    %514 = vector.extract_strided_slice %502 {offsets = [0, 32], sizes = [2, 32], strides = [1, 1]} : vector<2x96xf32> to vector<2x32xf32>
    %515 = arith.addf %513, %514 : vector<2x32xf32>
    %516 = arith.negf %515 : vector<2x32xf32>
    %517 = math.exp %516 : vector<2x32xf32>
    %cst_88 = arith.constant 1.000000e+00 : f32
    %518 = vector.broadcast %cst_88 : f32 to vector<2x32xf32>
    %519 = arith.addf %518, %517 : vector<2x32xf32>
    %520 = arith.divf %518, %519 : vector<2x32xf32>
    %521 = vector.extract_strided_slice %298 {offsets = [6, 0, 0], sizes = [1, 2, 32], strides = [1, 1, 1]} : vector<8x2x32xf32> to vector<1x2x32xf32>
    %522 = vector.shape_cast %521 : vector<1x2x32xf32> to vector<2x32xf32>
    %523 = vector.extract_strided_slice %502 {offsets = [0, 64], sizes = [2, 32], strides = [1, 1]} : vector<2x96xf32> to vector<2x32xf32>
    %524 = vector.broadcast %302 : vector<1x32xf32> to vector<2x32xf32>
    %525 = arith.addf %523, %524 : vector<2x32xf32>
    %526 = arith.mulf %511, %525 : vector<2x32xf32>
    %527 = arith.addf %522, %526 : vector<2x32xf32>
    %528 = math.tanh %527 : vector<2x32xf32>
    %cst_89 = arith.constant 1.000000e+00 : f32
    %529 = vector.broadcast %cst_89 : f32 to vector<2x32xf32>
    %530 = arith.subf %529, %520 : vector<2x32xf32>
    %531 = arith.mulf %530, %528 : vector<2x32xf32>
    %532 = arith.mulf %520, %500 : vector<2x32xf32>
    %533 = arith.addf %531, %532 : vector<2x32xf32>
    %534 = arith.truncf %533 : vector<2x32xf32> to vector<2x32xbf16>
    %cst_90 = arith.constant dense<0.000000e+00> : vector<2x96xf32>
    %535 = tpu.matmul %534, %300, %cst_90 {dimension_numbers = #tpu.dot_dimension_numbers<[1], [0], [0], [1], [0, 0, 1, 1], [], []>} : vector<2x32xbf16>, vector<32x96xbf16>, vector<2x96xf32> -> vector<2x96xf32>
    %536 = vector.extract_strided_slice %296 {offsets = [7, 0, 0], sizes = [1, 2, 32], strides = [1, 1, 1]} : vector<8x2x32xf32> to vector<1x2x32xf32>
    %537 = vector.shape_cast %536 : vector<1x2x32xf32> to vector<2x32xf32>
    %538 = vector.extract_strided_slice %535 {offsets = [0, 0], sizes = [2, 32], strides = [1, 1]} : vector<2x96xf32> to vector<2x32xf32>
    %539 = arith.addf %537, %538 : vector<2x32xf32>
    %540 = arith.negf %539 : vector<2x32xf32>
    %541 = math.exp %540 : vector<2x32xf32>
    %cst_91 = arith.constant 1.000000e+00 : f32
    %542 = vector.broadcast %cst_91 : f32 to vector<2x32xf32>
    %543 = arith.addf %542, %541 : vector<2x32xf32>
    %544 = arith.divf %542, %543 : vector<2x32xf32>
    %545 = vector.extract_strided_slice %297 {offsets = [7, 0, 0], sizes = [1, 2, 32], strides = [1, 1, 1]} : vector<8x2x32xf32> to vector<1x2x32xf32>
    %546 = vector.shape_cast %545 : vector<1x2x32xf32> to vector<2x32xf32>
    %547 = vector.extract_strided_slice %535 {offsets = [0, 32], sizes = [2, 32], strides = [1, 1]} : vector<2x96xf32> to vector<2x32xf32>
    %548 = arith.addf %546, %547 : vector<2x32xf32>
    %549 = arith.negf %548 : vector<2x32xf32>
    %550 = math.exp %549 : vector<2x32xf32>
    %cst_92 = arith.constant 1.000000e+00 : f32
    %551 = vector.broadcast %cst_92 : f32 to vector<2x32xf32>
    %552 = arith.addf %551, %550 : vector<2x32xf32>
    %553 = arith.divf %551, %552 : vector<2x32xf32>
    %554 = vector.extract_strided_slice %298 {offsets = [7, 0, 0], sizes = [1, 2, 32], strides = [1, 1, 1]} : vector<8x2x32xf32> to vector<1x2x32xf32>
    %555 = vector.shape_cast %554 : vector<1x2x32xf32> to vector<2x32xf32>
    %556 = vector.extract_strided_slice %535 {offsets = [0, 64], sizes = [2, 32], strides = [1, 1]} : vector<2x96xf32> to vector<2x32xf32>
    %557 = vector.broadcast %302 : vector<1x32xf32> to vector<2x32xf32>
    %558 = arith.addf %556, %557 : vector<2x32xf32>
    %559 = arith.mulf %544, %558 : vector<2x32xf32>
    %560 = arith.addf %555, %559 : vector<2x32xf32>
    %561 = math.tanh %560 : vector<2x32xf32>
    %cst_93 = arith.constant 1.000000e+00 : f32
    %562 = vector.broadcast %cst_93 : f32 to vector<2x32xf32>
    %563 = arith.subf %562, %553 : vector<2x32xf32>
    %564 = arith.mulf %563, %561 : vector<2x32xf32>
    %565 = arith.mulf %553, %533 : vector<2x32xf32>
    %566 = arith.addf %564, %565 : vector<2x32xf32>
    %c0_94 = arith.constant 0 : index
    %c0_95 = arith.constant 0 : index
    %c0_96 = arith.constant 0 : index
    %567 = vector.load %arg6[%c0_94, %c0_95, %c0_96] : memref<2x32x128xbf16, #tpu.memory_space<vmem>>, vector<1x32x128xbf16>
    %568 = vector.shape_cast %567 : vector<1x32x128xbf16> to vector<32x128xbf16>
    %cst_97 = arith.constant dense<0.000000e+00> : vector<16x128xf32>
    %569 = tpu.matmul %3, %568, %cst_97 {dimension_numbers = #tpu.dot_dimension_numbers<[1], [0], [0], [1], [0, 0, 1, 1], [], []>} : vector<16x32xbf16>, vector<32x128xbf16>, vector<16x128xf32> -> vector<16x128xf32>
    %c0_98 = arith.constant 0 : index
    %c0_99 = arith.constant 0 : index
    %c0_100 = arith.constant 0 : index
    %570 = vector.load %arg8[%c0_98, %c0_99, %c0_100] : memref<2x1x128xf32, #tpu.memory_space<vmem>>, vector<1x1x128xf32>
    %571 = vector.shape_cast %570 : vector<1x1x128xf32> to vector<1x128xf32>
    %572 = vector.broadcast %571 : vector<1x128xf32> to vector<16x128xf32>
    %573 = arith.addf %569, %572 : vector<16x128xf32>
    %574 = vector.shape_cast %573 : vector<16x128xf32> to vector<8x2x128xf32>
    %c0_101 = arith.constant 0 : index
    %c0_102 = arith.constant 0 : index
    %c0_103 = arith.constant 0 : index
    %575 = vector.load %arg7[%c0_101, %c0_102, %c0_103] : memref<2x32x128xbf16, #tpu.memory_space<vmem>>, vector<1x32x128xbf16>
    %576 = vector.shape_cast %575 : vector<1x32x128xbf16> to vector<32x128xbf16>
    %577 = vector.extract_strided_slice %574 {offsets = [0, 0, 0], sizes = [1, 2, 128], strides = [1, 1, 1]} : vector<8x2x128xf32> to vector<1x2x128xf32>
    %578 = vector.shape_cast %577 : vector<1x2x128xf32> to vector<2x128xf32>
    %579 = arith.truncf %0 : vector<2x32xf32> to vector<2x32xbf16>
    %cst_104 = arith.constant dense<0.000000e+00> : vector<2x128xf32>
    %580 = tpu.matmul %579, %576, %cst_104 {dimension_numbers = #tpu.dot_dimension_numbers<[1], [0], [0], [1], [0, 0, 1, 1], [], []>} : vector<2x32xbf16>, vector<32x128xbf16>, vector<2x128xf32> -> vector<2x128xf32>
    %581 = arith.addf %578, %580 : vector<2x128xf32>
    %582 = vector.extract_strided_slice %581 {offsets = [0, 0], sizes = [2, 32], strides = [1, 1]} : vector<2x128xf32> to vector<2x32xf32>
    %583 = arith.negf %582 : vector<2x32xf32>
    %584 = math.exp %583 : vector<2x32xf32>
    %cst_105 = arith.constant 1.000000e+00 : f32
    %585 = vector.broadcast %cst_105 : f32 to vector<2x32xf32>
    %586 = arith.addf %585, %584 : vector<2x32xf32>
    %587 = arith.divf %585, %586 : vector<2x32xf32>
    %588 = vector.extract_strided_slice %581 {offsets = [0, 32], sizes = [2, 32], strides = [1, 1]} : vector<2x128xf32> to vector<2x32xf32>
    %589 = arith.negf %588 : vector<2x32xf32>
    %590 = math.exp %589 : vector<2x32xf32>
    %cst_106 = arith.constant 1.000000e+00 : f32
    %591 = vector.broadcast %cst_106 : f32 to vector<2x32xf32>
    %592 = arith.addf %591, %590 : vector<2x32xf32>
    %593 = arith.divf %591, %592 : vector<2x32xf32>
    %594 = vector.extract_strided_slice %581 {offsets = [0, 64], sizes = [2, 32], strides = [1, 1]} : vector<2x128xf32> to vector<2x32xf32>
    %595 = math.tanh %594 : vector<2x32xf32>
    %596 = vector.extract_strided_slice %581 {offsets = [0, 96], sizes = [2, 32], strides = [1, 1]} : vector<2x128xf32> to vector<2x32xf32>
    %597 = arith.negf %596 : vector<2x32xf32>
    %598 = math.exp %597 : vector<2x32xf32>
    %cst_107 = arith.constant 1.000000e+00 : f32
    %599 = vector.broadcast %cst_107 : f32 to vector<2x32xf32>
    %600 = arith.addf %599, %598 : vector<2x32xf32>
    %601 = arith.divf %599, %600 : vector<2x32xf32>
    %602 = arith.mulf %593, %0 : vector<2x32xf32>
    %603 = arith.mulf %587, %595 : vector<2x32xf32>
    %604 = arith.addf %602, %603 : vector<2x32xf32>
    %605 = math.tanh %604 : vector<2x32xf32>
    %606 = arith.mulf %601, %605 : vector<2x32xf32>
    %607 = vector.extract_strided_slice %574 {offsets = [1, 0, 0], sizes = [1, 2, 128], strides = [1, 1, 1]} : vector<8x2x128xf32> to vector<1x2x128xf32>
    %608 = vector.shape_cast %607 : vector<1x2x128xf32> to vector<2x128xf32>
    %609 = arith.truncf %606 : vector<2x32xf32> to vector<2x32xbf16>
    %cst_108 = arith.constant dense<0.000000e+00> : vector<2x128xf32>
    %610 = tpu.matmul %609, %576, %cst_108 {dimension_numbers = #tpu.dot_dimension_numbers<[1], [0], [0], [1], [0, 0, 1, 1], [], []>} : vector<2x32xbf16>, vector<32x128xbf16>, vector<2x128xf32> -> vector<2x128xf32>
    %611 = arith.addf %608, %610 : vector<2x128xf32>
    %612 = vector.extract_strided_slice %611 {offsets = [0, 0], sizes = [2, 32], strides = [1, 1]} : vector<2x128xf32> to vector<2x32xf32>
    %613 = arith.negf %612 : vector<2x32xf32>
    %614 = math.exp %613 : vector<2x32xf32>
    %cst_109 = arith.constant 1.000000e+00 : f32
    %615 = vector.broadcast %cst_109 : f32 to vector<2x32xf32>
    %616 = arith.addf %615, %614 : vector<2x32xf32>
    %617 = arith.divf %615, %616 : vector<2x32xf32>
    %618 = vector.extract_strided_slice %611 {offsets = [0, 32], sizes = [2, 32], strides = [1, 1]} : vector<2x128xf32> to vector<2x32xf32>
    %619 = arith.negf %618 : vector<2x32xf32>
    %620 = math.exp %619 : vector<2x32xf32>
    %cst_110 = arith.constant 1.000000e+00 : f32
    %621 = vector.broadcast %cst_110 : f32 to vector<2x32xf32>
    %622 = arith.addf %621, %620 : vector<2x32xf32>
    %623 = arith.divf %621, %622 : vector<2x32xf32>
    %624 = vector.extract_strided_slice %611 {offsets = [0, 64], sizes = [2, 32], strides = [1, 1]} : vector<2x128xf32> to vector<2x32xf32>
    %625 = math.tanh %624 : vector<2x32xf32>
    %626 = vector.extract_strided_slice %611 {offsets = [0, 96], sizes = [2, 32], strides = [1, 1]} : vector<2x128xf32> to vector<2x32xf32>
    %627 = arith.negf %626 : vector<2x32xf32>
    %628 = math.exp %627 : vector<2x32xf32>
    %cst_111 = arith.constant 1.000000e+00 : f32
    %629 = vector.broadcast %cst_111 : f32 to vector<2x32xf32>
    %630 = arith.addf %629, %628 : vector<2x32xf32>
    %631 = arith.divf %629, %630 : vector<2x32xf32>
    %632 = arith.mulf %623, %604 : vector<2x32xf32>
    %633 = arith.mulf %617, %625 : vector<2x32xf32>
    %634 = arith.addf %632, %633 : vector<2x32xf32>
    %635 = math.tanh %634 : vector<2x32xf32>
    %636 = arith.mulf %631, %635 : vector<2x32xf32>
    %637 = vector.extract_strided_slice %574 {offsets = [2, 0, 0], sizes = [1, 2, 128], strides = [1, 1, 1]} : vector<8x2x128xf32> to vector<1x2x128xf32>
    %638 = vector.shape_cast %637 : vector<1x2x128xf32> to vector<2x128xf32>
    %639 = arith.truncf %636 : vector<2x32xf32> to vector<2x32xbf16>
    %cst_112 = arith.constant dense<0.000000e+00> : vector<2x128xf32>
    %640 = tpu.matmul %639, %576, %cst_112 {dimension_numbers = #tpu.dot_dimension_numbers<[1], [0], [0], [1], [0, 0, 1, 1], [], []>} : vector<2x32xbf16>, vector<32x128xbf16>, vector<2x128xf32> -> vector<2x128xf32>
    %641 = arith.addf %638, %640 : vector<2x128xf32>
    %642 = vector.extract_strided_slice %641 {offsets = [0, 0], sizes = [2, 32], strides = [1, 1]} : vector<2x128xf32> to vector<2x32xf32>
    %643 = arith.negf %642 : vector<2x32xf32>
    %644 = math.exp %643 : vector<2x32xf32>
    %cst_113 = arith.constant 1.000000e+00 : f32
    %645 = vector.broadcast %cst_113 : f32 to vector<2x32xf32>
    %646 = arith.addf %645, %644 : vector<2x32xf32>
    %647 = arith.divf %645, %646 : vector<2x32xf32>
    %648 = vector.extract_strided_slice %641 {offsets = [0, 32], sizes = [2, 32], strides = [1, 1]} : vector<2x128xf32> to vector<2x32xf32>
    %649 = arith.negf %648 : vector<2x32xf32>
    %650 = math.exp %649 : vector<2x32xf32>
    %cst_114 = arith.constant 1.000000e+00 : f32
    %651 = vector.broadcast %cst_114 : f32 to vector<2x32xf32>
    %652 = arith.addf %651, %650 : vector<2x32xf32>
    %653 = arith.divf %651, %652 : vector<2x32xf32>
    %654 = vector.extract_strided_slice %641 {offsets = [0, 64], sizes = [2, 32], strides = [1, 1]} : vector<2x128xf32> to vector<2x32xf32>
    %655 = math.tanh %654 : vector<2x32xf32>
    %656 = vector.extract_strided_slice %641 {offsets = [0, 96], sizes = [2, 32], strides = [1, 1]} : vector<2x128xf32> to vector<2x32xf32>
    %657 = arith.negf %656 : vector<2x32xf32>
    %658 = math.exp %657 : vector<2x32xf32>
    %cst_115 = arith.constant 1.000000e+00 : f32
    %659 = vector.broadcast %cst_115 : f32 to vector<2x32xf32>
    %660 = arith.addf %659, %658 : vector<2x32xf32>
    %661 = arith.divf %659, %660 : vector<2x32xf32>
    %662 = arith.mulf %653, %634 : vector<2x32xf32>
    %663 = arith.mulf %647, %655 : vector<2x32xf32>
    %664 = arith.addf %662, %663 : vector<2x32xf32>
    %665 = math.tanh %664 : vector<2x32xf32>
    %666 = arith.mulf %661, %665 : vector<2x32xf32>
    %667 = vector.extract_strided_slice %574 {offsets = [3, 0, 0], sizes = [1, 2, 128], strides = [1, 1, 1]} : vector<8x2x128xf32> to vector<1x2x128xf32>
    %668 = vector.shape_cast %667 : vector<1x2x128xf32> to vector<2x128xf32>
    %669 = arith.truncf %666 : vector<2x32xf32> to vector<2x32xbf16>
    %cst_116 = arith.constant dense<0.000000e+00> : vector<2x128xf32>
    %670 = tpu.matmul %669, %576, %cst_116 {dimension_numbers = #tpu.dot_dimension_numbers<[1], [0], [0], [1], [0, 0, 1, 1], [], []>} : vector<2x32xbf16>, vector<32x128xbf16>, vector<2x128xf32> -> vector<2x128xf32>
    %671 = arith.addf %668, %670 : vector<2x128xf32>
    %672 = vector.extract_strided_slice %671 {offsets = [0, 0], sizes = [2, 32], strides = [1, 1]} : vector<2x128xf32> to vector<2x32xf32>
    %673 = arith.negf %672 : vector<2x32xf32>
    %674 = math.exp %673 : vector<2x32xf32>
    %cst_117 = arith.constant 1.000000e+00 : f32
    %675 = vector.broadcast %cst_117 : f32 to vector<2x32xf32>
    %676 = arith.addf %675, %674 : vector<2x32xf32>
    %677 = arith.divf %675, %676 : vector<2x32xf32>
    %678 = vector.extract_strided_slice %671 {offsets = [0, 32], sizes = [2, 32], strides = [1, 1]} : vector<2x128xf32> to vector<2x32xf32>
    %679 = arith.negf %678 : vector<2x32xf32>
    %680 = math.exp %679 : vector<2x32xf32>
    %cst_118 = arith.constant 1.000000e+00 : f32
    %681 = vector.broadcast %cst_118 : f32 to vector<2x32xf32>
    %682 = arith.addf %681, %680 : vector<2x32xf32>
    %683 = arith.divf %681, %682 : vector<2x32xf32>
    %684 = vector.extract_strided_slice %671 {offsets = [0, 64], sizes = [2, 32], strides = [1, 1]} : vector<2x128xf32> to vector<2x32xf32>
    %685 = math.tanh %684 : vector<2x32xf32>
    %686 = vector.extract_strided_slice %671 {offsets = [0, 96], sizes = [2, 32], strides = [1, 1]} : vector<2x128xf32> to vector<2x32xf32>
    %687 = arith.negf %686 : vector<2x32xf32>
    %688 = math.exp %687 : vector<2x32xf32>
    %cst_119 = arith.constant 1.000000e+00 : f32
    %689 = vector.broadcast %cst_119 : f32 to vector<2x32xf32>
    %690 = arith.addf %689, %688 : vector<2x32xf32>
    %691 = arith.divf %689, %690 : vector<2x32xf32>
    %692 = arith.mulf %683, %664 : vector<2x32xf32>
    %693 = arith.mulf %677, %685 : vector<2x32xf32>
    %694 = arith.addf %692, %693 : vector<2x32xf32>
    %695 = math.tanh %694 : vector<2x32xf32>
    %696 = arith.mulf %691, %695 : vector<2x32xf32>
    %697 = vector.extract_strided_slice %574 {offsets = [4, 0, 0], sizes = [1, 2, 128], strides = [1, 1, 1]} : vector<8x2x128xf32> to vector<1x2x128xf32>
    %698 = vector.shape_cast %697 : vector<1x2x128xf32> to vector<2x128xf32>
    %699 = arith.truncf %696 : vector<2x32xf32> to vector<2x32xbf16>
    %cst_120 = arith.constant dense<0.000000e+00> : vector<2x128xf32>
    %700 = tpu.matmul %699, %576, %cst_120 {dimension_numbers = #tpu.dot_dimension_numbers<[1], [0], [0], [1], [0, 0, 1, 1], [], []>} : vector<2x32xbf16>, vector<32x128xbf16>, vector<2x128xf32> -> vector<2x128xf32>
    %701 = arith.addf %698, %700 : vector<2x128xf32>
    %702 = vector.extract_strided_slice %701 {offsets = [0, 0], sizes = [2, 32], strides = [1, 1]} : vector<2x128xf32> to vector<2x32xf32>
    %703 = arith.negf %702 : vector<2x32xf32>
    %704 = math.exp %703 : vector<2x32xf32>
    %cst_121 = arith.constant 1.000000e+00 : f32
    %705 = vector.broadcast %cst_121 : f32 to vector<2x32xf32>
    %706 = arith.addf %705, %704 : vector<2x32xf32>
    %707 = arith.divf %705, %706 : vector<2x32xf32>
    %708 = vector.extract_strided_slice %701 {offsets = [0, 32], sizes = [2, 32], strides = [1, 1]} : vector<2x128xf32> to vector<2x32xf32>
    %709 = arith.negf %708 : vector<2x32xf32>
    %710 = math.exp %709 : vector<2x32xf32>
    %cst_122 = arith.constant 1.000000e+00 : f32
    %711 = vector.broadcast %cst_122 : f32 to vector<2x32xf32>
    %712 = arith.addf %711, %710 : vector<2x32xf32>
    %713 = arith.divf %711, %712 : vector<2x32xf32>
    %714 = vector.extract_strided_slice %701 {offsets = [0, 64], sizes = [2, 32], strides = [1, 1]} : vector<2x128xf32> to vector<2x32xf32>
    %715 = math.tanh %714 : vector<2x32xf32>
    %716 = vector.extract_strided_slice %701 {offsets = [0, 96], sizes = [2, 32], strides = [1, 1]} : vector<2x128xf32> to vector<2x32xf32>
    %717 = arith.negf %716 : vector<2x32xf32>
    %718 = math.exp %717 : vector<2x32xf32>
    %cst_123 = arith.constant 1.000000e+00 : f32
    %719 = vector.broadcast %cst_123 : f32 to vector<2x32xf32>
    %720 = arith.addf %719, %718 : vector<2x32xf32>
    %721 = arith.divf %719, %720 : vector<2x32xf32>
    %722 = arith.mulf %713, %694 : vector<2x32xf32>
    %723 = arith.mulf %707, %715 : vector<2x32xf32>
    %724 = arith.addf %722, %723 : vector<2x32xf32>
    %725 = math.tanh %724 : vector<2x32xf32>
    %726 = arith.mulf %721, %725 : vector<2x32xf32>
    %727 = vector.extract_strided_slice %574 {offsets = [5, 0, 0], sizes = [1, 2, 128], strides = [1, 1, 1]} : vector<8x2x128xf32> to vector<1x2x128xf32>
    %728 = vector.shape_cast %727 : vector<1x2x128xf32> to vector<2x128xf32>
    %729 = arith.truncf %726 : vector<2x32xf32> to vector<2x32xbf16>
    %cst_124 = arith.constant dense<0.000000e+00> : vector<2x128xf32>
    %730 = tpu.matmul %729, %576, %cst_124 {dimension_numbers = #tpu.dot_dimension_numbers<[1], [0], [0], [1], [0, 0, 1, 1], [], []>} : vector<2x32xbf16>, vector<32x128xbf16>, vector<2x128xf32> -> vector<2x128xf32>
    %731 = arith.addf %728, %730 : vector<2x128xf32>
    %732 = vector.extract_strided_slice %731 {offsets = [0, 0], sizes = [2, 32], strides = [1, 1]} : vector<2x128xf32> to vector<2x32xf32>
    %733 = arith.negf %732 : vector<2x32xf32>
    %734 = math.exp %733 : vector<2x32xf32>
    %cst_125 = arith.constant 1.000000e+00 : f32
    %735 = vector.broadcast %cst_125 : f32 to vector<2x32xf32>
    %736 = arith.addf %735, %734 : vector<2x32xf32>
    %737 = arith.divf %735, %736 : vector<2x32xf32>
    %738 = vector.extract_strided_slice %731 {offsets = [0, 32], sizes = [2, 32], strides = [1, 1]} : vector<2x128xf32> to vector<2x32xf32>
    %739 = arith.negf %738 : vector<2x32xf32>
    %740 = math.exp %739 : vector<2x32xf32>
    %cst_126 = arith.constant 1.000000e+00 : f32
    %741 = vector.broadcast %cst_126 : f32 to vector<2x32xf32>
    %742 = arith.addf %741, %740 : vector<2x32xf32>
    %743 = arith.divf %741, %742 : vector<2x32xf32>
    %744 = vector.extract_strided_slice %731 {offsets = [0, 64], sizes = [2, 32], strides = [1, 1]} : vector<2x128xf32> to vector<2x32xf32>
    %745 = math.tanh %744 : vector<2x32xf32>
    %746 = vector.extract_strided_slice %731 {offsets = [0, 96], sizes = [2, 32], strides = [1, 1]} : vector<2x128xf32> to vector<2x32xf32>
    %747 = arith.negf %746 : vector<2x32xf32>
    %748 = math.exp %747 : vector<2x32xf32>
    %cst_127 = arith.constant 1.000000e+00 : f32
    %749 = vector.broadcast %cst_127 : f32 to vector<2x32xf32>
    %750 = arith.addf %749, %748 : vector<2x32xf32>
    %751 = arith.divf %749, %750 : vector<2x32xf32>
    %752 = arith.mulf %743, %724 : vector<2x32xf32>
    %753 = arith.mulf %737, %745 : vector<2x32xf32>
    %754 = arith.addf %752, %753 : vector<2x32xf32>
    %755 = math.tanh %754 : vector<2x32xf32>
    %756 = arith.mulf %751, %755 : vector<2x32xf32>
    %757 = vector.extract_strided_slice %574 {offsets = [6, 0, 0], sizes = [1, 2, 128], strides = [1, 1, 1]} : vector<8x2x128xf32> to vector<1x2x128xf32>
    %758 = vector.shape_cast %757 : vector<1x2x128xf32> to vector<2x128xf32>
    %759 = arith.truncf %756 : vector<2x32xf32> to vector<2x32xbf16>
    %cst_128 = arith.constant dense<0.000000e+00> : vector<2x128xf32>
    %760 = tpu.matmul %759, %576, %cst_128 {dimension_numbers = #tpu.dot_dimension_numbers<[1], [0], [0], [1], [0, 0, 1, 1], [], []>} : vector<2x32xbf16>, vector<32x128xbf16>, vector<2x128xf32> -> vector<2x128xf32>
    %761 = arith.addf %758, %760 : vector<2x128xf32>
    %762 = vector.extract_strided_slice %761 {offsets = [0, 0], sizes = [2, 32], strides = [1, 1]} : vector<2x128xf32> to vector<2x32xf32>
    %763 = arith.negf %762 : vector<2x32xf32>
    %764 = math.exp %763 : vector<2x32xf32>
    %cst_129 = arith.constant 1.000000e+00 : f32
    %765 = vector.broadcast %cst_129 : f32 to vector<2x32xf32>
    %766 = arith.addf %765, %764 : vector<2x32xf32>
    %767 = arith.divf %765, %766 : vector<2x32xf32>
    %768 = vector.extract_strided_slice %761 {offsets = [0, 32], sizes = [2, 32], strides = [1, 1]} : vector<2x128xf32> to vector<2x32xf32>
    %769 = arith.negf %768 : vector<2x32xf32>
    %770 = math.exp %769 : vector<2x32xf32>
    %cst_130 = arith.constant 1.000000e+00 : f32
    %771 = vector.broadcast %cst_130 : f32 to vector<2x32xf32>
    %772 = arith.addf %771, %770 : vector<2x32xf32>
    %773 = arith.divf %771, %772 : vector<2x32xf32>
    %774 = vector.extract_strided_slice %761 {offsets = [0, 64], sizes = [2, 32], strides = [1, 1]} : vector<2x128xf32> to vector<2x32xf32>
    %775 = math.tanh %774 : vector<2x32xf32>
    %776 = vector.extract_strided_slice %761 {offsets = [0, 96], sizes = [2, 32], strides = [1, 1]} : vector<2x128xf32> to vector<2x32xf32>
    %777 = arith.negf %776 : vector<2x32xf32>
    %778 = math.exp %777 : vector<2x32xf32>
    %cst_131 = arith.constant 1.000000e+00 : f32
    %779 = vector.broadcast %cst_131 : f32 to vector<2x32xf32>
    %780 = arith.addf %779, %778 : vector<2x32xf32>
    %781 = arith.divf %779, %780 : vector<2x32xf32>
    %782 = arith.mulf %773, %754 : vector<2x32xf32>
    %783 = arith.mulf %767, %775 : vector<2x32xf32>
    %784 = arith.addf %782, %783 : vector<2x32xf32>
    %785 = math.tanh %784 : vector<2x32xf32>
    %786 = arith.mulf %781, %785 : vector<2x32xf32>
    %787 = vector.extract_strided_slice %574 {offsets = [7, 0, 0], sizes = [1, 2, 128], strides = [1, 1, 1]} : vector<8x2x128xf32> to vector<1x2x128xf32>
    %788 = vector.shape_cast %787 : vector<1x2x128xf32> to vector<2x128xf32>
    %789 = arith.truncf %786 : vector<2x32xf32> to vector<2x32xbf16>
    %cst_132 = arith.constant dense<0.000000e+00> : vector<2x128xf32>
    %790 = tpu.matmul %789, %576, %cst_132 {dimension_numbers = #tpu.dot_dimension_numbers<[1], [0], [0], [1], [0, 0, 1, 1], [], []>} : vector<2x32xbf16>, vector<32x128xbf16>, vector<2x128xf32> -> vector<2x128xf32>
    %791 = arith.addf %788, %790 : vector<2x128xf32>
    %792 = vector.extract_strided_slice %791 {offsets = [0, 0], sizes = [2, 32], strides = [1, 1]} : vector<2x128xf32> to vector<2x32xf32>
    %793 = arith.negf %792 : vector<2x32xf32>
    %794 = math.exp %793 : vector<2x32xf32>
    %cst_133 = arith.constant 1.000000e+00 : f32
    %795 = vector.broadcast %cst_133 : f32 to vector<2x32xf32>
    %796 = arith.addf %795, %794 : vector<2x32xf32>
    %797 = arith.divf %795, %796 : vector<2x32xf32>
    %798 = vector.extract_strided_slice %791 {offsets = [0, 32], sizes = [2, 32], strides = [1, 1]} : vector<2x128xf32> to vector<2x32xf32>
    %799 = arith.negf %798 : vector<2x32xf32>
    %800 = math.exp %799 : vector<2x32xf32>
    %cst_134 = arith.constant 1.000000e+00 : f32
    %801 = vector.broadcast %cst_134 : f32 to vector<2x32xf32>
    %802 = arith.addf %801, %800 : vector<2x32xf32>
    %803 = arith.divf %801, %802 : vector<2x32xf32>
    %804 = vector.extract_strided_slice %791 {offsets = [0, 64], sizes = [2, 32], strides = [1, 1]} : vector<2x128xf32> to vector<2x32xf32>
    %805 = math.tanh %804 : vector<2x32xf32>
    %806 = vector.extract_strided_slice %791 {offsets = [0, 96], sizes = [2, 32], strides = [1, 1]} : vector<2x128xf32> to vector<2x32xf32>
    %807 = arith.negf %806 : vector<2x32xf32>
    %808 = math.exp %807 : vector<2x32xf32>
    %cst_135 = arith.constant 1.000000e+00 : f32
    %809 = vector.broadcast %cst_135 : f32 to vector<2x32xf32>
    %810 = arith.addf %809, %808 : vector<2x32xf32>
    %811 = arith.divf %809, %810 : vector<2x32xf32>
    %812 = arith.mulf %803, %784 : vector<2x32xf32>
    %813 = arith.mulf %797, %805 : vector<2x32xf32>
    %814 = arith.addf %812, %813 : vector<2x32xf32>
    %815 = math.tanh %814 : vector<2x32xf32>
    %816 = arith.mulf %811, %815 : vector<2x32xf32>
    %817 = tpu.concatenate %606, %636, %666, %696, %726, %756, %786, %816 in 0 : vector<2x32xf32>, vector<2x32xf32>, vector<2x32xf32>, vector<2x32xf32>, vector<2x32xf32>, vector<2x32xf32>, vector<2x32xf32>, vector<2x32xf32> -> vector<16x32xf32>
    %818 = arith.truncf %817 : vector<16x32xf32> to vector<16x32xbf16>
    %c1_136 = arith.constant 1 : index
    %c0_137 = arith.constant 0 : index
    %c0_138 = arith.constant 0 : index
    %819 = vector.load %arg6[%c1_136, %c0_137, %c0_138] : memref<2x32x128xbf16, #tpu.memory_space<vmem>>, vector<1x32x128xbf16>
    %820 = vector.shape_cast %819 : vector<1x32x128xbf16> to vector<32x128xbf16>
    %cst_139 = arith.constant dense<0.000000e+00> : vector<16x128xf32>
    %821 = tpu.matmul %818, %820, %cst_139 {dimension_numbers = #tpu.dot_dimension_numbers<[1], [0], [0], [1], [0, 0, 1, 1], [], []>} : vector<16x32xbf16>, vector<32x128xbf16>, vector<16x128xf32> -> vector<16x128xf32>
    %c1_140 = arith.constant 1 : index
    %c0_141 = arith.constant 0 : index
    %c0_142 = arith.constant 0 : index
    %822 = vector.load %arg8[%c1_140, %c0_141, %c0_142] : memref<2x1x128xf32, #tpu.memory_space<vmem>>, vector<1x1x128xf32>
    %823 = vector.shape_cast %822 : vector<1x1x128xf32> to vector<1x128xf32>
    %824 = vector.broadcast %823 : vector<1x128xf32> to vector<16x128xf32>
    %825 = arith.addf %821, %824 : vector<16x128xf32>
    %826 = vector.shape_cast %825 : vector<16x128xf32> to vector<8x2x128xf32>
    %c1_143 = arith.constant 1 : index
    %c0_144 = arith.constant 0 : index
    %c0_145 = arith.constant 0 : index
    %827 = vector.load %arg7[%c1_143, %c0_144, %c0_145] : memref<2x32x128xbf16, #tpu.memory_space<vmem>>, vector<1x32x128xbf16>
    %828 = vector.shape_cast %827 : vector<1x32x128xbf16> to vector<32x128xbf16>
    %829 = vector.extract_strided_slice %826 {offsets = [0, 0, 0], sizes = [1, 2, 128], strides = [1, 1, 1]} : vector<8x2x128xf32> to vector<1x2x128xf32>
    %830 = vector.shape_cast %829 : vector<1x2x128xf32> to vector<2x128xf32>
    %831 = arith.truncf %0 : vector<2x32xf32> to vector<2x32xbf16>
    %cst_146 = arith.constant dense<0.000000e+00> : vector<2x128xf32>
    %832 = tpu.matmul %831, %828, %cst_146 {dimension_numbers = #tpu.dot_dimension_numbers<[1], [0], [0], [1], [0, 0, 1, 1], [], []>} : vector<2x32xbf16>, vector<32x128xbf16>, vector<2x128xf32> -> vector<2x128xf32>
    %833 = arith.addf %830, %832 : vector<2x128xf32>
    %834 = vector.extract_strided_slice %833 {offsets = [0, 0], sizes = [2, 32], strides = [1, 1]} : vector<2x128xf32> to vector<2x32xf32>
    %835 = arith.negf %834 : vector<2x32xf32>
    %836 = math.exp %835 : vector<2x32xf32>
    %cst_147 = arith.constant 1.000000e+00 : f32
    %837 = vector.broadcast %cst_147 : f32 to vector<2x32xf32>
    %838 = arith.addf %837, %836 : vector<2x32xf32>
    %839 = arith.divf %837, %838 : vector<2x32xf32>
    %840 = vector.extract_strided_slice %833 {offsets = [0, 32], sizes = [2, 32], strides = [1, 1]} : vector<2x128xf32> to vector<2x32xf32>
    %841 = arith.negf %840 : vector<2x32xf32>
    %842 = math.exp %841 : vector<2x32xf32>
    %cst_148 = arith.constant 1.000000e+00 : f32
    %843 = vector.broadcast %cst_148 : f32 to vector<2x32xf32>
    %844 = arith.addf %843, %842 : vector<2x32xf32>
    %845 = arith.divf %843, %844 : vector<2x32xf32>
    %846 = vector.extract_strided_slice %833 {offsets = [0, 64], sizes = [2, 32], strides = [1, 1]} : vector<2x128xf32> to vector<2x32xf32>
    %847 = math.tanh %846 : vector<2x32xf32>
    %848 = vector.extract_strided_slice %833 {offsets = [0, 96], sizes = [2, 32], strides = [1, 1]} : vector<2x128xf32> to vector<2x32xf32>
    %849 = arith.negf %848 : vector<2x32xf32>
    %850 = math.exp %849 : vector<2x32xf32>
    %cst_149 = arith.constant 1.000000e+00 : f32
    %851 = vector.broadcast %cst_149 : f32 to vector<2x32xf32>
    %852 = arith.addf %851, %850 : vector<2x32xf32>
    %853 = arith.divf %851, %852 : vector<2x32xf32>
    %854 = arith.mulf %845, %0 : vector<2x32xf32>
    %855 = arith.mulf %839, %847 : vector<2x32xf32>
    %856 = arith.addf %854, %855 : vector<2x32xf32>
    %857 = math.tanh %856 : vector<2x32xf32>
    %858 = arith.mulf %853, %857 : vector<2x32xf32>
    %859 = vector.extract_strided_slice %826 {offsets = [1, 0, 0], sizes = [1, 2, 128], strides = [1, 1, 1]} : vector<8x2x128xf32> to vector<1x2x128xf32>
    %860 = vector.shape_cast %859 : vector<1x2x128xf32> to vector<2x128xf32>
    %861 = arith.truncf %858 : vector<2x32xf32> to vector<2x32xbf16>
    %cst_150 = arith.constant dense<0.000000e+00> : vector<2x128xf32>
    %862 = tpu.matmul %861, %828, %cst_150 {dimension_numbers = #tpu.dot_dimension_numbers<[1], [0], [0], [1], [0, 0, 1, 1], [], []>} : vector<2x32xbf16>, vector<32x128xbf16>, vector<2x128xf32> -> vector<2x128xf32>
    %863 = arith.addf %860, %862 : vector<2x128xf32>
    %864 = vector.extract_strided_slice %863 {offsets = [0, 0], sizes = [2, 32], strides = [1, 1]} : vector<2x128xf32> to vector<2x32xf32>
    %865 = arith.negf %864 : vector<2x32xf32>
    %866 = math.exp %865 : vector<2x32xf32>
    %cst_151 = arith.constant 1.000000e+00 : f32
    %867 = vector.broadcast %cst_151 : f32 to vector<2x32xf32>
    %868 = arith.addf %867, %866 : vector<2x32xf32>
    %869 = arith.divf %867, %868 : vector<2x32xf32>
    %870 = vector.extract_strided_slice %863 {offsets = [0, 32], sizes = [2, 32], strides = [1, 1]} : vector<2x128xf32> to vector<2x32xf32>
    %871 = arith.negf %870 : vector<2x32xf32>
    %872 = math.exp %871 : vector<2x32xf32>
    %cst_152 = arith.constant 1.000000e+00 : f32
    %873 = vector.broadcast %cst_152 : f32 to vector<2x32xf32>
    %874 = arith.addf %873, %872 : vector<2x32xf32>
    %875 = arith.divf %873, %874 : vector<2x32xf32>
    %876 = vector.extract_strided_slice %863 {offsets = [0, 64], sizes = [2, 32], strides = [1, 1]} : vector<2x128xf32> to vector<2x32xf32>
    %877 = math.tanh %876 : vector<2x32xf32>
    %878 = vector.extract_strided_slice %863 {offsets = [0, 96], sizes = [2, 32], strides = [1, 1]} : vector<2x128xf32> to vector<2x32xf32>
    %879 = arith.negf %878 : vector<2x32xf32>
    %880 = math.exp %879 : vector<2x32xf32>
    %cst_153 = arith.constant 1.000000e+00 : f32
    %881 = vector.broadcast %cst_153 : f32 to vector<2x32xf32>
    %882 = arith.addf %881, %880 : vector<2x32xf32>
    %883 = arith.divf %881, %882 : vector<2x32xf32>
    %884 = arith.mulf %875, %856 : vector<2x32xf32>
    %885 = arith.mulf %869, %877 : vector<2x32xf32>
    %886 = arith.addf %884, %885 : vector<2x32xf32>
    %887 = math.tanh %886 : vector<2x32xf32>
    %888 = arith.mulf %883, %887 : vector<2x32xf32>
    %889 = vector.extract_strided_slice %826 {offsets = [2, 0, 0], sizes = [1, 2, 128], strides = [1, 1, 1]} : vector<8x2x128xf32> to vector<1x2x128xf32>
    %890 = vector.shape_cast %889 : vector<1x2x128xf32> to vector<2x128xf32>
    %891 = arith.truncf %888 : vector<2x32xf32> to vector<2x32xbf16>
    %cst_154 = arith.constant dense<0.000000e+00> : vector<2x128xf32>
    %892 = tpu.matmul %891, %828, %cst_154 {dimension_numbers = #tpu.dot_dimension_numbers<[1], [0], [0], [1], [0, 0, 1, 1], [], []>} : vector<2x32xbf16>, vector<32x128xbf16>, vector<2x128xf32> -> vector<2x128xf32>
    %893 = arith.addf %890, %892 : vector<2x128xf32>
    %894 = vector.extract_strided_slice %893 {offsets = [0, 0], sizes = [2, 32], strides = [1, 1]} : vector<2x128xf32> to vector<2x32xf32>
    %895 = arith.negf %894 : vector<2x32xf32>
    %896 = math.exp %895 : vector<2x32xf32>
    %cst_155 = arith.constant 1.000000e+00 : f32
    %897 = vector.broadcast %cst_155 : f32 to vector<2x32xf32>
    %898 = arith.addf %897, %896 : vector<2x32xf32>
    %899 = arith.divf %897, %898 : vector<2x32xf32>
    %900 = vector.extract_strided_slice %893 {offsets = [0, 32], sizes = [2, 32], strides = [1, 1]} : vector<2x128xf32> to vector<2x32xf32>
    %901 = arith.negf %900 : vector<2x32xf32>
    %902 = math.exp %901 : vector<2x32xf32>
    %cst_156 = arith.constant 1.000000e+00 : f32
    %903 = vector.broadcast %cst_156 : f32 to vector<2x32xf32>
    %904 = arith.addf %903, %902 : vector<2x32xf32>
    %905 = arith.divf %903, %904 : vector<2x32xf32>
    %906 = vector.extract_strided_slice %893 {offsets = [0, 64], sizes = [2, 32], strides = [1, 1]} : vector<2x128xf32> to vector<2x32xf32>
    %907 = math.tanh %906 : vector<2x32xf32>
    %908 = vector.extract_strided_slice %893 {offsets = [0, 96], sizes = [2, 32], strides = [1, 1]} : vector<2x128xf32> to vector<2x32xf32>
    %909 = arith.negf %908 : vector<2x32xf32>
    %910 = math.exp %909 : vector<2x32xf32>
    %cst_157 = arith.constant 1.000000e+00 : f32
    %911 = vector.broadcast %cst_157 : f32 to vector<2x32xf32>
    %912 = arith.addf %911, %910 : vector<2x32xf32>
    %913 = arith.divf %911, %912 : vector<2x32xf32>
    %914 = arith.mulf %905, %886 : vector<2x32xf32>
    %915 = arith.mulf %899, %907 : vector<2x32xf32>
    %916 = arith.addf %914, %915 : vector<2x32xf32>
    %917 = math.tanh %916 : vector<2x32xf32>
    %918 = arith.mulf %913, %917 : vector<2x32xf32>
    %919 = vector.extract_strided_slice %826 {offsets = [3, 0, 0], sizes = [1, 2, 128], strides = [1, 1, 1]} : vector<8x2x128xf32> to vector<1x2x128xf32>
    %920 = vector.shape_cast %919 : vector<1x2x128xf32> to vector<2x128xf32>
    %921 = arith.truncf %918 : vector<2x32xf32> to vector<2x32xbf16>
    %cst_158 = arith.constant dense<0.000000e+00> : vector<2x128xf32>
    %922 = tpu.matmul %921, %828, %cst_158 {dimension_numbers = #tpu.dot_dimension_numbers<[1], [0], [0], [1], [0, 0, 1, 1], [], []>} : vector<2x32xbf16>, vector<32x128xbf16>, vector<2x128xf32> -> vector<2x128xf32>
    %923 = arith.addf %920, %922 : vector<2x128xf32>
    %924 = vector.extract_strided_slice %923 {offsets = [0, 0], sizes = [2, 32], strides = [1, 1]} : vector<2x128xf32> to vector<2x32xf32>
    %925 = arith.negf %924 : vector<2x32xf32>
    %926 = math.exp %925 : vector<2x32xf32>
    %cst_159 = arith.constant 1.000000e+00 : f32
    %927 = vector.broadcast %cst_159 : f32 to vector<2x32xf32>
    %928 = arith.addf %927, %926 : vector<2x32xf32>
    %929 = arith.divf %927, %928 : vector<2x32xf32>
    %930 = vector.extract_strided_slice %923 {offsets = [0, 32], sizes = [2, 32], strides = [1, 1]} : vector<2x128xf32> to vector<2x32xf32>
    %931 = arith.negf %930 : vector<2x32xf32>
    %932 = math.exp %931 : vector<2x32xf32>
    %cst_160 = arith.constant 1.000000e+00 : f32
    %933 = vector.broadcast %cst_160 : f32 to vector<2x32xf32>
    %934 = arith.addf %933, %932 : vector<2x32xf32>
    %935 = arith.divf %933, %934 : vector<2x32xf32>
    %936 = vector.extract_strided_slice %923 {offsets = [0, 64], sizes = [2, 32], strides = [1, 1]} : vector<2x128xf32> to vector<2x32xf32>
    %937 = math.tanh %936 : vector<2x32xf32>
    %938 = vector.extract_strided_slice %923 {offsets = [0, 96], sizes = [2, 32], strides = [1, 1]} : vector<2x128xf32> to vector<2x32xf32>
    %939 = arith.negf %938 : vector<2x32xf32>
    %940 = math.exp %939 : vector<2x32xf32>
    %cst_161 = arith.constant 1.000000e+00 : f32
    %941 = vector.broadcast %cst_161 : f32 to vector<2x32xf32>
    %942 = arith.addf %941, %940 : vector<2x32xf32>
    %943 = arith.divf %941, %942 : vector<2x32xf32>
    %944 = arith.mulf %935, %916 : vector<2x32xf32>
    %945 = arith.mulf %929, %937 : vector<2x32xf32>
    %946 = arith.addf %944, %945 : vector<2x32xf32>
    %947 = math.tanh %946 : vector<2x32xf32>
    %948 = arith.mulf %943, %947 : vector<2x32xf32>
    %949 = vector.extract_strided_slice %826 {offsets = [4, 0, 0], sizes = [1, 2, 128], strides = [1, 1, 1]} : vector<8x2x128xf32> to vector<1x2x128xf32>
    %950 = vector.shape_cast %949 : vector<1x2x128xf32> to vector<2x128xf32>
    %951 = arith.truncf %948 : vector<2x32xf32> to vector<2x32xbf16>
    %cst_162 = arith.constant dense<0.000000e+00> : vector<2x128xf32>
    %952 = tpu.matmul %951, %828, %cst_162 {dimension_numbers = #tpu.dot_dimension_numbers<[1], [0], [0], [1], [0, 0, 1, 1], [], []>} : vector<2x32xbf16>, vector<32x128xbf16>, vector<2x128xf32> -> vector<2x128xf32>
    %953 = arith.addf %950, %952 : vector<2x128xf32>
    %954 = vector.extract_strided_slice %953 {offsets = [0, 0], sizes = [2, 32], strides = [1, 1]} : vector<2x128xf32> to vector<2x32xf32>
    %955 = arith.negf %954 : vector<2x32xf32>
    %956 = math.exp %955 : vector<2x32xf32>
    %cst_163 = arith.constant 1.000000e+00 : f32
    %957 = vector.broadcast %cst_163 : f32 to vector<2x32xf32>
    %958 = arith.addf %957, %956 : vector<2x32xf32>
    %959 = arith.divf %957, %958 : vector<2x32xf32>
    %960 = vector.extract_strided_slice %953 {offsets = [0, 32], sizes = [2, 32], strides = [1, 1]} : vector<2x128xf32> to vector<2x32xf32>
    %961 = arith.negf %960 : vector<2x32xf32>
    %962 = math.exp %961 : vector<2x32xf32>
    %cst_164 = arith.constant 1.000000e+00 : f32
    %963 = vector.broadcast %cst_164 : f32 to vector<2x32xf32>
    %964 = arith.addf %963, %962 : vector<2x32xf32>
    %965 = arith.divf %963, %964 : vector<2x32xf32>
    %966 = vector.extract_strided_slice %953 {offsets = [0, 64], sizes = [2, 32], strides = [1, 1]} : vector<2x128xf32> to vector<2x32xf32>
    %967 = math.tanh %966 : vector<2x32xf32>
    %968 = vector.extract_strided_slice %953 {offsets = [0, 96], sizes = [2, 32], strides = [1, 1]} : vector<2x128xf32> to vector<2x32xf32>
    %969 = arith.negf %968 : vector<2x32xf32>
    %970 = math.exp %969 : vector<2x32xf32>
    %cst_165 = arith.constant 1.000000e+00 : f32
    %971 = vector.broadcast %cst_165 : f32 to vector<2x32xf32>
    %972 = arith.addf %971, %970 : vector<2x32xf32>
    %973 = arith.divf %971, %972 : vector<2x32xf32>
    %974 = arith.mulf %965, %946 : vector<2x32xf32>
    %975 = arith.mulf %959, %967 : vector<2x32xf32>
    %976 = arith.addf %974, %975 : vector<2x32xf32>
    %977 = math.tanh %976 : vector<2x32xf32>
    %978 = arith.mulf %973, %977 : vector<2x32xf32>
    %979 = vector.extract_strided_slice %826 {offsets = [5, 0, 0], sizes = [1, 2, 128], strides = [1, 1, 1]} : vector<8x2x128xf32> to vector<1x2x128xf32>
    %980 = vector.shape_cast %979 : vector<1x2x128xf32> to vector<2x128xf32>
    %981 = arith.truncf %978 : vector<2x32xf32> to vector<2x32xbf16>
    %cst_166 = arith.constant dense<0.000000e+00> : vector<2x128xf32>
    %982 = tpu.matmul %981, %828, %cst_166 {dimension_numbers = #tpu.dot_dimension_numbers<[1], [0], [0], [1], [0, 0, 1, 1], [], []>} : vector<2x32xbf16>, vector<32x128xbf16>, vector<2x128xf32> -> vector<2x128xf32>
    %983 = arith.addf %980, %982 : vector<2x128xf32>
    %984 = vector.extract_strided_slice %983 {offsets = [0, 0], sizes = [2, 32], strides = [1, 1]} : vector<2x128xf32> to vector<2x32xf32>
    %985 = arith.negf %984 : vector<2x32xf32>
    %986 = math.exp %985 : vector<2x32xf32>
    %cst_167 = arith.constant 1.000000e+00 : f32
    %987 = vector.broadcast %cst_167 : f32 to vector<2x32xf32>
    %988 = arith.addf %987, %986 : vector<2x32xf32>
    %989 = arith.divf %987, %988 : vector<2x32xf32>
    %990 = vector.extract_strided_slice %983 {offsets = [0, 32], sizes = [2, 32], strides = [1, 1]} : vector<2x128xf32> to vector<2x32xf32>
    %991 = arith.negf %990 : vector<2x32xf32>
    %992 = math.exp %991 : vector<2x32xf32>
    %cst_168 = arith.constant 1.000000e+00 : f32
    %993 = vector.broadcast %cst_168 : f32 to vector<2x32xf32>
    %994 = arith.addf %993, %992 : vector<2x32xf32>
    %995 = arith.divf %993, %994 : vector<2x32xf32>
    %996 = vector.extract_strided_slice %983 {offsets = [0, 64], sizes = [2, 32], strides = [1, 1]} : vector<2x128xf32> to vector<2x32xf32>
    %997 = math.tanh %996 : vector<2x32xf32>
    %998 = vector.extract_strided_slice %983 {offsets = [0, 96], sizes = [2, 32], strides = [1, 1]} : vector<2x128xf32> to vector<2x32xf32>
    %999 = arith.negf %998 : vector<2x32xf32>
    %1000 = math.exp %999 : vector<2x32xf32>
    %cst_169 = arith.constant 1.000000e+00 : f32
    %1001 = vector.broadcast %cst_169 : f32 to vector<2x32xf32>
    %1002 = arith.addf %1001, %1000 : vector<2x32xf32>
    %1003 = arith.divf %1001, %1002 : vector<2x32xf32>
    %1004 = arith.mulf %995, %976 : vector<2x32xf32>
    %1005 = arith.mulf %989, %997 : vector<2x32xf32>
    %1006 = arith.addf %1004, %1005 : vector<2x32xf32>
    %1007 = math.tanh %1006 : vector<2x32xf32>
    %1008 = arith.mulf %1003, %1007 : vector<2x32xf32>
    %1009 = vector.extract_strided_slice %826 {offsets = [6, 0, 0], sizes = [1, 2, 128], strides = [1, 1, 1]} : vector<8x2x128xf32> to vector<1x2x128xf32>
    %1010 = vector.shape_cast %1009 : vector<1x2x128xf32> to vector<2x128xf32>
    %1011 = arith.truncf %1008 : vector<2x32xf32> to vector<2x32xbf16>
    %cst_170 = arith.constant dense<0.000000e+00> : vector<2x128xf32>
    %1012 = tpu.matmul %1011, %828, %cst_170 {dimension_numbers = #tpu.dot_dimension_numbers<[1], [0], [0], [1], [0, 0, 1, 1], [], []>} : vector<2x32xbf16>, vector<32x128xbf16>, vector<2x128xf32> -> vector<2x128xf32>
    %1013 = arith.addf %1010, %1012 : vector<2x128xf32>
    %1014 = vector.extract_strided_slice %1013 {offsets = [0, 0], sizes = [2, 32], strides = [1, 1]} : vector<2x128xf32> to vector<2x32xf32>
    %1015 = arith.negf %1014 : vector<2x32xf32>
    %1016 = math.exp %1015 : vector<2x32xf32>
    %cst_171 = arith.constant 1.000000e+00 : f32
    %1017 = vector.broadcast %cst_171 : f32 to vector<2x32xf32>
    %1018 = arith.addf %1017, %1016 : vector<2x32xf32>
    %1019 = arith.divf %1017, %1018 : vector<2x32xf32>
    %1020 = vector.extract_strided_slice %1013 {offsets = [0, 32], sizes = [2, 32], strides = [1, 1]} : vector<2x128xf32> to vector<2x32xf32>
    %1021 = arith.negf %1020 : vector<2x32xf32>
    %1022 = math.exp %1021 : vector<2x32xf32>
    %cst_172 = arith.constant 1.000000e+00 : f32
    %1023 = vector.broadcast %cst_172 : f32 to vector<2x32xf32>
    %1024 = arith.addf %1023, %1022 : vector<2x32xf32>
    %1025 = arith.divf %1023, %1024 : vector<2x32xf32>
    %1026 = vector.extract_strided_slice %1013 {offsets = [0, 64], sizes = [2, 32], strides = [1, 1]} : vector<2x128xf32> to vector<2x32xf32>
    %1027 = math.tanh %1026 : vector<2x32xf32>
    %1028 = vector.extract_strided_slice %1013 {offsets = [0, 96], sizes = [2, 32], strides = [1, 1]} : vector<2x128xf32> to vector<2x32xf32>
    %1029 = arith.negf %1028 : vector<2x32xf32>
    %1030 = math.exp %1029 : vector<2x32xf32>
    %cst_173 = arith.constant 1.000000e+00 : f32
    %1031 = vector.broadcast %cst_173 : f32 to vector<2x32xf32>
    %1032 = arith.addf %1031, %1030 : vector<2x32xf32>
    %1033 = arith.divf %1031, %1032 : vector<2x32xf32>
    %1034 = arith.mulf %1025, %1006 : vector<2x32xf32>
    %1035 = arith.mulf %1019, %1027 : vector<2x32xf32>
    %1036 = arith.addf %1034, %1035 : vector<2x32xf32>
    %1037 = math.tanh %1036 : vector<2x32xf32>
    %1038 = arith.mulf %1033, %1037 : vector<2x32xf32>
    %1039 = vector.extract_strided_slice %826 {offsets = [7, 0, 0], sizes = [1, 2, 128], strides = [1, 1, 1]} : vector<8x2x128xf32> to vector<1x2x128xf32>
    %1040 = vector.shape_cast %1039 : vector<1x2x128xf32> to vector<2x128xf32>
    %1041 = arith.truncf %1038 : vector<2x32xf32> to vector<2x32xbf16>
    %cst_174 = arith.constant dense<0.000000e+00> : vector<2x128xf32>
    %1042 = tpu.matmul %1041, %828, %cst_174 {dimension_numbers = #tpu.dot_dimension_numbers<[1], [0], [0], [1], [0, 0, 1, 1], [], []>} : vector<2x32xbf16>, vector<32x128xbf16>, vector<2x128xf32> -> vector<2x128xf32>
    %1043 = arith.addf %1040, %1042 : vector<2x128xf32>
    %1044 = vector.extract_strided_slice %1043 {offsets = [0, 0], sizes = [2, 32], strides = [1, 1]} : vector<2x128xf32> to vector<2x32xf32>
    %1045 = arith.negf %1044 : vector<2x32xf32>
    %1046 = math.exp %1045 : vector<2x32xf32>
    %cst_175 = arith.constant 1.000000e+00 : f32
    %1047 = vector.broadcast %cst_175 : f32 to vector<2x32xf32>
    %1048 = arith.addf %1047, %1046 : vector<2x32xf32>
    %1049 = arith.divf %1047, %1048 : vector<2x32xf32>
    %1050 = vector.extract_strided_slice %1043 {offsets = [0, 32], sizes = [2, 32], strides = [1, 1]} : vector<2x128xf32> to vector<2x32xf32>
    %1051 = arith.negf %1050 : vector<2x32xf32>
    %1052 = math.exp %1051 : vector<2x32xf32>
    %cst_176 = arith.constant 1.000000e+00 : f32
    %1053 = vector.broadcast %cst_176 : f32 to vector<2x32xf32>
    %1054 = arith.addf %1053, %1052 : vector<2x32xf32>
    %1055 = arith.divf %1053, %1054 : vector<2x32xf32>
    %1056 = vector.extract_strided_slice %1043 {offsets = [0, 64], sizes = [2, 32], strides = [1, 1]} : vector<2x128xf32> to vector<2x32xf32>
    %1057 = math.tanh %1056 : vector<2x32xf32>
    %1058 = vector.extract_strided_slice %1043 {offsets = [0, 96], sizes = [2, 32], strides = [1, 1]} : vector<2x128xf32> to vector<2x32xf32>
    %1059 = arith.negf %1058 : vector<2x32xf32>
    %1060 = math.exp %1059 : vector<2x32xf32>
    %cst_177 = arith.constant 1.000000e+00 : f32
    %1061 = vector.broadcast %cst_177 : f32 to vector<2x32xf32>
    %1062 = arith.addf %1061, %1060 : vector<2x32xf32>
    %1063 = arith.divf %1061, %1062 : vector<2x32xf32>
    %1064 = arith.mulf %1055, %1036 : vector<2x32xf32>
    %1065 = arith.mulf %1049, %1057 : vector<2x32xf32>
    %1066 = arith.addf %1064, %1065 : vector<2x32xf32>
    %1067 = math.tanh %1066 : vector<2x32xf32>
    %1068 = arith.mulf %1063, %1067 : vector<2x32xf32>
    %c0_178 = arith.constant 0 : index
    %c0_179 = arith.constant 0 : index
    %c0_180 = arith.constant 0 : index
    %1069 = vector.load %arg2[%c0_178, %c0_179, %c0_180] : memref<2x32x96xbf16, #tpu.memory_space<vmem>>, vector<1x32x96xbf16>
    %1070 = vector.shape_cast %1069 : vector<1x32x96xbf16> to vector<32x96xbf16>
    %cst_181 = arith.constant dense<0.000000e+00> : vector<16x96xf32>
    %1071 = tpu.matmul %6, %1070, %cst_181 {dimension_numbers = #tpu.dot_dimension_numbers<[1], [0], [0], [1], [0, 0, 1, 1], [], []>} : vector<16x32xbf16>, vector<32x96xbf16>, vector<16x96xf32> -> vector<16x96xf32>
    %c0_182 = arith.constant 0 : index
    %c0_183 = arith.constant 0 : index
    %c0_184 = arith.constant 0 : index
    %1072 = vector.load %arg4[%c0_182, %c0_183, %c0_184] : memref<2x1x96xf32, #tpu.memory_space<vmem>>, vector<1x1x96xf32>
    %1073 = vector.shape_cast %1072 : vector<1x1x96xf32> to vector<1x96xf32>
    %1074 = vector.broadcast %1073 : vector<1x96xf32> to vector<16x96xf32>
    %1075 = arith.addf %1071, %1074 : vector<16x96xf32>
    %1076 = vector.shape_cast %1075 : vector<16x96xf32> to vector<8x2x96xf32>
    %1077 = vector.extract_strided_slice %1076 {offsets = [0, 0, 0], sizes = [8, 2, 32], strides = [1, 1, 1]} : vector<8x2x96xf32> to vector<8x2x32xf32>
    %1078 = vector.extract_strided_slice %1076 {offsets = [0, 0, 32], sizes = [8, 2, 32], strides = [1, 1, 1]} : vector<8x2x96xf32> to vector<8x2x32xf32>
    %1079 = vector.extract_strided_slice %1076 {offsets = [0, 0, 64], sizes = [8, 2, 32], strides = [1, 1, 1]} : vector<8x2x96xf32> to vector<8x2x32xf32>
    %c0_185 = arith.constant 0 : index
    %c0_186 = arith.constant 0 : index
    %c0_187 = arith.constant 0 : index
    %1080 = vector.load %arg3[%c0_185, %c0_186, %c0_187] : memref<2x32x96xbf16, #tpu.memory_space<vmem>>, vector<1x32x96xbf16>
    %1081 = vector.shape_cast %1080 : vector<1x32x96xbf16> to vector<32x96xbf16>
    %c0_188 = arith.constant 0 : index
    %c0_189 = arith.constant 0 : index
    %c0_190 = arith.constant 0 : index
    %1082 = vector.load %arg5[%c0_188, %c0_189, %c0_190] : memref<2x1x32xf32, #tpu.memory_space<vmem>>, vector<1x1x32xf32>
    %1083 = vector.shape_cast %1082 : vector<1x1x32xf32> to vector<1x32xf32>
    %1084 = arith.truncf %285 : vector<2x32xf32> to vector<2x32xbf16>
    %cst_191 = arith.constant dense<0.000000e+00> : vector<2x96xf32>
    %1085 = tpu.matmul %1084, %1081, %cst_191 {dimension_numbers = #tpu.dot_dimension_numbers<[1], [0], [0], [1], [0, 0, 1, 1], [], []>} : vector<2x32xbf16>, vector<32x96xbf16>, vector<2x96xf32> -> vector<2x96xf32>
    %1086 = vector.extract_strided_slice %1077 {offsets = [0, 0, 0], sizes = [1, 2, 32], strides = [1, 1, 1]} : vector<8x2x32xf32> to vector<1x2x32xf32>
    %1087 = vector.shape_cast %1086 : vector<1x2x32xf32> to vector<2x32xf32>
    %1088 = vector.extract_strided_slice %1085 {offsets = [0, 0], sizes = [2, 32], strides = [1, 1]} : vector<2x96xf32> to vector<2x32xf32>
    %1089 = arith.addf %1087, %1088 : vector<2x32xf32>
    %1090 = arith.negf %1089 : vector<2x32xf32>
    %1091 = math.exp %1090 : vector<2x32xf32>
    %cst_192 = arith.constant 1.000000e+00 : f32
    %1092 = vector.broadcast %cst_192 : f32 to vector<2x32xf32>
    %1093 = arith.addf %1092, %1091 : vector<2x32xf32>
    %1094 = arith.divf %1092, %1093 : vector<2x32xf32>
    %1095 = vector.extract_strided_slice %1078 {offsets = [0, 0, 0], sizes = [1, 2, 32], strides = [1, 1, 1]} : vector<8x2x32xf32> to vector<1x2x32xf32>
    %1096 = vector.shape_cast %1095 : vector<1x2x32xf32> to vector<2x32xf32>
    %1097 = vector.extract_strided_slice %1085 {offsets = [0, 32], sizes = [2, 32], strides = [1, 1]} : vector<2x96xf32> to vector<2x32xf32>
    %1098 = arith.addf %1096, %1097 : vector<2x32xf32>
    %1099 = arith.negf %1098 : vector<2x32xf32>
    %1100 = math.exp %1099 : vector<2x32xf32>
    %cst_193 = arith.constant 1.000000e+00 : f32
    %1101 = vector.broadcast %cst_193 : f32 to vector<2x32xf32>
    %1102 = arith.addf %1101, %1100 : vector<2x32xf32>
    %1103 = arith.divf %1101, %1102 : vector<2x32xf32>
    %1104 = vector.extract_strided_slice %1079 {offsets = [0, 0, 0], sizes = [1, 2, 32], strides = [1, 1, 1]} : vector<8x2x32xf32> to vector<1x2x32xf32>
    %1105 = vector.shape_cast %1104 : vector<1x2x32xf32> to vector<2x32xf32>
    %1106 = vector.extract_strided_slice %1085 {offsets = [0, 64], sizes = [2, 32], strides = [1, 1]} : vector<2x96xf32> to vector<2x32xf32>
    %1107 = vector.broadcast %1083 : vector<1x32xf32> to vector<2x32xf32>
    %1108 = arith.addf %1106, %1107 : vector<2x32xf32>
    %1109 = arith.mulf %1094, %1108 : vector<2x32xf32>
    %1110 = arith.addf %1105, %1109 : vector<2x32xf32>
    %1111 = math.tanh %1110 : vector<2x32xf32>
    %cst_194 = arith.constant 1.000000e+00 : f32
    %1112 = vector.broadcast %cst_194 : f32 to vector<2x32xf32>
    %1113 = arith.subf %1112, %1103 : vector<2x32xf32>
    %1114 = arith.mulf %1113, %1111 : vector<2x32xf32>
    %1115 = arith.mulf %1103, %285 : vector<2x32xf32>
    %1116 = arith.addf %1114, %1115 : vector<2x32xf32>
    %1117 = arith.truncf %1116 : vector<2x32xf32> to vector<2x32xbf16>
    %cst_195 = arith.constant dense<0.000000e+00> : vector<2x96xf32>
    %1118 = tpu.matmul %1117, %1081, %cst_195 {dimension_numbers = #tpu.dot_dimension_numbers<[1], [0], [0], [1], [0, 0, 1, 1], [], []>} : vector<2x32xbf16>, vector<32x96xbf16>, vector<2x96xf32> -> vector<2x96xf32>
    %1119 = vector.extract_strided_slice %1077 {offsets = [1, 0, 0], sizes = [1, 2, 32], strides = [1, 1, 1]} : vector<8x2x32xf32> to vector<1x2x32xf32>
    %1120 = vector.shape_cast %1119 : vector<1x2x32xf32> to vector<2x32xf32>
    %1121 = vector.extract_strided_slice %1118 {offsets = [0, 0], sizes = [2, 32], strides = [1, 1]} : vector<2x96xf32> to vector<2x32xf32>
    %1122 = arith.addf %1120, %1121 : vector<2x32xf32>
    %1123 = arith.negf %1122 : vector<2x32xf32>
    %1124 = math.exp %1123 : vector<2x32xf32>
    %cst_196 = arith.constant 1.000000e+00 : f32
    %1125 = vector.broadcast %cst_196 : f32 to vector<2x32xf32>
    %1126 = arith.addf %1125, %1124 : vector<2x32xf32>
    %1127 = arith.divf %1125, %1126 : vector<2x32xf32>
    %1128 = vector.extract_strided_slice %1078 {offsets = [1, 0, 0], sizes = [1, 2, 32], strides = [1, 1, 1]} : vector<8x2x32xf32> to vector<1x2x32xf32>
    %1129 = vector.shape_cast %1128 : vector<1x2x32xf32> to vector<2x32xf32>
    %1130 = vector.extract_strided_slice %1118 {offsets = [0, 32], sizes = [2, 32], strides = [1, 1]} : vector<2x96xf32> to vector<2x32xf32>
    %1131 = arith.addf %1129, %1130 : vector<2x32xf32>
    %1132 = arith.negf %1131 : vector<2x32xf32>
    %1133 = math.exp %1132 : vector<2x32xf32>
    %cst_197 = arith.constant 1.000000e+00 : f32
    %1134 = vector.broadcast %cst_197 : f32 to vector<2x32xf32>
    %1135 = arith.addf %1134, %1133 : vector<2x32xf32>
    %1136 = arith.divf %1134, %1135 : vector<2x32xf32>
    %1137 = vector.extract_strided_slice %1079 {offsets = [1, 0, 0], sizes = [1, 2, 32], strides = [1, 1, 1]} : vector<8x2x32xf32> to vector<1x2x32xf32>
    %1138 = vector.shape_cast %1137 : vector<1x2x32xf32> to vector<2x32xf32>
    %1139 = vector.extract_strided_slice %1118 {offsets = [0, 64], sizes = [2, 32], strides = [1, 1]} : vector<2x96xf32> to vector<2x32xf32>
    %1140 = vector.broadcast %1083 : vector<1x32xf32> to vector<2x32xf32>
    %1141 = arith.addf %1139, %1140 : vector<2x32xf32>
    %1142 = arith.mulf %1127, %1141 : vector<2x32xf32>
    %1143 = arith.addf %1138, %1142 : vector<2x32xf32>
    %1144 = math.tanh %1143 : vector<2x32xf32>
    %cst_198 = arith.constant 1.000000e+00 : f32
    %1145 = vector.broadcast %cst_198 : f32 to vector<2x32xf32>
    %1146 = arith.subf %1145, %1136 : vector<2x32xf32>
    %1147 = arith.mulf %1146, %1144 : vector<2x32xf32>
    %1148 = arith.mulf %1136, %1116 : vector<2x32xf32>
    %1149 = arith.addf %1147, %1148 : vector<2x32xf32>
    %1150 = arith.truncf %1149 : vector<2x32xf32> to vector<2x32xbf16>
    %cst_199 = arith.constant dense<0.000000e+00> : vector<2x96xf32>
    %1151 = tpu.matmul %1150, %1081, %cst_199 {dimension_numbers = #tpu.dot_dimension_numbers<[1], [0], [0], [1], [0, 0, 1, 1], [], []>} : vector<2x32xbf16>, vector<32x96xbf16>, vector<2x96xf32> -> vector<2x96xf32>
    %1152 = vector.extract_strided_slice %1077 {offsets = [2, 0, 0], sizes = [1, 2, 32], strides = [1, 1, 1]} : vector<8x2x32xf32> to vector<1x2x32xf32>
    %1153 = vector.shape_cast %1152 : vector<1x2x32xf32> to vector<2x32xf32>
    %1154 = vector.extract_strided_slice %1151 {offsets = [0, 0], sizes = [2, 32], strides = [1, 1]} : vector<2x96xf32> to vector<2x32xf32>
    %1155 = arith.addf %1153, %1154 : vector<2x32xf32>
    %1156 = arith.negf %1155 : vector<2x32xf32>
    %1157 = math.exp %1156 : vector<2x32xf32>
    %cst_200 = arith.constant 1.000000e+00 : f32
    %1158 = vector.broadcast %cst_200 : f32 to vector<2x32xf32>
    %1159 = arith.addf %1158, %1157 : vector<2x32xf32>
    %1160 = arith.divf %1158, %1159 : vector<2x32xf32>
    %1161 = vector.extract_strided_slice %1078 {offsets = [2, 0, 0], sizes = [1, 2, 32], strides = [1, 1, 1]} : vector<8x2x32xf32> to vector<1x2x32xf32>
    %1162 = vector.shape_cast %1161 : vector<1x2x32xf32> to vector<2x32xf32>
    %1163 = vector.extract_strided_slice %1151 {offsets = [0, 32], sizes = [2, 32], strides = [1, 1]} : vector<2x96xf32> to vector<2x32xf32>
    %1164 = arith.addf %1162, %1163 : vector<2x32xf32>
    %1165 = arith.negf %1164 : vector<2x32xf32>
    %1166 = math.exp %1165 : vector<2x32xf32>
    %cst_201 = arith.constant 1.000000e+00 : f32
    %1167 = vector.broadcast %cst_201 : f32 to vector<2x32xf32>
    %1168 = arith.addf %1167, %1166 : vector<2x32xf32>
    %1169 = arith.divf %1167, %1168 : vector<2x32xf32>
    %1170 = vector.extract_strided_slice %1079 {offsets = [2, 0, 0], sizes = [1, 2, 32], strides = [1, 1, 1]} : vector<8x2x32xf32> to vector<1x2x32xf32>
    %1171 = vector.shape_cast %1170 : vector<1x2x32xf32> to vector<2x32xf32>
    %1172 = vector.extract_strided_slice %1151 {offsets = [0, 64], sizes = [2, 32], strides = [1, 1]} : vector<2x96xf32> to vector<2x32xf32>
    %1173 = vector.broadcast %1083 : vector<1x32xf32> to vector<2x32xf32>
    %1174 = arith.addf %1172, %1173 : vector<2x32xf32>
    %1175 = arith.mulf %1160, %1174 : vector<2x32xf32>
    %1176 = arith.addf %1171, %1175 : vector<2x32xf32>
    %1177 = math.tanh %1176 : vector<2x32xf32>
    %cst_202 = arith.constant 1.000000e+00 : f32
    %1178 = vector.broadcast %cst_202 : f32 to vector<2x32xf32>
    %1179 = arith.subf %1178, %1169 : vector<2x32xf32>
    %1180 = arith.mulf %1179, %1177 : vector<2x32xf32>
    %1181 = arith.mulf %1169, %1149 : vector<2x32xf32>
    %1182 = arith.addf %1180, %1181 : vector<2x32xf32>
    %1183 = arith.truncf %1182 : vector<2x32xf32> to vector<2x32xbf16>
    %cst_203 = arith.constant dense<0.000000e+00> : vector<2x96xf32>
    %1184 = tpu.matmul %1183, %1081, %cst_203 {dimension_numbers = #tpu.dot_dimension_numbers<[1], [0], [0], [1], [0, 0, 1, 1], [], []>} : vector<2x32xbf16>, vector<32x96xbf16>, vector<2x96xf32> -> vector<2x96xf32>
    %1185 = vector.extract_strided_slice %1077 {offsets = [3, 0, 0], sizes = [1, 2, 32], strides = [1, 1, 1]} : vector<8x2x32xf32> to vector<1x2x32xf32>
    %1186 = vector.shape_cast %1185 : vector<1x2x32xf32> to vector<2x32xf32>
    %1187 = vector.extract_strided_slice %1184 {offsets = [0, 0], sizes = [2, 32], strides = [1, 1]} : vector<2x96xf32> to vector<2x32xf32>
    %1188 = arith.addf %1186, %1187 : vector<2x32xf32>
    %1189 = arith.negf %1188 : vector<2x32xf32>
    %1190 = math.exp %1189 : vector<2x32xf32>
    %cst_204 = arith.constant 1.000000e+00 : f32
    %1191 = vector.broadcast %cst_204 : f32 to vector<2x32xf32>
    %1192 = arith.addf %1191, %1190 : vector<2x32xf32>
    %1193 = arith.divf %1191, %1192 : vector<2x32xf32>
    %1194 = vector.extract_strided_slice %1078 {offsets = [3, 0, 0], sizes = [1, 2, 32], strides = [1, 1, 1]} : vector<8x2x32xf32> to vector<1x2x32xf32>
    %1195 = vector.shape_cast %1194 : vector<1x2x32xf32> to vector<2x32xf32>
    %1196 = vector.extract_strided_slice %1184 {offsets = [0, 32], sizes = [2, 32], strides = [1, 1]} : vector<2x96xf32> to vector<2x32xf32>
    %1197 = arith.addf %1195, %1196 : vector<2x32xf32>
    %1198 = arith.negf %1197 : vector<2x32xf32>
    %1199 = math.exp %1198 : vector<2x32xf32>
    %cst_205 = arith.constant 1.000000e+00 : f32
    %1200 = vector.broadcast %cst_205 : f32 to vector<2x32xf32>
    %1201 = arith.addf %1200, %1199 : vector<2x32xf32>
    %1202 = arith.divf %1200, %1201 : vector<2x32xf32>
    %1203 = vector.extract_strided_slice %1079 {offsets = [3, 0, 0], sizes = [1, 2, 32], strides = [1, 1, 1]} : vector<8x2x32xf32> to vector<1x2x32xf32>
    %1204 = vector.shape_cast %1203 : vector<1x2x32xf32> to vector<2x32xf32>
    %1205 = vector.extract_strided_slice %1184 {offsets = [0, 64], sizes = [2, 32], strides = [1, 1]} : vector<2x96xf32> to vector<2x32xf32>
    %1206 = vector.broadcast %1083 : vector<1x32xf32> to vector<2x32xf32>
    %1207 = arith.addf %1205, %1206 : vector<2x32xf32>
    %1208 = arith.mulf %1193, %1207 : vector<2x32xf32>
    %1209 = arith.addf %1204, %1208 : vector<2x32xf32>
    %1210 = math.tanh %1209 : vector<2x32xf32>
    %cst_206 = arith.constant 1.000000e+00 : f32
    %1211 = vector.broadcast %cst_206 : f32 to vector<2x32xf32>
    %1212 = arith.subf %1211, %1202 : vector<2x32xf32>
    %1213 = arith.mulf %1212, %1210 : vector<2x32xf32>
    %1214 = arith.mulf %1202, %1182 : vector<2x32xf32>
    %1215 = arith.addf %1213, %1214 : vector<2x32xf32>
    %1216 = arith.truncf %1215 : vector<2x32xf32> to vector<2x32xbf16>
    %cst_207 = arith.constant dense<0.000000e+00> : vector<2x96xf32>
    %1217 = tpu.matmul %1216, %1081, %cst_207 {dimension_numbers = #tpu.dot_dimension_numbers<[1], [0], [0], [1], [0, 0, 1, 1], [], []>} : vector<2x32xbf16>, vector<32x96xbf16>, vector<2x96xf32> -> vector<2x96xf32>
    %1218 = vector.extract_strided_slice %1077 {offsets = [4, 0, 0], sizes = [1, 2, 32], strides = [1, 1, 1]} : vector<8x2x32xf32> to vector<1x2x32xf32>
    %1219 = vector.shape_cast %1218 : vector<1x2x32xf32> to vector<2x32xf32>
    %1220 = vector.extract_strided_slice %1217 {offsets = [0, 0], sizes = [2, 32], strides = [1, 1]} : vector<2x96xf32> to vector<2x32xf32>
    %1221 = arith.addf %1219, %1220 : vector<2x32xf32>
    %1222 = arith.negf %1221 : vector<2x32xf32>
    %1223 = math.exp %1222 : vector<2x32xf32>
    %cst_208 = arith.constant 1.000000e+00 : f32
    %1224 = vector.broadcast %cst_208 : f32 to vector<2x32xf32>
    %1225 = arith.addf %1224, %1223 : vector<2x32xf32>
    %1226 = arith.divf %1224, %1225 : vector<2x32xf32>
    %1227 = vector.extract_strided_slice %1078 {offsets = [4, 0, 0], sizes = [1, 2, 32], strides = [1, 1, 1]} : vector<8x2x32xf32> to vector<1x2x32xf32>
    %1228 = vector.shape_cast %1227 : vector<1x2x32xf32> to vector<2x32xf32>
    %1229 = vector.extract_strided_slice %1217 {offsets = [0, 32], sizes = [2, 32], strides = [1, 1]} : vector<2x96xf32> to vector<2x32xf32>
    %1230 = arith.addf %1228, %1229 : vector<2x32xf32>
    %1231 = arith.negf %1230 : vector<2x32xf32>
    %1232 = math.exp %1231 : vector<2x32xf32>
    %cst_209 = arith.constant 1.000000e+00 : f32
    %1233 = vector.broadcast %cst_209 : f32 to vector<2x32xf32>
    %1234 = arith.addf %1233, %1232 : vector<2x32xf32>
    %1235 = arith.divf %1233, %1234 : vector<2x32xf32>
    %1236 = vector.extract_strided_slice %1079 {offsets = [4, 0, 0], sizes = [1, 2, 32], strides = [1, 1, 1]} : vector<8x2x32xf32> to vector<1x2x32xf32>
    %1237 = vector.shape_cast %1236 : vector<1x2x32xf32> to vector<2x32xf32>
    %1238 = vector.extract_strided_slice %1217 {offsets = [0, 64], sizes = [2, 32], strides = [1, 1]} : vector<2x96xf32> to vector<2x32xf32>
    %1239 = vector.broadcast %1083 : vector<1x32xf32> to vector<2x32xf32>
    %1240 = arith.addf %1238, %1239 : vector<2x32xf32>
    %1241 = arith.mulf %1226, %1240 : vector<2x32xf32>
    %1242 = arith.addf %1237, %1241 : vector<2x32xf32>
    %1243 = math.tanh %1242 : vector<2x32xf32>
    %cst_210 = arith.constant 1.000000e+00 : f32
    %1244 = vector.broadcast %cst_210 : f32 to vector<2x32xf32>
    %1245 = arith.subf %1244, %1235 : vector<2x32xf32>
    %1246 = arith.mulf %1245, %1243 : vector<2x32xf32>
    %1247 = arith.mulf %1235, %1215 : vector<2x32xf32>
    %1248 = arith.addf %1246, %1247 : vector<2x32xf32>
    %1249 = arith.truncf %1248 : vector<2x32xf32> to vector<2x32xbf16>
    %cst_211 = arith.constant dense<0.000000e+00> : vector<2x96xf32>
    %1250 = tpu.matmul %1249, %1081, %cst_211 {dimension_numbers = #tpu.dot_dimension_numbers<[1], [0], [0], [1], [0, 0, 1, 1], [], []>} : vector<2x32xbf16>, vector<32x96xbf16>, vector<2x96xf32> -> vector<2x96xf32>
    %1251 = vector.extract_strided_slice %1077 {offsets = [5, 0, 0], sizes = [1, 2, 32], strides = [1, 1, 1]} : vector<8x2x32xf32> to vector<1x2x32xf32>
    %1252 = vector.shape_cast %1251 : vector<1x2x32xf32> to vector<2x32xf32>
    %1253 = vector.extract_strided_slice %1250 {offsets = [0, 0], sizes = [2, 32], strides = [1, 1]} : vector<2x96xf32> to vector<2x32xf32>
    %1254 = arith.addf %1252, %1253 : vector<2x32xf32>
    %1255 = arith.negf %1254 : vector<2x32xf32>
    %1256 = math.exp %1255 : vector<2x32xf32>
    %cst_212 = arith.constant 1.000000e+00 : f32
    %1257 = vector.broadcast %cst_212 : f32 to vector<2x32xf32>
    %1258 = arith.addf %1257, %1256 : vector<2x32xf32>
    %1259 = arith.divf %1257, %1258 : vector<2x32xf32>
    %1260 = vector.extract_strided_slice %1078 {offsets = [5, 0, 0], sizes = [1, 2, 32], strides = [1, 1, 1]} : vector<8x2x32xf32> to vector<1x2x32xf32>
    %1261 = vector.shape_cast %1260 : vector<1x2x32xf32> to vector<2x32xf32>
    %1262 = vector.extract_strided_slice %1250 {offsets = [0, 32], sizes = [2, 32], strides = [1, 1]} : vector<2x96xf32> to vector<2x32xf32>
    %1263 = arith.addf %1261, %1262 : vector<2x32xf32>
    %1264 = arith.negf %1263 : vector<2x32xf32>
    %1265 = math.exp %1264 : vector<2x32xf32>
    %cst_213 = arith.constant 1.000000e+00 : f32
    %1266 = vector.broadcast %cst_213 : f32 to vector<2x32xf32>
    %1267 = arith.addf %1266, %1265 : vector<2x32xf32>
    %1268 = arith.divf %1266, %1267 : vector<2x32xf32>
    %1269 = vector.extract_strided_slice %1079 {offsets = [5, 0, 0], sizes = [1, 2, 32], strides = [1, 1, 1]} : vector<8x2x32xf32> to vector<1x2x32xf32>
    %1270 = vector.shape_cast %1269 : vector<1x2x32xf32> to vector<2x32xf32>
    %1271 = vector.extract_strided_slice %1250 {offsets = [0, 64], sizes = [2, 32], strides = [1, 1]} : vector<2x96xf32> to vector<2x32xf32>
    %1272 = vector.broadcast %1083 : vector<1x32xf32> to vector<2x32xf32>
    %1273 = arith.addf %1271, %1272 : vector<2x32xf32>
    %1274 = arith.mulf %1259, %1273 : vector<2x32xf32>
    %1275 = arith.addf %1270, %1274 : vector<2x32xf32>
    %1276 = math.tanh %1275 : vector<2x32xf32>
    %cst_214 = arith.constant 1.000000e+00 : f32
    %1277 = vector.broadcast %cst_214 : f32 to vector<2x32xf32>
    %1278 = arith.subf %1277, %1268 : vector<2x32xf32>
    %1279 = arith.mulf %1278, %1276 : vector<2x32xf32>
    %1280 = arith.mulf %1268, %1248 : vector<2x32xf32>
    %1281 = arith.addf %1279, %1280 : vector<2x32xf32>
    %1282 = arith.truncf %1281 : vector<2x32xf32> to vector<2x32xbf16>
    %cst_215 = arith.constant dense<0.000000e+00> : vector<2x96xf32>
    %1283 = tpu.matmul %1282, %1081, %cst_215 {dimension_numbers = #tpu.dot_dimension_numbers<[1], [0], [0], [1], [0, 0, 1, 1], [], []>} : vector<2x32xbf16>, vector<32x96xbf16>, vector<2x96xf32> -> vector<2x96xf32>
    %1284 = vector.extract_strided_slice %1077 {offsets = [6, 0, 0], sizes = [1, 2, 32], strides = [1, 1, 1]} : vector<8x2x32xf32> to vector<1x2x32xf32>
    %1285 = vector.shape_cast %1284 : vector<1x2x32xf32> to vector<2x32xf32>
    %1286 = vector.extract_strided_slice %1283 {offsets = [0, 0], sizes = [2, 32], strides = [1, 1]} : vector<2x96xf32> to vector<2x32xf32>
    %1287 = arith.addf %1285, %1286 : vector<2x32xf32>
    %1288 = arith.negf %1287 : vector<2x32xf32>
    %1289 = math.exp %1288 : vector<2x32xf32>
    %cst_216 = arith.constant 1.000000e+00 : f32
    %1290 = vector.broadcast %cst_216 : f32 to vector<2x32xf32>
    %1291 = arith.addf %1290, %1289 : vector<2x32xf32>
    %1292 = arith.divf %1290, %1291 : vector<2x32xf32>
    %1293 = vector.extract_strided_slice %1078 {offsets = [6, 0, 0], sizes = [1, 2, 32], strides = [1, 1, 1]} : vector<8x2x32xf32> to vector<1x2x32xf32>
    %1294 = vector.shape_cast %1293 : vector<1x2x32xf32> to vector<2x32xf32>
    %1295 = vector.extract_strided_slice %1283 {offsets = [0, 32], sizes = [2, 32], strides = [1, 1]} : vector<2x96xf32> to vector<2x32xf32>
    %1296 = arith.addf %1294, %1295 : vector<2x32xf32>
    %1297 = arith.negf %1296 : vector<2x32xf32>
    %1298 = math.exp %1297 : vector<2x32xf32>
    %cst_217 = arith.constant 1.000000e+00 : f32
    %1299 = vector.broadcast %cst_217 : f32 to vector<2x32xf32>
    %1300 = arith.addf %1299, %1298 : vector<2x32xf32>
    %1301 = arith.divf %1299, %1300 : vector<2x32xf32>
    %1302 = vector.extract_strided_slice %1079 {offsets = [6, 0, 0], sizes = [1, 2, 32], strides = [1, 1, 1]} : vector<8x2x32xf32> to vector<1x2x32xf32>
    %1303 = vector.shape_cast %1302 : vector<1x2x32xf32> to vector<2x32xf32>
    %1304 = vector.extract_strided_slice %1283 {offsets = [0, 64], sizes = [2, 32], strides = [1, 1]} : vector<2x96xf32> to vector<2x32xf32>
    %1305 = vector.broadcast %1083 : vector<1x32xf32> to vector<2x32xf32>
    %1306 = arith.addf %1304, %1305 : vector<2x32xf32>
    %1307 = arith.mulf %1292, %1306 : vector<2x32xf32>
    %1308 = arith.addf %1303, %1307 : vector<2x32xf32>
    %1309 = math.tanh %1308 : vector<2x32xf32>
    %cst_218 = arith.constant 1.000000e+00 : f32
    %1310 = vector.broadcast %cst_218 : f32 to vector<2x32xf32>
    %1311 = arith.subf %1310, %1301 : vector<2x32xf32>
    %1312 = arith.mulf %1311, %1309 : vector<2x32xf32>
    %1313 = arith.mulf %1301, %1281 : vector<2x32xf32>
    %1314 = arith.addf %1312, %1313 : vector<2x32xf32>
    %1315 = arith.truncf %1314 : vector<2x32xf32> to vector<2x32xbf16>
    %cst_219 = arith.constant dense<0.000000e+00> : vector<2x96xf32>
    %1316 = tpu.matmul %1315, %1081, %cst_219 {dimension_numbers = #tpu.dot_dimension_numbers<[1], [0], [0], [1], [0, 0, 1, 1], [], []>} : vector<2x32xbf16>, vector<32x96xbf16>, vector<2x96xf32> -> vector<2x96xf32>
    %1317 = vector.extract_strided_slice %1077 {offsets = [7, 0, 0], sizes = [1, 2, 32], strides = [1, 1, 1]} : vector<8x2x32xf32> to vector<1x2x32xf32>
    %1318 = vector.shape_cast %1317 : vector<1x2x32xf32> to vector<2x32xf32>
    %1319 = vector.extract_strided_slice %1316 {offsets = [0, 0], sizes = [2, 32], strides = [1, 1]} : vector<2x96xf32> to vector<2x32xf32>
    %1320 = arith.addf %1318, %1319 : vector<2x32xf32>
    %1321 = arith.negf %1320 : vector<2x32xf32>
    %1322 = math.exp %1321 : vector<2x32xf32>
    %cst_220 = arith.constant 1.000000e+00 : f32
    %1323 = vector.broadcast %cst_220 : f32 to vector<2x32xf32>
    %1324 = arith.addf %1323, %1322 : vector<2x32xf32>
    %1325 = arith.divf %1323, %1324 : vector<2x32xf32>
    %1326 = vector.extract_strided_slice %1078 {offsets = [7, 0, 0], sizes = [1, 2, 32], strides = [1, 1, 1]} : vector<8x2x32xf32> to vector<1x2x32xf32>
    %1327 = vector.shape_cast %1326 : vector<1x2x32xf32> to vector<2x32xf32>
    %1328 = vector.extract_strided_slice %1316 {offsets = [0, 32], sizes = [2, 32], strides = [1, 1]} : vector<2x96xf32> to vector<2x32xf32>
    %1329 = arith.addf %1327, %1328 : vector<2x32xf32>
    %1330 = arith.negf %1329 : vector<2x32xf32>
    %1331 = math.exp %1330 : vector<2x32xf32>
    %cst_221 = arith.constant 1.000000e+00 : f32
    %1332 = vector.broadcast %cst_221 : f32 to vector<2x32xf32>
    %1333 = arith.addf %1332, %1331 : vector<2x32xf32>
    %1334 = arith.divf %1332, %1333 : vector<2x32xf32>
    %1335 = vector.extract_strided_slice %1079 {offsets = [7, 0, 0], sizes = [1, 2, 32], strides = [1, 1, 1]} : vector<8x2x32xf32> to vector<1x2x32xf32>
    %1336 = vector.shape_cast %1335 : vector<1x2x32xf32> to vector<2x32xf32>
    %1337 = vector.extract_strided_slice %1316 {offsets = [0, 64], sizes = [2, 32], strides = [1, 1]} : vector<2x96xf32> to vector<2x32xf32>
    %1338 = vector.broadcast %1083 : vector<1x32xf32> to vector<2x32xf32>
    %1339 = arith.addf %1337, %1338 : vector<2x32xf32>
    %1340 = arith.mulf %1325, %1339 : vector<2x32xf32>
    %1341 = arith.addf %1336, %1340 : vector<2x32xf32>
    %1342 = math.tanh %1341 : vector<2x32xf32>
    %cst_222 = arith.constant 1.000000e+00 : f32
    %1343 = vector.broadcast %cst_222 : f32 to vector<2x32xf32>
    %1344 = arith.subf %1343, %1334 : vector<2x32xf32>
    %1345 = arith.mulf %1344, %1342 : vector<2x32xf32>
    %1346 = arith.mulf %1334, %1314 : vector<2x32xf32>
    %1347 = arith.addf %1345, %1346 : vector<2x32xf32>
    %1348 = tpu.concatenate %1116, %1149, %1182, %1215, %1248, %1281, %1314, %1347 in 0 : vector<2x32xf32>, vector<2x32xf32>, vector<2x32xf32>, vector<2x32xf32>, vector<2x32xf32>, vector<2x32xf32>, vector<2x32xf32>, vector<2x32xf32> -> vector<16x32xf32>
    %1349 = arith.truncf %1348 : vector<16x32xf32> to vector<16x32xbf16>
    %c1_223 = arith.constant 1 : index
    %c0_224 = arith.constant 0 : index
    %c0_225 = arith.constant 0 : index
    %1350 = vector.load %arg2[%c1_223, %c0_224, %c0_225] : memref<2x32x96xbf16, #tpu.memory_space<vmem>>, vector<1x32x96xbf16>
    %1351 = vector.shape_cast %1350 : vector<1x32x96xbf16> to vector<32x96xbf16>
    %cst_226 = arith.constant dense<0.000000e+00> : vector<16x96xf32>
    %1352 = tpu.matmul %1349, %1351, %cst_226 {dimension_numbers = #tpu.dot_dimension_numbers<[1], [0], [0], [1], [0, 0, 1, 1], [], []>} : vector<16x32xbf16>, vector<32x96xbf16>, vector<16x96xf32> -> vector<16x96xf32>
    %c1_227 = arith.constant 1 : index
    %c0_228 = arith.constant 0 : index
    %c0_229 = arith.constant 0 : index
    %1353 = vector.load %arg4[%c1_227, %c0_228, %c0_229] : memref<2x1x96xf32, #tpu.memory_space<vmem>>, vector<1x1x96xf32>
    %1354 = vector.shape_cast %1353 : vector<1x1x96xf32> to vector<1x96xf32>
    %1355 = vector.broadcast %1354 : vector<1x96xf32> to vector<16x96xf32>
    %1356 = arith.addf %1352, %1355 : vector<16x96xf32>
    %1357 = vector.shape_cast %1356 : vector<16x96xf32> to vector<8x2x96xf32>
    %1358 = vector.extract_strided_slice %1357 {offsets = [0, 0, 0], sizes = [8, 2, 32], strides = [1, 1, 1]} : vector<8x2x96xf32> to vector<8x2x32xf32>
    %1359 = vector.extract_strided_slice %1357 {offsets = [0, 0, 32], sizes = [8, 2, 32], strides = [1, 1, 1]} : vector<8x2x96xf32> to vector<8x2x32xf32>
    %1360 = vector.extract_strided_slice %1357 {offsets = [0, 0, 64], sizes = [8, 2, 32], strides = [1, 1, 1]} : vector<8x2x96xf32> to vector<8x2x32xf32>
    %c1_230 = arith.constant 1 : index
    %c0_231 = arith.constant 0 : index
    %c0_232 = arith.constant 0 : index
    %1361 = vector.load %arg3[%c1_230, %c0_231, %c0_232] : memref<2x32x96xbf16, #tpu.memory_space<vmem>>, vector<1x32x96xbf16>
    %1362 = vector.shape_cast %1361 : vector<1x32x96xbf16> to vector<32x96xbf16>
    %c1_233 = arith.constant 1 : index
    %c0_234 = arith.constant 0 : index
    %c0_235 = arith.constant 0 : index
    %1363 = vector.load %arg5[%c1_233, %c0_234, %c0_235] : memref<2x1x32xf32, #tpu.memory_space<vmem>>, vector<1x1x32xf32>
    %1364 = vector.shape_cast %1363 : vector<1x1x32xf32> to vector<1x32xf32>
    %1365 = arith.truncf %566 : vector<2x32xf32> to vector<2x32xbf16>
    %cst_236 = arith.constant dense<0.000000e+00> : vector<2x96xf32>
    %1366 = tpu.matmul %1365, %1362, %cst_236 {dimension_numbers = #tpu.dot_dimension_numbers<[1], [0], [0], [1], [0, 0, 1, 1], [], []>} : vector<2x32xbf16>, vector<32x96xbf16>, vector<2x96xf32> -> vector<2x96xf32>
    %1367 = vector.extract_strided_slice %1358 {offsets = [0, 0, 0], sizes = [1, 2, 32], strides = [1, 1, 1]} : vector<8x2x32xf32> to vector<1x2x32xf32>
    %1368 = vector.shape_cast %1367 : vector<1x2x32xf32> to vector<2x32xf32>
    %1369 = vector.extract_strided_slice %1366 {offsets = [0, 0], sizes = [2, 32], strides = [1, 1]} : vector<2x96xf32> to vector<2x32xf32>
    %1370 = arith.addf %1368, %1369 : vector<2x32xf32>
    %1371 = arith.negf %1370 : vector<2x32xf32>
    %1372 = math.exp %1371 : vector<2x32xf32>
    %cst_237 = arith.constant 1.000000e+00 : f32
    %1373 = vector.broadcast %cst_237 : f32 to vector<2x32xf32>
    %1374 = arith.addf %1373, %1372 : vector<2x32xf32>
    %1375 = arith.divf %1373, %1374 : vector<2x32xf32>
    %1376 = vector.extract_strided_slice %1359 {offsets = [0, 0, 0], sizes = [1, 2, 32], strides = [1, 1, 1]} : vector<8x2x32xf32> to vector<1x2x32xf32>
    %1377 = vector.shape_cast %1376 : vector<1x2x32xf32> to vector<2x32xf32>
    %1378 = vector.extract_strided_slice %1366 {offsets = [0, 32], sizes = [2, 32], strides = [1, 1]} : vector<2x96xf32> to vector<2x32xf32>
    %1379 = arith.addf %1377, %1378 : vector<2x32xf32>
    %1380 = arith.negf %1379 : vector<2x32xf32>
    %1381 = math.exp %1380 : vector<2x32xf32>
    %cst_238 = arith.constant 1.000000e+00 : f32
    %1382 = vector.broadcast %cst_238 : f32 to vector<2x32xf32>
    %1383 = arith.addf %1382, %1381 : vector<2x32xf32>
    %1384 = arith.divf %1382, %1383 : vector<2x32xf32>
    %1385 = vector.extract_strided_slice %1360 {offsets = [0, 0, 0], sizes = [1, 2, 32], strides = [1, 1, 1]} : vector<8x2x32xf32> to vector<1x2x32xf32>
    %1386 = vector.shape_cast %1385 : vector<1x2x32xf32> to vector<2x32xf32>
    %1387 = vector.extract_strided_slice %1366 {offsets = [0, 64], sizes = [2, 32], strides = [1, 1]} : vector<2x96xf32> to vector<2x32xf32>
    %1388 = vector.broadcast %1364 : vector<1x32xf32> to vector<2x32xf32>
    %1389 = arith.addf %1387, %1388 : vector<2x32xf32>
    %1390 = arith.mulf %1375, %1389 : vector<2x32xf32>
    %1391 = arith.addf %1386, %1390 : vector<2x32xf32>
    %1392 = math.tanh %1391 : vector<2x32xf32>
    %cst_239 = arith.constant 1.000000e+00 : f32
    %1393 = vector.broadcast %cst_239 : f32 to vector<2x32xf32>
    %1394 = arith.subf %1393, %1384 : vector<2x32xf32>
    %1395 = arith.mulf %1394, %1392 : vector<2x32xf32>
    %1396 = arith.mulf %1384, %566 : vector<2x32xf32>
    %1397 = arith.addf %1395, %1396 : vector<2x32xf32>
    %1398 = arith.truncf %1397 : vector<2x32xf32> to vector<2x32xbf16>
    %cst_240 = arith.constant dense<0.000000e+00> : vector<2x96xf32>
    %1399 = tpu.matmul %1398, %1362, %cst_240 {dimension_numbers = #tpu.dot_dimension_numbers<[1], [0], [0], [1], [0, 0, 1, 1], [], []>} : vector<2x32xbf16>, vector<32x96xbf16>, vector<2x96xf32> -> vector<2x96xf32>
    %1400 = vector.extract_strided_slice %1358 {offsets = [1, 0, 0], sizes = [1, 2, 32], strides = [1, 1, 1]} : vector<8x2x32xf32> to vector<1x2x32xf32>
    %1401 = vector.shape_cast %1400 : vector<1x2x32xf32> to vector<2x32xf32>
    %1402 = vector.extract_strided_slice %1399 {offsets = [0, 0], sizes = [2, 32], strides = [1, 1]} : vector<2x96xf32> to vector<2x32xf32>
    %1403 = arith.addf %1401, %1402 : vector<2x32xf32>
    %1404 = arith.negf %1403 : vector<2x32xf32>
    %1405 = math.exp %1404 : vector<2x32xf32>
    %cst_241 = arith.constant 1.000000e+00 : f32
    %1406 = vector.broadcast %cst_241 : f32 to vector<2x32xf32>
    %1407 = arith.addf %1406, %1405 : vector<2x32xf32>
    %1408 = arith.divf %1406, %1407 : vector<2x32xf32>
    %1409 = vector.extract_strided_slice %1359 {offsets = [1, 0, 0], sizes = [1, 2, 32], strides = [1, 1, 1]} : vector<8x2x32xf32> to vector<1x2x32xf32>
    %1410 = vector.shape_cast %1409 : vector<1x2x32xf32> to vector<2x32xf32>
    %1411 = vector.extract_strided_slice %1399 {offsets = [0, 32], sizes = [2, 32], strides = [1, 1]} : vector<2x96xf32> to vector<2x32xf32>
    %1412 = arith.addf %1410, %1411 : vector<2x32xf32>
    %1413 = arith.negf %1412 : vector<2x32xf32>
    %1414 = math.exp %1413 : vector<2x32xf32>
    %cst_242 = arith.constant 1.000000e+00 : f32
    %1415 = vector.broadcast %cst_242 : f32 to vector<2x32xf32>
    %1416 = arith.addf %1415, %1414 : vector<2x32xf32>
    %1417 = arith.divf %1415, %1416 : vector<2x32xf32>
    %1418 = vector.extract_strided_slice %1360 {offsets = [1, 0, 0], sizes = [1, 2, 32], strides = [1, 1, 1]} : vector<8x2x32xf32> to vector<1x2x32xf32>
    %1419 = vector.shape_cast %1418 : vector<1x2x32xf32> to vector<2x32xf32>
    %1420 = vector.extract_strided_slice %1399 {offsets = [0, 64], sizes = [2, 32], strides = [1, 1]} : vector<2x96xf32> to vector<2x32xf32>
    %1421 = vector.broadcast %1364 : vector<1x32xf32> to vector<2x32xf32>
    %1422 = arith.addf %1420, %1421 : vector<2x32xf32>
    %1423 = arith.mulf %1408, %1422 : vector<2x32xf32>
    %1424 = arith.addf %1419, %1423 : vector<2x32xf32>
    %1425 = math.tanh %1424 : vector<2x32xf32>
    %cst_243 = arith.constant 1.000000e+00 : f32
    %1426 = vector.broadcast %cst_243 : f32 to vector<2x32xf32>
    %1427 = arith.subf %1426, %1417 : vector<2x32xf32>
    %1428 = arith.mulf %1427, %1425 : vector<2x32xf32>
    %1429 = arith.mulf %1417, %1397 : vector<2x32xf32>
    %1430 = arith.addf %1428, %1429 : vector<2x32xf32>
    %1431 = arith.truncf %1430 : vector<2x32xf32> to vector<2x32xbf16>
    %cst_244 = arith.constant dense<0.000000e+00> : vector<2x96xf32>
    %1432 = tpu.matmul %1431, %1362, %cst_244 {dimension_numbers = #tpu.dot_dimension_numbers<[1], [0], [0], [1], [0, 0, 1, 1], [], []>} : vector<2x32xbf16>, vector<32x96xbf16>, vector<2x96xf32> -> vector<2x96xf32>
    %1433 = vector.extract_strided_slice %1358 {offsets = [2, 0, 0], sizes = [1, 2, 32], strides = [1, 1, 1]} : vector<8x2x32xf32> to vector<1x2x32xf32>
    %1434 = vector.shape_cast %1433 : vector<1x2x32xf32> to vector<2x32xf32>
    %1435 = vector.extract_strided_slice %1432 {offsets = [0, 0], sizes = [2, 32], strides = [1, 1]} : vector<2x96xf32> to vector<2x32xf32>
    %1436 = arith.addf %1434, %1435 : vector<2x32xf32>
    %1437 = arith.negf %1436 : vector<2x32xf32>
    %1438 = math.exp %1437 : vector<2x32xf32>
    %cst_245 = arith.constant 1.000000e+00 : f32
    %1439 = vector.broadcast %cst_245 : f32 to vector<2x32xf32>
    %1440 = arith.addf %1439, %1438 : vector<2x32xf32>
    %1441 = arith.divf %1439, %1440 : vector<2x32xf32>
    %1442 = vector.extract_strided_slice %1359 {offsets = [2, 0, 0], sizes = [1, 2, 32], strides = [1, 1, 1]} : vector<8x2x32xf32> to vector<1x2x32xf32>
    %1443 = vector.shape_cast %1442 : vector<1x2x32xf32> to vector<2x32xf32>
    %1444 = vector.extract_strided_slice %1432 {offsets = [0, 32], sizes = [2, 32], strides = [1, 1]} : vector<2x96xf32> to vector<2x32xf32>
    %1445 = arith.addf %1443, %1444 : vector<2x32xf32>
    %1446 = arith.negf %1445 : vector<2x32xf32>
    %1447 = math.exp %1446 : vector<2x32xf32>
    %cst_246 = arith.constant 1.000000e+00 : f32
    %1448 = vector.broadcast %cst_246 : f32 to vector<2x32xf32>
    %1449 = arith.addf %1448, %1447 : vector<2x32xf32>
    %1450 = arith.divf %1448, %1449 : vector<2x32xf32>
    %1451 = vector.extract_strided_slice %1360 {offsets = [2, 0, 0], sizes = [1, 2, 32], strides = [1, 1, 1]} : vector<8x2x32xf32> to vector<1x2x32xf32>
    %1452 = vector.shape_cast %1451 : vector<1x2x32xf32> to vector<2x32xf32>
    %1453 = vector.extract_strided_slice %1432 {offsets = [0, 64], sizes = [2, 32], strides = [1, 1]} : vector<2x96xf32> to vector<2x32xf32>
    %1454 = vector.broadcast %1364 : vector<1x32xf32> to vector<2x32xf32>
    %1455 = arith.addf %1453, %1454 : vector<2x32xf32>
    %1456 = arith.mulf %1441, %1455 : vector<2x32xf32>
    %1457 = arith.addf %1452, %1456 : vector<2x32xf32>
    %1458 = math.tanh %1457 : vector<2x32xf32>
    %cst_247 = arith.constant 1.000000e+00 : f32
    %1459 = vector.broadcast %cst_247 : f32 to vector<2x32xf32>
    %1460 = arith.subf %1459, %1450 : vector<2x32xf32>
    %1461 = arith.mulf %1460, %1458 : vector<2x32xf32>
    %1462 = arith.mulf %1450, %1430 : vector<2x32xf32>
    %1463 = arith.addf %1461, %1462 : vector<2x32xf32>
    %1464 = arith.truncf %1463 : vector<2x32xf32> to vector<2x32xbf16>
    %cst_248 = arith.constant dense<0.000000e+00> : vector<2x96xf32>
    %1465 = tpu.matmul %1464, %1362, %cst_248 {dimension_numbers = #tpu.dot_dimension_numbers<[1], [0], [0], [1], [0, 0, 1, 1], [], []>} : vector<2x32xbf16>, vector<32x96xbf16>, vector<2x96xf32> -> vector<2x96xf32>
    %1466 = vector.extract_strided_slice %1358 {offsets = [3, 0, 0], sizes = [1, 2, 32], strides = [1, 1, 1]} : vector<8x2x32xf32> to vector<1x2x32xf32>
    %1467 = vector.shape_cast %1466 : vector<1x2x32xf32> to vector<2x32xf32>
    %1468 = vector.extract_strided_slice %1465 {offsets = [0, 0], sizes = [2, 32], strides = [1, 1]} : vector<2x96xf32> to vector<2x32xf32>
    %1469 = arith.addf %1467, %1468 : vector<2x32xf32>
    %1470 = arith.negf %1469 : vector<2x32xf32>
    %1471 = math.exp %1470 : vector<2x32xf32>
    %cst_249 = arith.constant 1.000000e+00 : f32
    %1472 = vector.broadcast %cst_249 : f32 to vector<2x32xf32>
    %1473 = arith.addf %1472, %1471 : vector<2x32xf32>
    %1474 = arith.divf %1472, %1473 : vector<2x32xf32>
    %1475 = vector.extract_strided_slice %1359 {offsets = [3, 0, 0], sizes = [1, 2, 32], strides = [1, 1, 1]} : vector<8x2x32xf32> to vector<1x2x32xf32>
    %1476 = vector.shape_cast %1475 : vector<1x2x32xf32> to vector<2x32xf32>
    %1477 = vector.extract_strided_slice %1465 {offsets = [0, 32], sizes = [2, 32], strides = [1, 1]} : vector<2x96xf32> to vector<2x32xf32>
    %1478 = arith.addf %1476, %1477 : vector<2x32xf32>
    %1479 = arith.negf %1478 : vector<2x32xf32>
    %1480 = math.exp %1479 : vector<2x32xf32>
    %cst_250 = arith.constant 1.000000e+00 : f32
    %1481 = vector.broadcast %cst_250 : f32 to vector<2x32xf32>
    %1482 = arith.addf %1481, %1480 : vector<2x32xf32>
    %1483 = arith.divf %1481, %1482 : vector<2x32xf32>
    %1484 = vector.extract_strided_slice %1360 {offsets = [3, 0, 0], sizes = [1, 2, 32], strides = [1, 1, 1]} : vector<8x2x32xf32> to vector<1x2x32xf32>
    %1485 = vector.shape_cast %1484 : vector<1x2x32xf32> to vector<2x32xf32>
    %1486 = vector.extract_strided_slice %1465 {offsets = [0, 64], sizes = [2, 32], strides = [1, 1]} : vector<2x96xf32> to vector<2x32xf32>
    %1487 = vector.broadcast %1364 : vector<1x32xf32> to vector<2x32xf32>
    %1488 = arith.addf %1486, %1487 : vector<2x32xf32>
    %1489 = arith.mulf %1474, %1488 : vector<2x32xf32>
    %1490 = arith.addf %1485, %1489 : vector<2x32xf32>
    %1491 = math.tanh %1490 : vector<2x32xf32>
    %cst_251 = arith.constant 1.000000e+00 : f32
    %1492 = vector.broadcast %cst_251 : f32 to vector<2x32xf32>
    %1493 = arith.subf %1492, %1483 : vector<2x32xf32>
    %1494 = arith.mulf %1493, %1491 : vector<2x32xf32>
    %1495 = arith.mulf %1483, %1463 : vector<2x32xf32>
    %1496 = arith.addf %1494, %1495 : vector<2x32xf32>
    %1497 = arith.truncf %1496 : vector<2x32xf32> to vector<2x32xbf16>
    %cst_252 = arith.constant dense<0.000000e+00> : vector<2x96xf32>
    %1498 = tpu.matmul %1497, %1362, %cst_252 {dimension_numbers = #tpu.dot_dimension_numbers<[1], [0], [0], [1], [0, 0, 1, 1], [], []>} : vector<2x32xbf16>, vector<32x96xbf16>, vector<2x96xf32> -> vector<2x96xf32>
    %1499 = vector.extract_strided_slice %1358 {offsets = [4, 0, 0], sizes = [1, 2, 32], strides = [1, 1, 1]} : vector<8x2x32xf32> to vector<1x2x32xf32>
    %1500 = vector.shape_cast %1499 : vector<1x2x32xf32> to vector<2x32xf32>
    %1501 = vector.extract_strided_slice %1498 {offsets = [0, 0], sizes = [2, 32], strides = [1, 1]} : vector<2x96xf32> to vector<2x32xf32>
    %1502 = arith.addf %1500, %1501 : vector<2x32xf32>
    %1503 = arith.negf %1502 : vector<2x32xf32>
    %1504 = math.exp %1503 : vector<2x32xf32>
    %cst_253 = arith.constant 1.000000e+00 : f32
    %1505 = vector.broadcast %cst_253 : f32 to vector<2x32xf32>
    %1506 = arith.addf %1505, %1504 : vector<2x32xf32>
    %1507 = arith.divf %1505, %1506 : vector<2x32xf32>
    %1508 = vector.extract_strided_slice %1359 {offsets = [4, 0, 0], sizes = [1, 2, 32], strides = [1, 1, 1]} : vector<8x2x32xf32> to vector<1x2x32xf32>
    %1509 = vector.shape_cast %1508 : vector<1x2x32xf32> to vector<2x32xf32>
    %1510 = vector.extract_strided_slice %1498 {offsets = [0, 32], sizes = [2, 32], strides = [1, 1]} : vector<2x96xf32> to vector<2x32xf32>
    %1511 = arith.addf %1509, %1510 : vector<2x32xf32>
    %1512 = arith.negf %1511 : vector<2x32xf32>
    %1513 = math.exp %1512 : vector<2x32xf32>
    %cst_254 = arith.constant 1.000000e+00 : f32
    %1514 = vector.broadcast %cst_254 : f32 to vector<2x32xf32>
    %1515 = arith.addf %1514, %1513 : vector<2x32xf32>
    %1516 = arith.divf %1514, %1515 : vector<2x32xf32>
    %1517 = vector.extract_strided_slice %1360 {offsets = [4, 0, 0], sizes = [1, 2, 32], strides = [1, 1, 1]} : vector<8x2x32xf32> to vector<1x2x32xf32>
    %1518 = vector.shape_cast %1517 : vector<1x2x32xf32> to vector<2x32xf32>
    %1519 = vector.extract_strided_slice %1498 {offsets = [0, 64], sizes = [2, 32], strides = [1, 1]} : vector<2x96xf32> to vector<2x32xf32>
    %1520 = vector.broadcast %1364 : vector<1x32xf32> to vector<2x32xf32>
    %1521 = arith.addf %1519, %1520 : vector<2x32xf32>
    %1522 = arith.mulf %1507, %1521 : vector<2x32xf32>
    %1523 = arith.addf %1518, %1522 : vector<2x32xf32>
    %1524 = math.tanh %1523 : vector<2x32xf32>
    %cst_255 = arith.constant 1.000000e+00 : f32
    %1525 = vector.broadcast %cst_255 : f32 to vector<2x32xf32>
    %1526 = arith.subf %1525, %1516 : vector<2x32xf32>
    %1527 = arith.mulf %1526, %1524 : vector<2x32xf32>
    %1528 = arith.mulf %1516, %1496 : vector<2x32xf32>
    %1529 = arith.addf %1527, %1528 : vector<2x32xf32>
    %1530 = arith.truncf %1529 : vector<2x32xf32> to vector<2x32xbf16>
    %cst_256 = arith.constant dense<0.000000e+00> : vector<2x96xf32>
    %1531 = tpu.matmul %1530, %1362, %cst_256 {dimension_numbers = #tpu.dot_dimension_numbers<[1], [0], [0], [1], [0, 0, 1, 1], [], []>} : vector<2x32xbf16>, vector<32x96xbf16>, vector<2x96xf32> -> vector<2x96xf32>
    %1532 = vector.extract_strided_slice %1358 {offsets = [5, 0, 0], sizes = [1, 2, 32], strides = [1, 1, 1]} : vector<8x2x32xf32> to vector<1x2x32xf32>
    %1533 = vector.shape_cast %1532 : vector<1x2x32xf32> to vector<2x32xf32>
    %1534 = vector.extract_strided_slice %1531 {offsets = [0, 0], sizes = [2, 32], strides = [1, 1]} : vector<2x96xf32> to vector<2x32xf32>
    %1535 = arith.addf %1533, %1534 : vector<2x32xf32>
    %1536 = arith.negf %1535 : vector<2x32xf32>
    %1537 = math.exp %1536 : vector<2x32xf32>
    %cst_257 = arith.constant 1.000000e+00 : f32
    %1538 = vector.broadcast %cst_257 : f32 to vector<2x32xf32>
    %1539 = arith.addf %1538, %1537 : vector<2x32xf32>
    %1540 = arith.divf %1538, %1539 : vector<2x32xf32>
    %1541 = vector.extract_strided_slice %1359 {offsets = [5, 0, 0], sizes = [1, 2, 32], strides = [1, 1, 1]} : vector<8x2x32xf32> to vector<1x2x32xf32>
    %1542 = vector.shape_cast %1541 : vector<1x2x32xf32> to vector<2x32xf32>
    %1543 = vector.extract_strided_slice %1531 {offsets = [0, 32], sizes = [2, 32], strides = [1, 1]} : vector<2x96xf32> to vector<2x32xf32>
    %1544 = arith.addf %1542, %1543 : vector<2x32xf32>
    %1545 = arith.negf %1544 : vector<2x32xf32>
    %1546 = math.exp %1545 : vector<2x32xf32>
    %cst_258 = arith.constant 1.000000e+00 : f32
    %1547 = vector.broadcast %cst_258 : f32 to vector<2x32xf32>
    %1548 = arith.addf %1547, %1546 : vector<2x32xf32>
    %1549 = arith.divf %1547, %1548 : vector<2x32xf32>
    %1550 = vector.extract_strided_slice %1360 {offsets = [5, 0, 0], sizes = [1, 2, 32], strides = [1, 1, 1]} : vector<8x2x32xf32> to vector<1x2x32xf32>
    %1551 = vector.shape_cast %1550 : vector<1x2x32xf32> to vector<2x32xf32>
    %1552 = vector.extract_strided_slice %1531 {offsets = [0, 64], sizes = [2, 32], strides = [1, 1]} : vector<2x96xf32> to vector<2x32xf32>
    %1553 = vector.broadcast %1364 : vector<1x32xf32> to vector<2x32xf32>
    %1554 = arith.addf %1552, %1553 : vector<2x32xf32>
    %1555 = arith.mulf %1540, %1554 : vector<2x32xf32>
    %1556 = arith.addf %1551, %1555 : vector<2x32xf32>
    %1557 = math.tanh %1556 : vector<2x32xf32>
    %cst_259 = arith.constant 1.000000e+00 : f32
    %1558 = vector.broadcast %cst_259 : f32 to vector<2x32xf32>
    %1559 = arith.subf %1558, %1549 : vector<2x32xf32>
    %1560 = arith.mulf %1559, %1557 : vector<2x32xf32>
    %1561 = arith.mulf %1549, %1529 : vector<2x32xf32>
    %1562 = arith.addf %1560, %1561 : vector<2x32xf32>
    %1563 = arith.truncf %1562 : vector<2x32xf32> to vector<2x32xbf16>
    %cst_260 = arith.constant dense<0.000000e+00> : vector<2x96xf32>
    %1564 = tpu.matmul %1563, %1362, %cst_260 {dimension_numbers = #tpu.dot_dimension_numbers<[1], [0], [0], [1], [0, 0, 1, 1], [], []>} : vector<2x32xbf16>, vector<32x96xbf16>, vector<2x96xf32> -> vector<2x96xf32>
    %1565 = vector.extract_strided_slice %1358 {offsets = [6, 0, 0], sizes = [1, 2, 32], strides = [1, 1, 1]} : vector<8x2x32xf32> to vector<1x2x32xf32>
    %1566 = vector.shape_cast %1565 : vector<1x2x32xf32> to vector<2x32xf32>
    %1567 = vector.extract_strided_slice %1564 {offsets = [0, 0], sizes = [2, 32], strides = [1, 1]} : vector<2x96xf32> to vector<2x32xf32>
    %1568 = arith.addf %1566, %1567 : vector<2x32xf32>
    %1569 = arith.negf %1568 : vector<2x32xf32>
    %1570 = math.exp %1569 : vector<2x32xf32>
    %cst_261 = arith.constant 1.000000e+00 : f32
    %1571 = vector.broadcast %cst_261 : f32 to vector<2x32xf32>
    %1572 = arith.addf %1571, %1570 : vector<2x32xf32>
    %1573 = arith.divf %1571, %1572 : vector<2x32xf32>
    %1574 = vector.extract_strided_slice %1359 {offsets = [6, 0, 0], sizes = [1, 2, 32], strides = [1, 1, 1]} : vector<8x2x32xf32> to vector<1x2x32xf32>
    %1575 = vector.shape_cast %1574 : vector<1x2x32xf32> to vector<2x32xf32>
    %1576 = vector.extract_strided_slice %1564 {offsets = [0, 32], sizes = [2, 32], strides = [1, 1]} : vector<2x96xf32> to vector<2x32xf32>
    %1577 = arith.addf %1575, %1576 : vector<2x32xf32>
    %1578 = arith.negf %1577 : vector<2x32xf32>
    %1579 = math.exp %1578 : vector<2x32xf32>
    %cst_262 = arith.constant 1.000000e+00 : f32
    %1580 = vector.broadcast %cst_262 : f32 to vector<2x32xf32>
    %1581 = arith.addf %1580, %1579 : vector<2x32xf32>
    %1582 = arith.divf %1580, %1581 : vector<2x32xf32>
    %1583 = vector.extract_strided_slice %1360 {offsets = [6, 0, 0], sizes = [1, 2, 32], strides = [1, 1, 1]} : vector<8x2x32xf32> to vector<1x2x32xf32>
    %1584 = vector.shape_cast %1583 : vector<1x2x32xf32> to vector<2x32xf32>
    %1585 = vector.extract_strided_slice %1564 {offsets = [0, 64], sizes = [2, 32], strides = [1, 1]} : vector<2x96xf32> to vector<2x32xf32>
    %1586 = vector.broadcast %1364 : vector<1x32xf32> to vector<2x32xf32>
    %1587 = arith.addf %1585, %1586 : vector<2x32xf32>
    %1588 = arith.mulf %1573, %1587 : vector<2x32xf32>
    %1589 = arith.addf %1584, %1588 : vector<2x32xf32>
    %1590 = math.tanh %1589 : vector<2x32xf32>
    %cst_263 = arith.constant 1.000000e+00 : f32
    %1591 = vector.broadcast %cst_263 : f32 to vector<2x32xf32>
    %1592 = arith.subf %1591, %1582 : vector<2x32xf32>
    %1593 = arith.mulf %1592, %1590 : vector<2x32xf32>
    %1594 = arith.mulf %1582, %1562 : vector<2x32xf32>
    %1595 = arith.addf %1593, %1594 : vector<2x32xf32>
    %1596 = arith.truncf %1595 : vector<2x32xf32> to vector<2x32xbf16>
    %cst_264 = arith.constant dense<0.000000e+00> : vector<2x96xf32>
    %1597 = tpu.matmul %1596, %1362, %cst_264 {dimension_numbers = #tpu.dot_dimension_numbers<[1], [0], [0], [1], [0, 0, 1, 1], [], []>} : vector<2x32xbf16>, vector<32x96xbf16>, vector<2x96xf32> -> vector<2x96xf32>
    %1598 = vector.extract_strided_slice %1358 {offsets = [7, 0, 0], sizes = [1, 2, 32], strides = [1, 1, 1]} : vector<8x2x32xf32> to vector<1x2x32xf32>
    %1599 = vector.shape_cast %1598 : vector<1x2x32xf32> to vector<2x32xf32>
    %1600 = vector.extract_strided_slice %1597 {offsets = [0, 0], sizes = [2, 32], strides = [1, 1]} : vector<2x96xf32> to vector<2x32xf32>
    %1601 = arith.addf %1599, %1600 : vector<2x32xf32>
    %1602 = arith.negf %1601 : vector<2x32xf32>
    %1603 = math.exp %1602 : vector<2x32xf32>
    %cst_265 = arith.constant 1.000000e+00 : f32
    %1604 = vector.broadcast %cst_265 : f32 to vector<2x32xf32>
    %1605 = arith.addf %1604, %1603 : vector<2x32xf32>
    %1606 = arith.divf %1604, %1605 : vector<2x32xf32>
    %1607 = vector.extract_strided_slice %1359 {offsets = [7, 0, 0], sizes = [1, 2, 32], strides = [1, 1, 1]} : vector<8x2x32xf32> to vector<1x2x32xf32>
    %1608 = vector.shape_cast %1607 : vector<1x2x32xf32> to vector<2x32xf32>
    %1609 = vector.extract_strided_slice %1597 {offsets = [0, 32], sizes = [2, 32], strides = [1, 1]} : vector<2x96xf32> to vector<2x32xf32>
    %1610 = arith.addf %1608, %1609 : vector<2x32xf32>
    %1611 = arith.negf %1610 : vector<2x32xf32>
    %1612 = math.exp %1611 : vector<2x32xf32>
    %cst_266 = arith.constant 1.000000e+00 : f32
    %1613 = vector.broadcast %cst_266 : f32 to vector<2x32xf32>
    %1614 = arith.addf %1613, %1612 : vector<2x32xf32>
    %1615 = arith.divf %1613, %1614 : vector<2x32xf32>
    %1616 = vector.extract_strided_slice %1360 {offsets = [7, 0, 0], sizes = [1, 2, 32], strides = [1, 1, 1]} : vector<8x2x32xf32> to vector<1x2x32xf32>
    %1617 = vector.shape_cast %1616 : vector<1x2x32xf32> to vector<2x32xf32>
    %1618 = vector.extract_strided_slice %1597 {offsets = [0, 64], sizes = [2, 32], strides = [1, 1]} : vector<2x96xf32> to vector<2x32xf32>
    %1619 = vector.broadcast %1364 : vector<1x32xf32> to vector<2x32xf32>
    %1620 = arith.addf %1618, %1619 : vector<2x32xf32>
    %1621 = arith.mulf %1606, %1620 : vector<2x32xf32>
    %1622 = arith.addf %1617, %1621 : vector<2x32xf32>
    %1623 = math.tanh %1622 : vector<2x32xf32>
    %cst_267 = arith.constant 1.000000e+00 : f32
    %1624 = vector.broadcast %cst_267 : f32 to vector<2x32xf32>
    %1625 = arith.subf %1624, %1615 : vector<2x32xf32>
    %1626 = arith.mulf %1625, %1623 : vector<2x32xf32>
    %1627 = arith.mulf %1615, %1595 : vector<2x32xf32>
    %1628 = arith.addf %1626, %1627 : vector<2x32xf32>
    %1629 = tpu.concatenate %1397, %1430, %1463, %1496, %1529, %1562, %1595, %1628 in 0 : vector<2x32xf32>, vector<2x32xf32>, vector<2x32xf32>, vector<2x32xf32>, vector<2x32xf32>, vector<2x32xf32>, vector<2x32xf32>, vector<2x32xf32> -> vector<16x32xf32>
    %1630 = vector.shape_cast %1629 : vector<16x32xf32> to vector<8x2x32xf32>
    %1631 = arith.truncf %1630 : vector<8x2x32xf32> to vector<8x2x32xbf16>
    %c0_268 = arith.constant 0 : index
    %c0_269 = arith.constant 0 : index
    %c0_270 = arith.constant 0 : index
    %1632 = vector.load %arg9[%c0_268, %c0_269, %c0_270] : memref<8x16x32xbf16, #tpu.memory_space<vmem>>, vector<8x16x32xbf16>
    "tpu.trace_start"() <{level = 10 : i32, message = "tbh,tmh->tbm"}> : () -> ()
    %cst_271 = arith.constant dense<0.000000e+00> : vector<8x2x16xf32>
    %1633 = tpu.matmul %1631, %1632, %cst_271 {dimension_numbers = #tpu.dot_dimension_numbers<[2], [2], [1], [1], [0, 0, 0, 1, 1, 1], [0], [0]>} : vector<8x2x32xbf16>, vector<8x16x32xbf16>, vector<8x2x16xf32> -> vector<8x2x16xf32>
    "tpu.trace_stop"() : () -> ()
    %cst_272 = arith.constant dense<0xFF800000> : vector<8x2xf32>
    %1634 = vector.multi_reduction <maximumf>, %1633, %cst_272 [2] : vector<8x2x16xf32> to vector<8x2xf32>
    %1635 = vector.shape_cast %1634 : vector<8x2xf32> to vector<8x2x1xf32>
    %1636 = vector.broadcast %1635 : vector<8x2x1xf32> to vector<8x2x16xf32>
    %1637 = arith.subf %1633, %1636 : vector<8x2x16xf32>
    %1638 = math.exp %1637 : vector<8x2x16xf32>
    %cst_273 = arith.constant dense<0.000000e+00> : vector<8x2xf32>
    %1639 = vector.multi_reduction <add>, %1638, %cst_273 [2] : vector<8x2x16xf32> to vector<8x2xf32>
    %1640 = vector.shape_cast %1639 : vector<8x2xf32> to vector<8x2x1xf32>
    %1641 = vector.broadcast %1640 : vector<8x2x1xf32> to vector<8x2x16xf32>
    %1642 = arith.divf %1638, %1641 : vector<8x2x16xf32>
    %c0_274 = arith.constant 0 : index
    %c0_275 = arith.constant 0 : index
    %c0_276 = arith.constant 0 : index
    %1643 = vector.load %arg10[%c0_274, %c0_275, %c0_276] : memref<8x16x3xf32, #tpu.memory_space<vmem>>, vector<8x16x3xf32>
    "tpu.trace_start"() <{level = 10 : i32, message = "tbm,tmk->tbk"}> : () -> ()
    %cst_277 = arith.constant dense<0.000000e+00> : vector<8x2x3xf32>
    %1644 = tpu.matmul %1642, %1643, %cst_277 {dimension_numbers = #tpu.dot_dimension_numbers<[2], [1], [1], [2], [0, 0, 0, 1, 1, 2], [0], [0]>} : vector<8x2x16xf32>, vector<8x16x3xf32>, vector<8x2x3xf32> -> vector<8x2x3xf32>
    "tpu.trace_stop"() : () -> ()
    %1645 = vector.shape_cast %1644 : vector<8x2x3xf32> to vector<16x3xf32>
    %c0_278 = arith.constant 0 : index
    %c0_279 = arith.constant 0 : index
    %1646 = vector.load %arg19[%c0_278, %c0_279] : memref<16x3xf32, #tpu.memory_space<vmem>>, vector<16x3xf32>
    tpu.vector_store %arg19[%c0_278, %c0_279], %1645 {strides = array<i32>} : memref<16x3xf32, #tpu.memory_space<vmem>>, vector<16x3xf32>,
    %c0_280 = arith.constant 0 : index
    %c0_281 = arith.constant 0 : index
    %c0_282 = arith.constant 0 : index
    %1647 = vector.load %arg6[%c0_280, %c0_281, %c0_282] : memref<2x32x128xbf16, #tpu.memory_space<vmem>>, vector<1x32x128xbf16>
    %1648 = vector.shape_cast %1647 : vector<1x32x128xbf16> to vector<32x128xbf16>
    %cst_283 = arith.constant dense<0.000000e+00> : vector<16x128xf32>
    %1649 = tpu.matmul %6, %1648, %cst_283 {dimension_numbers = #tpu.dot_dimension_numbers<[1], [0], [0], [1], [0, 0, 1, 1], [], []>} : vector<16x32xbf16>, vector<32x128xbf16>, vector<16x128xf32> -> vector<16x128xf32>
    %c0_284 = arith.constant 0 : index
    %c0_285 = arith.constant 0 : index
    %c0_286 = arith.constant 0 : index
    %1650 = vector.load %arg8[%c0_284, %c0_285, %c0_286] : memref<2x1x128xf32, #tpu.memory_space<vmem>>, vector<1x1x128xf32>
    %1651 = vector.shape_cast %1650 : vector<1x1x128xf32> to vector<1x128xf32>
    %1652 = vector.broadcast %1651 : vector<1x128xf32> to vector<16x128xf32>
    %1653 = arith.addf %1649, %1652 : vector<16x128xf32>
    %1654 = vector.shape_cast %1653 : vector<16x128xf32> to vector<8x2x128xf32>
    %c0_287 = arith.constant 0 : index
    %c0_288 = arith.constant 0 : index
    %c0_289 = arith.constant 0 : index
    %1655 = vector.load %arg7[%c0_287, %c0_288, %c0_289] : memref<2x32x128xbf16, #tpu.memory_space<vmem>>, vector<1x32x128xbf16>
    %1656 = vector.shape_cast %1655 : vector<1x32x128xbf16> to vector<32x128xbf16>
    %1657 = vector.extract_strided_slice %1654 {offsets = [0, 0, 0], sizes = [1, 2, 128], strides = [1, 1, 1]} : vector<8x2x128xf32> to vector<1x2x128xf32>
    %1658 = vector.shape_cast %1657 : vector<1x2x128xf32> to vector<2x128xf32>
    %1659 = arith.truncf %816 : vector<2x32xf32> to vector<2x32xbf16>
    %cst_290 = arith.constant dense<0.000000e+00> : vector<2x128xf32>
    %1660 = tpu.matmul %1659, %1656, %cst_290 {dimension_numbers = #tpu.dot_dimension_numbers<[1], [0], [0], [1], [0, 0, 1, 1], [], []>} : vector<2x32xbf16>, vector<32x128xbf16>, vector<2x128xf32> -> vector<2x128xf32>
    %1661 = arith.addf %1658, %1660 : vector<2x128xf32>
    %1662 = vector.extract_strided_slice %1661 {offsets = [0, 0], sizes = [2, 32], strides = [1, 1]} : vector<2x128xf32> to vector<2x32xf32>
    %1663 = arith.negf %1662 : vector<2x32xf32>
    %1664 = math.exp %1663 : vector<2x32xf32>
    %cst_291 = arith.constant 1.000000e+00 : f32
    %1665 = vector.broadcast %cst_291 : f32 to vector<2x32xf32>
    %1666 = arith.addf %1665, %1664 : vector<2x32xf32>
    %1667 = arith.divf %1665, %1666 : vector<2x32xf32>
    %1668 = vector.extract_strided_slice %1661 {offsets = [0, 32], sizes = [2, 32], strides = [1, 1]} : vector<2x128xf32> to vector<2x32xf32>
    %1669 = arith.negf %1668 : vector<2x32xf32>
    %1670 = math.exp %1669 : vector<2x32xf32>
    %cst_292 = arith.constant 1.000000e+00 : f32
    %1671 = vector.broadcast %cst_292 : f32 to vector<2x32xf32>
    %1672 = arith.addf %1671, %1670 : vector<2x32xf32>
    %1673 = arith.divf %1671, %1672 : vector<2x32xf32>
    %1674 = vector.extract_strided_slice %1661 {offsets = [0, 64], sizes = [2, 32], strides = [1, 1]} : vector<2x128xf32> to vector<2x32xf32>
    %1675 = math.tanh %1674 : vector<2x32xf32>
    %1676 = vector.extract_strided_slice %1661 {offsets = [0, 96], sizes = [2, 32], strides = [1, 1]} : vector<2x128xf32> to vector<2x32xf32>
    %1677 = arith.negf %1676 : vector<2x32xf32>
    %1678 = math.exp %1677 : vector<2x32xf32>
    %cst_293 = arith.constant 1.000000e+00 : f32
    %1679 = vector.broadcast %cst_293 : f32 to vector<2x32xf32>
    %1680 = arith.addf %1679, %1678 : vector<2x32xf32>
    %1681 = arith.divf %1679, %1680 : vector<2x32xf32>
    %1682 = arith.mulf %1673, %814 : vector<2x32xf32>
    %1683 = arith.mulf %1667, %1675 : vector<2x32xf32>
    %1684 = arith.addf %1682, %1683 : vector<2x32xf32>
    %1685 = math.tanh %1684 : vector<2x32xf32>
    %1686 = arith.mulf %1681, %1685 : vector<2x32xf32>
    %1687 = vector.extract_strided_slice %1654 {offsets = [1, 0, 0], sizes = [1, 2, 128], strides = [1, 1, 1]} : vector<8x2x128xf32> to vector<1x2x128xf32>
    %1688 = vector.shape_cast %1687 : vector<1x2x128xf32> to vector<2x128xf32>
    %1689 = arith.truncf %1686 : vector<2x32xf32> to vector<2x32xbf16>
    %cst_294 = arith.constant dense<0.000000e+00> : vector<2x128xf32>
    %1690 = tpu.matmul %1689, %1656, %cst_294 {dimension_numbers = #tpu.dot_dimension_numbers<[1], [0], [0], [1], [0, 0, 1, 1], [], []>} : vector<2x32xbf16>, vector<32x128xbf16>, vector<2x128xf32> -> vector<2x128xf32>
    %1691 = arith.addf %1688, %1690 : vector<2x128xf32>
    %1692 = vector.extract_strided_slice %1691 {offsets = [0, 0], sizes = [2, 32], strides = [1, 1]} : vector<2x128xf32> to vector<2x32xf32>
    %1693 = arith.negf %1692 : vector<2x32xf32>
    %1694 = math.exp %1693 : vector<2x32xf32>
    %cst_295 = arith.constant 1.000000e+00 : f32
    %1695 = vector.broadcast %cst_295 : f32 to vector<2x32xf32>
    %1696 = arith.addf %1695, %1694 : vector<2x32xf32>
    %1697 = arith.divf %1695, %1696 : vector<2x32xf32>
    %1698 = vector.extract_strided_slice %1691 {offsets = [0, 32], sizes = [2, 32], strides = [1, 1]} : vector<2x128xf32> to vector<2x32xf32>
    %1699 = arith.negf %1698 : vector<2x32xf32>
    %1700 = math.exp %1699 : vector<2x32xf32>
    %cst_296 = arith.constant 1.000000e+00 : f32
    %1701 = vector.broadcast %cst_296 : f32 to vector<2x32xf32>
    %1702 = arith.addf %1701, %1700 : vector<2x32xf32>
    %1703 = arith.divf %1701, %1702 : vector<2x32xf32>
    %1704 = vector.extract_strided_slice %1691 {offsets = [0, 64], sizes = [2, 32], strides = [1, 1]} : vector<2x128xf32> to vector<2x32xf32>
    %1705 = math.tanh %1704 : vector<2x32xf32>
    %1706 = vector.extract_strided_slice %1691 {offsets = [0, 96], sizes = [2, 32], strides = [1, 1]} : vector<2x128xf32> to vector<2x32xf32>
    %1707 = arith.negf %1706 : vector<2x32xf32>
    %1708 = math.exp %1707 : vector<2x32xf32>
    %cst_297 = arith.constant 1.000000e+00 : f32
    %1709 = vector.broadcast %cst_297 : f32 to vector<2x32xf32>
    %1710 = arith.addf %1709, %1708 : vector<2x32xf32>
    %1711 = arith.divf %1709, %1710 : vector<2x32xf32>
    %1712 = arith.mulf %1703, %1684 : vector<2x32xf32>
    %1713 = arith.mulf %1697, %1705 : vector<2x32xf32>
    %1714 = arith.addf %1712, %1713 : vector<2x32xf32>
    %1715 = math.tanh %1714 : vector<2x32xf32>
    %1716 = arith.mulf %1711, %1715 : vector<2x32xf32>
    %1717 = vector.extract_strided_slice %1654 {offsets = [2, 0, 0], sizes = [1, 2, 128], strides = [1, 1, 1]} : vector<8x2x128xf32> to vector<1x2x128xf32>
    %1718 = vector.shape_cast %1717 : vector<1x2x128xf32> to vector<2x128xf32>
    %1719 = arith.truncf %1716 : vector<2x32xf32> to vector<2x32xbf16>
    %cst_298 = arith.constant dense<0.000000e+00> : vector<2x128xf32>
    %1720 = tpu.matmul %1719, %1656, %cst_298 {dimension_numbers = #tpu.dot_dimension_numbers<[1], [0], [0], [1], [0, 0, 1, 1], [], []>} : vector<2x32xbf16>, vector<32x128xbf16>, vector<2x128xf32> -> vector<2x128xf32>
    %1721 = arith.addf %1718, %1720 : vector<2x128xf32>
    %1722 = vector.extract_strided_slice %1721 {offsets = [0, 0], sizes = [2, 32], strides = [1, 1]} : vector<2x128xf32> to vector<2x32xf32>
    %1723 = arith.negf %1722 : vector<2x32xf32>
    %1724 = math.exp %1723 : vector<2x32xf32>
    %cst_299 = arith.constant 1.000000e+00 : f32
    %1725 = vector.broadcast %cst_299 : f32 to vector<2x32xf32>
    %1726 = arith.addf %1725, %1724 : vector<2x32xf32>
    %1727 = arith.divf %1725, %1726 : vector<2x32xf32>
    %1728 = vector.extract_strided_slice %1721 {offsets = [0, 32], sizes = [2, 32], strides = [1, 1]} : vector<2x128xf32> to vector<2x32xf32>
    %1729 = arith.negf %1728 : vector<2x32xf32>
    %1730 = math.exp %1729 : vector<2x32xf32>
    %cst_300 = arith.constant 1.000000e+00 : f32
    %1731 = vector.broadcast %cst_300 : f32 to vector<2x32xf32>
    %1732 = arith.addf %1731, %1730 : vector<2x32xf32>
    %1733 = arith.divf %1731, %1732 : vector<2x32xf32>
    %1734 = vector.extract_strided_slice %1721 {offsets = [0, 64], sizes = [2, 32], strides = [1, 1]} : vector<2x128xf32> to vector<2x32xf32>
    %1735 = math.tanh %1734 : vector<2x32xf32>
    %1736 = vector.extract_strided_slice %1721 {offsets = [0, 96], sizes = [2, 32], strides = [1, 1]} : vector<2x128xf32> to vector<2x32xf32>
    %1737 = arith.negf %1736 : vector<2x32xf32>
    %1738 = math.exp %1737 : vector<2x32xf32>
    %cst_301 = arith.constant 1.000000e+00 : f32
    %1739 = vector.broadcast %cst_301 : f32 to vector<2x32xf32>
    %1740 = arith.addf %1739, %1738 : vector<2x32xf32>
    %1741 = arith.divf %1739, %1740 : vector<2x32xf32>
    %1742 = arith.mulf %1733, %1714 : vector<2x32xf32>
    %1743 = arith.mulf %1727, %1735 : vector<2x32xf32>
    %1744 = arith.addf %1742, %1743 : vector<2x32xf32>
    %1745 = math.tanh %1744 : vector<2x32xf32>
    %1746 = arith.mulf %1741, %1745 : vector<2x32xf32>
    %1747 = vector.extract_strided_slice %1654 {offsets = [3, 0, 0], sizes = [1, 2, 128], strides = [1, 1, 1]} : vector<8x2x128xf32> to vector<1x2x128xf32>
    %1748 = vector.shape_cast %1747 : vector<1x2x128xf32> to vector<2x128xf32>
    %1749 = arith.truncf %1746 : vector<2x32xf32> to vector<2x32xbf16>
    %cst_302 = arith.constant dense<0.000000e+00> : vector<2x128xf32>
    %1750 = tpu.matmul %1749, %1656, %cst_302 {dimension_numbers = #tpu.dot_dimension_numbers<[1], [0], [0], [1], [0, 0, 1, 1], [], []>} : vector<2x32xbf16>, vector<32x128xbf16>, vector<2x128xf32> -> vector<2x128xf32>
    %1751 = arith.addf %1748, %1750 : vector<2x128xf32>
    %1752 = vector.extract_strided_slice %1751 {offsets = [0, 0], sizes = [2, 32], strides = [1, 1]} : vector<2x128xf32> to vector<2x32xf32>
    %1753 = arith.negf %1752 : vector<2x32xf32>
    %1754 = math.exp %1753 : vector<2x32xf32>
    %cst_303 = arith.constant 1.000000e+00 : f32
    %1755 = vector.broadcast %cst_303 : f32 to vector<2x32xf32>
    %1756 = arith.addf %1755, %1754 : vector<2x32xf32>
    %1757 = arith.divf %1755, %1756 : vector<2x32xf32>
    %1758 = vector.extract_strided_slice %1751 {offsets = [0, 32], sizes = [2, 32], strides = [1, 1]} : vector<2x128xf32> to vector<2x32xf32>
    %1759 = arith.negf %1758 : vector<2x32xf32>
    %1760 = math.exp %1759 : vector<2x32xf32>
    %cst_304 = arith.constant 1.000000e+00 : f32
    %1761 = vector.broadcast %cst_304 : f32 to vector<2x32xf32>
    %1762 = arith.addf %1761, %1760 : vector<2x32xf32>
    %1763 = arith.divf %1761, %1762 : vector<2x32xf32>
    %1764 = vector.extract_strided_slice %1751 {offsets = [0, 64], sizes = [2, 32], strides = [1, 1]} : vector<2x128xf32> to vector<2x32xf32>
    %1765 = math.tanh %1764 : vector<2x32xf32>
    %1766 = vector.extract_strided_slice %1751 {offsets = [0, 96], sizes = [2, 32], strides = [1, 1]} : vector<2x128xf32> to vector<2x32xf32>
    %1767 = arith.negf %1766 : vector<2x32xf32>
    %1768 = math.exp %1767 : vector<2x32xf32>
    %cst_305 = arith.constant 1.000000e+00 : f32
    %1769 = vector.broadcast %cst_305 : f32 to vector<2x32xf32>
    %1770 = arith.addf %1769, %1768 : vector<2x32xf32>
    %1771 = arith.divf %1769, %1770 : vector<2x32xf32>
    %1772 = arith.mulf %1763, %1744 : vector<2x32xf32>
    %1773 = arith.mulf %1757, %1765 : vector<2x32xf32>
    %1774 = arith.addf %1772, %1773 : vector<2x32xf32>
    %1775 = math.tanh %1774 : vector<2x32xf32>
    %1776 = arith.mulf %1771, %1775 : vector<2x32xf32>
    %1777 = vector.extract_strided_slice %1654 {offsets = [4, 0, 0], sizes = [1, 2, 128], strides = [1, 1, 1]} : vector<8x2x128xf32> to vector<1x2x128xf32>
    %1778 = vector.shape_cast %1777 : vector<1x2x128xf32> to vector<2x128xf32>
    %1779 = arith.truncf %1776 : vector<2x32xf32> to vector<2x32xbf16>
    %cst_306 = arith.constant dense<0.000000e+00> : vector<2x128xf32>
    %1780 = tpu.matmul %1779, %1656, %cst_306 {dimension_numbers = #tpu.dot_dimension_numbers<[1], [0], [0], [1], [0, 0, 1, 1], [], []>} : vector<2x32xbf16>, vector<32x128xbf16>, vector<2x128xf32> -> vector<2x128xf32>
    %1781 = arith.addf %1778, %1780 : vector<2x128xf32>
    %1782 = vector.extract_strided_slice %1781 {offsets = [0, 0], sizes = [2, 32], strides = [1, 1]} : vector<2x128xf32> to vector<2x32xf32>
    %1783 = arith.negf %1782 : vector<2x32xf32>
    %1784 = math.exp %1783 : vector<2x32xf32>
    %cst_307 = arith.constant 1.000000e+00 : f32
    %1785 = vector.broadcast %cst_307 : f32 to vector<2x32xf32>
    %1786 = arith.addf %1785, %1784 : vector<2x32xf32>
    %1787 = arith.divf %1785, %1786 : vector<2x32xf32>
    %1788 = vector.extract_strided_slice %1781 {offsets = [0, 32], sizes = [2, 32], strides = [1, 1]} : vector<2x128xf32> to vector<2x32xf32>
    %1789 = arith.negf %1788 : vector<2x32xf32>
    %1790 = math.exp %1789 : vector<2x32xf32>
    %cst_308 = arith.constant 1.000000e+00 : f32
    %1791 = vector.broadcast %cst_308 : f32 to vector<2x32xf32>
    %1792 = arith.addf %1791, %1790 : vector<2x32xf32>
    %1793 = arith.divf %1791, %1792 : vector<2x32xf32>
    %1794 = vector.extract_strided_slice %1781 {offsets = [0, 64], sizes = [2, 32], strides = [1, 1]} : vector<2x128xf32> to vector<2x32xf32>
    %1795 = math.tanh %1794 : vector<2x32xf32>
    %1796 = vector.extract_strided_slice %1781 {offsets = [0, 96], sizes = [2, 32], strides = [1, 1]} : vector<2x128xf32> to vector<2x32xf32>
    %1797 = arith.negf %1796 : vector<2x32xf32>
    %1798 = math.exp %1797 : vector<2x32xf32>
    %cst_309 = arith.constant 1.000000e+00 : f32
    %1799 = vector.broadcast %cst_309 : f32 to vector<2x32xf32>
    %1800 = arith.addf %1799, %1798 : vector<2x32xf32>
    %1801 = arith.divf %1799, %1800 : vector<2x32xf32>
    %1802 = arith.mulf %1793, %1774 : vector<2x32xf32>
    %1803 = arith.mulf %1787, %1795 : vector<2x32xf32>
    %1804 = arith.addf %1802, %1803 : vector<2x32xf32>
    %1805 = math.tanh %1804 : vector<2x32xf32>
    %1806 = arith.mulf %1801, %1805 : vector<2x32xf32>
    %1807 = vector.extract_strided_slice %1654 {offsets = [5, 0, 0], sizes = [1, 2, 128], strides = [1, 1, 1]} : vector<8x2x128xf32> to vector<1x2x128xf32>
    %1808 = vector.shape_cast %1807 : vector<1x2x128xf32> to vector<2x128xf32>
    %1809 = arith.truncf %1806 : vector<2x32xf32> to vector<2x32xbf16>
    %cst_310 = arith.constant dense<0.000000e+00> : vector<2x128xf32>
    %1810 = tpu.matmul %1809, %1656, %cst_310 {dimension_numbers = #tpu.dot_dimension_numbers<[1], [0], [0], [1], [0, 0, 1, 1], [], []>} : vector<2x32xbf16>, vector<32x128xbf16>, vector<2x128xf32> -> vector<2x128xf32>
    %1811 = arith.addf %1808, %1810 : vector<2x128xf32>
    %1812 = vector.extract_strided_slice %1811 {offsets = [0, 0], sizes = [2, 32], strides = [1, 1]} : vector<2x128xf32> to vector<2x32xf32>
    %1813 = arith.negf %1812 : vector<2x32xf32>
    %1814 = math.exp %1813 : vector<2x32xf32>
    %cst_311 = arith.constant 1.000000e+00 : f32
    %1815 = vector.broadcast %cst_311 : f32 to vector<2x32xf32>
    %1816 = arith.addf %1815, %1814 : vector<2x32xf32>
    %1817 = arith.divf %1815, %1816 : vector<2x32xf32>
    %1818 = vector.extract_strided_slice %1811 {offsets = [0, 32], sizes = [2, 32], strides = [1, 1]} : vector<2x128xf32> to vector<2x32xf32>
    %1819 = arith.negf %1818 : vector<2x32xf32>
    %1820 = math.exp %1819 : vector<2x32xf32>
    %cst_312 = arith.constant 1.000000e+00 : f32
    %1821 = vector.broadcast %cst_312 : f32 to vector<2x32xf32>
    %1822 = arith.addf %1821, %1820 : vector<2x32xf32>
    %1823 = arith.divf %1821, %1822 : vector<2x32xf32>
    %1824 = vector.extract_strided_slice %1811 {offsets = [0, 64], sizes = [2, 32], strides = [1, 1]} : vector<2x128xf32> to vector<2x32xf32>
    %1825 = math.tanh %1824 : vector<2x32xf32>
    %1826 = vector.extract_strided_slice %1811 {offsets = [0, 96], sizes = [2, 32], strides = [1, 1]} : vector<2x128xf32> to vector<2x32xf32>
    %1827 = arith.negf %1826 : vector<2x32xf32>
    %1828 = math.exp %1827 : vector<2x32xf32>
    %cst_313 = arith.constant 1.000000e+00 : f32
    %1829 = vector.broadcast %cst_313 : f32 to vector<2x32xf32>
    %1830 = arith.addf %1829, %1828 : vector<2x32xf32>
    %1831 = arith.divf %1829, %1830 : vector<2x32xf32>
    %1832 = arith.mulf %1823, %1804 : vector<2x32xf32>
    %1833 = arith.mulf %1817, %1825 : vector<2x32xf32>
    %1834 = arith.addf %1832, %1833 : vector<2x32xf32>
    %1835 = math.tanh %1834 : vector<2x32xf32>
    %1836 = arith.mulf %1831, %1835 : vector<2x32xf32>
    %1837 = vector.extract_strided_slice %1654 {offsets = [6, 0, 0], sizes = [1, 2, 128], strides = [1, 1, 1]} : vector<8x2x128xf32> to vector<1x2x128xf32>
    %1838 = vector.shape_cast %1837 : vector<1x2x128xf32> to vector<2x128xf32>
    %1839 = arith.truncf %1836 : vector<2x32xf32> to vector<2x32xbf16>
    %cst_314 = arith.constant dense<0.000000e+00> : vector<2x128xf32>
    %1840 = tpu.matmul %1839, %1656, %cst_314 {dimension_numbers = #tpu.dot_dimension_numbers<[1], [0], [0], [1], [0, 0, 1, 1], [], []>} : vector<2x32xbf16>, vector<32x128xbf16>, vector<2x128xf32> -> vector<2x128xf32>
    %1841 = arith.addf %1838, %1840 : vector<2x128xf32>
    %1842 = vector.extract_strided_slice %1841 {offsets = [0, 0], sizes = [2, 32], strides = [1, 1]} : vector<2x128xf32> to vector<2x32xf32>
    %1843 = arith.negf %1842 : vector<2x32xf32>
    %1844 = math.exp %1843 : vector<2x32xf32>
    %cst_315 = arith.constant 1.000000e+00 : f32
    %1845 = vector.broadcast %cst_315 : f32 to vector<2x32xf32>
    %1846 = arith.addf %1845, %1844 : vector<2x32xf32>
    %1847 = arith.divf %1845, %1846 : vector<2x32xf32>
    %1848 = vector.extract_strided_slice %1841 {offsets = [0, 32], sizes = [2, 32], strides = [1, 1]} : vector<2x128xf32> to vector<2x32xf32>
    %1849 = arith.negf %1848 : vector<2x32xf32>
    %1850 = math.exp %1849 : vector<2x32xf32>
    %cst_316 = arith.constant 1.000000e+00 : f32
    %1851 = vector.broadcast %cst_316 : f32 to vector<2x32xf32>
    %1852 = arith.addf %1851, %1850 : vector<2x32xf32>
    %1853 = arith.divf %1851, %1852 : vector<2x32xf32>
    %1854 = vector.extract_strided_slice %1841 {offsets = [0, 64], sizes = [2, 32], strides = [1, 1]} : vector<2x128xf32> to vector<2x32xf32>
    %1855 = math.tanh %1854 : vector<2x32xf32>
    %1856 = vector.extract_strided_slice %1841 {offsets = [0, 96], sizes = [2, 32], strides = [1, 1]} : vector<2x128xf32> to vector<2x32xf32>
    %1857 = arith.negf %1856 : vector<2x32xf32>
    %1858 = math.exp %1857 : vector<2x32xf32>
    %cst_317 = arith.constant 1.000000e+00 : f32
    %1859 = vector.broadcast %cst_317 : f32 to vector<2x32xf32>
    %1860 = arith.addf %1859, %1858 : vector<2x32xf32>
    %1861 = arith.divf %1859, %1860 : vector<2x32xf32>
    %1862 = arith.mulf %1853, %1834 : vector<2x32xf32>
    %1863 = arith.mulf %1847, %1855 : vector<2x32xf32>
    %1864 = arith.addf %1862, %1863 : vector<2x32xf32>
    %1865 = math.tanh %1864 : vector<2x32xf32>
    %1866 = arith.mulf %1861, %1865 : vector<2x32xf32>
    %1867 = vector.extract_strided_slice %1654 {offsets = [7, 0, 0], sizes = [1, 2, 128], strides = [1, 1, 1]} : vector<8x2x128xf32> to vector<1x2x128xf32>
    %1868 = vector.shape_cast %1867 : vector<1x2x128xf32> to vector<2x128xf32>
    %1869 = arith.truncf %1866 : vector<2x32xf32> to vector<2x32xbf16>
    %cst_318 = arith.constant dense<0.000000e+00> : vector<2x128xf32>
    %1870 = tpu.matmul %1869, %1656, %cst_318 {dimension_numbers = #tpu.dot_dimension_numbers<[1], [0], [0], [1], [0, 0, 1, 1], [], []>} : vector<2x32xbf16>, vector<32x128xbf16>, vector<2x128xf32> -> vector<2x128xf32>
    %1871 = arith.addf %1868, %1870 : vector<2x128xf32>
    %1872 = vector.extract_strided_slice %1871 {offsets = [0, 0], sizes = [2, 32], strides = [1, 1]} : vector<2x128xf32> to vector<2x32xf32>
    %1873 = arith.negf %1872 : vector<2x32xf32>
    %1874 = math.exp %1873 : vector<2x32xf32>
    %cst_319 = arith.constant 1.000000e+00 : f32
    %1875 = vector.broadcast %cst_319 : f32 to vector<2x32xf32>
    %1876 = arith.addf %1875, %1874 : vector<2x32xf32>
    %1877 = arith.divf %1875, %1876 : vector<2x32xf32>
    %1878 = vector.extract_strided_slice %1871 {offsets = [0, 32], sizes = [2, 32], strides = [1, 1]} : vector<2x128xf32> to vector<2x32xf32>
    %1879 = arith.negf %1878 : vector<2x32xf32>
    %1880 = math.exp %1879 : vector<2x32xf32>
    %cst_320 = arith.constant 1.000000e+00 : f32
    %1881 = vector.broadcast %cst_320 : f32 to vector<2x32xf32>
    %1882 = arith.addf %1881, %1880 : vector<2x32xf32>
    %1883 = arith.divf %1881, %1882 : vector<2x32xf32>
    %1884 = vector.extract_strided_slice %1871 {offsets = [0, 64], sizes = [2, 32], strides = [1, 1]} : vector<2x128xf32> to vector<2x32xf32>
    %1885 = math.tanh %1884 : vector<2x32xf32>
    %1886 = vector.extract_strided_slice %1871 {offsets = [0, 96], sizes = [2, 32], strides = [1, 1]} : vector<2x128xf32> to vector<2x32xf32>
    %1887 = arith.negf %1886 : vector<2x32xf32>
    %1888 = math.exp %1887 : vector<2x32xf32>
    %cst_321 = arith.constant 1.000000e+00 : f32
    %1889 = vector.broadcast %cst_321 : f32 to vector<2x32xf32>
    %1890 = arith.addf %1889, %1888 : vector<2x32xf32>
    %1891 = arith.divf %1889, %1890 : vector<2x32xf32>
    %1892 = arith.mulf %1883, %1864 : vector<2x32xf32>
    %1893 = arith.mulf %1877, %1885 : vector<2x32xf32>
    %1894 = arith.addf %1892, %1893 : vector<2x32xf32>
    %1895 = math.tanh %1894 : vector<2x32xf32>
    %1896 = arith.mulf %1891, %1895 : vector<2x32xf32>
    %1897 = tpu.concatenate %1686, %1716, %1746, %1776, %1806, %1836, %1866, %1896 in 0 : vector<2x32xf32>, vector<2x32xf32>, vector<2x32xf32>, vector<2x32xf32>, vector<2x32xf32>, vector<2x32xf32>, vector<2x32xf32>, vector<2x32xf32> -> vector<16x32xf32>
    %1898 = arith.truncf %1897 : vector<16x32xf32> to vector<16x32xbf16>
    %c1_322 = arith.constant 1 : index
    %c0_323 = arith.constant 0 : index
    %c0_324 = arith.constant 0 : index
    %1899 = vector.load %arg6[%c1_322, %c0_323, %c0_324] : memref<2x32x128xbf16, #tpu.memory_space<vmem>>, vector<1x32x128xbf16>
    %1900 = vector.shape_cast %1899 : vector<1x32x128xbf16> to vector<32x128xbf16>
    %cst_325 = arith.constant dense<0.000000e+00> : vector<16x128xf32>
    %1901 = tpu.matmul %1898, %1900, %cst_325 {dimension_numbers = #tpu.dot_dimension_numbers<[1], [0], [0], [1], [0, 0, 1, 1], [], []>} : vector<16x32xbf16>, vector<32x128xbf16>, vector<16x128xf32> -> vector<16x128xf32>
    %c1_326 = arith.constant 1 : index
    %c0_327 = arith.constant 0 : index
    %c0_328 = arith.constant 0 : index
    %1902 = vector.load %arg8[%c1_326, %c0_327, %c0_328] : memref<2x1x128xf32, #tpu.memory_space<vmem>>, vector<1x1x128xf32>
    %1903 = vector.shape_cast %1902 : vector<1x1x128xf32> to vector<1x128xf32>
    %1904 = vector.broadcast %1903 : vector<1x128xf32> to vector<16x128xf32>
    %1905 = arith.addf %1901, %1904 : vector<16x128xf32>
    %1906 = vector.shape_cast %1905 : vector<16x128xf32> to vector<8x2x128xf32>
    %c1_329 = arith.constant 1 : index
    %c0_330 = arith.constant 0 : index
    %c0_331 = arith.constant 0 : index
    %1907 = vector.load %arg7[%c1_329, %c0_330, %c0_331] : memref<2x32x128xbf16, #tpu.memory_space<vmem>>, vector<1x32x128xbf16>
    %1908 = vector.shape_cast %1907 : vector<1x32x128xbf16> to vector<32x128xbf16>
    %1909 = vector.extract_strided_slice %1906 {offsets = [0, 0, 0], sizes = [1, 2, 128], strides = [1, 1, 1]} : vector<8x2x128xf32> to vector<1x2x128xf32>
    %1910 = vector.shape_cast %1909 : vector<1x2x128xf32> to vector<2x128xf32>
    %1911 = arith.truncf %1068 : vector<2x32xf32> to vector<2x32xbf16>
    %cst_332 = arith.constant dense<0.000000e+00> : vector<2x128xf32>
    %1912 = tpu.matmul %1911, %1908, %cst_332 {dimension_numbers = #tpu.dot_dimension_numbers<[1], [0], [0], [1], [0, 0, 1, 1], [], []>} : vector<2x32xbf16>, vector<32x128xbf16>, vector<2x128xf32> -> vector<2x128xf32>
    %1913 = arith.addf %1910, %1912 : vector<2x128xf32>
    %1914 = vector.extract_strided_slice %1913 {offsets = [0, 0], sizes = [2, 32], strides = [1, 1]} : vector<2x128xf32> to vector<2x32xf32>
    %1915 = arith.negf %1914 : vector<2x32xf32>
    %1916 = math.exp %1915 : vector<2x32xf32>
    %cst_333 = arith.constant 1.000000e+00 : f32
    %1917 = vector.broadcast %cst_333 : f32 to vector<2x32xf32>
    %1918 = arith.addf %1917, %1916 : vector<2x32xf32>
    %1919 = arith.divf %1917, %1918 : vector<2x32xf32>
    %1920 = vector.extract_strided_slice %1913 {offsets = [0, 32], sizes = [2, 32], strides = [1, 1]} : vector<2x128xf32> to vector<2x32xf32>
    %1921 = arith.negf %1920 : vector<2x32xf32>
    %1922 = math.exp %1921 : vector<2x32xf32>
    %cst_334 = arith.constant 1.000000e+00 : f32
    %1923 = vector.broadcast %cst_334 : f32 to vector<2x32xf32>
    %1924 = arith.addf %1923, %1922 : vector<2x32xf32>
    %1925 = arith.divf %1923, %1924 : vector<2x32xf32>
    %1926 = vector.extract_strided_slice %1913 {offsets = [0, 64], sizes = [2, 32], strides = [1, 1]} : vector<2x128xf32> to vector<2x32xf32>
    %1927 = math.tanh %1926 : vector<2x32xf32>
    %1928 = vector.extract_strided_slice %1913 {offsets = [0, 96], sizes = [2, 32], strides = [1, 1]} : vector<2x128xf32> to vector<2x32xf32>
    %1929 = arith.negf %1928 : vector<2x32xf32>
    %1930 = math.exp %1929 : vector<2x32xf32>
    %cst_335 = arith.constant 1.000000e+00 : f32
    %1931 = vector.broadcast %cst_335 : f32 to vector<2x32xf32>
    %1932 = arith.addf %1931, %1930 : vector<2x32xf32>
    %1933 = arith.divf %1931, %1932 : vector<2x32xf32>
    %1934 = arith.mulf %1925, %1066 : vector<2x32xf32>
    %1935 = arith.mulf %1919, %1927 : vector<2x32xf32>
    %1936 = arith.addf %1934, %1935 : vector<2x32xf32>
    %1937 = math.tanh %1936 : vector<2x32xf32>
    %1938 = arith.mulf %1933, %1937 : vector<2x32xf32>
    %1939 = vector.extract_strided_slice %1906 {offsets = [1, 0, 0], sizes = [1, 2, 128], strides = [1, 1, 1]} : vector<8x2x128xf32> to vector<1x2x128xf32>
    %1940 = vector.shape_cast %1939 : vector<1x2x128xf32> to vector<2x128xf32>
    %1941 = arith.truncf %1938 : vector<2x32xf32> to vector<2x32xbf16>
    %cst_336 = arith.constant dense<0.000000e+00> : vector<2x128xf32>
    %1942 = tpu.matmul %1941, %1908, %cst_336 {dimension_numbers = #tpu.dot_dimension_numbers<[1], [0], [0], [1], [0, 0, 1, 1], [], []>} : vector<2x32xbf16>, vector<32x128xbf16>, vector<2x128xf32> -> vector<2x128xf32>
    %1943 = arith.addf %1940, %1942 : vector<2x128xf32>
    %1944 = vector.extract_strided_slice %1943 {offsets = [0, 0], sizes = [2, 32], strides = [1, 1]} : vector<2x128xf32> to vector<2x32xf32>
    %1945 = arith.negf %1944 : vector<2x32xf32>
    %1946 = math.exp %1945 : vector<2x32xf32>
    %cst_337 = arith.constant 1.000000e+00 : f32
    %1947 = vector.broadcast %cst_337 : f32 to vector<2x32xf32>
    %1948 = arith.addf %1947, %1946 : vector<2x32xf32>
    %1949 = arith.divf %1947, %1948 : vector<2x32xf32>
    %1950 = vector.extract_strided_slice %1943 {offsets = [0, 32], sizes = [2, 32], strides = [1, 1]} : vector<2x128xf32> to vector<2x32xf32>
    %1951 = arith.negf %1950 : vector<2x32xf32>
    %1952 = math.exp %1951 : vector<2x32xf32>
    %cst_338 = arith.constant 1.000000e+00 : f32
    %1953 = vector.broadcast %cst_338 : f32 to vector<2x32xf32>
    %1954 = arith.addf %1953, %1952 : vector<2x32xf32>
    %1955 = arith.divf %1953, %1954 : vector<2x32xf32>
    %1956 = vector.extract_strided_slice %1943 {offsets = [0, 64], sizes = [2, 32], strides = [1, 1]} : vector<2x128xf32> to vector<2x32xf32>
    %1957 = math.tanh %1956 : vector<2x32xf32>
    %1958 = vector.extract_strided_slice %1943 {offsets = [0, 96], sizes = [2, 32], strides = [1, 1]} : vector<2x128xf32> to vector<2x32xf32>
    %1959 = arith.negf %1958 : vector<2x32xf32>
    %1960 = math.exp %1959 : vector<2x32xf32>
    %cst_339 = arith.constant 1.000000e+00 : f32
    %1961 = vector.broadcast %cst_339 : f32 to vector<2x32xf32>
    %1962 = arith.addf %1961, %1960 : vector<2x32xf32>
    %1963 = arith.divf %1961, %1962 : vector<2x32xf32>
    %1964 = arith.mulf %1955, %1936 : vector<2x32xf32>
    %1965 = arith.mulf %1949, %1957 : vector<2x32xf32>
    %1966 = arith.addf %1964, %1965 : vector<2x32xf32>
    %1967 = math.tanh %1966 : vector<2x32xf32>
    %1968 = arith.mulf %1963, %1967 : vector<2x32xf32>
    %1969 = vector.extract_strided_slice %1906 {offsets = [2, 0, 0], sizes = [1, 2, 128], strides = [1, 1, 1]} : vector<8x2x128xf32> to vector<1x2x128xf32>
    %1970 = vector.shape_cast %1969 : vector<1x2x128xf32> to vector<2x128xf32>
    %1971 = arith.truncf %1968 : vector<2x32xf32> to vector<2x32xbf16>
    %cst_340 = arith.constant dense<0.000000e+00> : vector<2x128xf32>
    %1972 = tpu.matmul %1971, %1908, %cst_340 {dimension_numbers = #tpu.dot_dimension_numbers<[1], [0], [0], [1], [0, 0, 1, 1], [], []>} : vector<2x32xbf16>, vector<32x128xbf16>, vector<2x128xf32> -> vector<2x128xf32>
    %1973 = arith.addf %1970, %1972 : vector<2x128xf32>
    %1974 = vector.extract_strided_slice %1973 {offsets = [0, 0], sizes = [2, 32], strides = [1, 1]} : vector<2x128xf32> to vector<2x32xf32>
    %1975 = arith.negf %1974 : vector<2x32xf32>
    %1976 = math.exp %1975 : vector<2x32xf32>
    %cst_341 = arith.constant 1.000000e+00 : f32
    %1977 = vector.broadcast %cst_341 : f32 to vector<2x32xf32>
    %1978 = arith.addf %1977, %1976 : vector<2x32xf32>
    %1979 = arith.divf %1977, %1978 : vector<2x32xf32>
    %1980 = vector.extract_strided_slice %1973 {offsets = [0, 32], sizes = [2, 32], strides = [1, 1]} : vector<2x128xf32> to vector<2x32xf32>
    %1981 = arith.negf %1980 : vector<2x32xf32>
    %1982 = math.exp %1981 : vector<2x32xf32>
    %cst_342 = arith.constant 1.000000e+00 : f32
    %1983 = vector.broadcast %cst_342 : f32 to vector<2x32xf32>
    %1984 = arith.addf %1983, %1982 : vector<2x32xf32>
    %1985 = arith.divf %1983, %1984 : vector<2x32xf32>
    %1986 = vector.extract_strided_slice %1973 {offsets = [0, 64], sizes = [2, 32], strides = [1, 1]} : vector<2x128xf32> to vector<2x32xf32>
    %1987 = math.tanh %1986 : vector<2x32xf32>
    %1988 = vector.extract_strided_slice %1973 {offsets = [0, 96], sizes = [2, 32], strides = [1, 1]} : vector<2x128xf32> to vector<2x32xf32>
    %1989 = arith.negf %1988 : vector<2x32xf32>
    %1990 = math.exp %1989 : vector<2x32xf32>
    %cst_343 = arith.constant 1.000000e+00 : f32
    %1991 = vector.broadcast %cst_343 : f32 to vector<2x32xf32>
    %1992 = arith.addf %1991, %1990 : vector<2x32xf32>
    %1993 = arith.divf %1991, %1992 : vector<2x32xf32>
    %1994 = arith.mulf %1985, %1966 : vector<2x32xf32>
    %1995 = arith.mulf %1979, %1987 : vector<2x32xf32>
    %1996 = arith.addf %1994, %1995 : vector<2x32xf32>
    %1997 = math.tanh %1996 : vector<2x32xf32>
    %1998 = arith.mulf %1993, %1997 : vector<2x32xf32>
    %1999 = vector.extract_strided_slice %1906 {offsets = [3, 0, 0], sizes = [1, 2, 128], strides = [1, 1, 1]} : vector<8x2x128xf32> to vector<1x2x128xf32>
    %2000 = vector.shape_cast %1999 : vector<1x2x128xf32> to vector<2x128xf32>
    %2001 = arith.truncf %1998 : vector<2x32xf32> to vector<2x32xbf16>
    %cst_344 = arith.constant dense<0.000000e+00> : vector<2x128xf32>
    %2002 = tpu.matmul %2001, %1908, %cst_344 {dimension_numbers = #tpu.dot_dimension_numbers<[1], [0], [0], [1], [0, 0, 1, 1], [], []>} : vector<2x32xbf16>, vector<32x128xbf16>, vector<2x128xf32> -> vector<2x128xf32>
    %2003 = arith.addf %2000, %2002 : vector<2x128xf32>
    %2004 = vector.extract_strided_slice %2003 {offsets = [0, 0], sizes = [2, 32], strides = [1, 1]} : vector<2x128xf32> to vector<2x32xf32>
    %2005 = arith.negf %2004 : vector<2x32xf32>
    %2006 = math.exp %2005 : vector<2x32xf32>
    %cst_345 = arith.constant 1.000000e+00 : f32
    %2007 = vector.broadcast %cst_345 : f32 to vector<2x32xf32>
    %2008 = arith.addf %2007, %2006 : vector<2x32xf32>
    %2009 = arith.divf %2007, %2008 : vector<2x32xf32>
    %2010 = vector.extract_strided_slice %2003 {offsets = [0, 32], sizes = [2, 32], strides = [1, 1]} : vector<2x128xf32> to vector<2x32xf32>
    %2011 = arith.negf %2010 : vector<2x32xf32>
    %2012 = math.exp %2011 : vector<2x32xf32>
    %cst_346 = arith.constant 1.000000e+00 : f32
    %2013 = vector.broadcast %cst_346 : f32 to vector<2x32xf32>
    %2014 = arith.addf %2013, %2012 : vector<2x32xf32>
    %2015 = arith.divf %2013, %2014 : vector<2x32xf32>
    %2016 = vector.extract_strided_slice %2003 {offsets = [0, 64], sizes = [2, 32], strides = [1, 1]} : vector<2x128xf32> to vector<2x32xf32>
    %2017 = math.tanh %2016 : vector<2x32xf32>
    %2018 = vector.extract_strided_slice %2003 {offsets = [0, 96], sizes = [2, 32], strides = [1, 1]} : vector<2x128xf32> to vector<2x32xf32>
    %2019 = arith.negf %2018 : vector<2x32xf32>
    %2020 = math.exp %2019 : vector<2x32xf32>
    %cst_347 = arith.constant 1.000000e+00 : f32
    %2021 = vector.broadcast %cst_347 : f32 to vector<2x32xf32>
    %2022 = arith.addf %2021, %2020 : vector<2x32xf32>
    %2023 = arith.divf %2021, %2022 : vector<2x32xf32>
    %2024 = arith.mulf %2015, %1996 : vector<2x32xf32>
    %2025 = arith.mulf %2009, %2017 : vector<2x32xf32>
    %2026 = arith.addf %2024, %2025 : vector<2x32xf32>
    %2027 = math.tanh %2026 : vector<2x32xf32>
    %2028 = arith.mulf %2023, %2027 : vector<2x32xf32>
    %2029 = vector.extract_strided_slice %1906 {offsets = [4, 0, 0], sizes = [1, 2, 128], strides = [1, 1, 1]} : vector<8x2x128xf32> to vector<1x2x128xf32>
    %2030 = vector.shape_cast %2029 : vector<1x2x128xf32> to vector<2x128xf32>
    %2031 = arith.truncf %2028 : vector<2x32xf32> to vector<2x32xbf16>
    %cst_348 = arith.constant dense<0.000000e+00> : vector<2x128xf32>
    %2032 = tpu.matmul %2031, %1908, %cst_348 {dimension_numbers = #tpu.dot_dimension_numbers<[1], [0], [0], [1], [0, 0, 1, 1], [], []>} : vector<2x32xbf16>, vector<32x128xbf16>, vector<2x128xf32> -> vector<2x128xf32>
    %2033 = arith.addf %2030, %2032 : vector<2x128xf32>
    %2034 = vector.extract_strided_slice %2033 {offsets = [0, 0], sizes = [2, 32], strides = [1, 1]} : vector<2x128xf32> to vector<2x32xf32>
    %2035 = arith.negf %2034 : vector<2x32xf32>
    %2036 = math.exp %2035 : vector<2x32xf32>
    %cst_349 = arith.constant 1.000000e+00 : f32
    %2037 = vector.broadcast %cst_349 : f32 to vector<2x32xf32>
    %2038 = arith.addf %2037, %2036 : vector<2x32xf32>
    %2039 = arith.divf %2037, %2038 : vector<2x32xf32>
    %2040 = vector.extract_strided_slice %2033 {offsets = [0, 32], sizes = [2, 32], strides = [1, 1]} : vector<2x128xf32> to vector<2x32xf32>
    %2041 = arith.negf %2040 : vector<2x32xf32>
    %2042 = math.exp %2041 : vector<2x32xf32>
    %cst_350 = arith.constant 1.000000e+00 : f32
    %2043 = vector.broadcast %cst_350 : f32 to vector<2x32xf32>
    %2044 = arith.addf %2043, %2042 : vector<2x32xf32>
    %2045 = arith.divf %2043, %2044 : vector<2x32xf32>
    %2046 = vector.extract_strided_slice %2033 {offsets = [0, 64], sizes = [2, 32], strides = [1, 1]} : vector<2x128xf32> to vector<2x32xf32>
    %2047 = math.tanh %2046 : vector<2x32xf32>
    %2048 = vector.extract_strided_slice %2033 {offsets = [0, 96], sizes = [2, 32], strides = [1, 1]} : vector<2x128xf32> to vector<2x32xf32>
    %2049 = arith.negf %2048 : vector<2x32xf32>
    %2050 = math.exp %2049 : vector<2x32xf32>
    %cst_351 = arith.constant 1.000000e+00 : f32
    %2051 = vector.broadcast %cst_351 : f32 to vector<2x32xf32>
    %2052 = arith.addf %2051, %2050 : vector<2x32xf32>
    %2053 = arith.divf %2051, %2052 : vector<2x32xf32>
    %2054 = arith.mulf %2045, %2026 : vector<2x32xf32>
    %2055 = arith.mulf %2039, %2047 : vector<2x32xf32>
    %2056 = arith.addf %2054, %2055 : vector<2x32xf32>
    %2057 = math.tanh %2056 : vector<2x32xf32>
    %2058 = arith.mulf %2053, %2057 : vector<2x32xf32>
    %2059 = vector.extract_strided_slice %1906 {offsets = [5, 0, 0], sizes = [1, 2, 128], strides = [1, 1, 1]} : vector<8x2x128xf32> to vector<1x2x128xf32>
    %2060 = vector.shape_cast %2059 : vector<1x2x128xf32> to vector<2x128xf32>
    %2061 = arith.truncf %2058 : vector<2x32xf32> to vector<2x32xbf16>
    %cst_352 = arith.constant dense<0.000000e+00> : vector<2x128xf32>
    %2062 = tpu.matmul %2061, %1908, %cst_352 {dimension_numbers = #tpu.dot_dimension_numbers<[1], [0], [0], [1], [0, 0, 1, 1], [], []>} : vector<2x32xbf16>, vector<32x128xbf16>, vector<2x128xf32> -> vector<2x128xf32>
    %2063 = arith.addf %2060, %2062 : vector<2x128xf32>
    %2064 = vector.extract_strided_slice %2063 {offsets = [0, 0], sizes = [2, 32], strides = [1, 1]} : vector<2x128xf32> to vector<2x32xf32>
    %2065 = arith.negf %2064 : vector<2x32xf32>
    %2066 = math.exp %2065 : vector<2x32xf32>
    %cst_353 = arith.constant 1.000000e+00 : f32
    %2067 = vector.broadcast %cst_353 : f32 to vector<2x32xf32>
    %2068 = arith.addf %2067, %2066 : vector<2x32xf32>
    %2069 = arith.divf %2067, %2068 : vector<2x32xf32>
    %2070 = vector.extract_strided_slice %2063 {offsets = [0, 32], sizes = [2, 32], strides = [1, 1]} : vector<2x128xf32> to vector<2x32xf32>
    %2071 = arith.negf %2070 : vector<2x32xf32>
    %2072 = math.exp %2071 : vector<2x32xf32>
    %cst_354 = arith.constant 1.000000e+00 : f32
    %2073 = vector.broadcast %cst_354 : f32 to vector<2x32xf32>
    %2074 = arith.addf %2073, %2072 : vector<2x32xf32>
    %2075 = arith.divf %2073, %2074 : vector<2x32xf32>
    %2076 = vector.extract_strided_slice %2063 {offsets = [0, 64], sizes = [2, 32], strides = [1, 1]} : vector<2x128xf32> to vector<2x32xf32>
    %2077 = math.tanh %2076 : vector<2x32xf32>
    %2078 = vector.extract_strided_slice %2063 {offsets = [0, 96], sizes = [2, 32], strides = [1, 1]} : vector<2x128xf32> to vector<2x32xf32>
    %2079 = arith.negf %2078 : vector<2x32xf32>
    %2080 = math.exp %2079 : vector<2x32xf32>
    %cst_355 = arith.constant 1.000000e+00 : f32
    %2081 = vector.broadcast %cst_355 : f32 to vector<2x32xf32>
    %2082 = arith.addf %2081, %2080 : vector<2x32xf32>
    %2083 = arith.divf %2081, %2082 : vector<2x32xf32>
    %2084 = arith.mulf %2075, %2056 : vector<2x32xf32>
    %2085 = arith.mulf %2069, %2077 : vector<2x32xf32>
    %2086 = arith.addf %2084, %2085 : vector<2x32xf32>
    %2087 = math.tanh %2086 : vector<2x32xf32>
    %2088 = arith.mulf %2083, %2087 : vector<2x32xf32>
    %2089 = vector.extract_strided_slice %1906 {offsets = [6, 0, 0], sizes = [1, 2, 128], strides = [1, 1, 1]} : vector<8x2x128xf32> to vector<1x2x128xf32>
    %2090 = vector.shape_cast %2089 : vector<1x2x128xf32> to vector<2x128xf32>
    %2091 = arith.truncf %2088 : vector<2x32xf32> to vector<2x32xbf16>
    %cst_356 = arith.constant dense<0.000000e+00> : vector<2x128xf32>
    %2092 = tpu.matmul %2091, %1908, %cst_356 {dimension_numbers = #tpu.dot_dimension_numbers<[1], [0], [0], [1], [0, 0, 1, 1], [], []>} : vector<2x32xbf16>, vector<32x128xbf16>, vector<2x128xf32> -> vector<2x128xf32>
    %2093 = arith.addf %2090, %2092 : vector<2x128xf32>
    %2094 = vector.extract_strided_slice %2093 {offsets = [0, 0], sizes = [2, 32], strides = [1, 1]} : vector<2x128xf32> to vector<2x32xf32>
    %2095 = arith.negf %2094 : vector<2x32xf32>
    %2096 = math.exp %2095 : vector<2x32xf32>
    %cst_357 = arith.constant 1.000000e+00 : f32
    %2097 = vector.broadcast %cst_357 : f32 to vector<2x32xf32>
    %2098 = arith.addf %2097, %2096 : vector<2x32xf32>
    %2099 = arith.divf %2097, %2098 : vector<2x32xf32>
    %2100 = vector.extract_strided_slice %2093 {offsets = [0, 32], sizes = [2, 32], strides = [1, 1]} : vector<2x128xf32> to vector<2x32xf32>
    %2101 = arith.negf %2100 : vector<2x32xf32>
    %2102 = math.exp %2101 : vector<2x32xf32>
    %cst_358 = arith.constant 1.000000e+00 : f32
    %2103 = vector.broadcast %cst_358 : f32 to vector<2x32xf32>
    %2104 = arith.addf %2103, %2102 : vector<2x32xf32>
    %2105 = arith.divf %2103, %2104 : vector<2x32xf32>
    %2106 = vector.extract_strided_slice %2093 {offsets = [0, 64], sizes = [2, 32], strides = [1, 1]} : vector<2x128xf32> to vector<2x32xf32>
    %2107 = math.tanh %2106 : vector<2x32xf32>
    %2108 = vector.extract_strided_slice %2093 {offsets = [0, 96], sizes = [2, 32], strides = [1, 1]} : vector<2x128xf32> to vector<2x32xf32>
    %2109 = arith.negf %2108 : vector<2x32xf32>
    %2110 = math.exp %2109 : vector<2x32xf32>
    %cst_359 = arith.constant 1.000000e+00 : f32
    %2111 = vector.broadcast %cst_359 : f32 to vector<2x32xf32>
    %2112 = arith.addf %2111, %2110 : vector<2x32xf32>
    %2113 = arith.divf %2111, %2112 : vector<2x32xf32>
    %2114 = arith.mulf %2105, %2086 : vector<2x32xf32>
    %2115 = arith.mulf %2099, %2107 : vector<2x32xf32>
    %2116 = arith.addf %2114, %2115 : vector<2x32xf32>
    %2117 = math.tanh %2116 : vector<2x32xf32>
    %2118 = arith.mulf %2113, %2117 : vector<2x32xf32>
    %2119 = vector.extract_strided_slice %1906 {offsets = [7, 0, 0], sizes = [1, 2, 128], strides = [1, 1, 1]} : vector<8x2x128xf32> to vector<1x2x128xf32>
    %2120 = vector.shape_cast %2119 : vector<1x2x128xf32> to vector<2x128xf32>
    %2121 = arith.truncf %2118 : vector<2x32xf32> to vector<2x32xbf16>
    %cst_360 = arith.constant dense<0.000000e+00> : vector<2x128xf32>
    %2122 = tpu.matmul %2121, %1908, %cst_360 {dimension_numbers = #tpu.dot_dimension_numbers<[1], [0], [0], [1], [0, 0, 1, 1], [], []>} : vector<2x32xbf16>, vector<32x128xbf16>, vector<2x128xf32> -> vector<2x128xf32>
    %2123 = arith.addf %2120, %2122 : vector<2x128xf32>
    %2124 = vector.extract_strided_slice %2123 {offsets = [0, 0], sizes = [2, 32], strides = [1, 1]} : vector<2x128xf32> to vector<2x32xf32>
    %2125 = arith.negf %2124 : vector<2x32xf32>
    %2126 = math.exp %2125 : vector<2x32xf32>
    %cst_361 = arith.constant 1.000000e+00 : f32
    %2127 = vector.broadcast %cst_361 : f32 to vector<2x32xf32>
    %2128 = arith.addf %2127, %2126 : vector<2x32xf32>
    %2129 = arith.divf %2127, %2128 : vector<2x32xf32>
    %2130 = vector.extract_strided_slice %2123 {offsets = [0, 32], sizes = [2, 32], strides = [1, 1]} : vector<2x128xf32> to vector<2x32xf32>
    %2131 = arith.negf %2130 : vector<2x32xf32>
    %2132 = math.exp %2131 : vector<2x32xf32>
    %cst_362 = arith.constant 1.000000e+00 : f32
    %2133 = vector.broadcast %cst_362 : f32 to vector<2x32xf32>
    %2134 = arith.addf %2133, %2132 : vector<2x32xf32>
    %2135 = arith.divf %2133, %2134 : vector<2x32xf32>
    %2136 = vector.extract_strided_slice %2123 {offsets = [0, 64], sizes = [2, 32], strides = [1, 1]} : vector<2x128xf32> to vector<2x32xf32>
    %2137 = math.tanh %2136 : vector<2x32xf32>
    %2138 = vector.extract_strided_slice %2123 {offsets = [0, 96], sizes = [2, 32], strides = [1, 1]} : vector<2x128xf32> to vector<2x32xf32>
    %2139 = arith.negf %2138 : vector<2x32xf32>
    %2140 = math.exp %2139 : vector<2x32xf32>
    %cst_363 = arith.constant 1.000000e+00 : f32
    %2141 = vector.broadcast %cst_363 : f32 to vector<2x32xf32>
    %2142 = arith.addf %2141, %2140 : vector<2x32xf32>
    %2143 = arith.divf %2141, %2142 : vector<2x32xf32>
    %2144 = arith.mulf %2135, %2116 : vector<2x32xf32>
    %2145 = arith.mulf %2129, %2137 : vector<2x32xf32>
    %2146 = arith.addf %2144, %2145 : vector<2x32xf32>
    %2147 = math.tanh %2146 : vector<2x32xf32>
    %2148 = arith.mulf %2143, %2147 : vector<2x32xf32>
    %2149 = tpu.concatenate %1938, %1968, %1998, %2028, %2058, %2088, %2118, %2148 in 0 : vector<2x32xf32>, vector<2x32xf32>, vector<2x32xf32>, vector<2x32xf32>, vector<2x32xf32>, vector<2x32xf32>, vector<2x32xf32>, vector<2x32xf32> -> vector<16x32xf32>
    %2150 = arith.truncf %2149 : vector<16x32xf32> to vector<16x32xbf16>
    %c0_364 = arith.constant 0 : index
    %c0_365 = arith.constant 0 : index
    %2151 = vector.load %arg11[%c0_364, %c0_365] : memref<32x32xbf16, #tpu.memory_space<vmem>>, vector<32x32xbf16>
    %cst_366 = arith.constant dense<0.000000e+00> : vector<16x32xf32>
    %2152 = tpu.matmul %2150, %2151, %cst_366 {dimension_numbers = #tpu.dot_dimension_numbers<[1], [0], [0], [1], [0, 0, 1, 1], [], []>} : vector<16x32xbf16>, vector<32x32xbf16>, vector<16x32xf32> -> vector<16x32xf32>
    %c0_367 = arith.constant 0 : index
    %c0_368 = arith.constant 0 : index
    %2153 = vector.load %arg12[%c0_367, %c0_368] : memref<1x32xf32, #tpu.memory_space<vmem>>, vector<1x32xf32>
    %2154 = vector.broadcast %2153 : vector<1x32xf32> to vector<16x32xf32>
    %2155 = arith.addf %2152, %2154 : vector<16x32xf32>
    %cst_369 = arith.constant dense<0.000000e+00> : vector<32xf32>
    %2156 = vector.multi_reduction <add>, %2155, %cst_369 [0] : vector<16x32xf32> to vector<32xf32>
    %2157 = vector.shape_cast %2156 : vector<32xf32> to vector<1x32xf32>
    %cst_370 = arith.constant 1.600000e+01 : f32
    %2158 = vector.broadcast %cst_370 : f32 to vector<1x32xf32>
    %2159 = arith.divf %2157, %2158 : vector<1x32xf32>
    %2160 = vector.broadcast %2159 : vector<1x32xf32> to vector<16x32xf32>
    %2161 = arith.subf %2155, %2160 : vector<16x32xf32>
    %2162 = arith.mulf %2161, %2161 : vector<16x32xf32>
    %cst_371 = arith.constant dense<0.000000e+00> : vector<32xf32>
    %2163 = vector.multi_reduction <add>, %2162, %cst_371 [0] : vector<16x32xf32> to vector<32xf32>
    %2164 = vector.shape_cast %2163 : vector<32xf32> to vector<1x32xf32>
    %cst_372 = arith.constant 1.600000e+01 : f32
    %2165 = vector.broadcast %cst_372 : f32 to vector<1x32xf32>
    %2166 = arith.divf %2164, %2165 : vector<1x32xf32>
    %2167 = vector.broadcast %2159 : vector<1x32xf32> to vector<16x32xf32>
    %2168 = arith.subf %2155, %2167 : vector<16x32xf32>
    %cst_373 = arith.constant 9.99999974E-6 : f32
    %2169 = vector.broadcast %cst_373 : f32 to vector<1x32xf32>
    %2170 = arith.addf %2166, %2169 : vector<1x32xf32>
    %2171 = math.rsqrt %2170 : vector<1x32xf32>
    %2172 = vector.broadcast %2171 : vector<1x32xf32> to vector<16x32xf32>
    %2173 = arith.mulf %2168, %2172 : vector<16x32xf32>
    %c0_374 = arith.constant 0 : index
    %c0_375 = arith.constant 0 : index
    %2174 = vector.load %arg13[%c0_374, %c0_375] : memref<1x32xf32, #tpu.memory_space<vmem>>, vector<1x32xf32>
    %2175 = vector.broadcast %2174 : vector<1x32xf32> to vector<16x32xf32>
    %2176 = arith.mulf %2173, %2175 : vector<16x32xf32>
    %c0_376 = arith.constant 0 : index
    %c0_377 = arith.constant 0 : index
    %2177 = vector.load %arg14[%c0_376, %c0_377] : memref<1x32xf32, #tpu.memory_space<vmem>>, vector<1x32xf32>
    %2178 = vector.broadcast %2177 : vector<1x32xf32> to vector<16x32xf32>
    %2179 = arith.addf %2176, %2178 : vector<16x32xf32>
    %cst_378 = arith.constant 0.000000e+00 : f32
    %2180 = vector.broadcast %cst_378 : f32 to vector<16x32xf32>
    %2181 = arith.maximumf %2179, %2180 : vector<16x32xf32>
    %2182 = arith.truncf %2181 : vector<16x32xf32> to vector<16x32xbf16>
    %c0_379 = arith.constant 0 : index
    %c0_380 = arith.constant 0 : index
    %2183 = vector.load %arg15[%c0_379, %c0_380] : memref<32x4xbf16, #tpu.memory_space<vmem>>, vector<32x4xbf16>
    %cst_381 = arith.constant dense<0.000000e+00> : vector<16x4xf32>
    %2184 = tpu.matmul %2182, %2183, %cst_381 {dimension_numbers = #tpu.dot_dimension_numbers<[1], [0], [0], [1], [0, 0, 1, 1], [], []>} : vector<16x32xbf16>, vector<32x4xbf16>, vector<16x4xf32> -> vector<16x4xf32>
    %c0_382 = arith.constant 0 : index
    %c0_383 = arith.constant 0 : index
    %2185 = vector.load %arg16[%c0_382, %c0_383] : memref<1x4xf32, #tpu.memory_space<vmem>>, vector<1x4xf32>
    %2186 = vector.broadcast %2185 : vector<1x4xf32> to vector<16x4xf32>
    %2187 = arith.addf %2184, %2186 : vector<16x4xf32>
    %2188 = vector.extract_strided_slice %1644 {offsets = [0, 0, 2], sizes = [8, 2, 1], strides = [1, 1, 1]} : vector<8x2x3xf32> to vector<8x2x1xf32>
    %2189 = vector.extract_strided_slice %1644 {offsets = [0, 0, 0], sizes = [8, 2, 1], strides = [1, 1, 1]} : vector<8x2x3xf32> to vector<8x2x1xf32>
    %2190 = arith.subf %2188, %2189 : vector<8x2x1xf32>
    %2191 = vector.shape_cast %2190 : vector<8x2x1xf32> to vector<16x1xf32>
    %c0_384 = arith.constant 0 : index
    %2192 = memref.load %arg17[%c0_384] : memref<1xf32, #tpu.memory_space<smem>>
    %2193 = vector.broadcast %2192 : f32 to vector<16x1xf32>
    %2194 = arith.mulf %2193, %2191 : vector<16x1xf32>
    %2195 = vector.broadcast %2194 : vector<16x1xf32> to vector<16x4xf32>
    %2196 = arith.addf %2187, %2195 : vector<16x4xf32>
    %c0_385 = arith.constant 0 : index
    %c0_386 = arith.constant 0 : index
    %2197 = vector.load %arg18[%c0_385, %c0_386] : memref<16x4xf32, #tpu.memory_space<vmem>>, vector<16x4xf32>
    tpu.vector_store %arg18[%c0_385, %c0_386], %2196 {strides = array<i32>} : memref<16x4xf32, #tpu.memory_space<vmem>>, vector<16x4xf32>,
    return
  }
}

</mosaic_0001>

<llo_original>
// kernel: memnn_forward.1
$region0: #{memnn_forward.1}
  #allocation0 [shape = 'u32[]', space=smem, size = 0x4, offset = 0x4, fixed_abs, tag = 'smem constant byte address 0x4 - core index']
  #allocation1 [shape = 'u32[144,128]{1,0:T(1,128)}', space=vmem, size = 0x12000, scoped, tag = 'internal scratch']
  #allocation2 [shape = 'f32[1]{0:T(128)S(6)}', space=smem, size = 0x200, scoped, tag = 'scoped memory for memnn_forward.1']
  %s0 = inlined_call_operand.vmem [shape: f32[8,2,32], index: 0, kind: input, shape index: {}]
  %s1 = inlined_call_operand.vmem [shape: f32[8,2,32], index: 1, kind: input, shape index: {}]
  %s2 = inlined_call_operand.vmem [shape: bf16[2,32,96], index: 2, kind: input, shape index: {}]
  %s3 = inlined_call_operand.vmem [shape: bf16[2,32,96], index: 3, kind: input, shape index: {}]
  %s4 = inlined_call_operand.vmem [shape: f32[2,1,96], index: 4, kind: input, shape index: {}]
  %s5 = inlined_call_operand.vmem [shape: f32[2,1,32], index: 5, kind: input, shape index: {}]
  %s6 = inlined_call_operand.vmem [shape: bf16[2,32,128], index: 6, kind: input, shape index: {}]
  %s7 = inlined_call_operand.vmem [shape: bf16[2,32,128], index: 7, kind: input, shape index: {}]
  %s8 = inlined_call_operand.vmem [shape: f32[2,1,128], index: 8, kind: input, shape index: {}]
  %s9 = inlined_call_operand.vmem [shape: bf16[8,16,32], index: 9, kind: input, shape index: {}]
  %s10 = inlined_call_operand.vmem [shape: f32[8,16,3], index: 10, kind: input, shape index: {}]
  %s11 = inlined_call_operand.vmem [shape: bf16[32,32], index: 11, kind: input, shape index: {}]
  %s12 = inlined_call_operand.hbm [shape: f32[1,32], index: 12, kind: input, shape index: {}]
  %s13 = inlined_call_operand.vmem [shape: f32[1,32], index: 13, kind: input, shape index: {}]
  %s14 = inlined_call_operand.vmem [shape: f32[1,32], index: 14, kind: input, shape index: {}]
  %s15 = inlined_call_operand.vmem [shape: bf16[32,4], index: 15, kind: input, shape index: {}]
  %s16 = inlined_call_operand.hbm [shape: f32[1,4], index: 16, kind: input, shape index: {}]
  %s17 = inlined_call_operand.<no memory space> [shape: f32[1], index: 17, kind: input, shape index: {}]
  %s18 = inlined_call_operand.vmem [shape: f32[16,4], index: 18, kind: output, shape index: {0}]
  %s19 = inlined_call_operand.vmem [shape: f32[16,3], index: 19, kind: output, shape index: {1}]
  %20 = xla_tuple %s18, %s19
  %s21 = sld [smem:[#allocation0]]
  $region98: #{memnn_forward.1} parent=0
    _
  %s23 = ssub.s32 1, %s21
  %s24 = scalar_select 0, %s23, %s21
  %25 = sst [smem:[#allocation2]] %s17
  $region1: #{memnn_forward.1} parent=0
    #allocation3 [shape = 'u8[512]{0}', space=vmem, size = 0x400, scoped, tag = 'input window, operand 12, single buffered']
    #allocation4 [shape = 's32[1]{0}', space=sflag, size = 0x4, scoped, tag = 'scoped memory for memnn_forward.1']
    #allocation5 [shape = 'u8[512]{0}', space=vmem, size = 0x400, scoped, tag = 'input window, operand 16, single buffered']
    #allocation6 [shape = 's32[1]{0}', space=sflag, size = 0x4, scoped, tag = 'scoped memory for memnn_forward.1']
    %26 = vsyncpa [#allocation4], 0
    %27 = vsyncpa [#allocation6], 0
    // Predicated region
    $region2: #{memnn_forward.1} parent=1 // pred_check
      _
    $region3: #{memnn_forward.1} parent=1 // pred_check_branch
      %29 = sbr.rel (0) target = $region5
    $region4: #{memnn_forward.1} parent=1 // pred_region
      _
    $region5: #{memnn_forward.1} parent=1 // pred_fallthru
      _
    // Predicated region
    $region6: #{memnn_forward.1} parent=1 // pred_check
      _
    $region7: #{memnn_forward.1} parent=1 // pred_check_branch
      %31 = sbr.rel (0) target = $region9
    $region8: #{memnn_forward.1} parent=1 // pred_region
      _
    $region9: #{memnn_forward.1} parent=1 // pred_fallthru
      _
    // Predicated region
    $region10: #{memnn_forward.1} parent=1 // pred_check
      _
    $region11: #{memnn_forward.1} parent=1 // pred_check_branch
      %33 = sbr.rel (0) target = $region13
    $region12: #{memnn_forward.1} parent=1 // pred_region
      _
    $region13: #{memnn_forward.1} parent=1 // pred_fallthru
      _
    // Predicated region
    $region14: #{memnn_forward.1} parent=1 // pred_check
      _
    $region15: #{memnn_forward.1} parent=1 // pred_check_branch
      %35 = sbr.rel (0) target = $region17
    $region16: #{memnn_forward.1} parent=1 // pred_region
      _
    $region17: #{memnn_forward.1} parent=1 // pred_fallthru
      _
    // Predicated region
    $region18: #{memnn_forward.1} parent=1 // pred_check
      _
    $region19: #{memnn_forward.1} parent=1 // pred_check_branch
      %37 = sbr.rel (0) target = $region21
    $region20: #{memnn_forward.1} parent=1 // pred_region
      _
    $region21: #{memnn_forward.1} parent=1 // pred_fallthru
      _
    // Predicated region
    $region22: #{memnn_forward.1} parent=1 // pred_check
      _
    $region23: #{memnn_forward.1} parent=1 // pred_check_branch
      %39 = sbr.rel (0) target = $region25
    $region24: #{memnn_forward.1} parent=1 // pred_region
      _
    $region25: #{memnn_forward.1} parent=1 // pred_fallthru
      _
    // Predicated region
    $region26: #{memnn_forward.1} parent=1 // pred_check
      _
    $region27: #{memnn_forward.1} parent=1 // pred_check_branch
      %41 = sbr.rel (0) target = $region29
    $region28: #{memnn_forward.1} parent=1 // pred_region
      _
    $region29: #{memnn_forward.1} parent=1 // pred_fallthru
      _
    // Predicated region
    $region30: #{memnn_forward.1} parent=1 // pred_check
      _
    $region31: #{memnn_forward.1} parent=1 // pred_check_branch
      %43 = sbr.rel (0) target = $region33
    $region32: #{memnn_forward.1} parent=1 // pred_region
      _
    $region33: #{memnn_forward.1} parent=1 // pred_fallthru
      _
    // Predicated region
    $region34: #{memnn_forward.1} parent=1 // pred_check
      _
    $region35: #{memnn_forward.1} parent=1 // pred_check_branch
      %45 = sbr.rel (0) target = $region37
    $region36: #{memnn_forward.1} parent=1 // pred_region
      _
    $region37: #{memnn_forward.1} parent=1 // pred_fallthru
      _
    // Predicated region
    $region38: #{memnn_forward.1} parent=1 // pred_check
      _
    $region39: #{memnn_forward.1} parent=1 // pred_check_branch
      %47 = sbr.rel (0) target = $region41
    $region40: #{memnn_forward.1} parent=1 // pred_region
      _
    $region41: #{memnn_forward.1} parent=1 // pred_fallthru
      _
    // Predicated region
    $region42: #{memnn_forward.1} parent=1 // pred_check
      _
    $region43: #{memnn_forward.1} parent=1 // pred_check_branch
      %49 = sbr.rel (0) target = $region45
    $region44: #{memnn_forward.1} parent=1 // pred_region
      _
    $region45: #{memnn_forward.1} parent=1 // pred_fallthru
      _
    // Predicated region
    $region46: #{memnn_forward.1} parent=1 // pred_check
      _
    $region47: #{memnn_forward.1} parent=1 // pred_check_branch
      %51 = sbr.rel (0) target = $region49
    $region48: #{memnn_forward.1} parent=1 // pred_region
      _
    $region49: #{memnn_forward.1} parent=1 // pred_fallthru
      _
    // Predicated region
    $region50: #{memnn_forward.1} parent=1 // pred_check
      _
    $region51: #{memnn_forward.1} parent=1 // pred_check_branch
      %53 = sbr.rel (0) target = $region53
    $region52: #{memnn_forward.1} parent=1 // pred_region
      %s55 = ssub.s32 16, 16
      %56 = vsyncadd [#allocation4], %s55
      %s58 = sshll.u32 [#allocation3], 4
      %s59 = int_to_ptr.vmem [resolvable:$true] %s58
      %61 = dma.hbm_to_vmem [thread:$0]  %s12, 16, %s59, [#allocation4]
    $region53: #{memnn_forward.1} parent=1 // pred_fallthru
      _
    // Predicated region
    $region54: #{memnn_forward.1} parent=1 // pred_check
      _
    $region55: #{memnn_forward.1} parent=1 // pred_check_branch
      %63 = sbr.rel (0) target = $region57
    $region56: #{memnn_forward.1} parent=1 // pred_region
      _
    $region57: #{memnn_forward.1} parent=1 // pred_fallthru
      _
    // Predicated region
    $region58: #{memnn_forward.1} parent=1 // pred_check
      _
    $region59: #{memnn_forward.1} parent=1 // pred_check_branch
      %65 = sbr.rel (0) target = $region61
    $region60: #{memnn_forward.1} parent=1 // pred_region
      _
    $region61: #{memnn_forward.1} parent=1 // pred_fallthru
      _
    // Predicated region
    $region62: #{memnn_forward.1} parent=1 // pred_check
      _
    $region63: #{memnn_forward.1} parent=1 // pred_check_branch
      %67 = sbr.rel (0) target = $region65
    $region64: #{memnn_forward.1} parent=1 // pred_region
      _
    $region65: #{memnn_forward.1} parent=1 // pred_fallthru
      _
    // Predicated region
    $region66: #{memnn_forward.1} parent=1 // pred_check
      _
    $region67: #{memnn_forward.1} parent=1 // pred_check_branch
      %69 = sbr.rel (0) target = $region69
    $region68: #{memnn_forward.1} parent=1 // pred_region
      %s71 = ssub.s32 16, 16
      %72 = vsyncadd [#allocation6], %s71
      %s74 = sshll.u32 [#allocation5], 4
      %s75 = int_to_ptr.vmem [resolvable:$true] %s74
      %77 = dma.hbm_to_vmem [thread:$0]  %s16, 16, %s75, [#allocation6]
    $region69: #{memnn_forward.1} parent=1 // pred_fallthru
      _
    // Predicated region
    $region70: #{memnn_forward.1} parent=1 // pred_check
      _
    $region71: #{memnn_forward.1} parent=1 // pred_check_branch
      %79 = sbr.rel (0) target = $region73
    $region72: #{memnn_forward.1} parent=1 // pred_region
      _
    $region73: #{memnn_forward.1} parent=1 // pred_fallthru
      _
    // Predicated region
    $region74: #{memnn_forward.1} parent=1 // pred_check
      _
    $region75: #{memnn_forward.1} parent=1 // pred_check_branch
      %81 = sbr.rel (0) target = $region77
    $region76: #{memnn_forward.1} parent=1 // pred_region
      %82 = dma.done [#allocation4], 16
    $region77: #{memnn_forward.1} parent=1 // pred_fallthru
      _
    // Predicated region
    $region78: #{memnn_forward.1} parent=1 // pred_check
      _
    $region79: #{memnn_forward.1} parent=1 // pred_check_branch
      %84 = sbr.rel (0) target = $region81
    $region80: #{memnn_forward.1} parent=1 // pred_region
      %85 = dma.done [#allocation6], 16
    $region81: #{memnn_forward.1} parent=1 // pred_fallthru
      _
    %v87 = vld [vmem:[%s0] sm:$0x3]
    %v88 = vld [vmem:[%s0 + $0x2] sm:$0x3]
    %v89 = vld [vmem:[%s0 + $0x4] sm:$0x3]
    %v90 = vld [vmem:[%s0 + $0x6] sm:$0x3]
    %v91 = vld [vmem:[%s0 + $0x8] sm:$0x3]
    %v92 = vld [vmem:[%s0 + $0xa] sm:$0x3]
    %v93 = vld [vmem:[%s0 + $0xc] sm:$0x3]
    %v94 = vld [vmem:[%s0 + $0xe] sm:$0x3]
    %v103 = vcombine.low %v87, %v88
    %v104 = vcombine.low %v89, %v90
    %v106 = vunpack.c.l.s4 1983009808
    %v107 = vunpack.c.0.s8 %v106
    %v108 = vlaneseq
    %v109 = vshrl.u32 %v108, 7
    %v110 = vsub.s32 %v107, %v109
    %v111 = vrot.slane %v103, %v110
    %v113 = vunpack.c.l.s4 1983009808
    %v114 = vunpack.c.0.s8 %v113
    %v115 = vlaneseq
    %v116 = vshrl.u32 %v115, 7
    %v117 = vsub.s32 %v114, %v116
    %v118 = vrot.slane %v104, %v117
    %v119 = vcombine.low %v111, %v118
    %v120 = vcombine.low %v91, %v92
    %v121 = vcombine.low %v93, %v94
    %v123 = vunpack.c.l.s4 1983009808
    %v124 = vunpack.c.0.s8 %v123
    %v125 = vlaneseq
    %v126 = vshrl.u32 %v125, 7
    %v127 = vsub.s32 %v124, %v126
    %v128 = vrot.slane %v120, %v127
    %v130 = vunpack.c.l.s4 1983009808
    %v131 = vunpack.c.0.s8 %v130
    %v132 = vlaneseq
    %v133 = vshrl.u32 %v132, 7
    %v134 = vsub.s32 %v131, %v133
    %v135 = vrot.slane %v121, %v134
    %v136 = vcombine.low %v128, %v135
    %v139 = vpack.c.bf16 %v136, %v119
    %v140 = vld [vmem:[%s1] sm:$0x3]
    %v141 = vld [vmem:[%s1 + $0x2] sm:$0x3]
    %v142 = vld [vmem:[%s1 + $0x4] sm:$0x3]
    %v143 = vld [vmem:[%s1 + $0x6] sm:$0x3]
    %v144 = vld [vmem:[%s1 + $0x8] sm:$0x3]
    %v145 = vld [vmem:[%s1 + $0xa] sm:$0x3]
    %v146 = vld [vmem:[%s1 + $0xc] sm:$0x3]
    %v147 = vld [vmem:[%s1 + $0xe] sm:$0x3]
    %v156 = vcombine.low %v140, %v141
    %v157 = vcombine.low %v142, %v143
    %v159 = vunpack.c.l.s4 1983009808
    %v160 = vunpack.c.0.s8 %v159
    %v161 = vlaneseq
    %v162 = vshrl.u32 %v161, 7
    %v163 = vsub.s32 %v160, %v162
    %v164 = vrot.slane %v156, %v163
    %v166 = vunpack.c.l.s4 1983009808
    %v167 = vunpack.c.0.s8 %v166
    %v168 = vlaneseq
    %v169 = vshrl.u32 %v168, 7
    %v170 = vsub.s32 %v167, %v169
    %v171 = vrot.slane %v157, %v170
    %v172 = vcombine.low %v164, %v171
    %v173 = vcombine.low %v144, %v145
    %v174 = vcombine.low %v146, %v147
    %v176 = vunpack.c.l.s4 1983009808
    %v177 = vunpack.c.0.s8 %v176
    %v178 = vlaneseq
    %v179 = vshrl.u32 %v178, 7
    %v180 = vsub.s32 %v177, %v179
    %v181 = vrot.slane %v173, %v180
    %v183 = vunpack.c.l.s4 1983009808
    %v184 = vunpack.c.0.s8 %v183
    %v185 = vlaneseq
    %v186 = vshrl.u32 %v185, 7
    %v187 = vsub.s32 %v184, %v186
    %v188 = vrot.slane %v174, %v187
    %v189 = vcombine.low %v181, %v188
    %v192 = vpack.c.bf16 %v189, %v172
    %v193 = vld [vmem:[%s2] sm:$0xf]
    %v194 = vld [vmem:[%s2 + $0x4] sm:$0xf]
    %v195 = vld [vmem:[%s2 + $0x8] sm:$0xf]
    %v196 = vld [vmem:[%s2 + $0xc] sm:$0xf]
    %v197 = vld [vmem:[%s4] sm:$0x1]
    %v199 = vlaneseq
    %v200 = vshrl.u32 %v199, 7
    %v201 = vsub.s32 0, %v200
    %v202 = vrot.slane %v197, %v201
    %v208 = vunpack.c.l.b16 %v193
    %v209 = vunpack.c.l.b16 %v194
    %v210 = vunpack.c.l.b16 %v195
    %v211 = vunpack.c.l.b16 %v196
    %v212 = vpack.c.b16 %v209, %v208
    %v213 = vpack.c.b16 %v211, %v210
    %vm216 = vcmask 261120
    %v218 = vsel %vm216, %v139, 0
    %220 = vmatprep.subr.bf16.mxu0 0
    %221 = vmatpush1.bf16.msra.mxu0 %v212
    %222 = vmatprep.subr.bf16.mxu0 0
    %223 = vmatpush1.bf16.msra.mxu0 %v213
    %224 = vmatprep.subr.bf16.mxu0 0
    %225 = vmatpush1.bf16.msra.mxu0 0
    %226 = vmatprep.subr.bf16.mxu0 0
    %227 = vmatpush1.bf16.msra.mxu0 0
    %228 = vmatprep.subr.bf16.mxu0 0
    %229 = vmatpush1.bf16.msra.mxu0 0
    %230 = vmatprep.subr.bf16.mxu0 0
    %231 = vmatpush1.bf16.msra.mxu0 0
    %232 = vmatprep.subr.bf16.mxu0 0
    %233 = vmatpush1.bf16.msra.mxu0 0
    %234 = vmatprep.subr.bf16.mxu0 0
    %235 = vmatpush1.bf16.msra.mxu0 0
    %236 = vmatprep.subr.bf16.mxu0 0
    %237 = vmatpush1.bf16.msra.mxu0 0
    %238 = vmatprep.subr.bf16.mxu0 0
    %239 = vmatpush1.bf16.msra.mxu0 0
    %240 = vmatprep.subr.bf16.mxu0 0
    %241 = vmatpush1.bf16.msra.mxu0 0
    %242 = vmatprep.subr.bf16.mxu0 0
    %243 = vmatpush1.bf16.msra.mxu0 0
    %244 = vmatprep.subr.bf16.mxu0 0
    %245 = vmatpush1.bf16.msra.mxu0 0
    %246 = vmatprep.subr.bf16.mxu0 0
    %247 = vmatpush1.bf16.msra.mxu0 0
    %248 = vmatprep.subr.bf16.mxu0 0
    %249 = vmatpush1.bf16.msra.mxu0 0
    %250 = vmatprep.subr.bf16.mxu0 0
    %251 = vmatpush1.bf16.msra.mxu0 0
    %252 = vmatprep.mubr.bf16.mxu0 0
    %253 = vmatmul.mubr.bf16.gmra.mrb[0].mxu0 %v218
    %v254 = vpop.f32.mrb[0].mxu0
    %v255 = vadd.f32 %v202, %v254
    %v256 = vpop.f32.mrb[0].mxu0
    %v257 = vpop.f32.mrb[0].mxu0
    %v258 = vadd.f32 %v202, %v257
    %v259 = vpop.f32.mrb[0].mxu0
    %260 = vdwg.mxu0
    %v263 = vcombine.high %v255, %v255
    %v265 = vunpack.c.l.s4 1983009808
    %v266 = vunpack.c.0.s8 %v265
    %v267 = vlaneseq
    %v268 = vshrl.u32 %v267, 7
    %v269 = vsub.s32 %v266, %v268
    %v270 = vrot.slane %v255, %v269
    %v272 = vunpack.c.l.s4 1983009808
    %v273 = vunpack.c.0.s8 %v272
    %v274 = vlaneseq
    %v275 = vshrl.u32 %v274, 7
    %v276 = vsub.s32 %v273, %v275
    %v277 = vrot.slane %v263, %v276
    %v278 = vcombine.high %v270, %v270
    %v279 = vcombine.high %v277, %v277
    %v280 = vcombine.high %v258, %v258
    %v282 = vunpack.c.l.s4 1983009808
    %v283 = vunpack.c.0.s8 %v282
    %v284 = vlaneseq
    %v285 = vshrl.u32 %v284, 7
    %v286 = vsub.s32 %v283, %v285
    %v287 = vrot.slane %v258, %v286
    %v289 = vunpack.c.l.s4 1983009808
    %v290 = vunpack.c.0.s8 %v289
    %v291 = vlaneseq
    %v292 = vshrl.u32 %v291, 7
    %v293 = vsub.s32 %v290, %v292
    %v294 = vrot.slane %v280, %v293
    %v295 = vcombine.high %v287, %v287
    %v296 = vcombine.high %v294, %v294
    %v305 = vld [vmem:[%s3] sm:$0xf]
    %v306 = vld [vmem:[%s3 + $0x4] sm:$0xf]
    %v307 = vld [vmem:[%s3 + $0x8] sm:$0xf]
    %v308 = vld [vmem:[%s3 + $0xc] sm:$0xf]
    %v309 = vld [vmem:[%s5] sm:$0x1]
    %v314 = vunpack.c.l.b16 %v305
    %v315 = vunpack.c.l.b16 %v306
    %v316 = vunpack.c.l.b16 %v307
    %v317 = vunpack.c.l.b16 %v308
    %v318 = vpack.c.b16 %v315, %v314
    %v319 = vpack.c.b16 %v317, %v316
    %v323 = vsel %vm216, 0, 0
    %325 = vmatprep.subr.bf16.mxu0 0
    %326 = vmatpush1.bf16.msra.mxu0 %v318
    %327 = vmatprep.subr.bf16.mxu0 0
    %328 = vmatpush1.bf16.msra.mxu0 %v319
    %329 = vmatprep.subr.bf16.mxu0 0
    %330 = vmatpush1.bf16.msra.mxu0 0
    %331 = vmatprep.subr.bf16.mxu0 0
    %332 = vmatpush1.bf16.msra.mxu0 0
    %333 = vmatprep.subr.bf16.mxu0 0
    %334 = vmatpush1.bf16.msra.mxu0 0
    %335 = vmatprep.subr.bf16.mxu0 0
    %336 = vmatpush1.bf16.msra.mxu0 0
    %337 = vmatprep.subr.bf16.mxu0 0
    %338 = vmatpush1.bf16.msra.mxu0 0
    %339 = vmatprep.subr.bf16.mxu0 0
    %340 = vmatpush1.bf16.msra.mxu0 0
    %341 = vmatprep.subr.bf16.mxu0 0
    %342 = vmatpush1.bf16.msra.mxu0 0
    %343 = vmatprep.subr.bf16.mxu0 0
    %344 = vmatpush1.bf16.msra.mxu0 0
    %345 = vmatprep.subr.bf16.mxu0 0
    %346 = vmatpush1.bf16.msra.mxu0 0
    %347 = vmatprep.subr.bf16.mxu0 0
    %348 = vmatpush1.bf16.msra.mxu0 0
    %349 = vmatprep.subr.bf16.mxu0 0
    %350 = vmatpush1.bf16.msra.mxu0 0
    %351 = vmatprep.subr.bf16.mxu0 0
    %352 = vmatpush1.bf16.msra.mxu0 0
    %353 = vmatprep.subr.bf16.mxu0 0
    %354 = vmatpush1.bf16.msra.mxu0 0
    %355 = vmatprep.subr.bf16.mxu0 0
    %356 = vmatpush1.bf16.msra.mxu0 0
    %357 = vmatprep.mubr.bf16.mxu0 0
    %358 = vmatmul.mubr.bf16.gmra.mrb[0].mxu0 %v323
    %v359 = vpop.f32.mrb[0].mxu0
    %v360 = vadd.f32 0.0, %v359
    %v361 = vpop.f32.mrb[0].mxu0
    %v362 = vpop.f32.mrb[0].mxu0
    %v363 = vpop.f32.mrb[0].mxu0
    %364 = vdwg.mxu0
    %v365 = vadd.f32 %v270, %v360
    %v366 = vxor.u32 %v365, 2147483648
    %v367 = vmul.f32 %v366, 1.442695
    %v368 = vpow.pop %v367
    %v369 = vadd.f32 %v368, 1.0
    %v370 = vrcp.pop %v369
    %v371 = vmul.f32 1.0, %v370
    %v373 = vlaneseq
    %v374 = vshrl.u32 %v373, 7
    %v375 = vsub.s32 0, %v374
    %v376 = vrot.slane %v309, %v375
    %377 = vrot.lane.b32.xlu0 %v376, 64
    %v378 = vpop.permute.xlu0 %377
    %v380 = vadd.f32 %v360, %v378
    %v383 = vunpack.c.l.s4 1983009808
    %v384 = vunpack.c.0.s8 %v383
    %v385 = vlaneseq
    %v386 = vshrl.u32 %v385, 7
    %v387 = vsub.s32 %v384, %v386
    %v388 = vrot.slane %v380, %v387
    %389 = vrot.lane.b32.xlu0 %v388, 64
    %v390 = vpop.permute.xlu0 %389
    %v392 = vmul.f32 %v371, %v390
    %394 = vrot.lane.b32.xlu0 %v392, 64
    %v395 = vpop.permute.xlu0 %394
    %v397 = vadd.f32 %v270, %v395
    %v398 = vtanh.pop %v397
    %v399 = vsub.f32 1.0, %v371
    %401 = vrot.lane.b32.xlu0 %v398, 96
    %v402 = vpop.permute.xlu0 %401
    %v404 = vmul.f32 %v399, %v402
    %v405 = vmul.f32 %v371, 0.0
    %v406 = vadd.f32 %v404, %v405
    %v407 = vpack.c.bf16 %v406, %v406
    %409 = vrot.lane.b32.xlu0 %v407, 96
    %v410 = vpop.permute.xlu0 %409
    %v412 = vsel %vm216, %v410, 0
    %414 = vmatprep.subr.bf16.mxu0 0
    %415 = vmatpush1.bf16.msra.mxu0 %v318
    %416 = vmatprep.subr.bf16.mxu0 0
    %417 = vmatpush1.bf16.msra.mxu0 %v319
    %418 = vmatprep.subr.bf16.mxu0 0
    %419 = vmatpush1.bf16.msra.mxu0 0
    %420 = vmatprep.subr.bf16.mxu0 0
    %421 = vmatpush1.bf16.msra.mxu0 0
    %422 = vmatprep.subr.bf16.mxu0 0
    %423 = vmatpush1.bf16.msra.mxu0 0
    %424 = vmatprep.subr.bf16.mxu0 0
    %425 = vmatpush1.bf16.msra.mxu0 0
    %426 = vmatprep.subr.bf16.mxu0 0
    %427 = vmatpush1.bf16.msra.mxu0 0
    %428 = vmatprep.subr.bf16.mxu0 0
    %429 = vmatpush1.bf16.msra.mxu0 0
    %430 = vmatprep.subr.bf16.mxu0 0
    %431 = vmatpush1.bf16.msra.mxu0 0
    %432 = vmatprep.subr.bf16.mxu0 0
    %433 = vmatpush1.bf16.msra.mxu0 0
    %434 = vmatprep.subr.bf16.mxu0 0
    %435 = vmatpush1.bf16.msra.mxu0 0
    %436 = vmatprep.subr.bf16.mxu0 0
    %437 = vmatpush1.bf16.msra.mxu0 0
    %438 = vmatprep.subr.bf16.mxu0 0
    %439 = vmatpush1.bf16.msra.mxu0 0
    %440 = vmatprep.subr.bf16.mxu0 0
    %441 = vmatpush1.bf16.msra.mxu0 0
    %442 = vmatprep.subr.bf16.mxu0 0
    %443 = vmatpush1.bf16.msra.mxu0 0
    %444 = vmatprep.subr.bf16.mxu0 0
    %445 = vmatpush1.bf16.msra.mxu0 0
    %446 = vmatprep.mubr.bf16.mxu0 0
    %447 = vmatmul.mubr.bf16.gmra.mrb[0].mxu0 %v412
    %v448 = vpop.f32.mrb[0].mxu0
    %v449 = vadd.f32 0.0, %v448
    %v450 = vpop.f32.mrb[0].mxu0
    %v451 = vpop.f32.mrb[0].mxu0
    %v452 = vpop.f32.mrb[0].mxu0
    %453 = vdwg.mxu0
    %v454 = vadd.f32 %v278, %v449
    %v455 = vxor.u32 %v454, 2147483648
    %v456 = vmul.f32 %v455, 1.442695
    %v457 = vpow.pop %v456
    %v458 = vadd.f32 %v457, 1.0
    %v459 = vrcp.pop %v458
    %v460 = vmul.f32 1.0, %v459
    %v461 = vadd.f32 %v449, %v378
    %v464 = vunpack.c.l.s4 1983009808
    %v465 = vunpack.c.0.s8 %v464
    %v466 = vlaneseq
    %v467 = vshrl.u32 %v466, 7
    %v468 = vsub.s32 %v465, %v467
    %v469 = vrot.slane %v461, %v468
    %470 = vrot.lane.b32.xlu0 %v469, 64
    %v471 = vpop.permute.xlu0 %470
    %v473 = vmul.f32 %v460, %v471
    %475 = vrot.lane.b32.xlu0 %v473, 64
    %v476 = vpop.permute.xlu0 %475
    %v478 = vadd.f32 %v278, %v476
    %v479 = vtanh.pop %v478
    %v480 = vsub.f32 1.0, %v460
    %482 = vrot.lane.b32.xlu0 %v479, 96
    %v483 = vpop.permute.xlu0 %482
    %v485 = vmul.f32 %v480, %v483
    %v486 = vmul.f32 %v460, %v406
    %v487 = vadd.f32 %v485, %v486
    %v488 = vpack.c.bf16 %v487, %v487
    %490 = vrot.lane.b32.xlu0 %v488, 96
    %v491 = vpop.permute.xlu0 %490
    %v493 = vsel %vm216, %v491, 0
    %495 = vmatprep.subr.bf16.mxu0 0
    %496 = vmatpush1.bf16.msra.mxu0 %v318
    %497 = vmatprep.subr.bf16.mxu0 0
    %498 = vmatpush1.bf16.msra.mxu0 %v319
    %499 = vmatprep.subr.bf16.mxu0 0
    %500 = vmatpush1.bf16.msra.mxu0 0
    %501 = vmatprep.subr.bf16.mxu0 0
    %502 = vmatpush1.bf16.msra.mxu0 0
    %503 = vmatprep.subr.bf16.mxu0 0
    %504 = vmatpush1.bf16.msra.mxu0 0
    %505 = vmatprep.subr.bf16.mxu0 0
    %506 = vmatpush1.bf16.msra.mxu0 0
    %507 = vmatprep.subr.bf16.mxu0 0
    %508 = vmatpush1.bf16.msra.mxu0 0
    %509 = vmatprep.subr.bf16.mxu0 0
    %510 = vmatpush1.bf16.msra.mxu0 0
    %511 = vmatprep.subr.bf16.mxu0 0
    %512 = vmatpush1.bf16.msra.mxu0 0
    %513 = vmatprep.subr.bf16.mxu0 0
    %514 = vmatpush1.bf16.msra.mxu0 0
    %515 = vmatprep.subr.bf16.mxu0 0
    %516 = vmatpush1.bf16.msra.mxu0 0
    %517 = vmatprep.subr.bf16.mxu0 0
    %518 = vmatpush1.bf16.msra.mxu0 0
    %519 = vmatprep.subr.bf16.mxu0 0
    %520 = vmatpush1.bf16.msra.mxu0 0
    %521 = vmatprep.subr.bf16.mxu0 0
    %522 = vmatpush1.bf16.msra.mxu0 0
    %523 = vmatprep.subr.bf16.mxu0 0
    %524 = vmatpush1.bf16.msra.mxu0 0
    %525 = vmatprep.subr.bf16.mxu0 0
    %526 = vmatpush1.bf16.msra.mxu0 0
    %527 = vmatprep.mubr.bf16.mxu0 0
    %528 = vmatmul.mubr.bf16.gmra.mrb[0].mxu0 %v493
    %v529 = vpop.f32.mrb[0].mxu0
    %v530 = vadd.f32 0.0, %v529
    %v531 = vpop.f32.mrb[0].mxu0
    %v532 = vpop.f32.mrb[0].mxu0
    %v533 = vpop.f32.mrb[0].mxu0
    %534 = vdwg.mxu0
    %v535 = vadd.f32 %v277, %v530
    %v536 = vxor.u32 %v535, 2147483648
    %v537 = vmul.f32 %v536, 1.442695
    %v538 = vpow.pop %v537
    %v539 = vadd.f32 %v538, 1.0
    %v540 = vrcp.pop %v539
    %v541 = vmul.f32 1.0, %v540
    %v542 = vadd.f32 %v530, %v378
    %v545 = vunpack.c.l.s4 1983009808
    %v546 = vunpack.c.0.s8 %v545
    %v547 = vlaneseq
    %v548 = vshrl.u32 %v547, 7
    %v549 = vsub.s32 %v546, %v548
    %v550 = vrot.slane %v542, %v549
    %551 = vrot.lane.b32.xlu0 %v550, 64
    %v552 = vpop.permute.xlu0 %551
    %v554 = vmul.f32 %v541, %v552
    %556 = vrot.lane.b32.xlu0 %v554, 64
    %v557 = vpop.permute.xlu0 %556
    %v559 = vadd.f32 %v277, %v557
    %v560 = vtanh.pop %v559
    %v561 = vsub.f32 1.0, %v541
    %563 = vrot.lane.b32.xlu0 %v560, 96
    %v564 = vpop.permute.xlu0 %563
    %v566 = vmul.f32 %v561, %v564
    %v567 = vmul.f32 %v541, %v487
    %v568 = vadd.f32 %v566, %v567
    %v569 = vpack.c.bf16 %v568, %v568
    %571 = vrot.lane.b32.xlu0 %v569, 96
    %v572 = vpop.permute.xlu0 %571
    %v574 = vsel %vm216, %v572, 0
    %576 = vmatprep.subr.bf16.mxu0 0
    %577 = vmatpush1.bf16.msra.mxu0 %v318
    %578 = vmatprep.subr.bf16.mxu0 0
    %579 = vmatpush1.bf16.msra.mxu0 %v319
    %580 = vmatprep.subr.bf16.mxu0 0
    %581 = vmatpush1.bf16.msra.mxu0 0
    %582 = vmatprep.subr.bf16.mxu0 0
    %583 = vmatpush1.bf16.msra.mxu0 0
    %584 = vmatprep.subr.bf16.mxu0 0
    %585 = vmatpush1.bf16.msra.mxu0 0
    %586 = vmatprep.subr.bf16.mxu0 0
    %587 = vmatpush1.bf16.msra.mxu0 0
    %588 = vmatprep.subr.bf16.mxu0 0
    %589 = vmatpush1.bf16.msra.mxu0 0
    %590 = vmatprep.subr.bf16.mxu0 0
    %591 = vmatpush1.bf16.msra.mxu0 0
    %592 = vmatprep.subr.bf16.mxu0 0
    %593 = vmatpush1.bf16.msra.mxu0 0
    %594 = vmatprep.subr.bf16.mxu0 0
    %595 = vmatpush1.bf16.msra.mxu0 0
    %596 = vmatprep.subr.bf16.mxu0 0
    %597 = vmatpush1.bf16.msra.mxu0 0
    %598 = vmatprep.subr.bf16.mxu0 0
    %599 = vmatpush1.bf16.msra.mxu0 0
    %600 = vmatprep.subr.bf16.mxu0 0
    %601 = vmatpush1.bf16.msra.mxu0 0
    %602 = vmatprep.subr.bf16.mxu0 0
    %603 = vmatpush1.bf16.msra.mxu0 0
    %604 = vmatprep.subr.bf16.mxu0 0
    %605 = vmatpush1.bf16.msra.mxu0 0
    %606 = vmatprep.subr.bf16.mxu0 0
    %607 = vmatpush1.bf16.msra.mxu0 0
    %608 = vmatprep.mubr.bf16.mxu0 0
    %609 = vmatmul.mubr.bf16.gmra.mrb[0].mxu0 %v574
    %v610 = vpop.f32.mrb[0].mxu0
    %v611 = vadd.f32 0.0, %v610
    %v612 = vpop.f32.mrb[0].mxu0
    %v613 = vpop.f32.mrb[0].mxu0
    %v614 = vpop.f32.mrb[0].mxu0
    %615 = vdwg.mxu0
    %v616 = vadd.f32 %v279, %v611
    %v617 = vxor.u32 %v616, 2147483648
    %v618 = vmul.f32 %v617, 1.442695
    %v619 = vpow.pop %v618
    %v620 = vadd.f32 %v619, 1.0
    %v621 = vrcp.pop %v620
    %v622 = vmul.f32 1.0, %v621
    %v623 = vadd.f32 %v611, %v378
    %v626 = vunpack.c.l.s4 1983009808
    %v627 = vunpack.c.0.s8 %v626
    %v628 = vlaneseq
    %v629 = vshrl.u32 %v628, 7
    %v630 = vsub.s32 %v627, %v629
    %v631 = vrot.slane %v623, %v630
    %632 = vrot.lane.b32.xlu0 %v631, 64
    %v633 = vpop.permute.xlu0 %632
    %v635 = vmul.f32 %v622, %v633
    %637 = vrot.lane.b32.xlu0 %v635, 64
    %v638 = vpop.permute.xlu0 %637
    %v640 = vadd.f32 %v279, %v638
    %v641 = vtanh.pop %v640
    %v642 = vsub.f32 1.0, %v622
    %644 = vrot.lane.b32.xlu0 %v641, 96
    %v645 = vpop.permute.xlu0 %644
    %v647 = vmul.f32 %v642, %v645
    %v648 = vmul.f32 %v622, %v568
    %v649 = vadd.f32 %v647, %v648
    %v650 = vpack.c.bf16 %v649, %v649
    %652 = vrot.lane.b32.xlu0 %v650, 96
    %v653 = vpop.permute.xlu0 %652
    %v655 = vsel %vm216, %v653, 0
    %657 = vmatprep.subr.bf16.mxu0 0
    %658 = vmatpush1.bf16.msra.mxu0 %v318
    %659 = vmatprep.subr.bf16.mxu0 0
    %660 = vmatpush1.bf16.msra.mxu0 %v319
    %661 = vmatprep.subr.bf16.mxu0 0
    %662 = vmatpush1.bf16.msra.mxu0 0
    %663 = vmatprep.subr.bf16.mxu0 0
    %664 = vmatpush1.bf16.msra.mxu0 0
    %665 = vmatprep.subr.bf16.mxu0 0
    %666 = vmatpush1.bf16.msra.mxu0 0
    %667 = vmatprep.subr.bf16.mxu0 0
    %668 = vmatpush1.bf16.msra.mxu0 0
    %669 = vmatprep.subr.bf16.mxu0 0
    %670 = vmatpush1.bf16.msra.mxu0 0
    %671 = vmatprep.subr.bf16.mxu0 0
    %672 = vmatpush1.bf16.msra.mxu0 0
    %673 = vmatprep.subr.bf16.mxu0 0
    %674 = vmatpush1.bf16.msra.mxu0 0
    %675 = vmatprep.subr.bf16.mxu0 0
    %676 = vmatpush1.bf16.msra.mxu0 0
    %677 = vmatprep.subr.bf16.mxu0 0
    %678 = vmatpush1.bf16.msra.mxu0 0
    %679 = vmatprep.subr.bf16.mxu0 0
    %680 = vmatpush1.bf16.msra.mxu0 0
    %681 = vmatprep.subr.bf16.mxu0 0
    %682 = vmatpush1.bf16.msra.mxu0 0
    %683 = vmatprep.subr.bf16.mxu0 0
    %684 = vmatpush1.bf16.msra.mxu0 0
    %685 = vmatprep.subr.bf16.mxu0 0
    %686 = vmatpush1.bf16.msra.mxu0 0
    %687 = vmatprep.subr.bf16.mxu0 0
    %688 = vmatpush1.bf16.msra.mxu0 0
    %689 = vmatprep.mubr.bf16.mxu0 0
    %690 = vmatmul.mubr.bf16.gmra.mrb[0].mxu0 %v655
    %v691 = vpop.f32.mrb[0].mxu0
    %v692 = vadd.f32 0.0, %v691
    %v693 = vpop.f32.mrb[0].mxu0
    %v694 = vpop.f32.mrb[0].mxu0
    %v695 = vpop.f32.mrb[0].mxu0
    %696 = vdwg.mxu0
    %v697 = vadd.f32 %v287, %v692
    %v698 = vxor.u32 %v697, 2147483648
    %v699 = vmul.f32 %v698, 1.442695
    %v700 = vpow.pop %v699
    %v701 = vadd.f32 %v700, 1.0
    %v702 = vrcp.pop %v701
    %v703 = vmul.f32 1.0, %v702
    %v704 = vadd.f32 %v692, %v378
    %v707 = vunpack.c.l.s4 1983009808
    %v708 = vunpack.c.0.s8 %v707
    %v709 = vlaneseq
    %v710 = vshrl.u32 %v709, 7
    %v711 = vsub.s32 %v708, %v710
    %v712 = vrot.slane %v704, %v711
    %713 = vrot.lane.b32.xlu0 %v712, 64
    %v714 = vpop.permute.xlu0 %713
    %v716 = vmul.f32 %v703, %v714
    %718 = vrot.lane.b32.xlu0 %v716, 64
    %v719 = vpop.permute.xlu0 %718
    %v721 = vadd.f32 %v287, %v719
    %v722 = vtanh.pop %v721
    %v723 = vsub.f32 1.0, %v703
    %725 = vrot.lane.b32.xlu0 %v722, 96
    %v726 = vpop.permute.xlu0 %725
    %v728 = vmul.f32 %v723, %v726
    %v729 = vmul.f32 %v703, %v649
    %v730 = vadd.f32 %v728, %v729
    %v731 = vpack.c.bf16 %v730, %v730
    %733 = vrot.lane.b32.xlu0 %v731, 96
    %v734 = vpop.permute.xlu0 %733
    %v736 = vsel %vm216, %v734, 0
    %738 = vmatprep.subr.bf16.mxu0 0
    %739 = vmatpush1.bf16.msra.mxu0 %v318
    %740 = vmatprep.subr.bf16.mxu0 0
    %741 = vmatpush1.bf16.msra.mxu0 %v319
    %742 = vmatprep.subr.bf16.mxu0 0
    %743 = vmatpush1.bf16.msra.mxu0 0
    %744 = vmatprep.subr.bf16.mxu0 0
    %745 = vmatpush1.bf16.msra.mxu0 0
    %746 = vmatprep.subr.bf16.mxu0 0
    %747 = vmatpush1.bf16.msra.mxu0 0
    %748 = vmatprep.subr.bf16.mxu0 0
    %749 = vmatpush1.bf16.msra.mxu0 0
    %750 = vmatprep.subr.bf16.mxu0 0
    %751 = vmatpush1.bf16.msra.mxu0 0
    %752 = vmatprep.subr.bf16.mxu0 0
    %753 = vmatpush1.bf16.msra.mxu0 0
    %754 = vmatprep.subr.bf16.mxu0 0
    %755 = vmatpush1.bf16.msra.mxu0 0
    %756 = vmatprep.subr.bf16.mxu0 0
    %757 = vmatpush1.bf16.msra.mxu0 0
    %758 = vmatprep.subr.bf16.mxu0 0
    %759 = vmatpush1.bf16.msra.mxu0 0
    %760 = vmatprep.subr.bf16.mxu0 0
    %761 = vmatpush1.bf16.msra.mxu0 0
    %762 = vmatprep.subr.bf16.mxu0 0
    %763 = vmatpush1.bf16.msra.mxu0 0
    %764 = vmatprep.subr.bf16.mxu0 0
    %765 = vmatpush1.bf16.msra.mxu0 0
    %766 = vmatprep.subr.bf16.mxu0 0
    %767 = vmatpush1.bf16.msra.mxu0 0
    %768 = vmatprep.subr.bf16.mxu0 0
    %769 = vmatpush1.bf16.msra.mxu0 0
    %770 = vmatprep.mubr.bf16.mxu0 0
    %771 = vmatmul.mubr.bf16.gmra.mrb[0].mxu0 %v736
    %v772 = vpop.f32.mrb[0].mxu0
    %v773 = vadd.f32 0.0, %v772
    %v774 = vpop.f32.mrb[0].mxu0
    %v775 = vpop.f32.mrb[0].mxu0
    %v776 = vpop.f32.mrb[0].mxu0
    %777 = vdwg.mxu0
    %v778 = vadd.f32 %v295, %v773
    %v779 = vxor.u32 %v778, 2147483648
    %v780 = vmul.f32 %v779, 1.442695
    %v781 = vpow.pop %v780
    %v782 = vadd.f32 %v781, 1.0
    %v783 = vrcp.pop %v782
    %v784 = vmul.f32 1.0, %v783
    %v785 = vadd.f32 %v773, %v378
    %v788 = vunpack.c.l.s4 1983009808
    %v789 = vunpack.c.0.s8 %v788
    %v790 = vlaneseq
    %v791 = vshrl.u32 %v790, 7
    %v792 = vsub.s32 %v789, %v791
    %v793 = vrot.slane %v785, %v792
    %794 = vrot.lane.b32.xlu0 %v793, 64
    %v795 = vpop.permute.xlu0 %794
    %v797 = vmul.f32 %v784, %v795
    %799 = vrot.lane.b32.xlu0 %v797, 64
    %v800 = vpop.permute.xlu0 %799
    %v802 = vadd.f32 %v295, %v800
    %v803 = vtanh.pop %v802
    %v804 = vsub.f32 1.0, %v784
    %806 = vrot.lane.b32.xlu0 %v803, 96
    %v807 = vpop.permute.xlu0 %806
    %v809 = vmul.f32 %v804, %v807
    %v810 = vmul.f32 %v784, %v730
    %v811 = vadd.f32 %v809, %v810
    %v812 = vpack.c.bf16 %v811, %v811
    %814 = vrot.lane.b32.xlu0 %v812, 96
    %v815 = vpop.permute.xlu0 %814
    %v817 = vsel %vm216, %v815, 0
    %819 = vmatprep.subr.bf16.mxu0 0
    %820 = vmatpush1.bf16.msra.mxu0 %v318
    %821 = vmatprep.subr.bf16.mxu0 0
    %822 = vmatpush1.bf16.msra.mxu0 %v319
    %823 = vmatprep.subr.bf16.mxu0 0
    %824 = vmatpush1.bf16.msra.mxu0 0
    %825 = vmatprep.subr.bf16.mxu0 0
    %826 = vmatpush1.bf16.msra.mxu0 0
    %827 = vmatprep.subr.bf16.mxu0 0
    %828 = vmatpush1.bf16.msra.mxu0 0
    %829 = vmatprep.subr.bf16.mxu0 0
    %830 = vmatpush1.bf16.msra.mxu0 0
    %831 = vmatprep.subr.bf16.mxu0 0
    %832 = vmatpush1.bf16.msra.mxu0 0
    %833 = vmatprep.subr.bf16.mxu0 0
    %834 = vmatpush1.bf16.msra.mxu0 0
    %835 = vmatprep.subr.bf16.mxu0 0
    %836 = vmatpush1.bf16.msra.mxu0 0
    %837 = vmatprep.subr.bf16.mxu0 0
    %838 = vmatpush1.bf16.msra.mxu0 0
    %839 = vmatprep.subr.bf16.mxu0 0
    %840 = vmatpush1.bf16.msra.mxu0 0
    %841 = vmatprep.subr.bf16.mxu0 0
    %842 = vmatpush1.bf16.msra.mxu0 0
    %843 = vmatprep.subr.bf16.mxu0 0
    %844 = vmatpush1.bf16.msra.mxu0 0
    %845 = vmatprep.subr.bf16.mxu0 0
    %846 = vmatpush1.bf16.msra.mxu0 0
    %847 = vmatprep.subr.bf16.mxu0 0
    %848 = vmatpush1.bf16.msra.mxu0 0
    %849 = vmatprep.subr.bf16.mxu0 0
    %850 = vmatpush1.bf16.msra.mxu0 0
    %851 = vmatprep.mubr.bf16.mxu0 0
    %852 = vmatmul.mubr.bf16.gmra.mrb[0].mxu0 %v817
    %v853 = vpop.f32.mrb[0].mxu0
    %v854 = vadd.f32 0.0, %v853
    %v855 = vpop.f32.mrb[0].mxu0
    %v856 = vpop.f32.mrb[0].mxu0
    %v857 = vpop.f32.mrb[0].mxu0
    %858 = vdwg.mxu0
    %v859 = vadd.f32 %v294, %v854
    %v860 = vxor.u32 %v859, 2147483648
    %v861 = vmul.f32 %v860, 1.442695
    %v862 = vpow.pop %v861
    %v863 = vadd.f32 %v862, 1.0
    %v864 = vrcp.pop %v863
    %v865 = vmul.f32 1.0, %v864
    %v866 = vadd.f32 %v854, %v378
    %v869 = vunpack.c.l.s4 1983009808
    %v870 = vunpack.c.0.s8 %v869
    %v871 = vlaneseq
    %v872 = vshrl.u32 %v871, 7
    %v873 = vsub.s32 %v870, %v872
    %v874 = vrot.slane %v866, %v873
    %875 = vrot.lane.b32.xlu0 %v874, 64
    %v876 = vpop.permute.xlu0 %875
    %v878 = vmul.f32 %v865, %v876
    %880 = vrot.lane.b32.xlu0 %v878, 64
    %v881 = vpop.permute.xlu0 %880
    %v883 = vadd.f32 %v294, %v881
    %v884 = vtanh.pop %v883
    %v885 = vsub.f32 1.0, %v865
    %887 = vrot.lane.b32.xlu0 %v884, 96
    %v888 = vpop.permute.xlu0 %887
    %v890 = vmul.f32 %v885, %v888
    %v891 = vmul.f32 %v865, %v811
    %v892 = vadd.f32 %v890, %v891
    %v893 = vpack.c.bf16 %v892, %v892
    %895 = vrot.lane.b32.xlu0 %v893, 96
    %v896 = vpop.permute.xlu0 %895
    %v898 = vsel %vm216, %v896, 0
    %900 = vmatprep.subr.bf16.mxu0 0
    %901 = vmatpush1.bf16.msra.mxu0 %v318
    %902 = vmatprep.subr.bf16.mxu0 0
    %903 = vmatpush1.bf16.msra.mxu0 %v319
    %904 = vmatprep.subr.bf16.mxu0 0
    %905 = vmatpush1.bf16.msra.mxu0 0
    %906 = vmatprep.subr.bf16.mxu0 0
    %907 = vmatpush1.bf16.msra.mxu0 0
    %908 = vmatprep.subr.bf16.mxu0 0
    %909 = vmatpush1.bf16.msra.mxu0 0
    %910 = vmatprep.subr.bf16.mxu0 0
    %911 = vmatpush1.bf16.msra.mxu0 0
    %912 = vmatprep.subr.bf16.mxu0 0
    %913 = vmatpush1.bf16.msra.mxu0 0
    %914 = vmatprep.subr.bf16.mxu0 0
    %915 = vmatpush1.bf16.msra.mxu0 0
    %916 = vmatprep.subr.bf16.mxu0 0
    %917 = vmatpush1.bf16.msra.mxu0 0
    %918 = vmatprep.subr.bf16.mxu0 0
    %919 = vmatpush1.bf16.msra.mxu0 0
    %920 = vmatprep.subr.bf16.mxu0 0
    %921 = vmatpush1.bf16.msra.mxu0 0
    %922 = vmatprep.subr.bf16.mxu0 0
    %923 = vmatpush1.bf16.msra.mxu0 0
    %924 = vmatprep.subr.bf16.mxu0 0
    %925 = vmatpush1.bf16.msra.mxu0 0
    %926 = vmatprep.subr.bf16.mxu0 0
    %927 = vmatpush1.bf16.msra.mxu0 0
    %928 = vmatprep.subr.bf16.mxu0 0
    %929 = vmatpush1.bf16.msra.mxu0 0
    %930 = vmatprep.subr.bf16.mxu0 0
    %931 = vmatpush1.bf16.msra.mxu0 0
    %932 = vmatprep.mubr.bf16.mxu0 0
    %933 = vmatmul.mubr.bf16.gmra.mrb[0].mxu0 %v898
    %v934 = vpop.f32.mrb[0].mxu0
    %v935 = vadd.f32 0.0, %v934
    %v936 = vpop.f32.mrb[0].mxu0
    %v937 = vpop.f32.mrb[0].mxu0
    %v938 = vpop.f32.mrb[0].mxu0
    %939 = vdwg.mxu0
    %v940 = vadd.f32 %v296, %v935
    %v941 = vxor.u32 %v940, 2147483648
    %v942 = vmul.f32 %v941, 1.442695
    %v943 = vpow.pop %v942
    %v944 = vadd.f32 %v943, 1.0
    %v945 = vrcp.pop %v944
    %v946 = vmul.f32 1.0, %v945
    %v947 = vadd.f32 %v935, %v378
    %v950 = vunpack.c.l.s4 1983009808
    %v951 = vunpack.c.0.s8 %v950
    %v952 = vlaneseq
    %v953 = vshrl.u32 %v952, 7
    %v954 = vsub.s32 %v951, %v953
    %v955 = vrot.slane %v947, %v954
    %956 = vrot.lane.b32.xlu0 %v955, 64
    %v957 = vpop.permute.xlu0 %956
    %v959 = vmul.f32 %v946, %v957
    %961 = vrot.lane.b32.xlu0 %v959, 64
    %v962 = vpop.permute.xlu0 %961
    %v964 = vadd.f32 %v296, %v962
    %v965 = vtanh.pop %v964
    %v966 = vsub.f32 1.0, %v946
    %968 = vrot.lane.b32.xlu0 %v965, 96
    %v969 = vpop.permute.xlu0 %968
    %v971 = vmul.f32 %v966, %v969
    %v972 = vmul.f32 %v946, %v892
    %v973 = vadd.f32 %v971, %v972
    %v975 = vcombine.low %v487, %v487
    %v977 = vunpack.c.l.s4 1983009808
    %v978 = vunpack.c.0.s8 %v977
    %v979 = vlaneseq
    %v980 = vshrl.u32 %v979, 7
    %v981 = vsub.s32 %v978, %v980
    %v982 = vrot.slane %v975, %v981
    %v986 = vunpack.c.l.s4 1983009808
    %v987 = vunpack.c.0.s8 %v986
    %v988 = vlaneseq
    %v989 = vshrl.u32 %v988, 7
    %v990 = vsub.s32 %v987, %v989
    %v991 = vrot.slane %v568, %v990
    %v992 = vcombine.low %v991, %v991
    %v995 = vcombine.low %v649, %v649
    %v997 = vunpack.c.l.s4 1983009808
    %v998 = vunpack.c.0.s8 %v997
    %v999 = vlaneseq
    %v1000 = vshrl.u32 %v999, 7
    %v1001 = vsub.s32 %v998, %v1000
    %v1002 = vrot.slane %v995, %v1001
    %v1003 = vcombine.low %v1002, %v1002
    %v1006 = vcombine.low %v811, %v811
    %v1008 = vunpack.c.l.s4 1983009808
    %v1009 = vunpack.c.0.s8 %v1008
    %v1010 = vlaneseq
    %v1011 = vshrl.u32 %v1010, 7
    %v1012 = vsub.s32 %v1009, %v1011
    %v1013 = vrot.slane %v1006, %v1012
    %v1017 = vunpack.c.l.s4 1983009808
    %v1018 = vunpack.c.0.s8 %v1017
    %v1019 = vlaneseq
    %v1020 = vshrl.u32 %v1019, 7
    %v1021 = vsub.s32 %v1018, %v1020
    %v1022 = vrot.slane %v892, %v1021
    %v1023 = vcombine.low %v1022, %v1022
    %v1026 = vcombine.low %v973, %v973
    %v1028 = vunpack.c.l.s4 1983009808
    %v1029 = vunpack.c.0.s8 %v1028
    %v1030 = vlaneseq
    %v1031 = vshrl.u32 %v1030, 7
    %v1032 = vsub.s32 %v1029, %v1031
    %v1033 = vrot.slane %v1026, %v1032
    %v1034 = vcombine.low %v1033, %v1033
    %vm1036 = vcmask 1041408
    %v1037 = vsel %vm1036, %v406, %v982
    %vm1038 = vcmask 1043456
    %v1039 = vsel %vm1038, %v1037, %v992
    %vm1040 = vcmask 1045504
    %v1041 = vsel %vm1040, %v1039, %v1003
    %v1042 = vsel %vm1036, %v730, %v1013
    %v1043 = vsel %vm1038, %v1042, %v1023
    %v1044 = vsel %vm1040, %v1043, %v1034
    %v1045 = vpack.c.bf16 %v1044, %v1041
    %s1046 = scalar_lea.vmem %s2, 16
    %v1047 = vld [vmem:[%s1046] sm:$0xf]
    %v1048 = vld [vmem:[%s1046 + $0x4] sm:$0xf]
    %v1049 = vld [vmem:[%s1046 + $0x8] sm:$0xf]
    %v1050 = vld [vmem:[%s1046 + $0xc] sm:$0xf]
    %s1051 = scalar_lea.vmem %s4, 1
    %v1052 = vld [vmem:[%s1051] sm:$0x1]
    %v1054 = vlaneseq
    %v1055 = vshrl.u32 %v1054, 7
    %v1056 = vsub.s32 0, %v1055
    %v1057 = vrot.slane %v1052, %v1056
    %1060 = vrot.lane.b32.xlu0 %v1045, 96
    %v1061 = vpop.permute.xlu0 %1060
    %v1066 = vunpack.c.l.b16 %v1047
    %v1067 = vunpack.c.l.b16 %v1048
    %v1068 = vunpack.c.l.b16 %v1049
    %v1069 = vunpack.c.l.b16 %v1050
    %v1070 = vpack.c.b16 %v1067, %v1066
    %v1071 = vpack.c.b16 %v1069, %v1068
    %v1075 = vsel %vm216, %v1061, 0
    %1077 = vmatprep.subr.bf16.mxu0 0
    %1078 = vmatpush1.bf16.msra.mxu0 %v1070
    %1079 = vmatprep.subr.bf16.mxu0 0
    %1080 = vmatpush1.bf16.msra.mxu0 %v1071
    %1081 = vmatprep.subr.bf16.mxu0 0
    %1082 = vmatpush1.bf16.msra.mxu0 0
    %1083 = vmatprep.subr.bf16.mxu0 0
    %1084 = vmatpush1.bf16.msra.mxu0 0
    %1085 = vmatprep.subr.bf16.mxu0 0
    %1086 = vmatpush1.bf16.msra.mxu0 0
    %1087 = vmatprep.subr.bf16.mxu0 0
    %1088 = vmatpush1.bf16.msra.mxu0 0
    %1089 = vmatprep.subr.bf16.mxu0 0
    %1090 = vmatpush1.bf16.msra.mxu0 0
    %1091 = vmatprep.subr.bf16.mxu0 0
    %1092 = vmatpush1.bf16.msra.mxu0 0
    %1093 = vmatprep.subr.bf16.mxu0 0
    %1094 = vmatpush1.bf16.msra.mxu0 0
    %1095 = vmatprep.subr.bf16.mxu0 0
    %1096 = vmatpush1.bf16.msra.mxu0 0
    %1097 = vmatprep.subr.bf16.mxu0 0
    %1098 = vmatpush1.bf16.msra.mxu0 0
    %1099 = vmatprep.subr.bf16.mxu0 0
    %1100 = vmatpush1.bf16.msra.mxu0 0
    %1101 = vmatprep.subr.bf16.mxu0 0
    %1102 = vmatpush1.bf16.msra.mxu0 0
    %1103 = vmatprep.subr.bf16.mxu0 0
    %1104 = vmatpush1.bf16.msra.mxu0 0
    %1105 = vmatprep.subr.bf16.mxu0 0
    %1106 = vmatpush1.bf16.msra.mxu0 0
    %1107 = vmatprep.subr.bf16.mxu0 0
    %1108 = vmatpush1.bf16.msra.mxu0 0
    %1109 = vmatprep.mubr.bf16.mxu0 0
    %1110 = vmatmul.mubr.bf16.gmra.mrb[0].mxu0 %v1075
    %v1111 = vpop.f32.mrb[0].mxu0
    %v1112 = vadd.f32 %v1057, %v1111
    %v1113 = vpop.f32.mrb[0].mxu0
    %v1114 = vpop.f32.mrb[0].mxu0
    %v1115 = vadd.f32 %v1057, %v1114
    %v1116 = vpop.f32.mrb[0].mxu0
    %1117 = vdwg.mxu0
    %v1120 = vcombine.high %v1112, %v1112
    %v1122 = vunpack.c.l.s4 1983009808
    %v1123 = vunpack.c.0.s8 %v1122
    %v1124 = vlaneseq
    %v1125 = vshrl.u32 %v1124, 7
    %v1126 = vsub.s32 %v1123, %v1125
    %v1127 = vrot.slane %v1112, %v1126
    %v1129 = vunpack.c.l.s4 1983009808
    %v1130 = vunpack.c.0.s8 %v1129
    %v1131 = vlaneseq
    %v1132 = vshrl.u32 %v1131, 7
    %v1133 = vsub.s32 %v1130, %v1132
    %v1134 = vrot.slane %v1120, %v1133
    %v1135 = vcombine.high %v1127, %v1127
    %v1136 = vcombine.high %v1134, %v1134
    %v1137 = vcombine.high %v1115, %v1115
    %v1139 = vunpack.c.l.s4 1983009808
    %v1140 = vunpack.c.0.s8 %v1139
    %v1141 = vlaneseq
    %v1142 = vshrl.u32 %v1141, 7
    %v1143 = vsub.s32 %v1140, %v1142
    %v1144 = vrot.slane %v1115, %v1143
    %v1146 = vunpack.c.l.s4 1983009808
    %v1147 = vunpack.c.0.s8 %v1146
    %v1148 = vlaneseq
    %v1149 = vshrl.u32 %v1148, 7
    %v1150 = vsub.s32 %v1147, %v1149
    %v1151 = vrot.slane %v1137, %v1150
    %v1152 = vcombine.high %v1144, %v1144
    %v1153 = vcombine.high %v1151, %v1151
    %s1162 = scalar_lea.vmem %s3, 16
    %v1163 = vld [vmem:[%s1162] sm:$0xf]
    %v1164 = vld [vmem:[%s1162 + $0x4] sm:$0xf]
    %v1165 = vld [vmem:[%s1162 + $0x8] sm:$0xf]
    %v1166 = vld [vmem:[%s1162 + $0xc] sm:$0xf]
    %s1167 = scalar_lea.vmem %s5, 1
    %v1168 = vld [vmem:[%s1167] sm:$0x1]
    %v1173 = vunpack.c.l.b16 %v1163
    %v1174 = vunpack.c.l.b16 %v1164
    %v1175 = vunpack.c.l.b16 %v1165
    %v1176 = vunpack.c.l.b16 %v1166
    %v1177 = vpack.c.b16 %v1174, %v1173
    %v1178 = vpack.c.b16 %v1176, %v1175
    %1181 = vmatprep.subr.bf16.mxu0 0
    %1182 = vmatpush1.bf16.msra.mxu0 %v1177
    %1183 = vmatprep.subr.bf16.mxu0 0
    %1184 = vmatpush1.bf16.msra.mxu0 %v1178
    %1185 = vmatprep.subr.bf16.mxu0 0
    %1186 = vmatpush1.bf16.msra.mxu0 0
    %1187 = vmatprep.subr.bf16.mxu0 0
    %1188 = vmatpush1.bf16.msra.mxu0 0
    %1189 = vmatprep.subr.bf16.mxu0 0
    %1190 = vmatpush1.bf16.msra.mxu0 0
    %1191 = vmatprep.subr.bf16.mxu0 0
    %1192 = vmatpush1.bf16.msra.mxu0 0
    %1193 = vmatprep.subr.bf16.mxu0 0
    %1194 = vmatpush1.bf16.msra.mxu0 0
    %1195 = vmatprep.subr.bf16.mxu0 0
    %1196 = vmatpush1.bf16.msra.mxu0 0
    %1197 = vmatprep.subr.bf16.mxu0 0
    %1198 = vmatpush1.bf16.msra.mxu0 0
    %1199 = vmatprep.subr.bf16.mxu0 0
    %1200 = vmatpush1.bf16.msra.mxu0 0
    %1201 = vmatprep.subr.bf16.mxu0 0
    %1202 = vmatpush1.bf16.msra.mxu0 0
    %1203 = vmatprep.subr.bf16.mxu0 0
    %1204 = vmatpush1.bf16.msra.mxu0 0
    %1205 = vmatprep.subr.bf16.mxu0 0
    %1206 = vmatpush1.bf16.msra.mxu0 0
    %1207 = vmatprep.subr.bf16.mxu0 0
    %1208 = vmatpush1.bf16.msra.mxu0 0
    %1209 = vmatprep.subr.bf16.mxu0 0
    %1210 = vmatpush1.bf16.msra.mxu0 0
    %1211 = vmatprep.subr.bf16.mxu0 0
    %1212 = vmatpush1.bf16.msra.mxu0 0
    %1213 = vmatprep.mubr.bf16.mxu0 0
    %1214 = vmatmul.mubr.bf16.gmra.mrb[0].mxu0 %v323
    %v1215 = vpop.f32.mrb[0].mxu0
    %v1216 = vadd.f32 0.0, %v1215
    %v1217 = vpop.f32.mrb[0].mxu0
    %v1218 = vpop.f32.mrb[0].mxu0
    %v1219 = vpop.f32.mrb[0].mxu0
    %1220 = vdwg.mxu0
    %v1221 = vadd.f32 %v1127, %v1216
    %v1222 = vxor.u32 %v1221, 2147483648
    %v1223 = vmul.f32 %v1222, 1.442695
    %v1224 = vpow.pop %v1223
    %v1225 = vadd.f32 %v1224, 1.0
    %v1226 = vrcp.pop %v1225
    %v1227 = vmul.f32 1.0, %v1226
    %v1229 = vlaneseq
    %v1230 = vshrl.u32 %v1229, 7
    %v1231 = vsub.s32 0, %v1230
    %v1232 = vrot.slane %v1168, %v1231
    %1233 = vrot.lane.b32.xlu0 %v1232, 64
    %v1234 = vpop.permute.xlu0 %1233
    %v1236 = vadd.f32 %v1216, %v1234
    %v1239 = vunpack.c.l.s4 1983009808
    %v1240 = vunpack.c.0.s8 %v1239
    %v1241 = vlaneseq
    %v1242 = vshrl.u32 %v1241, 7
    %v1243 = vsub.s32 %v1240, %v1242
    %v1244 = vrot.slane %v1236, %v1243
    %1245 = vrot.lane.b32.xlu0 %v1244, 64
    %v1246 = vpop.permute.xlu0 %1245
    %v1248 = vmul.f32 %v1227, %v1246
    %1250 = vrot.lane.b32.xlu0 %v1248, 64
    %v1251 = vpop.permute.xlu0 %1250
    %v1253 = vadd.f32 %v1127, %v1251
    %v1254 = vtanh.pop %v1253
    %v1255 = vsub.f32 1.0, %v1227
    %1257 = vrot.lane.b32.xlu0 %v1254, 96
    %v1258 = vpop.permute.xlu0 %1257
    %v1260 = vmul.f32 %v1255, %v1258
    %v1261 = vmul.f32 %v1227, 0.0
    %v1262 = vadd.f32 %v1260, %v1261
    %v1263 = vpack.c.bf16 %v1262, %v1262
    %1265 = vrot.lane.b32.xlu0 %v1263, 96
    %v1266 = vpop.permute.xlu0 %1265
    %v1268 = vsel %vm216, %v1266, 0
    %1270 = vmatprep.subr.bf16.mxu0 0
    %1271 = vmatpush1.bf16.msra.mxu0 %v1177
    %1272 = vmatprep.subr.bf16.mxu0 0
    %1273 = vmatpush1.bf16.msra.mxu0 %v1178
    %1274 = vmatprep.subr.bf16.mxu0 0
    %1275 = vmatpush1.bf16.msra.mxu0 0
    %1276 = vmatprep.subr.bf16.mxu0 0
    %1277 = vmatpush1.bf16.msra.mxu0 0
    %1278 = vmatprep.subr.bf16.mxu0 0
    %1279 = vmatpush1.bf16.msra.mxu0 0
    %1280 = vmatprep.subr.bf16.mxu0 0
    %1281 = vmatpush1.bf16.msra.mxu0 0
    %1282 = vmatprep.subr.bf16.mxu0 0
    %1283 = vmatpush1.bf16.msra.mxu0 0
    %1284 = vmatprep.subr.bf16.mxu0 0
    %1285 = vmatpush1.bf16.msra.mxu0 0
    %1286 = vmatprep.subr.bf16.mxu0 0
    %1287 = vmatpush1.bf16.msra.mxu0 0
    %1288 = vmatprep.subr.bf16.mxu0 0
    %1289 = vmatpush1.bf16.msra.mxu0 0
    %1290 = vmatprep.subr.bf16.mxu0 0
    %1291 = vmatpush1.bf16.msra.mxu0 0
    %1292 = vmatprep.subr.bf16.mxu0 0
    %1293 = vmatpush1.bf16.msra.mxu0 0
    %1294 = vmatprep.subr.bf16.mxu0 0
    %1295 = vmatpush1.bf16.msra.mxu0 0
    %1296 = vmatprep.subr.bf16.mxu0 0
    %1297 = vmatpush1.bf16.msra.mxu0 0
    %1298 = vmatprep.subr.bf16.mxu0 0
    %1299 = vmatpush1.bf16.msra.mxu0 0
    %1300 = vmatprep.subr.bf16.mxu0 0
    %1301 = vmatpush1.bf16.msra.mxu0 0
    %1302 = vmatprep.mubr.bf16.mxu0 0
    %1303 = vmatmul.mubr.bf16.gmra.mrb[0].mxu0 %v1268
    %v1304 = vpop.f32.mrb[0].mxu0
    %v1305 = vadd.f32 0.0, %v1304
    %v1306 = vpop.f32.mrb[0].mxu0
    %v1307 = vpop.f32.mrb[0].mxu0
    %v1308 = vpop.f32.mrb[0].mxu0
    %1309 = vdwg.mxu0
    %v1310 = vadd.f32 %v1135, %v1305
    %v1311 = vxor.u32 %v1310, 2147483648
    %v1312 = vmul.f32 %v1311, 1.442695
    %v1313 = vpow.pop %v1312
    %v1314 = vadd.f32 %v1313, 1.0
    %v1315 = vrcp.pop %v1314
    %v1316 = vmul.f32 1.0, %v1315
    %v1317 = vadd.f32 %v1305, %v1234
    %v1320 = vunpack.c.l.s4 1983009808
    %v1321 = vunpack.c.0.s8 %v1320
    %v1322 = vlaneseq
    %v1323 = vshrl.u32 %v1322, 7
    %v1324 = vsub.s32 %v1321, %v1323
    %v1325 = vrot.slane %v1317, %v1324
    %1326 = vrot.lane.b32.xlu0 %v1325, 64
    %v1327 = vpop.permute.xlu0 %1326
    %v1329 = vmul.f32 %v1316, %v1327
    %1331 = vrot.lane.b32.xlu0 %v1329, 64
    %v1332 = vpop.permute.xlu0 %1331
    %v1334 = vadd.f32 %v1135, %v1332
    %v1335 = vtanh.pop %v1334
    %v1336 = vsub.f32 1.0, %v1316
    %1338 = vrot.lane.b32.xlu0 %v1335, 96
    %v1339 = vpop.permute.xlu0 %1338
    %v1341 = vmul.f32 %v1336, %v1339
    %v1342 = vmul.f32 %v1316, %v1262
    %v1343 = vadd.f32 %v1341, %v1342
    %v1344 = vpack.c.bf16 %v1343, %v1343
    %1346 = vrot.lane.b32.xlu0 %v1344, 96
    %v1347 = vpop.permute.xlu0 %1346
    %v1349 = vsel %vm216, %v1347, 0
    %1351 = vmatprep.subr.bf16.mxu0 0
    %1352 = vmatpush1.bf16.msra.mxu0 %v1177
    %1353 = vmatprep.subr.bf16.mxu0 0
    %1354 = vmatpush1.bf16.msra.mxu0 %v1178
    %1355 = vmatprep.subr.bf16.mxu0 0
    %1356 = vmatpush1.bf16.msra.mxu0 0
    %1357 = vmatprep.subr.bf16.mxu0 0
    %1358 = vmatpush1.bf16.msra.mxu0 0
    %1359 = vmatprep.subr.bf16.mxu0 0
    %1360 = vmatpush1.bf16.msra.mxu0 0
    %1361 = vmatprep.subr.bf16.mxu0 0
    %1362 = vmatpush1.bf16.msra.mxu0 0
    %1363 = vmatprep.subr.bf16.mxu0 0
    %1364 = vmatpush1.bf16.msra.mxu0 0
    %1365 = vmatprep.subr.bf16.mxu0 0
    %1366 = vmatpush1.bf16.msra.mxu0 0
    %1367 = vmatprep.subr.bf16.mxu0 0
    %1368 = vmatpush1.bf16.msra.mxu0 0
    %1369 = vmatprep.subr.bf16.mxu0 0
    %1370 = vmatpush1.bf16.msra.mxu0 0
    %1371 = vmatprep.subr.bf16.mxu0 0
    %1372 = vmatpush1.bf16.msra.mxu0 0
    %1373 = vmatprep.subr.bf16.mxu0 0
    %1374 = vmatpush1.bf16.msra.mxu0 0
    %1375 = vmatprep.subr.bf16.mxu0 0
    %1376 = vmatpush1.bf16.msra.mxu0 0
    %1377 = vmatprep.subr.bf16.mxu0 0
    %1378 = vmatpush1.bf16.msra.mxu0 0
    %1379 = vmatprep.subr.bf16.mxu0 0
    %1380 = vmatpush1.bf16.msra.mxu0 0
    %1381 = vmatprep.subr.bf16.mxu0 0
    %1382 = vmatpush1.bf16.msra.mxu0 0
    %1383 = vmatprep.mubr.bf16.mxu0 0
    %1384 = vmatmul.mubr.bf16.gmra.mrb[0].mxu0 %v1349
    %v1385 = vpop.f32.mrb[0].mxu0
    %v1386 = vadd.f32 0.0, %v1385
    %v1387 = vpop.f32.mrb[0].mxu0
    %v1388 = vpop.f32.mrb[0].mxu0
    %v1389 = vpop.f32.mrb[0].mxu0
    %1390 = vdwg.mxu0
    %v1391 = vadd.f32 %v1134, %v1386
    %v1392 = vxor.u32 %v1391, 2147483648
    %v1393 = vmul.f32 %v1392, 1.442695
    %v1394 = vpow.pop %v1393
    %v1395 = vadd.f32 %v1394, 1.0
    %v1396 = vrcp.pop %v1395
    %v1397 = vmul.f32 1.0, %v1396
    %v1398 = vadd.f32 %v1386, %v1234
    %v1401 = vunpack.c.l.s4 1983009808
    %v1402 = vunpack.c.0.s8 %v1401
    %v1403 = vlaneseq
    %v1404 = vshrl.u32 %v1403, 7
    %v1405 = vsub.s32 %v1402, %v1404
    %v1406 = vrot.slane %v1398, %v1405
    %1407 = vrot.lane.b32.xlu0 %v1406, 64
    %v1408 = vpop.permute.xlu0 %1407
    %v1410 = vmul.f32 %v1397, %v1408
    %1412 = vrot.lane.b32.xlu0 %v1410, 64
    %v1413 = vpop.permute.xlu0 %1412
    %v1415 = vadd.f32 %v1134, %v1413
    %v1416 = vtanh.pop %v1415
    %v1417 = vsub.f32 1.0, %v1397
    %1419 = vrot.lane.b32.xlu0 %v1416, 96
    %v1420 = vpop.permute.xlu0 %1419
    %v1422 = vmul.f32 %v1417, %v1420
    %v1423 = vmul.f32 %v1397, %v1343
    %v1424 = vadd.f32 %v1422, %v1423
    %v1425 = vpack.c.bf16 %v1424, %v1424
    %1427 = vrot.lane.b32.xlu0 %v1425, 96
    %v1428 = vpop.permute.xlu0 %1427
    %v1430 = vsel %vm216, %v1428, 0
    %1432 = vmatprep.subr.bf16.mxu0 0
    %1433 = vmatpush1.bf16.msra.mxu0 %v1177
    %1434 = vmatprep.subr.bf16.mxu0 0
    %1435 = vmatpush1.bf16.msra.mxu0 %v1178
    %1436 = vmatprep.subr.bf16.mxu0 0
    %1437 = vmatpush1.bf16.msra.mxu0 0
    %1438 = vmatprep.subr.bf16.mxu0 0
    %1439 = vmatpush1.bf16.msra.mxu0 0
    %1440 = vmatprep.subr.bf16.mxu0 0
    %1441 = vmatpush1.bf16.msra.mxu0 0
    %1442 = vmatprep.subr.bf16.mxu0 0
    %1443 = vmatpush1.bf16.msra.mxu0 0
    %1444 = vmatprep.subr.bf16.mxu0 0
    %1445 = vmatpush1.bf16.msra.mxu0 0
    %1446 = vmatprep.subr.bf16.mxu0 0
    %1447 = vmatpush1.bf16.msra.mxu0 0
    %1448 = vmatprep.subr.bf16.mxu0 0
    %1449 = vmatpush1.bf16.msra.mxu0 0
    %1450 = vmatprep.subr.bf16.mxu0 0
    %1451 = vmatpush1.bf16.msra.mxu0 0
    %1452 = vmatprep.subr.bf16.mxu0 0
    %1453 = vmatpush1.bf16.msra.mxu0 0
    %1454 = vmatprep.subr.bf16.mxu0 0
    %1455 = vmatpush1.bf16.msra.mxu0 0
    %1456 = vmatprep.subr.bf16.mxu0 0
    %1457 = vmatpush1.bf16.msra.mxu0 0
    %1458 = vmatprep.subr.bf16.mxu0 0
    %1459 = vmatpush1.bf16.msra.mxu0 0
    %1460 = vmatprep.subr.bf16.mxu0 0
    %1461 = vmatpush1.bf16.msra.mxu0 0
    %1462 = vmatprep.subr.bf16.mxu0 0
    %1463 = vmatpush1.bf16.msra.mxu0 0
    %1464 = vmatprep.mubr.bf16.mxu0 0
    %1465 = vmatmul.mubr.bf16.gmra.mrb[0].mxu0 %v1430
    %v1466 = vpop.f32.mrb[0].mxu0
    %v1467 = vadd.f32 0.0, %v1466
    %v1468 = vpop.f32.mrb[0].mxu0
    %v1469 = vpop.f32.mrb[0].mxu0
    %v1470 = vpop.f32.mrb[0].mxu0
    %1471 = vdwg.mxu0
    %v1472 = vadd.f32 %v1136, %v1467
    %v1473 = vxor.u32 %v1472, 2147483648
    %v1474 = vmul.f32 %v1473, 1.442695
    %v1475 = vpow.pop %v1474
    %v1476 = vadd.f32 %v1475, 1.0
    %v1477 = vrcp.pop %v1476
    %v1478 = vmul.f32 1.0, %v1477
    %v1479 = vadd.f32 %v1467, %v1234
    %v1482 = vunpack.c.l.s4 1983009808
    %v1483 = vunpack.c.0.s8 %v1482
    %v1484 = vlaneseq
    %v1485 = vshrl.u32 %v1484, 7
    %v1486 = vsub.s32 %v1483, %v1485
    %v1487 = vrot.slane %v1479, %v1486
    %1488 = vrot.lane.b32.xlu0 %v1487, 64
    %v1489 = vpop.permute.xlu0 %1488
    %v1491 = vmul.f32 %v1478, %v1489
    %1493 = vrot.lane.b32.xlu0 %v1491, 64
    %v1494 = vpop.permute.xlu0 %1493
    %v1496 = vadd.f32 %v1136, %v1494
    %v1497 = vtanh.pop %v1496
    %v1498 = vsub.f32 1.0, %v1478
    %1500 = vrot.lane.b32.xlu0 %v1497, 96
    %v1501 = vpop.permute.xlu0 %1500
    %v1503 = vmul.f32 %v1498, %v1501
    %v1504 = vmul.f32 %v1478, %v1424
    %v1505 = vadd.f32 %v1503, %v1504
    %v1506 = vpack.c.bf16 %v1505, %v1505
    %1508 = vrot.lane.b32.xlu0 %v1506, 96
    %v1509 = vpop.permute.xlu0 %1508
    %v1511 = vsel %vm216, %v1509, 0
    %1513 = vmatprep.subr.bf16.mxu0 0
    %1514 = vmatpush1.bf16.msra.mxu0 %v1177
    %1515 = vmatprep.subr.bf16.mxu0 0
    %1516 = vmatpush1.bf16.msra.mxu0 %v1178
    %1517 = vmatprep.subr.bf16.mxu0 0
    %1518 = vmatpush1.bf16.msra.mxu0 0
    %1519 = vmatprep.subr.bf16.mxu0 0
    %1520 = vmatpush1.bf16.msra.mxu0 0
    %1521 = vmatprep.subr.bf16.mxu0 0
    %1522 = vmatpush1.bf16.msra.mxu0 0
    %1523 = vmatprep.subr.bf16.mxu0 0
    %1524 = vmatpush1.bf16.msra.mxu0 0
    %1525 = vmatprep.subr.bf16.mxu0 0
    %1526 = vmatpush1.bf16.msra.mxu0 0
    %1527 = vmatprep.subr.bf16.mxu0 0
    %1528 = vmatpush1.bf16.msra.mxu0 0
    %1529 = vmatprep.subr.bf16.mxu0 0
    %1530 = vmatpush1.bf16.msra.mxu0 0
    %1531 = vmatprep.subr.bf16.mxu0 0
    %1532 = vmatpush1.bf16.msra.mxu0 0
    %1533 = vmatprep.subr.bf16.mxu0 0
    %1534 = vmatpush1.bf16.msra.mxu0 0
    %1535 = vmatprep.subr.bf16.mxu0 0
    %1536 = vmatpush1.bf16.msra.mxu0 0
    %1537 = vmatprep.subr.bf16.mxu0 0
    %1538 = vmatpush1.bf16.msra.mxu0 0
    %1539 = vmatprep.subr.bf16.mxu0 0
    %1540 = vmatpush1.bf16.msra.mxu0 0
    %1541 = vmatprep.subr.bf16.mxu0 0
    %1542 = vmatpush1.bf16.msra.mxu0 0
    %1543 = vmatprep.subr.bf16.mxu0 0
    %1544 = vmatpush1.bf16.msra.mxu0 0
    %1545 = vmatprep.mubr.bf16.mxu0 0
    %1546 = vmatmul.mubr.bf16.gmra.mrb[0].mxu0 %v1511
    %v1547 = vpop.f32.mrb[0].mxu0
    %v1548 = vadd.f32 0.0, %v1547
    %v1549 = vpop.f32.mrb[0].mxu0
    %v1550 = vpop.f32.mrb[0].mxu0
    %v1551 = vpop.f32.mrb[0].mxu0
    %1552 = vdwg.mxu0
    %v1553 = vadd.f32 %v1144, %v1548
    %v1554 = vxor.u32 %v1553, 2147483648
    %v1555 = vmul.f32 %v1554, 1.442695
    %v1556 = vpow.pop %v1555
    %v1557 = vadd.f32 %v1556, 1.0
    %v1558 = vrcp.pop %v1557
    %v1559 = vmul.f32 1.0, %v1558
    %v1560 = vadd.f32 %v1548, %v1234
    %v1563 = vunpack.c.l.s4 1983009808
    %v1564 = vunpack.c.0.s8 %v1563
    %v1565 = vlaneseq
    %v1566 = vshrl.u32 %v1565, 7
    %v1567 = vsub.s32 %v1564, %v1566
    %v1568 = vrot.slane %v1560, %v1567
    %1569 = vrot.lane.b32.xlu0 %v1568, 64
    %v1570 = vpop.permute.xlu0 %1569
    %v1572 = vmul.f32 %v1559, %v1570
    %1574 = vrot.lane.b32.xlu0 %v1572, 64
    %v1575 = vpop.permute.xlu0 %1574
    %v1577 = vadd.f32 %v1144, %v1575
    %v1578 = vtanh.pop %v1577
    %v1579 = vsub.f32 1.0, %v1559
    %1581 = vrot.lane.b32.xlu0 %v1578, 96
    %v1582 = vpop.permute.xlu0 %1581
    %v1584 = vmul.f32 %v1579, %v1582
    %v1585 = vmul.f32 %v1559, %v1505
    %v1586 = vadd.f32 %v1584, %v1585
    %v1587 = vpack.c.bf16 %v1586, %v1586
    %1589 = vrot.lane.b32.xlu0 %v1587, 96
    %v1590 = vpop.permute.xlu0 %1589
    %v1592 = vsel %vm216, %v1590, 0
    %1594 = vmatprep.subr.bf16.mxu0 0
    %1595 = vmatpush1.bf16.msra.mxu0 %v1177
    %1596 = vmatprep.subr.bf16.mxu0 0
    %1597 = vmatpush1.bf16.msra.mxu0 %v1178
    %1598 = vmatprep.subr.bf16.mxu0 0
    %1599 = vmatpush1.bf16.msra.mxu0 0
    %1600 = vmatprep.subr.bf16.mxu0 0
    %1601 = vmatpush1.bf16.msra.mxu0 0
    %1602 = vmatprep.subr.bf16.mxu0 0
    %1603 = vmatpush1.bf16.msra.mxu0 0
    %1604 = vmatprep.subr.bf16.mxu0 0
    %1605 = vmatpush1.bf16.msra.mxu0 0
    %1606 = vmatprep.subr.bf16.mxu0 0
    %1607 = vmatpush1.bf16.msra.mxu0 0
    %1608 = vmatprep.subr.bf16.mxu0 0
    %1609 = vmatpush1.bf16.msra.mxu0 0
    %1610 = vmatprep.subr.bf16.mxu0 0
    %1611 = vmatpush1.bf16.msra.mxu0 0
    %1612 = vmatprep.subr.bf16.mxu0 0
    %1613 = vmatpush1.bf16.msra.mxu0 0
    %1614 = vmatprep.subr.bf16.mxu0 0
    %1615 = vmatpush1.bf16.msra.mxu0 0
    %1616 = vmatprep.subr.bf16.mxu0 0
    %1617 = vmatpush1.bf16.msra.mxu0 0
    %1618 = vmatprep.subr.bf16.mxu0 0
    %1619 = vmatpush1.bf16.msra.mxu0 0
    %1620 = vmatprep.subr.bf16.mxu0 0
    %1621 = vmatpush1.bf16.msra.mxu0 0
    %1622 = vmatprep.subr.bf16.mxu0 0
    %1623 = vmatpush1.bf16.msra.mxu0 0
    %1624 = vmatprep.subr.bf16.mxu0 0
    %1625 = vmatpush1.bf16.msra.mxu0 0
    %1626 = vmatprep.mubr.bf16.mxu0 0
    %1627 = vmatmul.mubr.bf16.gmra.mrb[0].mxu0 %v1592
    %v1628 = vpop.f32.mrb[0].mxu0
    %v1629 = vadd.f32 0.0, %v1628
    %v1630 = vpop.f32.mrb[0].mxu0
    %v1631 = vpop.f32.mrb[0].mxu0
    %v1632 = vpop.f32.mrb[0].mxu0
    %1633 = vdwg.mxu0
    %v1634 = vadd.f32 %v1152, %v1629
    %v1635 = vxor.u32 %v1634, 2147483648
    %v1636 = vmul.f32 %v1635, 1.442695
    %v1637 = vpow.pop %v1636
    %v1638 = vadd.f32 %v1637, 1.0
    %v1639 = vrcp.pop %v1638
    %v1640 = vmul.f32 1.0, %v1639
    %v1641 = vadd.f32 %v1629, %v1234
    %v1644 = vunpack.c.l.s4 1983009808
    %v1645 = vunpack.c.0.s8 %v1644
    %v1646 = vlaneseq
    %v1647 = vshrl.u32 %v1646, 7
    %v1648 = vsub.s32 %v1645, %v1647
    %v1649 = vrot.slane %v1641, %v1648
    %1650 = vrot.lane.b32.xlu0 %v1649, 64
    %v1651 = vpop.permute.xlu0 %1650
    %v1653 = vmul.f32 %v1640, %v1651
    %1655 = vrot.lane.b32.xlu0 %v1653, 64
    %v1656 = vpop.permute.xlu0 %1655
    %v1658 = vadd.f32 %v1152, %v1656
    %v1659 = vtanh.pop %v1658
    %v1660 = vsub.f32 1.0, %v1640
    %1662 = vrot.lane.b32.xlu0 %v1659, 96
    %v1663 = vpop.permute.xlu0 %1662
    %v1665 = vmul.f32 %v1660, %v1663
    %v1666 = vmul.f32 %v1640, %v1586
    %v1667 = vadd.f32 %v1665, %v1666
    %v1668 = vpack.c.bf16 %v1667, %v1667
    %1670 = vrot.lane.b32.xlu0 %v1668, 96
    %v1671 = vpop.permute.xlu0 %1670
    %v1673 = vsel %vm216, %v1671, 0
    %1675 = vmatprep.subr.bf16.mxu0 0
    %1676 = vmatpush1.bf16.msra.mxu0 %v1177
    %1677 = vmatprep.subr.bf16.mxu0 0
    %1678 = vmatpush1.bf16.msra.mxu0 %v1178
    %1679 = vmatprep.subr.bf16.mxu0 0
    %1680 = vmatpush1.bf16.msra.mxu0 0
    %1681 = vmatprep.subr.bf16.mxu0 0
    %1682 = vmatpush1.bf16.msra.mxu0 0
    %1683 = vmatprep.subr.bf16.mxu0 0
    %1684 = vmatpush1.bf16.msra.mxu0 0
    %1685 = vmatprep.subr.bf16.mxu0 0
    %1686 = vmatpush1.bf16.msra.mxu0 0
    %1687 = vmatprep.subr.bf16.mxu0 0
    %1688 = vmatpush1.bf16.msra.mxu0 0
    %1689 = vmatprep.subr.bf16.mxu0 0
    %1690 = vmatpush1.bf16.msra.mxu0 0
    %1691 = vmatprep.subr.bf16.mxu0 0
    %1692 = vmatpush1.bf16.msra.mxu0 0
    %1693 = vmatprep.subr.bf16.mxu0 0
    %1694 = vmatpush1.bf16.msra.mxu0 0
    %1695 = vmatprep.subr.bf16.mxu0 0
    %1696 = vmatpush1.bf16.msra.mxu0 0
    %1697 = vmatprep.subr.bf16.mxu0 0
    %1698 = vmatpush1.bf16.msra.mxu0 0
    %1699 = vmatprep.subr.bf16.mxu0 0
    %1700 = vmatpush1.bf16.msra.mxu0 0
    %1701 = vmatprep.subr.bf16.mxu0 0
    %1702 = vmatpush1.bf16.msra.mxu0 0
    %1703 = vmatprep.subr.bf16.mxu0 0
    %1704 = vmatpush1.bf16.msra.mxu0 0
    %1705 = vmatprep.subr.bf16.mxu0 0
    %1706 = vmatpush1.bf16.msra.mxu0 0
    %1707 = vmatprep.mubr.bf16.mxu0 0
    %1708 = vmatmul.mubr.bf16.gmra.mrb[0].mxu0 %v1673
    %v1709 = vpop.f32.mrb[0].mxu0
    %v1710 = vadd.f32 0.0, %v1709
    %v1711 = vpop.f32.mrb[0].mxu0
    %v1712 = vpop.f32.mrb[0].mxu0
    %v1713 = vpop.f32.mrb[0].mxu0
    %1714 = vdwg.mxu0
    %v1715 = vadd.f32 %v1151, %v1710
    %v1716 = vxor.u32 %v1715, 2147483648
    %v1717 = vmul.f32 %v1716, 1.442695
    %v1718 = vpow.pop %v1717
    %v1719 = vadd.f32 %v1718, 1.0
    %v1720 = vrcp.pop %v1719
    %v1721 = vmul.f32 1.0, %v1720
    %v1722 = vadd.f32 %v1710, %v1234
    %v1725 = vunpack.c.l.s4 1983009808
    %v1726 = vunpack.c.0.s8 %v1725
    %v1727 = vlaneseq
    %v1728 = vshrl.u32 %v1727, 7
    %v1729 = vsub.s32 %v1726, %v1728
    %v1730 = vrot.slane %v1722, %v1729
    %1731 = vrot.lane.b32.xlu0 %v1730, 64
    %v1732 = vpop.permute.xlu0 %1731
    %v1734 = vmul.f32 %v1721, %v1732
    %1736 = vrot.lane.b32.xlu0 %v1734, 64
    %v1737 = vpop.permute.xlu0 %1736
    %v1739 = vadd.f32 %v1151, %v1737
    %v1740 = vtanh.pop %v1739
    %v1741 = vsub.f32 1.0, %v1721
    %1743 = vrot.lane.b32.xlu0 %v1740, 96
    %v1744 = vpop.permute.xlu0 %1743
    %v1746 = vmul.f32 %v1741, %v1744
    %v1747 = vmul.f32 %v1721, %v1667
    %v1748 = vadd.f32 %v1746, %v1747
    %v1749 = vpack.c.bf16 %v1748, %v1748
    %1751 = vrot.lane.b32.xlu0 %v1749, 96
    %v1752 = vpop.permute.xlu0 %1751
    %v1754 = vsel %vm216, %v1752, 0
    %1756 = vmatprep.subr.bf16.mxu0 0
    %1757 = vmatpush1.bf16.msra.mxu0 %v1177
    %1758 = vmatprep.subr.bf16.mxu0 0
    %1759 = vmatpush1.bf16.msra.mxu0 %v1178
    %1760 = vmatprep.subr.bf16.mxu0 0
    %1761 = vmatpush1.bf16.msra.mxu0 0
    %1762 = vmatprep.subr.bf16.mxu0 0
    %1763 = vmatpush1.bf16.msra.mxu0 0
    %1764 = vmatprep.subr.bf16.mxu0 0
    %1765 = vmatpush1.bf16.msra.mxu0 0
    %1766 = vmatprep.subr.bf16.mxu0 0
    %1767 = vmatpush1.bf16.msra.mxu0 0
    %1768 = vmatprep.subr.bf16.mxu0 0
    %1769 = vmatpush1.bf16.msra.mxu0 0
    %1770 = vmatprep.subr.bf16.mxu0 0
    %1771 = vmatpush1.bf16.msra.mxu0 0
    %1772 = vmatprep.subr.bf16.mxu0 0
    %1773 = vmatpush1.bf16.msra.mxu0 0
    %1774 = vmatprep.subr.bf16.mxu0 0
    %1775 = vmatpush1.bf16.msra.mxu0 0
    %1776 = vmatprep.subr.bf16.mxu0 0
    %1777 = vmatpush1.bf16.msra.mxu0 0
    %1778 = vmatprep.subr.bf16.mxu0 0
    %1779 = vmatpush1.bf16.msra.mxu0 0
    %1780 = vmatprep.subr.bf16.mxu0 0
    %1781 = vmatpush1.bf16.msra.mxu0 0
    %1782 = vmatprep.subr.bf16.mxu0 0
    %1783 = vmatpush1.bf16.msra.mxu0 0
    %1784 = vmatprep.subr.bf16.mxu0 0
    %1785 = vmatpush1.bf16.msra.mxu0 0
    %1786 = vmatprep.subr.bf16.mxu0 0
    %1787 = vmatpush1.bf16.msra.mxu0 0
    %1788 = vmatprep.mubr.bf16.mxu0 0
    %1789 = vmatmul.mubr.bf16.gmra.mrb[0].mxu0 %v1754
    %v1790 = vpop.f32.mrb[0].mxu0
    %v1791 = vadd.f32 0.0, %v1790
    %v1792 = vpop.f32.mrb[0].mxu0
    %v1793 = vpop.f32.mrb[0].mxu0
    %v1794 = vpop.f32.mrb[0].mxu0
    %1795 = vdwg.mxu0
    %v1796 = vadd.f32 %v1153, %v1791
    %v1797 = vxor.u32 %v1796, 2147483648
    %v1798 = vmul.f32 %v1797, 1.442695
    %v1799 = vpow.pop %v1798
    %v1800 = vadd.f32 %v1799, 1.0
    %v1801 = vrcp.pop %v1800
    %v1802 = vmul.f32 1.0, %v1801
    %v1803 = vadd.f32 %v1791, %v1234
    %v1806 = vunpack.c.l.s4 1983009808
    %v1807 = vunpack.c.0.s8 %v1806
    %v1808 = vlaneseq
    %v1809 = vshrl.u32 %v1808, 7
    %v1810 = vsub.s32 %v1807, %v1809
    %v1811 = vrot.slane %v1803, %v1810
    %1812 = vrot.lane.b32.xlu0 %v1811, 64
    %v1813 = vpop.permute.xlu0 %1812
    %v1815 = vmul.f32 %v1802, %v1813
    %1817 = vrot.lane.b32.xlu0 %v1815, 64
    %v1818 = vpop.permute.xlu0 %1817
    %v1820 = vadd.f32 %v1153, %v1818
    %v1821 = vtanh.pop %v1820
    %v1822 = vsub.f32 1.0, %v1802
    %1824 = vrot.lane.b32.xlu0 %v1821, 96
    %v1825 = vpop.permute.xlu0 %1824
    %v1827 = vmul.f32 %v1822, %v1825
    %v1828 = vmul.f32 %v1802, %v1748
    %v1829 = vadd.f32 %v1827, %v1828
    %v1830 = vld [vmem:[%s6] sm:$0xf]
    %v1831 = vld [vmem:[%s6 + $0x4] sm:$0xf]
    %v1832 = vld [vmem:[%s6 + $0x8] sm:$0xf]
    %v1833 = vld [vmem:[%s6 + $0xc] sm:$0xf]
    %v1834 = vld [vmem:[%s8] sm:$0x1]
    %v1836 = vlaneseq
    %v1837 = vshrl.u32 %v1836, 7
    %v1838 = vsub.s32 0, %v1837
    %v1839 = vrot.slane %v1834, %v1838
    %v1845 = vunpack.c.l.b16 %v1830
    %v1846 = vunpack.c.l.b16 %v1831
    %v1847 = vunpack.c.l.b16 %v1832
    %v1848 = vunpack.c.l.b16 %v1833
    %v1849 = vpack.c.b16 %v1846, %v1845
    %v1850 = vpack.c.b16 %v1848, %v1847
    %1853 = vmatprep.subr.bf16.mxu0 0
    %1854 = vmatpush1.bf16.msra.mxu0 %v1849
    %1855 = vmatprep.subr.bf16.mxu0 0
    %1856 = vmatpush1.bf16.msra.mxu0 %v1850
    %1857 = vmatprep.subr.bf16.mxu0 0
    %1858 = vmatpush1.bf16.msra.mxu0 0
    %1859 = vmatprep.subr.bf16.mxu0 0
    %1860 = vmatpush1.bf16.msra.mxu0 0
    %1861 = vmatprep.subr.bf16.mxu0 0
    %1862 = vmatpush1.bf16.msra.mxu0 0
    %1863 = vmatprep.subr.bf16.mxu0 0
    %1864 = vmatpush1.bf16.msra.mxu0 0
    %1865 = vmatprep.subr.bf16.mxu0 0
    %1866 = vmatpush1.bf16.msra.mxu0 0
    %1867 = vmatprep.subr.bf16.mxu0 0
    %1868 = vmatpush1.bf16.msra.mxu0 0
    %1869 = vmatprep.subr.bf16.mxu0 0
    %1870 = vmatpush1.bf16.msra.mxu0 0
    %1871 = vmatprep.subr.bf16.mxu0 0
    %1872 = vmatpush1.bf16.msra.mxu0 0
    %1873 = vmatprep.subr.bf16.mxu0 0
    %1874 = vmatpush1.bf16.msra.mxu0 0
    %1875 = vmatprep.subr.bf16.mxu0 0
    %1876 = vmatpush1.bf16.msra.mxu0 0
    %1877 = vmatprep.subr.bf16.mxu0 0
    %1878 = vmatpush1.bf16.msra.mxu0 0
    %1879 = vmatprep.subr.bf16.mxu0 0
    %1880 = vmatpush1.bf16.msra.mxu0 0
    %1881 = vmatprep.subr.bf16.mxu0 0
    %1882 = vmatpush1.bf16.msra.mxu0 0
    %1883 = vmatprep.subr.bf16.mxu0 0
    %1884 = vmatpush1.bf16.msra.mxu0 0
    %1885 = vmatprep.mubr.bf16.mxu0 0
    %1886 = vmatmul.mubr.bf16.gmra.mrb[0].mxu0 %v218
    %v1887 = vpop.f32.mrb[0].mxu0
    %v1888 = vadd.f32 %v1839, %v1887
    %v1889 = vpop.f32.mrb[0].mxu0
    %v1890 = vpop.f32.mrb[0].mxu0
    %v1891 = vadd.f32 %v1839, %v1890
    %v1892 = vpop.f32.mrb[0].mxu0
    %1893 = vdwg.mxu0
    %v1896 = vcombine.high %v1888, %v1888
    %v1898 = vunpack.c.l.s4 1983009808
    %v1899 = vunpack.c.0.s8 %v1898
    %v1900 = vlaneseq
    %v1901 = vshrl.u32 %v1900, 7
    %v1902 = vsub.s32 %v1899, %v1901
    %v1903 = vrot.slane %v1888, %v1902
    %v1905 = vunpack.c.l.s4 1983009808
    %v1906 = vunpack.c.0.s8 %v1905
    %v1907 = vlaneseq
    %v1908 = vshrl.u32 %v1907, 7
    %v1909 = vsub.s32 %v1906, %v1908
    %v1910 = vrot.slane %v1896, %v1909
    %v1911 = vcombine.high %v1903, %v1903
    %v1912 = vcombine.high %v1910, %v1910
    %v1913 = vcombine.high %v1891, %v1891
    %v1915 = vunpack.c.l.s4 1983009808
    %v1916 = vunpack.c.0.s8 %v1915
    %v1917 = vlaneseq
    %v1918 = vshrl.u32 %v1917, 7
    %v1919 = vsub.s32 %v1916, %v1918
    %v1920 = vrot.slane %v1891, %v1919
    %v1922 = vunpack.c.l.s4 1983009808
    %v1923 = vunpack.c.0.s8 %v1922
    %v1924 = vlaneseq
    %v1925 = vshrl.u32 %v1924, 7
    %v1926 = vsub.s32 %v1923, %v1925
    %v1927 = vrot.slane %v1913, %v1926
    %v1928 = vcombine.high %v1920, %v1920
    %v1929 = vcombine.high %v1927, %v1927
    %v1938 = vld [vmem:[%s7] sm:$0xf]
    %v1939 = vld [vmem:[%s7 + $0x4] sm:$0xf]
    %v1940 = vld [vmem:[%s7 + $0x8] sm:$0xf]
    %v1941 = vld [vmem:[%s7 + $0xc] sm:$0xf]
    %v1946 = vunpack.c.l.b16 %v1938
    %v1947 = vunpack.c.l.b16 %v1939
    %v1948 = vunpack.c.l.b16 %v1940
    %v1949 = vunpack.c.l.b16 %v1941
    %v1950 = vpack.c.b16 %v1947, %v1946
    %v1951 = vpack.c.b16 %v1949, %v1948
    %1954 = vmatprep.subr.bf16.mxu0 0
    %1955 = vmatpush1.bf16.msra.mxu0 %v1950
    %1956 = vmatprep.subr.bf16.mxu0 0
    %1957 = vmatpush1.bf16.msra.mxu0 %v1951
    %1958 = vmatprep.subr.bf16.mxu0 0
    %1959 = vmatpush1.bf16.msra.mxu0 0
    %1960 = vmatprep.subr.bf16.mxu0 0
    %1961 = vmatpush1.bf16.msra.mxu0 0
    %1962 = vmatprep.subr.bf16.mxu0 0
    %1963 = vmatpush1.bf16.msra.mxu0 0
    %1964 = vmatprep.subr.bf16.mxu0 0
    %1965 = vmatpush1.bf16.msra.mxu0 0
    %1966 = vmatprep.subr.bf16.mxu0 0
    %1967 = vmatpush1.bf16.msra.mxu0 0
    %1968 = vmatprep.subr.bf16.mxu0 0
    %1969 = vmatpush1.bf16.msra.mxu0 0
    %1970 = vmatprep.subr.bf16.mxu0 0
    %1971 = vmatpush1.bf16.msra.mxu0 0
    %1972 = vmatprep.subr.bf16.mxu0 0
    %1973 = vmatpush1.bf16.msra.mxu0 0
    %1974 = vmatprep.subr.bf16.mxu0 0
    %1975 = vmatpush1.bf16.msra.mxu0 0
    %1976 = vmatprep.subr.bf16.mxu0 0
    %1977 = vmatpush1.bf16.msra.mxu0 0
    %1978 = vmatprep.subr.bf16.mxu0 0
    %1979 = vmatpush1.bf16.msra.mxu0 0
    %1980 = vmatprep.subr.bf16.mxu0 0
    %1981 = vmatpush1.bf16.msra.mxu0 0
    %1982 = vmatprep.subr.bf16.mxu0 0
    %1983 = vmatpush1.bf16.msra.mxu0 0
    %1984 = vmatprep.subr.bf16.mxu0 0
    %1985 = vmatpush1.bf16.msra.mxu0 0
    %1986 = vmatprep.mubr.bf16.mxu0 0
    %1987 = vmatmul.mubr.bf16.gmra.mrb[0].mxu0 %v323
    %v1988 = vpop.f32.mrb[0].mxu0
    %v1989 = vadd.f32 0.0, %v1988
    %v1990 = vpop.f32.mrb[0].mxu0
    %v1991 = vpop.f32.mrb[0].mxu0
    %v1992 = vpop.f32.mrb[0].mxu0
    %1993 = vdwg.mxu0
    %v1994 = vadd.f32 %v1903, %v1989
    %v1995 = vxor.u32 %v1994, 2147483648
    %v1996 = vmul.f32 %v1995, 1.442695
    %v1997 = vpow.pop %v1996
    %v1998 = vadd.f32 %v1997, 1.0
    %v1999 = vrcp.pop %v1998
    %v2000 = vmul.f32 1.0, %v1999
    %v2001 = vtanh.pop %v1994
    %v2002 = vmul.f32 %v2000, 0.0
    %2004 = vrot.lane.b32.xlu0 %v2001, 64
    %v2005 = vpop.permute.xlu0 %2004
    %v2007 = vmul.f32 %v2000, %v2005
    %2009 = vrot.lane.b32.xlu0 %v2007, 32
    %v2010 = vpop.permute.xlu0 %2009
    %v2012 = vadd.f32 %v2002, %v2010
    %v2013 = vtanh.pop %v2012
    %2015 = vrot.lane.b32.xlu0 %v2013, 64
    %v2016 = vpop.permute.xlu0 %2015
    %v2018 = vmul.f32 %v2000, %v2016
    %v2019 = vpack.c.bf16 %v2018, %v2018
    %2021 = vrot.lane.b32.xlu0 %v2019, 32
    %v2022 = vpop.permute.xlu0 %2021
    %v2024 = vsel %vm216, %v2022, 0
    %2026 = vmatprep.subr.bf16.mxu0 0
    %2027 = vmatpush1.bf16.msra.mxu0 %v1950
    %2028 = vmatprep.subr.bf16.mxu0 0
    %2029 = vmatpush1.bf16.msra.mxu0 %v1951
    %2030 = vmatprep.subr.bf16.mxu0 0
    %2031 = vmatpush1.bf16.msra.mxu0 0
    %2032 = vmatprep.subr.bf16.mxu0 0
    %2033 = vmatpush1.bf16.msra.mxu0 0
    %2034 = vmatprep.subr.bf16.mxu0 0
    %2035 = vmatpush1.bf16.msra.mxu0 0
    %2036 = vmatprep.subr.bf16.mxu0 0
    %2037 = vmatpush1.bf16.msra.mxu0 0
    %2038 = vmatprep.subr.bf16.mxu0 0
    %2039 = vmatpush1.bf16.msra.mxu0 0
    %2040 = vmatprep.subr.bf16.mxu0 0
    %2041 = vmatpush1.bf16.msra.mxu0 0
    %2042 = vmatprep.subr.bf16.mxu0 0
    %2043 = vmatpush1.bf16.msra.mxu0 0
    %2044 = vmatprep.subr.bf16.mxu0 0
    %2045 = vmatpush1.bf16.msra.mxu0 0
    %2046 = vmatprep.subr.bf16.mxu0 0
    %2047 = vmatpush1.bf16.msra.mxu0 0
    %2048 = vmatprep.subr.bf16.mxu0 0
    %2049 = vmatpush1.bf16.msra.mxu0 0
    %2050 = vmatprep.subr.bf16.mxu0 0
    %2051 = vmatpush1.bf16.msra.mxu0 0
    %2052 = vmatprep.subr.bf16.mxu0 0
    %2053 = vmatpush1.bf16.msra.mxu0 0
    %2054 = vmatprep.subr.bf16.mxu0 0
    %2055 = vmatpush1.bf16.msra.mxu0 0
    %2056 = vmatprep.subr.bf16.mxu0 0
    %2057 = vmatpush1.bf16.msra.mxu0 0
    %2058 = vmatprep.mubr.bf16.mxu0 0
    %2059 = vmatmul.mubr.bf16.gmra.mrb[0].mxu0 %v2024
    %v2060 = vpop.f32.mrb[0].mxu0
    %v2061 = vadd.f32 0.0, %v2060
    %v2062 = vpop.f32.mrb[0].mxu0
    %v2063 = vpop.f32.mrb[0].mxu0
    %v2064 = vpop.f32.mrb[0].mxu0
    %2065 = vdwg.mxu0
    %v2066 = vadd.f32 %v1911, %v2061
    %v2067 = vxor.u32 %v2066, 2147483648
    %v2068 = vmul.f32 %v2067, 1.442695
    %v2069 = vpow.pop %v2068
    %v2070 = vadd.f32 %v2069, 1.0
    %v2071 = vrcp.pop %v2070
    %v2072 = vmul.f32 1.0, %v2071
    %v2073 = vtanh.pop %v2066
    %v2074 = vmul.f32 %v2072, %v2012
    %2076 = vrot.lane.b32.xlu0 %v2073, 64
    %v2077 = vpop.permute.xlu0 %2076
    %v2079 = vmul.f32 %v2072, %v2077
    %2081 = vrot.lane.b32.xlu0 %v2079, 32
    %v2082 = vpop.permute.xlu0 %2081
    %v2084 = vadd.f32 %v2074, %v2082
    %v2085 = vtanh.pop %v2084
    %2087 = vrot.lane.b32.xlu0 %v2085, 64
    %v2088 = vpop.permute.xlu0 %2087
    %v2090 = vmul.f32 %v2072, %v2088
    %v2091 = vpack.c.bf16 %v2090, %v2090
    %2093 = vrot.lane.b32.xlu0 %v2091, 32
    %v2094 = vpop.permute.xlu0 %2093
    %v2096 = vsel %vm216, %v2094, 0
    %2098 = vmatprep.subr.bf16.mxu0 0
    %2099 = vmatpush1.bf16.msra.mxu0 %v1950
    %2100 = vmatprep.subr.bf16.mxu0 0
    %2101 = vmatpush1.bf16.msra.mxu0 %v1951
    %2102 = vmatprep.subr.bf16.mxu0 0
    %2103 = vmatpush1.bf16.msra.mxu0 0
    %2104 = vmatprep.subr.bf16.mxu0 0
    %2105 = vmatpush1.bf16.msra.mxu0 0
    %2106 = vmatprep.subr.bf16.mxu0 0
    %2107 = vmatpush1.bf16.msra.mxu0 0
    %2108 = vmatprep.subr.bf16.mxu0 0
    %2109 = vmatpush1.bf16.msra.mxu0 0
    %2110 = vmatprep.subr.bf16.mxu0 0
    %2111 = vmatpush1.bf16.msra.mxu0 0
    %2112 = vmatprep.subr.bf16.mxu0 0
    %2113 = vmatpush1.bf16.msra.mxu0 0
    %2114 = vmatprep.subr.bf16.mxu0 0
    %2115 = vmatpush1.bf16.msra.mxu0 0
    %2116 = vmatprep.subr.bf16.mxu0 0
    %2117 = vmatpush1.bf16.msra.mxu0 0
    %2118 = vmatprep.subr.bf16.mxu0 0
    %2119 = vmatpush1.bf16.msra.mxu0 0
    %2120 = vmatprep.subr.bf16.mxu0 0
    %2121 = vmatpush1.bf16.msra.mxu0 0
    %2122 = vmatprep.subr.bf16.mxu0 0
    %2123 = vmatpush1.bf16.msra.mxu0 0
    %2124 = vmatprep.subr.bf16.mxu0 0
    %2125 = vmatpush1.bf16.msra.mxu0 0
    %2126 = vmatprep.subr.bf16.mxu0 0
    %2127 = vmatpush1.bf16.msra.mxu0 0
    %2128 = vmatprep.subr.bf16.mxu0 0
    %2129 = vmatpush1.bf16.msra.mxu0 0
    %2130 = vmatprep.mubr.bf16.mxu0 0
    %2131 = vmatmul.mubr.bf16.gmra.mrb[0].mxu0 %v2096
    %v2132 = vpop.f32.mrb[0].mxu0
    %v2133 = vadd.f32 0.0, %v2132
    %v2134 = vpop.f32.mrb[0].mxu0
    %v2135 = vpop.f32.mrb[0].mxu0
    %v2136 = vpop.f32.mrb[0].mxu0
    %2137 = vdwg.mxu0
    %v2138 = vadd.f32 %v1910, %v2133
    %v2139 = vxor.u32 %v2138, 2147483648
    %v2140 = vmul.f32 %v2139, 1.442695
    %v2141 = vpow.pop %v2140
    %v2142 = vadd.f32 %v2141, 1.0
    %v2143 = vrcp.pop %v2142
    %v2144 = vmul.f32 1.0, %v2143
    %v2145 = vtanh.pop %v2138
    %v2146 = vmul.f32 %v2144, %v2084
    %2148 = vrot.lane.b32.xlu0 %v2145, 64
    %v2149 = vpop.permute.xlu0 %2148
    %v2151 = vmul.f32 %v2144, %v2149
    %2153 = vrot.lane.b32.xlu0 %v2151, 32
    %v2154 = vpop.permute.xlu0 %2153
    %v2156 = vadd.f32 %v2146, %v2154
    %v2157 = vtanh.pop %v2156
    %2159 = vrot.lane.b32.xlu0 %v2157, 64
    %v2160 = vpop.permute.xlu0 %2159
    %v2162 = vmul.f32 %v2144, %v2160
    %v2163 = vpack.c.bf16 %v2162, %v2162
    %2165 = vrot.lane.b32.xlu0 %v2163, 32
    %v2166 = vpop.permute.xlu0 %2165
    %v2168 = vsel %vm216, %v2166, 0
    %2170 = vmatprep.subr.bf16.mxu0 0
    %2171 = vmatpush1.bf16.msra.mxu0 %v1950
    %2172 = vmatprep.subr.bf16.mxu0 0
    %2173 = vmatpush1.bf16.msra.mxu0 %v1951
    %2174 = vmatprep.subr.bf16.mxu0 0
    %2175 = vmatpush1.bf16.msra.mxu0 0
    %2176 = vmatprep.subr.bf16.mxu0 0
    %2177 = vmatpush1.bf16.msra.mxu0 0
    %2178 = vmatprep.subr.bf16.mxu0 0
    %2179 = vmatpush1.bf16.msra.mxu0 0
    %2180 = vmatprep.subr.bf16.mxu0 0
    %2181 = vmatpush1.bf16.msra.mxu0 0
    %2182 = vmatprep.subr.bf16.mxu0 0
    %2183 = vmatpush1.bf16.msra.mxu0 0
    %2184 = vmatprep.subr.bf16.mxu0 0
    %2185 = vmatpush1.bf16.msra.mxu0 0
    %2186 = vmatprep.subr.bf16.mxu0 0
    %2187 = vmatpush1.bf16.msra.mxu0 0
    %2188 = vmatprep.subr.bf16.mxu0 0
    %2189 = vmatpush1.bf16.msra.mxu0 0
    %2190 = vmatprep.subr.bf16.mxu0 0
    %2191 = vmatpush1.bf16.msra.mxu0 0
    %2192 = vmatprep.subr.bf16.mxu0 0
    %2193 = vmatpush1.bf16.msra.mxu0 0
    %2194 = vmatprep.subr.bf16.mxu0 0
    %2195 = vmatpush1.bf16.msra.mxu0 0
    %2196 = vmatprep.subr.bf16.mxu0 0
    %2197 = vmatpush1.bf16.msra.mxu0 0
    %2198 = vmatprep.subr.bf16.mxu0 0
    %2199 = vmatpush1.bf16.msra.mxu0 0
    %2200 = vmatprep.subr.bf16.mxu0 0
    %2201 = vmatpush1.bf16.msra.mxu0 0
    %2202 = vmatprep.mubr.bf16.mxu0 0
    %2203 = vmatmul.mubr.bf16.gmra.mrb[0].mxu0 %v2168
    %v2204 = vpop.f32.mrb[0].mxu0
    %v2205 = vadd.f32 0.0, %v2204
    %v2206 = vpop.f32.mrb[0].mxu0
    %v2207 = vpop.f32.mrb[0].mxu0
    %v2208 = vpop.f32.mrb[0].mxu0
    %2209 = vdwg.mxu0
    %v2210 = vadd.f32 %v1912, %v2205
    %v2211 = vxor.u32 %v2210, 2147483648
    %v2212 = vmul.f32 %v2211, 1.442695
    %v2213 = vpow.pop %v2212
    %v2214 = vadd.f32 %v2213, 1.0
    %v2215 = vrcp.pop %v2214
    %v2216 = vmul.f32 1.0, %v2215
    %v2217 = vtanh.pop %v2210
    %v2218 = vmul.f32 %v2216, %v2156
    %2220 = vrot.lane.b32.xlu0 %v2217, 64
    %v2221 = vpop.permute.xlu0 %2220
    %v2223 = vmul.f32 %v2216, %v2221
    %2225 = vrot.lane.b32.xlu0 %v2223, 32
    %v2226 = vpop.permute.xlu0 %2225
    %v2228 = vadd.f32 %v2218, %v2226
    %v2229 = vtanh.pop %v2228
    %2231 = vrot.lane.b32.xlu0 %v2229, 64
    %v2232 = vpop.permute.xlu0 %2231
    %v2234 = vmul.f32 %v2216, %v2232
    %v2235 = vpack.c.bf16 %v2234, %v2234
    %2237 = vrot.lane.b32.xlu0 %v2235, 32
    %v2238 = vpop.permute.xlu0 %2237
    %v2240 = vsel %vm216, %v2238, 0
    %2242 = vmatprep.subr.bf16.mxu0 0
    %2243 = vmatpush1.bf16.msra.mxu0 %v1950
    %2244 = vmatprep.subr.bf16.mxu0 0
    %2245 = vmatpush1.bf16.msra.mxu0 %v1951
    %2246 = vmatprep.subr.bf16.mxu0 0
    %2247 = vmatpush1.bf16.msra.mxu0 0
    %2248 = vmatprep.subr.bf16.mxu0 0
    %2249 = vmatpush1.bf16.msra.mxu0 0
    %2250 = vmatprep.subr.bf16.mxu0 0
    %2251 = vmatpush1.bf16.msra.mxu0 0
    %2252 = vmatprep.subr.bf16.mxu0 0
    %2253 = vmatpush1.bf16.msra.mxu0 0
    %2254 = vmatprep.subr.bf16.mxu0 0
    %2255 = vmatpush1.bf16.msra.mxu0 0
    %2256 = vmatprep.subr.bf16.mxu0 0
    %2257 = vmatpush1.bf16.msra.mxu0 0
    %2258 = vmatprep.subr.bf16.mxu0 0
    %2259 = vmatpush1.bf16.msra.mxu0 0
    %2260 = vmatprep.subr.bf16.mxu0 0
    %2261 = vmatpush1.bf16.msra.mxu0 0
    %2262 = vmatprep.subr.bf16.mxu0 0
    %2263 = vmatpush1.bf16.msra.mxu0 0
    %2264 = vmatprep.subr.bf16.mxu0 0
    %2265 = vmatpush1.bf16.msra.mxu0 0
    %2266 = vmatprep.subr.bf16.mxu0 0
    %2267 = vmatpush1.bf16.msra.mxu0 0
    %2268 = vmatprep.subr.bf16.mxu0 0
    %2269 = vmatpush1.bf16.msra.mxu0 0
    %2270 = vmatprep.subr.bf16.mxu0 0
    %2271 = vmatpush1.bf16.msra.mxu0 0
    %2272 = vmatprep.subr.bf16.mxu0 0
    %2273 = vmatpush1.bf16.msra.mxu0 0
    %2274 = vmatprep.mubr.bf16.mxu0 0
    %2275 = vmatmul.mubr.bf16.gmra.mrb[0].mxu0 %v2240
    %v2276 = vpop.f32.mrb[0].mxu0
    %v2277 = vadd.f32 0.0, %v2276
    %v2278 = vpop.f32.mrb[0].mxu0
    %v2279 = vpop.f32.mrb[0].mxu0
    %v2280 = vpop.f32.mrb[0].mxu0
    %2281 = vdwg.mxu0
    %v2282 = vadd.f32 %v1920, %v2277
    %v2283 = vxor.u32 %v2282, 2147483648
    %v2284 = vmul.f32 %v2283, 1.442695
    %v2285 = vpow.pop %v2284
    %v2286 = vadd.f32 %v2285, 1.0
    %v2287 = vrcp.pop %v2286
    %v2288 = vmul.f32 1.0, %v2287
    %v2289 = vtanh.pop %v2282
    %v2290 = vmul.f32 %v2288, %v2228
    %2292 = vrot.lane.b32.xlu0 %v2289, 64
    %v2293 = vpop.permute.xlu0 %2292
    %v2295 = vmul.f32 %v2288, %v2293
    %2297 = vrot.lane.b32.xlu0 %v2295, 32
    %v2298 = vpop.permute.xlu0 %2297
    %v2300 = vadd.f32 %v2290, %v2298
    %v2301 = vtanh.pop %v2300
    %2303 = vrot.lane.b32.xlu0 %v2301, 64
    %v2304 = vpop.permute.xlu0 %2303
    %v2306 = vmul.f32 %v2288, %v2304
    %v2307 = vpack.c.bf16 %v2306, %v2306
    %2309 = vrot.lane.b32.xlu0 %v2307, 32
    %v2310 = vpop.permute.xlu0 %2309
    %v2312 = vsel %vm216, %v2310, 0
    %2314 = vmatprep.subr.bf16.mxu0 0
    %2315 = vmatpush1.bf16.msra.mxu0 %v1950
    %2316 = vmatprep.subr.bf16.mxu0 0
    %2317 = vmatpush1.bf16.msra.mxu0 %v1951
    %2318 = vmatprep.subr.bf16.mxu0 0
    %2319 = vmatpush1.bf16.msra.mxu0 0
    %2320 = vmatprep.subr.bf16.mxu0 0
    %2321 = vmatpush1.bf16.msra.mxu0 0
    %2322 = vmatprep.subr.bf16.mxu0 0
    %2323 = vmatpush1.bf16.msra.mxu0 0
    %2324 = vmatprep.subr.bf16.mxu0 0
    %2325 = vmatpush1.bf16.msra.mxu0 0
    %2326 = vmatprep.subr.bf16.mxu0 0
    %2327 = vmatpush1.bf16.msra.mxu0 0
    %2328 = vmatprep.subr.bf16.mxu0 0
    %2329 = vmatpush1.bf16.msra.mxu0 0
    %2330 = vmatprep.subr.bf16.mxu0 0
    %2331 = vmatpush1.bf16.msra.mxu0 0
    %2332 = vmatprep.subr.bf16.mxu0 0
    %2333 = vmatpush1.bf16.msra.mxu0 0
    %2334 = vmatprep.subr.bf16.mxu0 0
    %2335 = vmatpush1.bf16.msra.mxu0 0
    %2336 = vmatprep.subr.bf16.mxu0 0
    %2337 = vmatpush1.bf16.msra.mxu0 0
    %2338 = vmatprep.subr.bf16.mxu0 0
    %2339 = vmatpush1.bf16.msra.mxu0 0
    %2340 = vmatprep.subr.bf16.mxu0 0
    %2341 = vmatpush1.bf16.msra.mxu0 0
    %2342 = vmatprep.subr.bf16.mxu0 0
    %2343 = vmatpush1.bf16.msra.mxu0 0
    %2344 = vmatprep.subr.bf16.mxu0 0
    %2345 = vmatpush1.bf16.msra.mxu0 0
    %2346 = vmatprep.mubr.bf16.mxu0 0
    %2347 = vmatmul.mubr.bf16.gmra.mrb[0].mxu0 %v2312
    %v2348 = vpop.f32.mrb[0].mxu0
    %v2349 = vadd.f32 0.0, %v2348
    %v2350 = vpop.f32.mrb[0].mxu0
    %v2351 = vpop.f32.mrb[0].mxu0
    %v2352 = vpop.f32.mrb[0].mxu0
    %2353 = vdwg.mxu0
    %v2354 = vadd.f32 %v1928, %v2349
    %v2355 = vxor.u32 %v2354, 2147483648
    %v2356 = vmul.f32 %v2355, 1.442695
    %v2357 = vpow.pop %v2356
    %v2358 = vadd.f32 %v2357, 1.0
    %v2359 = vrcp.pop %v2358
    %v2360 = vmul.f32 1.0, %v2359
    %v2361 = vtanh.pop %v2354
    %v2362 = vmul.f32 %v2360, %v2300
    %2364 = vrot.lane.b32.xlu0 %v2361, 64
    %v2365 = vpop.permute.xlu0 %2364
    %v2367 = vmul.f32 %v2360, %v2365
    %2369 = vrot.lane.b32.xlu0 %v2367, 32
    %v2370 = vpop.permute.xlu0 %2369
    %v2372 = vadd.f32 %v2362, %v2370
    %v2373 = vtanh.pop %v2372
    %2375 = vrot.lane.b32.xlu0 %v2373, 64
    %v2376 = vpop.permute.xlu0 %2375
    %v2378 = vmul.f32 %v2360, %v2376
    %v2379 = vpack.c.bf16 %v2378, %v2378
    %2381 = vrot.lane.b32.xlu0 %v2379, 32
    %v2382 = vpop.permute.xlu0 %2381
    %v2384 = vsel %vm216, %v2382, 0
    %2386 = vmatprep.subr.bf16.mxu0 0
    %2387 = vmatpush1.bf16.msra.mxu0 %v1950
    %2388 = vmatprep.subr.bf16.mxu0 0
    %2389 = vmatpush1.bf16.msra.mxu0 %v1951
    %2390 = vmatprep.subr.bf16.mxu0 0
    %2391 = vmatpush1.bf16.msra.mxu0 0
    %2392 = vmatprep.subr.bf16.mxu0 0
    %2393 = vmatpush1.bf16.msra.mxu0 0
    %2394 = vmatprep.subr.bf16.mxu0 0
    %2395 = vmatpush1.bf16.msra.mxu0 0
    %2396 = vmatprep.subr.bf16.mxu0 0
    %2397 = vmatpush1.bf16.msra.mxu0 0
    %2398 = vmatprep.subr.bf16.mxu0 0
    %2399 = vmatpush1.bf16.msra.mxu0 0
    %2400 = vmatprep.subr.bf16.mxu0 0
    %2401 = vmatpush1.bf16.msra.mxu0 0
    %2402 = vmatprep.subr.bf16.mxu0 0
    %2403 = vmatpush1.bf16.msra.mxu0 0
    %2404 = vmatprep.subr.bf16.mxu0 0
    %2405 = vmatpush1.bf16.msra.mxu0 0
    %2406 = vmatprep.subr.bf16.mxu0 0
    %2407 = vmatpush1.bf16.msra.mxu0 0
    %2408 = vmatprep.subr.bf16.mxu0 0
    %2409 = vmatpush1.bf16.msra.mxu0 0
    %2410 = vmatprep.subr.bf16.mxu0 0
    %2411 = vmatpush1.bf16.msra.mxu0 0
    %2412 = vmatprep.subr.bf16.mxu0 0
    %2413 = vmatpush1.bf16.msra.mxu0 0
    %2414 = vmatprep.subr.bf16.mxu0 0
    %2415 = vmatpush1.bf16.msra.mxu0 0
    %2416 = vmatprep.subr.bf16.mxu0 0
    %2417 = vmatpush1.bf16.msra.mxu0 0
    %2418 = vmatprep.mubr.bf16.mxu0 0
    %2419 = vmatmul.mubr.bf16.gmra.mrb[0].mxu0 %v2384
    %v2420 = vpop.f32.mrb[0].mxu0
    %v2421 = vadd.f32 0.0, %v2420
    %v2422 = vpop.f32.mrb[0].mxu0
    %v2423 = vpop.f32.mrb[0].mxu0
    %v2424 = vpop.f32.mrb[0].mxu0
    %2425 = vdwg.mxu0
    %v2426 = vadd.f32 %v1927, %v2421
    %v2427 = vxor.u32 %v2426, 2147483648
    %v2428 = vmul.f32 %v2427, 1.442695
    %v2429 = vpow.pop %v2428
    %v2430 = vadd.f32 %v2429, 1.0
    %v2431 = vrcp.pop %v2430
    %v2432 = vmul.f32 1.0, %v2431
    %v2433 = vtanh.pop %v2426
    %v2434 = vmul.f32 %v2432, %v2372
    %2436 = vrot.lane.b32.xlu0 %v2433, 64
    %v2437 = vpop.permute.xlu0 %2436
    %v2439 = vmul.f32 %v2432, %v2437
    %2441 = vrot.lane.b32.xlu0 %v2439, 32
    %v2442 = vpop.permute.xlu0 %2441
    %v2444 = vadd.f32 %v2434, %v2442
    %v2445 = vtanh.pop %v2444
    %2447 = vrot.lane.b32.xlu0 %v2445, 64
    %v2448 = vpop.permute.xlu0 %2447
    %v2450 = vmul.f32 %v2432, %v2448
    %v2451 = vpack.c.bf16 %v2450, %v2450
    %2453 = vrot.lane.b32.xlu0 %v2451, 32
    %v2454 = vpop.permute.xlu0 %2453
    %v2456 = vsel %vm216, %v2454, 0
    %2458 = vmatprep.subr.bf16.mxu0 0
    %2459 = vmatpush1.bf16.msra.mxu0 %v1950
    %2460 = vmatprep.subr.bf16.mxu0 0
    %2461 = vmatpush1.bf16.msra.mxu0 %v1951
    %2462 = vmatprep.subr.bf16.mxu0 0
    %2463 = vmatpush1.bf16.msra.mxu0 0
    %2464 = vmatprep.subr.bf16.mxu0 0
    %2465 = vmatpush1.bf16.msra.mxu0 0
    %2466 = vmatprep.subr.bf16.mxu0 0
    %2467 = vmatpush1.bf16.msra.mxu0 0
    %2468 = vmatprep.subr.bf16.mxu0 0
    %2469 = vmatpush1.bf16.msra.mxu0 0
    %2470 = vmatprep.subr.bf16.mxu0 0
    %2471 = vmatpush1.bf16.msra.mxu0 0
    %2472 = vmatprep.subr.bf16.mxu0 0
    %2473 = vmatpush1.bf16.msra.mxu0 0
    %2474 = vmatprep.subr.bf16.mxu0 0
    %2475 = vmatpush1.bf16.msra.mxu0 0
    %2476 = vmatprep.subr.bf16.mxu0 0
    %2477 = vmatpush1.bf16.msra.mxu0 0
    %2478 = vmatprep.subr.bf16.mxu0 0
    %2479 = vmatpush1.bf16.msra.mxu0 0
    %2480 = vmatprep.subr.bf16.mxu0 0
    %2481 = vmatpush1.bf16.msra.mxu0 0
    %2482 = vmatprep.subr.bf16.mxu0 0
    %2483 = vmatpush1.bf16.msra.mxu0 0
    %2484 = vmatprep.subr.bf16.mxu0 0
    %2485 = vmatpush1.bf16.msra.mxu0 0
    %2486 = vmatprep.subr.bf16.mxu0 0
    %2487 = vmatpush1.bf16.msra.mxu0 0
    %2488 = vmatprep.subr.bf16.mxu0 0
    %2489 = vmatpush1.bf16.msra.mxu0 0
    %2490 = vmatprep.mubr.bf16.mxu0 0
    %2491 = vmatmul.mubr.bf16.gmra.mrb[0].mxu0 %v2456
    %v2492 = vpop.f32.mrb[0].mxu0
    %v2493 = vadd.f32 0.0, %v2492
    %v2494 = vpop.f32.mrb[0].mxu0
    %v2495 = vpop.f32.mrb[0].mxu0
    %v2496 = vpop.f32.mrb[0].mxu0
    %2497 = vdwg.mxu0
    %v2498 = vadd.f32 %v1929, %v2493
    %v2499 = vxor.u32 %v2498, 2147483648
    %v2500 = vmul.f32 %v2499, 1.442695
    %v2501 = vpow.pop %v2500
    %v2502 = vadd.f32 %v2501, 1.0
    %v2503 = vrcp.pop %v2502
    %v2504 = vmul.f32 1.0, %v2503
    %v2505 = vtanh.pop %v2498
    %v2506 = vmul.f32 %v2504, %v2444
    %2508 = vrot.lane.b32.xlu0 %v2505, 64
    %v2509 = vpop.permute.xlu0 %2508
    %v2511 = vmul.f32 %v2504, %v2509
    %2513 = vrot.lane.b32.xlu0 %v2511, 32
    %v2514 = vpop.permute.xlu0 %2513
    %v2516 = vadd.f32 %v2506, %v2514
    %v2517 = vtanh.pop %v2516
    %2519 = vrot.lane.b32.xlu0 %v2517, 64
    %v2520 = vpop.permute.xlu0 %2519
    %v2522 = vmul.f32 %v2504, %v2520
    %v2524 = vcombine.low %v2090, %v2090
    %v2526 = vunpack.c.l.s4 1983009808
    %v2527 = vunpack.c.0.s8 %v2526
    %v2528 = vlaneseq
    %v2529 = vshrl.u32 %v2528, 7
    %v2530 = vsub.s32 %v2527, %v2529
    %v2531 = vrot.slane %v2524, %v2530
    %v2535 = vunpack.c.l.s4 1983009808
    %v2536 = vunpack.c.0.s8 %v2535
    %v2537 = vlaneseq
    %v2538 = vshrl.u32 %v2537, 7
    %v2539 = vsub.s32 %v2536, %v2538
    %v2540 = vrot.slane %v2162, %v2539
    %v2541 = vcombine.low %v2540, %v2540
    %v2544 = vcombine.low %v2234, %v2234
    %v2546 = vunpack.c.l.s4 1983009808
    %v2547 = vunpack.c.0.s8 %v2546
    %v2548 = vlaneseq
    %v2549 = vshrl.u32 %v2548, 7
    %v2550 = vsub.s32 %v2547, %v2549
    %v2551 = vrot.slane %v2544, %v2550
    %v2552 = vcombine.low %v2551, %v2551
    %v2555 = vcombine.low %v2378, %v2378
    %v2557 = vunpack.c.l.s4 1983009808
    %v2558 = vunpack.c.0.s8 %v2557
    %v2559 = vlaneseq
    %v2560 = vshrl.u32 %v2559, 7
    %v2561 = vsub.s32 %v2558, %v2560
    %v2562 = vrot.slane %v2555, %v2561
    %v2566 = vunpack.c.l.s4 1983009808
    %v2567 = vunpack.c.0.s8 %v2566
    %v2568 = vlaneseq
    %v2569 = vshrl.u32 %v2568, 7
    %v2570 = vsub.s32 %v2567, %v2569
    %v2571 = vrot.slane %v2450, %v2570
    %v2572 = vcombine.low %v2571, %v2571
    %v2575 = vcombine.low %v2522, %v2522
    %v2577 = vunpack.c.l.s4 1983009808
    %v2578 = vunpack.c.0.s8 %v2577
    %v2579 = vlaneseq
    %v2580 = vshrl.u32 %v2579, 7
    %v2581 = vsub.s32 %v2578, %v2580
    %v2582 = vrot.slane %v2575, %v2581
    %v2583 = vcombine.low %v2582, %v2582
    %v2585 = vsel %vm1036, %v2018, %v2531
    %v2586 = vsel %vm1038, %v2585, %v2541
    %v2587 = vsel %vm1040, %v2586, %v2552
    %v2588 = vsel %vm1036, %v2306, %v2562
    %v2589 = vsel %vm1038, %v2588, %v2572
    %v2590 = vsel %vm1040, %v2589, %v2583
    %v2591 = vpack.c.bf16 %v2590, %v2587
    %s2592 = scalar_lea.vmem %s6, 16
    %v2593 = vld [vmem:[%s2592] sm:$0xf]
    %v2594 = vld [vmem:[%s2592 + $0x4] sm:$0xf]
    %v2595 = vld [vmem:[%s2592 + $0x8] sm:$0xf]
    %v2596 = vld [vmem:[%s2592 + $0xc] sm:$0xf]
    %s2597 = scalar_lea.vmem %s8, 1
    %v2598 = vld [vmem:[%s2597] sm:$0x1]
    %v2600 = vlaneseq
    %v2601 = vshrl.u32 %v2600, 7
    %v2602 = vsub.s32 0, %v2601
    %v2603 = vrot.slane %v2598, %v2602
    %2606 = vrot.lane.b32.xlu0 %v2591, 32
    %v2607 = vpop.permute.xlu0 %2606
    %v2612 = vunpack.c.l.b16 %v2593
    %v2613 = vunpack.c.l.b16 %v2594
    %v2614 = vunpack.c.l.b16 %v2595
    %v2615 = vunpack.c.l.b16 %v2596
    %v2616 = vpack.c.b16 %v2613, %v2612
    %v2617 = vpack.c.b16 %v2615, %v2614
    %v2621 = vsel %vm216, %v2607, 0
    %2623 = vmatprep.subr.bf16.mxu0 0
    %2624 = vmatpush1.bf16.msra.mxu0 %v2616
    %2625 = vmatprep.subr.bf16.mxu0 0
    %2626 = vmatpush1.bf16.msra.mxu0 %v2617
    %2627 = vmatprep.subr.bf16.mxu0 0
    %2628 = vmatpush1.bf16.msra.mxu0 0
    %2629 = vmatprep.subr.bf16.mxu0 0
    %2630 = vmatpush1.bf16.msra.mxu0 0
    %2631 = vmatprep.subr.bf16.mxu0 0
    %2632 = vmatpush1.bf16.msra.mxu0 0
    %2633 = vmatprep.subr.bf16.mxu0 0
    %2634 = vmatpush1.bf16.msra.mxu0 0
    %2635 = vmatprep.subr.bf16.mxu0 0
    %2636 = vmatpush1.bf16.msra.mxu0 0
    %2637 = vmatprep.subr.bf16.mxu0 0
    %2638 = vmatpush1.bf16.msra.mxu0 0
    %2639 = vmatprep.subr.bf16.mxu0 0
    %2640 = vmatpush1.bf16.msra.mxu0 0
    %2641 = vmatprep.subr.bf16.mxu0 0
    %2642 = vmatpush1.bf16.msra.mxu0 0
    %2643 = vmatprep.subr.bf16.mxu0 0
    %2644 = vmatpush1.bf16.msra.mxu0 0
    %2645 = vmatprep.subr.bf16.mxu0 0
    %2646 = vmatpush1.bf16.msra.mxu0 0
    %2647 = vmatprep.subr.bf16.mxu0 0
    %2648 = vmatpush1.bf16.msra.mxu0 0
    %2649 = vmatprep.subr.bf16.mxu0 0
    %2650 = vmatpush1.bf16.msra.mxu0 0
    %2651 = vmatprep.subr.bf16.mxu0 0
    %2652 = vmatpush1.bf16.msra.mxu0 0
    %2653 = vmatprep.subr.bf16.mxu0 0
    %2654 = vmatpush1.bf16.msra.mxu0 0
    %2655 = vmatprep.mubr.bf16.mxu0 0
    %2656 = vmatmul.mubr.bf16.gmra.mrb[0].mxu0 %v2621
    %v2657 = vpop.f32.mrb[0].mxu0
    %v2658 = vadd.f32 %v2603, %v2657
    %v2659 = vpop.f32.mrb[0].mxu0
    %v2660 = vpop.f32.mrb[0].mxu0
    %v2661 = vadd.f32 %v2603, %v2660
    %v2662 = vpop.f32.mrb[0].mxu0
    %2663 = vdwg.mxu0
    %v2666 = vcombine.high %v2658, %v2658
    %v2668 = vunpack.c.l.s4 1983009808
    %v2669 = vunpack.c.0.s8 %v2668
    %v2670 = vlaneseq
    %v2671 = vshrl.u32 %v2670, 7
    %v2672 = vsub.s32 %v2669, %v2671
    %v2673 = vrot.slane %v2658, %v2672
    %v2675 = vunpack.c.l.s4 1983009808
    %v2676 = vunpack.c.0.s8 %v2675
    %v2677 = vlaneseq
    %v2678 = vshrl.u32 %v2677, 7
    %v2679 = vsub.s32 %v2676, %v2678
    %v2680 = vrot.slane %v2666, %v2679
    %v2681 = vcombine.high %v2673, %v2673
    %v2682 = vcombine.high %v2680, %v2680
    %v2683 = vcombine.high %v2661, %v2661
    %v2685 = vunpack.c.l.s4 1983009808
    %v2686 = vunpack.c.0.s8 %v2685
    %v2687 = vlaneseq
    %v2688 = vshrl.u32 %v2687, 7
    %v2689 = vsub.s32 %v2686, %v2688
    %v2690 = vrot.slane %v2661, %v2689
    %v2692 = vunpack.c.l.s4 1983009808
    %v2693 = vunpack.c.0.s8 %v2692
    %v2694 = vlaneseq
    %v2695 = vshrl.u32 %v2694, 7
    %v2696 = vsub.s32 %v2693, %v2695
    %v2697 = vrot.slane %v2683, %v2696
    %v2698 = vcombine.high %v2690, %v2690
    %v2699 = vcombine.high %v2697, %v2697
    %s2708 = scalar_lea.vmem %s7, 16
    %v2709 = vld [vmem:[%s2708] sm:$0xf]
    %v2710 = vld [vmem:[%s2708 + $0x4] sm:$0xf]
    %v2711 = vld [vmem:[%s2708 + $0x8] sm:$0xf]
    %v2712 = vld [vmem:[%s2708 + $0xc] sm:$0xf]
    %v2717 = vunpack.c.l.b16 %v2709
    %v2718 = vunpack.c.l.b16 %v2710
    %v2719 = vunpack.c.l.b16 %v2711
    %v2720 = vunpack.c.l.b16 %v2712
    %v2721 = vpack.c.b16 %v2718, %v2717
    %v2722 = vpack.c.b16 %v2720, %v2719
    %2725 = vmatprep.subr.bf16.mxu0 0
    %2726 = vmatpush1.bf16.msra.mxu0 %v2721
    %2727 = vmatprep.subr.bf16.mxu0 0
    %2728 = vmatpush1.bf16.msra.mxu0 %v2722
    %2729 = vmatprep.subr.bf16.mxu0 0
    %2730 = vmatpush1.bf16.msra.mxu0 0
    %2731 = vmatprep.subr.bf16.mxu0 0
    %2732 = vmatpush1.bf16.msra.mxu0 0
    %2733 = vmatprep.subr.bf16.mxu0 0
    %2734 = vmatpush1.bf16.msra.mxu0 0
    %2735 = vmatprep.subr.bf16.mxu0 0
    %2736 = vmatpush1.bf16.msra.mxu0 0
    %2737 = vmatprep.subr.bf16.mxu0 0
    %2738 = vmatpush1.bf16.msra.mxu0 0
    %2739 = vmatprep.subr.bf16.mxu0 0
    %2740 = vmatpush1.bf16.msra.mxu0 0
    %2741 = vmatprep.subr.bf16.mxu0 0
    %2742 = vmatpush1.bf16.msra.mxu0 0
    %2743 = vmatprep.subr.bf16.mxu0 0
    %2744 = vmatpush1.bf16.msra.mxu0 0
    %2745 = vmatprep.subr.bf16.mxu0 0
    %2746 = vmatpush1.bf16.msra.mxu0 0
    %2747 = vmatprep.subr.bf16.mxu0 0
    %2748 = vmatpush1.bf16.msra.mxu0 0
    %2749 = vmatprep.subr.bf16.mxu0 0
    %2750 = vmatpush1.bf16.msra.mxu0 0
    %2751 = vmatprep.subr.bf16.mxu0 0
    %2752 = vmatpush1.bf16.msra.mxu0 0
    %2753 = vmatprep.subr.bf16.mxu0 0
    %2754 = vmatpush1.bf16.msra.mxu0 0
    %2755 = vmatprep.subr.bf16.mxu0 0
    %2756 = vmatpush1.bf16.msra.mxu0 0
    %2757 = vmatprep.mubr.bf16.mxu0 0
    %2758 = vmatmul.mubr.bf16.gmra.mrb[0].mxu0 %v323
    %v2759 = vpop.f32.mrb[0].mxu0
    %v2760 = vadd.f32 0.0, %v2759
    %v2761 = vpop.f32.mrb[0].mxu0
    %v2762 = vpop.f32.mrb[0].mxu0
    %v2763 = vpop.f32.mrb[0].mxu0
    %2764 = vdwg.mxu0
    %v2765 = vadd.f32 %v2673, %v2760
    %v2766 = vxor.u32 %v2765, 2147483648
    %v2767 = vmul.f32 %v2766, 1.442695
    %v2768 = vpow.pop %v2767
    %v2769 = vadd.f32 %v2768, 1.0
    %v2770 = vrcp.pop %v2769
    %v2771 = vmul.f32 1.0, %v2770
    %v2772 = vtanh.pop %v2765
    %v2773 = vmul.f32 %v2771, 0.0
    %2775 = vrot.lane.b32.xlu0 %v2772, 64
    %v2776 = vpop.permute.xlu0 %2775
    %v2778 = vmul.f32 %v2771, %v2776
    %2780 = vrot.lane.b32.xlu0 %v2778, 32
    %v2781 = vpop.permute.xlu0 %2780
    %v2783 = vadd.f32 %v2773, %v2781
    %v2784 = vtanh.pop %v2783
    %2786 = vrot.lane.b32.xlu0 %v2784, 64
    %v2787 = vpop.permute.xlu0 %2786
    %v2789 = vmul.f32 %v2771, %v2787
    %v2790 = vpack.c.bf16 %v2789, %v2789
    %2792 = vrot.lane.b32.xlu0 %v2790, 32
    %v2793 = vpop.permute.xlu0 %2792
    %v2795 = vsel %vm216, %v2793, 0
    %2797 = vmatprep.subr.bf16.mxu0 0
    %2798 = vmatpush1.bf16.msra.mxu0 %v2721
    %2799 = vmatprep.subr.bf16.mxu0 0
    %2800 = vmatpush1.bf16.msra.mxu0 %v2722
    %2801 = vmatprep.subr.bf16.mxu0 0
    %2802 = vmatpush1.bf16.msra.mxu0 0
    %2803 = vmatprep.subr.bf16.mxu0 0
    %2804 = vmatpush1.bf16.msra.mxu0 0
    %2805 = vmatprep.subr.bf16.mxu0 0
    %2806 = vmatpush1.bf16.msra.mxu0 0
    %2807 = vmatprep.subr.bf16.mxu0 0
    %2808 = vmatpush1.bf16.msra.mxu0 0
    %2809 = vmatprep.subr.bf16.mxu0 0
    %2810 = vmatpush1.bf16.msra.mxu0 0
    %2811 = vmatprep.subr.bf16.mxu0 0
    %2812 = vmatpush1.bf16.msra.mxu0 0
    %2813 = vmatprep.subr.bf16.mxu0 0
    %2814 = vmatpush1.bf16.msra.mxu0 0
    %2815 = vmatprep.subr.bf16.mxu0 0
    %2816 = vmatpush1.bf16.msra.mxu0 0
    %2817 = vmatprep.subr.bf16.mxu0 0
    %2818 = vmatpush1.bf16.msra.mxu0 0
    %2819 = vmatprep.subr.bf16.mxu0 0
    %2820 = vmatpush1.bf16.msra.mxu0 0
    %2821 = vmatprep.subr.bf16.mxu0 0
    %2822 = vmatpush1.bf16.msra.mxu0 0
    %2823 = vmatprep.subr.bf16.mxu0 0
    %2824 = vmatpush1.bf16.msra.mxu0 0
    %2825 = vmatprep.subr.bf16.mxu0 0
    %2826 = vmatpush1.bf16.msra.mxu0 0
    %2827 = vmatprep.subr.bf16.mxu0 0
    %2828 = vmatpush1.bf16.msra.mxu0 0
    %2829 = vmatprep.mubr.bf16.mxu0 0
    %2830 = vmatmul.mubr.bf16.gmra.mrb[0].mxu0 %v2795
    %v2831 = vpop.f32.mrb[0].mxu0
    %v2832 = vadd.f32 0.0, %v2831
    %v2833 = vpop.f32.mrb[0].mxu0
    %v2834 = vpop.f32.mrb[0].mxu0
    %v2835 = vpop.f32.mrb[0].mxu0
    %2836 = vdwg.mxu0
    %v2837 = vadd.f32 %v2681, %v2832
    %v2838 = vxor.u32 %v2837, 2147483648
    %v2839 = vmul.f32 %v2838, 1.442695
    %v2840 = vpow.pop %v2839
    %v2841 = vadd.f32 %v2840, 1.0
    %v2842 = vrcp.pop %v2841
    %v2843 = vmul.f32 1.0, %v2842
    %v2844 = vtanh.pop %v2837
    %v2845 = vmul.f32 %v2843, %v2783
    %2847 = vrot.lane.b32.xlu0 %v2844, 64
    %v2848 = vpop.permute.xlu0 %2847
    %v2850 = vmul.f32 %v2843, %v2848
    %2852 = vrot.lane.b32.xlu0 %v2850, 32
    %v2853 = vpop.permute.xlu0 %2852
    %v2855 = vadd.f32 %v2845, %v2853
    %v2856 = vtanh.pop %v2855
    %2858 = vrot.lane.b32.xlu0 %v2856, 64
    %v2859 = vpop.permute.xlu0 %2858
    %v2861 = vmul.f32 %v2843, %v2859
    %v2862 = vpack.c.bf16 %v2861, %v2861
    %2864 = vrot.lane.b32.xlu0 %v2862, 32
    %v2865 = vpop.permute.xlu0 %2864
    %v2867 = vsel %vm216, %v2865, 0
    %2869 = vmatprep.subr.bf16.mxu0 0
    %2870 = vmatpush1.bf16.msra.mxu0 %v2721
    %2871 = vmatprep.subr.bf16.mxu0 0
    %2872 = vmatpush1.bf16.msra.mxu0 %v2722
    %2873 = vmatprep.subr.bf16.mxu0 0
    %2874 = vmatpush1.bf16.msra.mxu0 0
    %2875 = vmatprep.subr.bf16.mxu0 0
    %2876 = vmatpush1.bf16.msra.mxu0 0
    %2877 = vmatprep.subr.bf16.mxu0 0
    %2878 = vmatpush1.bf16.msra.mxu0 0
    %2879 = vmatprep.subr.bf16.mxu0 0
    %2880 = vmatpush1.bf16.msra.mxu0 0
    %2881 = vmatprep.subr.bf16.mxu0 0
    %2882 = vmatpush1.bf16.msra.mxu0 0
    %2883 = vmatprep.subr.bf16.mxu0 0
    %2884 = vmatpush1.bf16.msra.mxu0 0
    %2885 = vmatprep.subr.bf16.mxu0 0
    %2886 = vmatpush1.bf16.msra.mxu0 0
    %2887 = vmatprep.subr.bf16.mxu0 0
    %2888 = vmatpush1.bf16.msra.mxu0 0
    %2889 = vmatprep.subr.bf16.mxu0 0
    %2890 = vmatpush1.bf16.msra.mxu0 0
    %2891 = vmatprep.subr.bf16.mxu0 0
    %2892 = vmatpush1.bf16.msra.mxu0 0
    %2893 = vmatprep.subr.bf16.mxu0 0
    %2894 = vmatpush1.bf16.msra.mxu0 0
    %2895 = vmatprep.subr.bf16.mxu0 0
    %2896 = vmatpush1.bf16.msra.mxu0 0
    %2897 = vmatprep.subr.bf16.mxu0 0
    %2898 = vmatpush1.bf16.msra.mxu0 0
    %2899 = vmatprep.subr.bf16.mxu0 0
    %2900 = vmatpush1.bf16.msra.mxu0 0
    %2901 = vmatprep.mubr.bf16.mxu0 0
    %2902 = vmatmul.mubr.bf16.gmra.mrb[0].mxu0 %v2867
    %v2903 = vpop.f32.mrb[0].mxu0
    %v2904 = vadd.f32 0.0, %v2903
    %v2905 = vpop.f32.mrb[0].mxu0
    %v2906 = vpop.f32.mrb[0].mxu0
    %v2907 = vpop.f32.mrb[0].mxu0
    %2908 = vdwg.mxu0
    %v2909 = vadd.f32 %v2680, %v2904
    %v2910 = vxor.u32 %v2909, 2147483648
    %v2911 = vmul.f32 %v2910, 1.442695
    %v2912 = vpow.pop %v2911
    %v2913 = vadd.f32 %v2912, 1.0
    %v2914 = vrcp.pop %v2913
    %v2915 = vmul.f32 1.0, %v2914
    %v2916 = vtanh.pop %v2909
    %v2917 = vmul.f32 %v2915, %v2855
    %2919 = vrot.lane.b32.xlu0 %v2916, 64
    %v2920 = vpop.permute.xlu0 %2919
    %v2922 = vmul.f32 %v2915, %v2920
    %2924 = vrot.lane.b32.xlu0 %v2922, 32
    %v2925 = vpop.permute.xlu0 %2924
    %v2927 = vadd.f32 %v2917, %v2925
    %v2928 = vtanh.pop %v2927
    %2930 = vrot.lane.b32.xlu0 %v2928, 64
    %v2931 = vpop.permute.xlu0 %2930
    %v2933 = vmul.f32 %v2915, %v2931
    %v2934 = vpack.c.bf16 %v2933, %v2933
    %2936 = vrot.lane.b32.xlu0 %v2934, 32
    %v2937 = vpop.permute.xlu0 %2936
    %v2939 = vsel %vm216, %v2937, 0
    %2941 = vmatprep.subr.bf16.mxu0 0
    %2942 = vmatpush1.bf16.msra.mxu0 %v2721
    %2943 = vmatprep.subr.bf16.mxu0 0
    %2944 = vmatpush1.bf16.msra.mxu0 %v2722
    %2945 = vmatprep.subr.bf16.mxu0 0
    %2946 = vmatpush1.bf16.msra.mxu0 0
    %2947 = vmatprep.subr.bf16.mxu0 0
    %2948 = vmatpush1.bf16.msra.mxu0 0
    %2949 = vmatprep.subr.bf16.mxu0 0
    %2950 = vmatpush1.bf16.msra.mxu0 0
    %2951 = vmatprep.subr.bf16.mxu0 0
    %2952 = vmatpush1.bf16.msra.mxu0 0
    %2953 = vmatprep.subr.bf16.mxu0 0
    %2954 = vmatpush1.bf16.msra.mxu0 0
    %2955 = vmatprep.subr.bf16.mxu0 0
    %2956 = vmatpush1.bf16.msra.mxu0 0
    %2957 = vmatprep.subr.bf16.mxu0 0
    %2958 = vmatpush1.bf16.msra.mxu0 0
    %2959 = vmatprep.subr.bf16.mxu0 0
    %2960 = vmatpush1.bf16.msra.mxu0 0
    %2961 = vmatprep.subr.bf16.mxu0 0
    %2962 = vmatpush1.bf16.msra.mxu0 0
    %2963 = vmatprep.subr.bf16.mxu0 0
    %2964 = vmatpush1.bf16.msra.mxu0 0
    %2965 = vmatprep.subr.bf16.mxu0 0
    %2966 = vmatpush1.bf16.msra.mxu0 0
    %2967 = vmatprep.subr.bf16.mxu0 0
    %2968 = vmatpush1.bf16.msra.mxu0 0
    %2969 = vmatprep.subr.bf16.mxu0 0
    %2970 = vmatpush1.bf16.msra.mxu0 0
    %2971 = vmatprep.subr.bf16.mxu0 0
    %2972 = vmatpush1.bf16.msra.mxu0 0
    %2973 = vmatprep.mubr.bf16.mxu0 0
    %2974 = vmatmul.mubr.bf16.gmra.mrb[0].mxu0 %v2939
    %v2975 = vpop.f32.mrb[0].mxu0
    %v2976 = vadd.f32 0.0, %v2975
    %v2977 = vpop.f32.mrb[0].mxu0
    %v2978 = vpop.f32.mrb[0].mxu0
    %v2979 = vpop.f32.mrb[0].mxu0
    %2980 = vdwg.mxu0
    %v2981 = vadd.f32 %v2682, %v2976
    %v2982 = vxor.u32 %v2981, 2147483648
    %v2983 = vmul.f32 %v2982, 1.442695
    %v2984 = vpow.pop %v2983
    %v2985 = vadd.f32 %v2984, 1.0
    %v2986 = vrcp.pop %v2985
    %v2987 = vmul.f32 1.0, %v2986
    %v2988 = vtanh.pop %v2981
    %v2989 = vmul.f32 %v2987, %v2927
    %2991 = vrot.lane.b32.xlu0 %v2988, 64
    %v2992 = vpop.permute.xlu0 %2991
    %v2994 = vmul.f32 %v2987, %v2992
    %2996 = vrot.lane.b32.xlu0 %v2994, 32
    %v2997 = vpop.permute.xlu0 %2996
    %v2999 = vadd.f32 %v2989, %v2997
    %v3000 = vtanh.pop %v2999
    %3002 = vrot.lane.b32.xlu0 %v3000, 64
    %v3003 = vpop.permute.xlu0 %3002
    %v3005 = vmul.f32 %v2987, %v3003
    %v3006 = vpack.c.bf16 %v3005, %v3005
    %3008 = vrot.lane.b32.xlu0 %v3006, 32
    %v3009 = vpop.permute.xlu0 %3008
    %v3011 = vsel %vm216, %v3009, 0
    %3013 = vmatprep.subr.bf16.mxu0 0
    %3014 = vmatpush1.bf16.msra.mxu0 %v2721
    %3015 = vmatprep.subr.bf16.mxu0 0
    %3016 = vmatpush1.bf16.msra.mxu0 %v2722
    %3017 = vmatprep.subr.bf16.mxu0 0
    %3018 = vmatpush1.bf16.msra.mxu0 0
    %3019 = vmatprep.subr.bf16.mxu0 0
    %3020 = vmatpush1.bf16.msra.mxu0 0
    %3021 = vmatprep.subr.bf16.mxu0 0
    %3022 = vmatpush1.bf16.msra.mxu0 0
    %3023 = vmatprep.subr.bf16.mxu0 0
    %3024 = vmatpush1.bf16.msra.mxu0 0
    %3025 = vmatprep.subr.bf16.mxu0 0
    %3026 = vmatpush1.bf16.msra.mxu0 0
    %3027 = vmatprep.subr.bf16.mxu0 0
    %3028 = vmatpush1.bf16.msra.mxu0 0
    %3029 = vmatprep.subr.bf16.mxu0 0
    %3030 = vmatpush1.bf16.msra.mxu0 0
    %3031 = vmatprep.subr.bf16.mxu0 0
    %3032 = vmatpush1.bf16.msra.mxu0 0
    %3033 = vmatprep.subr.bf16.mxu0 0
    %3034 = vmatpush1.bf16.msra.mxu0 0
    %3035 = vmatprep.subr.bf16.mxu0 0
    %3036 = vmatpush1.bf16.msra.mxu0 0
    %3037 = vmatprep.subr.bf16.mxu0 0
    %3038 = vmatpush1.bf16.msra.mxu0 0
    %3039 = vmatprep.subr.bf16.mxu0 0
    %3040 = vmatpush1.bf16.msra.mxu0 0
    %3041 = vmatprep.subr.bf16.mxu0 0
    %3042 = vmatpush1.bf16.msra.mxu0 0
    %3043 = vmatprep.subr.bf16.mxu0 0
    %3044 = vmatpush1.bf16.msra.mxu0 0
    %3045 = vmatprep.mubr.bf16.mxu0 0
    %3046 = vmatmul.mubr.bf16.gmra.mrb[0].mxu0 %v3011
    %v3047 = vpop.f32.mrb[0].mxu0
    %v3048 = vadd.f32 0.0, %v3047
    %v3049 = vpop.f32.mrb[0].mxu0
    %v3050 = vpop.f32.mrb[0].mxu0
    %v3051 = vpop.f32.mrb[0].mxu0
    %3052 = vdwg.mxu0
    %v3053 = vadd.f32 %v2690, %v3048
    %v3054 = vxor.u32 %v3053, 2147483648
    %v3055 = vmul.f32 %v3054, 1.442695
    %v3056 = vpow.pop %v3055
    %v3057 = vadd.f32 %v3056, 1.0
    %v3058 = vrcp.pop %v3057
    %v3059 = vmul.f32 1.0, %v3058
    %v3060 = vtanh.pop %v3053
    %v3061 = vmul.f32 %v3059, %v2999
    %3063 = vrot.lane.b32.xlu0 %v3060, 64
    %v3064 = vpop.permute.xlu0 %3063
    %v3066 = vmul.f32 %v3059, %v3064
    %3068 = vrot.lane.b32.xlu0 %v3066, 32
    %v3069 = vpop.permute.xlu0 %3068
    %v3071 = vadd.f32 %v3061, %v3069
    %v3072 = vtanh.pop %v3071
    %3074 = vrot.lane.b32.xlu0 %v3072, 64
    %v3075 = vpop.permute.xlu0 %3074
    %v3077 = vmul.f32 %v3059, %v3075
    %v3078 = vpack.c.bf16 %v3077, %v3077
    %3080 = vrot.lane.b32.xlu0 %v3078, 32
    %v3081 = vpop.permute.xlu0 %3080
    %v3083 = vsel %vm216, %v3081, 0
    %3085 = vmatprep.subr.bf16.mxu0 0
    %3086 = vmatpush1.bf16.msra.mxu0 %v2721
    %3087 = vmatprep.subr.bf16.mxu0 0
    %3088 = vmatpush1.bf16.msra.mxu0 %v2722
    %3089 = vmatprep.subr.bf16.mxu0 0
    %3090 = vmatpush1.bf16.msra.mxu0 0
    %3091 = vmatprep.subr.bf16.mxu0 0
    %3092 = vmatpush1.bf16.msra.mxu0 0
    %3093 = vmatprep.subr.bf16.mxu0 0
    %3094 = vmatpush1.bf16.msra.mxu0 0
    %3095 = vmatprep.subr.bf16.mxu0 0
    %3096 = vmatpush1.bf16.msra.mxu0 0
    %3097 = vmatprep.subr.bf16.mxu0 0
    %3098 = vmatpush1.bf16.msra.mxu0 0
    %3099 = vmatprep.subr.bf16.mxu0 0
    %3100 = vmatpush1.bf16.msra.mxu0 0
    %3101 = vmatprep.subr.bf16.mxu0 0
    %3102 = vmatpush1.bf16.msra.mxu0 0
    %3103 = vmatprep.subr.bf16.mxu0 0
    %3104 = vmatpush1.bf16.msra.mxu0 0
    %3105 = vmatprep.subr.bf16.mxu0 0
    %3106 = vmatpush1.bf16.msra.mxu0 0
    %3107 = vmatprep.subr.bf16.mxu0 0
    %3108 = vmatpush1.bf16.msra.mxu0 0
    %3109 = vmatprep.subr.bf16.mxu0 0
    %3110 = vmatpush1.bf16.msra.mxu0 0
    %3111 = vmatprep.subr.bf16.mxu0 0
    %3112 = vmatpush1.bf16.msra.mxu0 0
    %3113 = vmatprep.subr.bf16.mxu0 0
    %3114 = vmatpush1.bf16.msra.mxu0 0
    %3115 = vmatprep.subr.bf16.mxu0 0
    %3116 = vmatpush1.bf16.msra.mxu0 0
    %3117 = vmatprep.mubr.bf16.mxu0 0
    %3118 = vmatmul.mubr.bf16.gmra.mrb[0].mxu0 %v3083
    %v3119 = vpop.f32.mrb[0].mxu0
    %v3120 = vadd.f32 0.0, %v3119
    %v3121 = vpop.f32.mrb[0].mxu0
    %v3122 = vpop.f32.mrb[0].mxu0
    %v3123 = vpop.f32.mrb[0].mxu0
    %3124 = vdwg.mxu0
    %v3125 = vadd.f32 %v2698, %v3120
    %v3126 = vxor.u32 %v3125, 2147483648
    %v3127 = vmul.f32 %v3126, 1.442695
    %v3128 = vpow.pop %v3127
    %v3129 = vadd.f32 %v3128, 1.0
    %v3130 = vrcp.pop %v3129
    %v3131 = vmul.f32 1.0, %v3130
    %v3132 = vtanh.pop %v3125
    %v3133 = vmul.f32 %v3131, %v3071
    %3135 = vrot.lane.b32.xlu0 %v3132, 64
    %v3136 = vpop.permute.xlu0 %3135
    %v3138 = vmul.f32 %v3131, %v3136
    %3140 = vrot.lane.b32.xlu0 %v3138, 32
    %v3141 = vpop.permute.xlu0 %3140
    %v3143 = vadd.f32 %v3133, %v3141
    %v3144 = vtanh.pop %v3143
    %3146 = vrot.lane.b32.xlu0 %v3144, 64
    %v3147 = vpop.permute.xlu0 %3146
    %v3149 = vmul.f32 %v3131, %v3147
    %v3150 = vpack.c.bf16 %v3149, %v3149
    %3152 = vrot.lane.b32.xlu0 %v3150, 32
    %v3153 = vpop.permute.xlu0 %3152
    %v3155 = vsel %vm216, %v3153, 0
    %3157 = vmatprep.subr.bf16.mxu0 0
    %3158 = vmatpush1.bf16.msra.mxu0 %v2721
    %3159 = vmatprep.subr.bf16.mxu0 0
    %3160 = vmatpush1.bf16.msra.mxu0 %v2722
    %3161 = vmatprep.subr.bf16.mxu0 0
    %3162 = vmatpush1.bf16.msra.mxu0 0
    %3163 = vmatprep.subr.bf16.mxu0 0
    %3164 = vmatpush1.bf16.msra.mxu0 0
    %3165 = vmatprep.subr.bf16.mxu0 0
    %3166 = vmatpush1.bf16.msra.mxu0 0
    %3167 = vmatprep.subr.bf16.mxu0 0
    %3168 = vmatpush1.bf16.msra.mxu0 0
    %3169 = vmatprep.subr.bf16.mxu0 0
    %3170 = vmatpush1.bf16.msra.mxu0 0
    %3171 = vmatprep.subr.bf16.mxu0 0
    %3172 = vmatpush1.bf16.msra.mxu0 0
    %3173 = vmatprep.subr.bf16.mxu0 0
    %3174 = vmatpush1.bf16.msra.mxu0 0
    %3175 = vmatprep.subr.bf16.mxu0 0
    %3176 = vmatpush1.bf16.msra.mxu0 0
    %3177 = vmatprep.subr.bf16.mxu0 0
    %3178 = vmatpush1.bf16.msra.mxu0 0
    %3179 = vmatprep.subr.bf16.mxu0 0
    %3180 = vmatpush1.bf16.msra.mxu0 0
    %3181 = vmatprep.subr.bf16.mxu0 0
    %3182 = vmatpush1.bf16.msra.mxu0 0
    %3183 = vmatprep.subr.bf16.mxu0 0
    %3184 = vmatpush1.bf16.msra.mxu0 0
    %3185 = vmatprep.subr.bf16.mxu0 0
    %3186 = vmatpush1.bf16.msra.mxu0 0
    %3187 = vmatprep.subr.bf16.mxu0 0
    %3188 = vmatpush1.bf16.msra.mxu0 0
    %3189 = vmatprep.mubr.bf16.mxu0 0
    %3190 = vmatmul.mubr.bf16.gmra.mrb[0].mxu0 %v3155
    %v3191 = vpop.f32.mrb[0].mxu0
    %v3192 = vadd.f32 0.0, %v3191
    %v3193 = vpop.f32.mrb[0].mxu0
    %v3194 = vpop.f32.mrb[0].mxu0
    %v3195 = vpop.f32.mrb[0].mxu0
    %3196 = vdwg.mxu0
    %v3197 = vadd.f32 %v2697, %v3192
    %v3198 = vxor.u32 %v3197, 2147483648
    %v3199 = vmul.f32 %v3198, 1.442695
    %v3200 = vpow.pop %v3199
    %v3201 = vadd.f32 %v3200, 1.0
    %v3202 = vrcp.pop %v3201
    %v3203 = vmul.f32 1.0, %v3202
    %v3204 = vtanh.pop %v3197
    %v3205 = vmul.f32 %v3203, %v3143
    %3207 = vrot.lane.b32.xlu0 %v3204, 64
    %v3208 = vpop.permute.xlu0 %3207
    %v3210 = vmul.f32 %v3203, %v3208
    %3212 = vrot.lane.b32.xlu0 %v3210, 32
    %v3213 = vpop.permute.xlu0 %3212
    %v3215 = vadd.f32 %v3205, %v3213
    %v3216 = vtanh.pop %v3215
    %3218 = vrot.lane.b32.xlu0 %v3216, 64
    %v3219 = vpop.permute.xlu0 %3218
    %v3221 = vmul.f32 %v3203, %v3219
    %v3222 = vpack.c.bf16 %v3221, %v3221
    %3224 = vrot.lane.b32.xlu0 %v3222, 32
    %v3225 = vpop.permute.xlu0 %3224
    %v3227 = vsel %vm216, %v3225, 0
    %3229 = vmatprep.subr.bf16.mxu0 0
    %3230 = vmatpush1.bf16.msra.mxu0 %v2721
    %3231 = vmatprep.subr.bf16.mxu0 0
    %3232 = vmatpush1.bf16.msra.mxu0 %v2722
    %3233 = vmatprep.subr.bf16.mxu0 0
    %3234 = vmatpush1.bf16.msra.mxu0 0
    %3235 = vmatprep.subr.bf16.mxu0 0
    %3236 = vmatpush1.bf16.msra.mxu0 0
    %3237 = vmatprep.subr.bf16.mxu0 0
    %3238 = vmatpush1.bf16.msra.mxu0 0
    %3239 = vmatprep.subr.bf16.mxu0 0
    %3240 = vmatpush1.bf16.msra.mxu0 0
    %3241 = vmatprep.subr.bf16.mxu0 0
    %3242 = vmatpush1.bf16.msra.mxu0 0
    %3243 = vmatprep.subr.bf16.mxu0 0
    %3244 = vmatpush1.bf16.msra.mxu0 0
    %3245 = vmatprep.subr.bf16.mxu0 0
    %3246 = vmatpush1.bf16.msra.mxu0 0
    %3247 = vmatprep.subr.bf16.mxu0 0
    %3248 = vmatpush1.bf16.msra.mxu0 0
    %3249 = vmatprep.subr.bf16.mxu0 0
    %3250 = vmatpush1.bf16.msra.mxu0 0
    %3251 = vmatprep.subr.bf16.mxu0 0
    %3252 = vmatpush1.bf16.msra.mxu0 0
    %3253 = vmatprep.subr.bf16.mxu0 0
    %3254 = vmatpush1.bf16.msra.mxu0 0
    %3255 = vmatprep.subr.bf16.mxu0 0
    %3256 = vmatpush1.bf16.msra.mxu0 0
    %3257 = vmatprep.subr.bf16.mxu0 0
    %3258 = vmatpush1.bf16.msra.mxu0 0
    %3259 = vmatprep.subr.bf16.mxu0 0
    %3260 = vmatpush1.bf16.msra.mxu0 0
    %3261 = vmatprep.mubr.bf16.mxu0 0
    %3262 = vmatmul.mubr.bf16.gmra.mrb[0].mxu0 %v3227
    %v3263 = vpop.f32.mrb[0].mxu0
    %v3264 = vadd.f32 0.0, %v3263
    %v3265 = vpop.f32.mrb[0].mxu0
    %v3266 = vpop.f32.mrb[0].mxu0
    %v3267 = vpop.f32.mrb[0].mxu0
    %3268 = vdwg.mxu0
    %v3269 = vadd.f32 %v2699, %v3264
    %v3270 = vxor.u32 %v3269, 2147483648
    %v3271 = vmul.f32 %v3270, 1.442695
    %v3272 = vpow.pop %v3271
    %v3273 = vadd.f32 %v3272, 1.0
    %v3274 = vrcp.pop %v3273
    %v3275 = vmul.f32 1.0, %v3274
    %v3276 = vtanh.pop %v3269
    %v3277 = vmul.f32 %v3275, %v3215
    %3279 = vrot.lane.b32.xlu0 %v3276, 64
    %v3280 = vpop.permute.xlu0 %3279
    %v3282 = vmul.f32 %v3275, %v3280
    %3284 = vrot.lane.b32.xlu0 %v3282, 32
    %v3285 = vpop.permute.xlu0 %3284
    %v3287 = vadd.f32 %v3277, %v3285
    %v3288 = vtanh.pop %v3287
    %3290 = vrot.lane.b32.xlu0 %v3288, 64
    %v3291 = vpop.permute.xlu0 %3290
    %v3293 = vmul.f32 %v3275, %v3291
    %v3295 = vsel %vm216, %v192, 0
    %3297 = vmatprep.subr.bf16.mxu0 0
    %3298 = vmatpush1.bf16.msra.mxu0 %v212
    %3299 = vmatprep.subr.bf16.mxu0 0
    %3300 = vmatpush1.bf16.msra.mxu0 %v213
    %3301 = vmatprep.subr.bf16.mxu0 0
    %3302 = vmatpush1.bf16.msra.mxu0 0
    %3303 = vmatprep.subr.bf16.mxu0 0
    %3304 = vmatpush1.bf16.msra.mxu0 0
    %3305 = vmatprep.subr.bf16.mxu0 0
    %3306 = vmatpush1.bf16.msra.mxu0 0
    %3307 = vmatprep.subr.bf16.mxu0 0
    %3308 = vmatpush1.bf16.msra.mxu0 0
    %3309 = vmatprep.subr.bf16.mxu0 0
    %3310 = vmatpush1.bf16.msra.mxu0 0
    %3311 = vmatprep.subr.bf16.mxu0 0
    %3312 = vmatpush1.bf16.msra.mxu0 0
    %3313 = vmatprep.subr.bf16.mxu0 0
    %3314 = vmatpush1.bf16.msra.mxu0 0
    %3315 = vmatprep.subr.bf16.mxu0 0
    %3316 = vmatpush1.bf16.msra.mxu0 0
    %3317 = vmatprep.subr.bf16.mxu0 0
    %3318 = vmatpush1.bf16.msra.mxu0 0
    %3319 = vmatprep.subr.bf16.mxu0 0
    %3320 = vmatpush1.bf16.msra.mxu0 0
    %3321 = vmatprep.subr.bf16.mxu0 0
    %3322 = vmatpush1.bf16.msra.mxu0 0
    %3323 = vmatprep.subr.bf16.mxu0 0
    %3324 = vmatpush1.bf16.msra.mxu0 0
    %3325 = vmatprep.subr.bf16.mxu0 0
    %3326 = vmatpush1.bf16.msra.mxu0 0
    %3327 = vmatprep.subr.bf16.mxu0 0
    %3328 = vmatpush1.bf16.msra.mxu0 0
    %3329 = vmatprep.mubr.bf16.mxu0 0
    %3330 = vmatmul.mubr.bf16.gmra.mrb[0].mxu0 %v3295
    %v3331 = vpop.f32.mrb[0].mxu0
    %v3332 = vadd.f32 %v202, %v3331
    %v3333 = vpop.f32.mrb[0].mxu0
    %v3334 = vpop.f32.mrb[0].mxu0
    %v3335 = vadd.f32 %v202, %v3334
    %v3336 = vpop.f32.mrb[0].mxu0
    %3337 = vdwg.mxu0
    %v3340 = vcombine.high %v3332, %v3332
    %v3342 = vunpack.c.l.s4 1983009808
    %v3343 = vunpack.c.0.s8 %v3342
    %v3344 = vlaneseq
    %v3345 = vshrl.u32 %v3344, 7
    %v3346 = vsub.s32 %v3343, %v3345
    %v3347 = vrot.slane %v3332, %v3346
    %v3349 = vunpack.c.l.s4 1983009808
    %v3350 = vunpack.c.0.s8 %v3349
    %v3351 = vlaneseq
    %v3352 = vshrl.u32 %v3351, 7
    %v3353 = vsub.s32 %v3350, %v3352
    %v3354 = vrot.slane %v3340, %v3353
    %v3355 = vcombine.high %v3347, %v3347
    %v3356 = vcombine.high %v3354, %v3354
    %v3357 = vcombine.high %v3335, %v3335
    %v3359 = vunpack.c.l.s4 1983009808
    %v3360 = vunpack.c.0.s8 %v3359
    %v3361 = vlaneseq
    %v3362 = vshrl.u32 %v3361, 7
    %v3363 = vsub.s32 %v3360, %v3362
    %v3364 = vrot.slane %v3335, %v3363
    %v3366 = vunpack.c.l.s4 1983009808
    %v3367 = vunpack.c.0.s8 %v3366
    %v3368 = vlaneseq
    %v3369 = vshrl.u32 %v3368, 7
    %v3370 = vsub.s32 %v3367, %v3369
    %v3371 = vrot.slane %v3357, %v3370
    %v3372 = vcombine.high %v3364, %v3364
    %v3373 = vcombine.high %v3371, %v3371
    %v3382 = vpack.c.bf16 %v973, %v973
    %3384 = vrot.lane.b32.xlu0 %v3382, 96
    %v3385 = vpop.permute.xlu0 %3384
    %v3387 = vsel %vm216, %v3385, 0
    %3389 = vmatprep.subr.bf16.mxu0 0
    %3390 = vmatpush1.bf16.msra.mxu0 %v318
    %3391 = vmatprep.subr.bf16.mxu0 0
    %3392 = vmatpush1.bf16.msra.mxu0 %v319
    %3393 = vmatprep.subr.bf16.mxu0 0
    %3394 = vmatpush1.bf16.msra.mxu0 0
    %3395 = vmatprep.subr.bf16.mxu0 0
    %3396 = vmatpush1.bf16.msra.mxu0 0
    %3397 = vmatprep.subr.bf16.mxu0 0
    %3398 = vmatpush1.bf16.msra.mxu0 0
    %3399 = vmatprep.subr.bf16.mxu0 0
    %3400 = vmatpush1.bf16.msra.mxu0 0
    %3401 = vmatprep.subr.bf16.mxu0 0
    %3402 = vmatpush1.bf16.msra.mxu0 0
    %3403 = vmatprep.subr.bf16.mxu0 0
    %3404 = vmatpush1.bf16.msra.mxu0 0
    %3405 = vmatprep.subr.bf16.mxu0 0
    %3406 = vmatpush1.bf16.msra.mxu0 0
    %3407 = vmatprep.subr.bf16.mxu0 0
    %3408 = vmatpush1.bf16.msra.mxu0 0
    %3409 = vmatprep.subr.bf16.mxu0 0
    %3410 = vmatpush1.bf16.msra.mxu0 0
    %3411 = vmatprep.subr.bf16.mxu0 0
    %3412 = vmatpush1.bf16.msra.mxu0 0
    %3413 = vmatprep.subr.bf16.mxu0 0
    %3414 = vmatpush1.bf16.msra.mxu0 0
    %3415 = vmatprep.subr.bf16.mxu0 0
    %3416 = vmatpush1.bf16.msra.mxu0 0
    %3417 = vmatprep.subr.bf16.mxu0 0
    %3418 = vmatpush1.bf16.msra.mxu0 0
    %3419 = vmatprep.subr.bf16.mxu0 0
    %3420 = vmatpush1.bf16.msra.mxu0 0
    %3421 = vmatprep.mubr.bf16.mxu0 0
    %3422 = vmatmul.mubr.bf16.gmra.mrb[0].mxu0 %v3387
    %v3423 = vpop.f32.mrb[0].mxu0
    %v3424 = vadd.f32 0.0, %v3423
    %v3425 = vpop.f32.mrb[0].mxu0
    %v3426 = vpop.f32.mrb[0].mxu0
    %v3427 = vpop.f32.mrb[0].mxu0
    %3428 = vdwg.mxu0
    %v3429 = vadd.f32 %v3347, %v3424
    %v3430 = vxor.u32 %v3429, 2147483648
    %v3431 = vmul.f32 %v3430, 1.442695
    %v3432 = vpow.pop %v3431
    %v3433 = vadd.f32 %v3432, 1.0
    %v3434 = vrcp.pop %v3433
    %v3435 = vmul.f32 1.0, %v3434
    %v3436 = vadd.f32 %v3424, %v378
    %v3439 = vunpack.c.l.s4 1983009808
    %v3440 = vunpack.c.0.s8 %v3439
    %v3441 = vlaneseq
    %v3442 = vshrl.u32 %v3441, 7
    %v3443 = vsub.s32 %v3440, %v3442
    %v3444 = vrot.slane %v3436, %v3443
    %3445 = vrot.lane.b32.xlu0 %v3444, 64
    %v3446 = vpop.permute.xlu0 %3445
    %v3448 = vmul.f32 %v3435, %v3446
    %3450 = vrot.lane.b32.xlu0 %v3448, 64
    %v3451 = vpop.permute.xlu0 %3450
    %v3453 = vadd.f32 %v3347, %v3451
    %v3454 = vtanh.pop %v3453
    %v3455 = vsub.f32 1.0, %v3435
    %3457 = vrot.lane.b32.xlu0 %v3454, 96
    %v3458 = vpop.permute.xlu0 %3457
    %v3460 = vmul.f32 %v3455, %v3458
    %v3461 = vmul.f32 %v3435, %v973
    %v3462 = vadd.f32 %v3460, %v3461
    %v3463 = vpack.c.bf16 %v3462, %v3462
    %3465 = vrot.lane.b32.xlu0 %v3463, 96
    %v3466 = vpop.permute.xlu0 %3465
    %v3468 = vsel %vm216, %v3466, 0
    %3470 = vmatprep.subr.bf16.mxu0 0
    %3471 = vmatpush1.bf16.msra.mxu0 %v318
    %3472 = vmatprep.subr.bf16.mxu0 0
    %3473 = vmatpush1.bf16.msra.mxu0 %v319
    %3474 = vmatprep.subr.bf16.mxu0 0
    %3475 = vmatpush1.bf16.msra.mxu0 0
    %3476 = vmatprep.subr.bf16.mxu0 0
    %3477 = vmatpush1.bf16.msra.mxu0 0
    %3478 = vmatprep.subr.bf16.mxu0 0
    %3479 = vmatpush1.bf16.msra.mxu0 0
    %3480 = vmatprep.subr.bf16.mxu0 0
    %3481 = vmatpush1.bf16.msra.mxu0 0
    %3482 = vmatprep.subr.bf16.mxu0 0
    %3483 = vmatpush1.bf16.msra.mxu0 0
    %3484 = vmatprep.subr.bf16.mxu0 0
    %3485 = vmatpush1.bf16.msra.mxu0 0
    %3486 = vmatprep.subr.bf16.mxu0 0
    %3487 = vmatpush1.bf16.msra.mxu0 0
    %3488 = vmatprep.subr.bf16.mxu0 0
    %3489 = vmatpush1.bf16.msra.mxu0 0
    %3490 = vmatprep.subr.bf16.mxu0 0
    %3491 = vmatpush1.bf16.msra.mxu0 0
    %3492 = vmatprep.subr.bf16.mxu0 0
    %3493 = vmatpush1.bf16.msra.mxu0 0
    %3494 = vmatprep.subr.bf16.mxu0 0
    %3495 = vmatpush1.bf16.msra.mxu0 0
    %3496 = vmatprep.subr.bf16.mxu0 0
    %3497 = vmatpush1.bf16.msra.mxu0 0
    %3498 = vmatprep.subr.bf16.mxu0 0
    %3499 = vmatpush1.bf16.msra.mxu0 0
    %3500 = vmatprep.subr.bf16.mxu0 0
    %3501 = vmatpush1.bf16.msra.mxu0 0
    %3502 = vmatprep.mubr.bf16.mxu0 0
    %3503 = vmatmul.mubr.bf16.gmra.mrb[0].mxu0 %v3468
    %v3504 = vpop.f32.mrb[0].mxu0
    %v3505 = vadd.f32 0.0, %v3504
    %v3506 = vpop.f32.mrb[0].mxu0
    %v3507 = vpop.f32.mrb[0].mxu0
    %v3508 = vpop.f32.mrb[0].mxu0
    %3509 = vdwg.mxu0
    %v3510 = vadd.f32 %v3355, %v3505
    %v3511 = vxor.u32 %v3510, 2147483648
    %v3512 = vmul.f32 %v3511, 1.442695
    %v3513 = vpow.pop %v3512
    %v3514 = vadd.f32 %v3513, 1.0
    %v3515 = vrcp.pop %v3514
    %v3516 = vmul.f32 1.0, %v3515
    %v3517 = vadd.f32 %v3505, %v378
    %v3520 = vunpack.c.l.s4 1983009808
    %v3521 = vunpack.c.0.s8 %v3520
    %v3522 = vlaneseq
    %v3523 = vshrl.u32 %v3522, 7
    %v3524 = vsub.s32 %v3521, %v3523
    %v3525 = vrot.slane %v3517, %v3524
    %3526 = vrot.lane.b32.xlu0 %v3525, 64
    %v3527 = vpop.permute.xlu0 %3526
    %v3529 = vmul.f32 %v3516, %v3527
    %3531 = vrot.lane.b32.xlu0 %v3529, 64
    %v3532 = vpop.permute.xlu0 %3531
    %v3534 = vadd.f32 %v3355, %v3532
    %v3535 = vtanh.pop %v3534
    %v3536 = vsub.f32 1.0, %v3516
    %3538 = vrot.lane.b32.xlu0 %v3535, 96
    %v3539 = vpop.permute.xlu0 %3538
    %v3541 = vmul.f32 %v3536, %v3539
    %v3542 = vmul.f32 %v3516, %v3462
    %v3543 = vadd.f32 %v3541, %v3542
    %v3544 = vpack.c.bf16 %v3543, %v3543
    %3546 = vrot.lane.b32.xlu0 %v3544, 96
    %v3547 = vpop.permute.xlu0 %3546
    %v3549 = vsel %vm216, %v3547, 0
    %3551 = vmatprep.subr.bf16.mxu0 0
    %3552 = vmatpush1.bf16.msra.mxu0 %v318
    %3553 = vmatprep.subr.bf16.mxu0 0
    %3554 = vmatpush1.bf16.msra.mxu0 %v319
    %3555 = vmatprep.subr.bf16.mxu0 0
    %3556 = vmatpush1.bf16.msra.mxu0 0
    %3557 = vmatprep.subr.bf16.mxu0 0
    %3558 = vmatpush1.bf16.msra.mxu0 0
    %3559 = vmatprep.subr.bf16.mxu0 0
    %3560 = vmatpush1.bf16.msra.mxu0 0
    %3561 = vmatprep.subr.bf16.mxu0 0
    %3562 = vmatpush1.bf16.msra.mxu0 0
    %3563 = vmatprep.subr.bf16.mxu0 0
    %3564 = vmatpush1.bf16.msra.mxu0 0
    %3565 = vmatprep.subr.bf16.mxu0 0
    %3566 = vmatpush1.bf16.msra.mxu0 0
    %3567 = vmatprep.subr.bf16.mxu0 0
    %3568 = vmatpush1.bf16.msra.mxu0 0
    %3569 = vmatprep.subr.bf16.mxu0 0
    %3570 = vmatpush1.bf16.msra.mxu0 0
    %3571 = vmatprep.subr.bf16.mxu0 0
    %3572 = vmatpush1.bf16.msra.mxu0 0
    %3573 = vmatprep.subr.bf16.mxu0 0
    %3574 = vmatpush1.bf16.msra.mxu0 0
    %3575 = vmatprep.subr.bf16.mxu0 0
    %3576 = vmatpush1.bf16.msra.mxu0 0
    %3577 = vmatprep.subr.bf16.mxu0 0
    %3578 = vmatpush1.bf16.msra.mxu0 0
    %3579 = vmatprep.subr.bf16.mxu0 0
    %3580 = vmatpush1.bf16.msra.mxu0 0
    %3581 = vmatprep.subr.bf16.mxu0 0
    %3582 = vmatpush1.bf16.msra.mxu0 0
    %3583 = vmatprep.mubr.bf16.mxu0 0
    %3584 = vmatmul.mubr.bf16.gmra.mrb[0].mxu0 %v3549
    %v3585 = vpop.f32.mrb[0].mxu0
    %v3586 = vadd.f32 0.0, %v3585
    %v3587 = vpop.f32.mrb[0].mxu0
    %v3588 = vpop.f32.mrb[0].mxu0
    %v3589 = vpop.f32.mrb[0].mxu0
    %3590 = vdwg.mxu0
    %v3591 = vadd.f32 %v3354, %v3586
    %v3592 = vxor.u32 %v3591, 2147483648
    %v3593 = vmul.f32 %v3592, 1.442695
    %v3594 = vpow.pop %v3593
    %v3595 = vadd.f32 %v3594, 1.0
    %v3596 = vrcp.pop %v3595
    %v3597 = vmul.f32 1.0, %v3596
    %v3598 = vadd.f32 %v3586, %v378
    %v3601 = vunpack.c.l.s4 1983009808
    %v3602 = vunpack.c.0.s8 %v3601
    %v3603 = vlaneseq
    %v3604 = vshrl.u32 %v3603, 7
    %v3605 = vsub.s32 %v3602, %v3604
    %v3606 = vrot.slane %v3598, %v3605
    %3607 = vrot.lane.b32.xlu0 %v3606, 64
    %v3608 = vpop.permute.xlu0 %3607
    %v3610 = vmul.f32 %v3597, %v3608
    %3612 = vrot.lane.b32.xlu0 %v3610, 64
    %v3613 = vpop.permute.xlu0 %3612
    %v3615 = vadd.f32 %v3354, %v3613
    %v3616 = vtanh.pop %v3615
    %v3617 = vsub.f32 1.0, %v3597
    %3619 = vrot.lane.b32.xlu0 %v3616, 96
    %v3620 = vpop.permute.xlu0 %3619
    %v3622 = vmul.f32 %v3617, %v3620
    %v3623 = vmul.f32 %v3597, %v3543
    %v3624 = vadd.f32 %v3622, %v3623
    %v3625 = vpack.c.bf16 %v3624, %v3624
    %3627 = vrot.lane.b32.xlu0 %v3625, 96
    %v3628 = vpop.permute.xlu0 %3627
    %v3630 = vsel %vm216, %v3628, 0
    %3632 = vmatprep.subr.bf16.mxu0 0
    %3633 = vmatpush1.bf16.msra.mxu0 %v318
    %3634 = vmatprep.subr.bf16.mxu0 0
    %3635 = vmatpush1.bf16.msra.mxu0 %v319
    %3636 = vmatprep.subr.bf16.mxu0 0
    %3637 = vmatpush1.bf16.msra.mxu0 0
    %3638 = vmatprep.subr.bf16.mxu0 0
    %3639 = vmatpush1.bf16.msra.mxu0 0
    %3640 = vmatprep.subr.bf16.mxu0 0
    %3641 = vmatpush1.bf16.msra.mxu0 0
    %3642 = vmatprep.subr.bf16.mxu0 0
    %3643 = vmatpush1.bf16.msra.mxu0 0
    %3644 = vmatprep.subr.bf16.mxu0 0
    %3645 = vmatpush1.bf16.msra.mxu0 0
    %3646 = vmatprep.subr.bf16.mxu0 0
    %3647 = vmatpush1.bf16.msra.mxu0 0
    %3648 = vmatprep.subr.bf16.mxu0 0
    %3649 = vmatpush1.bf16.msra.mxu0 0
    %3650 = vmatprep.subr.bf16.mxu0 0
    %3651 = vmatpush1.bf16.msra.mxu0 0
    %3652 = vmatprep.subr.bf16.mxu0 0
    %3653 = vmatpush1.bf16.msra.mxu0 0
    %3654 = vmatprep.subr.bf16.mxu0 0
    %3655 = vmatpush1.bf16.msra.mxu0 0
    %3656 = vmatprep.subr.bf16.mxu0 0
    %3657 = vmatpush1.bf16.msra.mxu0 0
    %3658 = vmatprep.subr.bf16.mxu0 0
    %3659 = vmatpush1.bf16.msra.mxu0 0
    %3660 = vmatprep.subr.bf16.mxu0 0
    %3661 = vmatpush1.bf16.msra.mxu0 0
    %3662 = vmatprep.subr.bf16.mxu0 0
    %3663 = vmatpush1.bf16.msra.mxu0 0
    %3664 = vmatprep.mubr.bf16.mxu0 0
    %3665 = vmatmul.mubr.bf16.gmra.mrb[0].mxu0 %v3630
    %v3666 = vpop.f32.mrb[0].mxu0
    %v3667 = vadd.f32 0.0, %v3666
    %v3668 = vpop.f32.mrb[0].mxu0
    %v3669 = vpop.f32.mrb[0].mxu0
    %v3670 = vpop.f32.mrb[0].mxu0
    %3671 = vdwg.mxu0
    %v3672 = vadd.f32 %v3356, %v3667
    %v3673 = vxor.u32 %v3672, 2147483648
    %v3674 = vmul.f32 %v3673, 1.442695
    %v3675 = vpow.pop %v3674
    %v3676 = vadd.f32 %v3675, 1.0
    %v3677 = vrcp.pop %v3676
    %v3678 = vmul.f32 1.0, %v3677
    %v3679 = vadd.f32 %v3667, %v378
    %v3682 = vunpack.c.l.s4 1983009808
    %v3683 = vunpack.c.0.s8 %v3682
    %v3684 = vlaneseq
    %v3685 = vshrl.u32 %v3684, 7
    %v3686 = vsub.s32 %v3683, %v3685
    %v3687 = vrot.slane %v3679, %v3686
    %3688 = vrot.lane.b32.xlu0 %v3687, 64
    %v3689 = vpop.permute.xlu0 %3688
    %v3691 = vmul.f32 %v3678, %v3689
    %3693 = vrot.lane.b32.xlu0 %v3691, 64
    %v3694 = vpop.permute.xlu0 %3693
    %v3696 = vadd.f32 %v3356, %v3694
    %v3697 = vtanh.pop %v3696
    %v3698 = vsub.f32 1.0, %v3678
    %3700 = vrot.lane.b32.xlu0 %v3697, 96
    %v3701 = vpop.permute.xlu0 %3700
    %v3703 = vmul.f32 %v3698, %v3701
    %v3704 = vmul.f32 %v3678, %v3624
    %v3705 = vadd.f32 %v3703, %v3704
    %v3706 = vpack.c.bf16 %v3705, %v3705
    %3708 = vrot.lane.b32.xlu0 %v3706, 96
    %v3709 = vpop.permute.xlu0 %3708
    %v3711 = vsel %vm216, %v3709, 0
    %3713 = vmatprep.subr.bf16.mxu0 0
    %3714 = vmatpush1.bf16.msra.mxu0 %v318
    %3715 = vmatprep.subr.bf16.mxu0 0
    %3716 = vmatpush1.bf16.msra.mxu0 %v319
    %3717 = vmatprep.subr.bf16.mxu0 0
    %3718 = vmatpush1.bf16.msra.mxu0 0
    %3719 = vmatprep.subr.bf16.mxu0 0
    %3720 = vmatpush1.bf16.msra.mxu0 0
    %3721 = vmatprep.subr.bf16.mxu0 0
    %3722 = vmatpush1.bf16.msra.mxu0 0
    %3723 = vmatprep.subr.bf16.mxu0 0
    %3724 = vmatpush1.bf16.msra.mxu0 0
    %3725 = vmatprep.subr.bf16.mxu0 0
    %3726 = vmatpush1.bf16.msra.mxu0 0
    %3727 = vmatprep.subr.bf16.mxu0 0
    %3728 = vmatpush1.bf16.msra.mxu0 0
    %3729 = vmatprep.subr.bf16.mxu0 0
    %3730 = vmatpush1.bf16.msra.mxu0 0
    %3731 = vmatprep.subr.bf16.mxu0 0
    %3732 = vmatpush1.bf16.msra.mxu0 0
    %3733 = vmatprep.subr.bf16.mxu0 0
    %3734 = vmatpush1.bf16.msra.mxu0 0
    %3735 = vmatprep.subr.bf16.mxu0 0
    %3736 = vmatpush1.bf16.msra.mxu0 0
    %3737 = vmatprep.subr.bf16.mxu0 0
    %3738 = vmatpush1.bf16.msra.mxu0 0
    %3739 = vmatprep.subr.bf16.mxu0 0
    %3740 = vmatpush1.bf16.msra.mxu0 0
    %3741 = vmatprep.subr.bf16.mxu0 0
    %3742 = vmatpush1.bf16.msra.mxu0 0
    %3743 = vmatprep.subr.bf16.mxu0 0
    %3744 = vmatpush1.bf16.msra.mxu0 0
    %3745 = vmatprep.mubr.bf16.mxu0 0
    %3746 = vmatmul.mubr.bf16.gmra.mrb[0].mxu0 %v3711
    %v3747 = vpop.f32.mrb[0].mxu0
    %v3748 = vadd.f32 0.0, %v3747
    %v3749 = vpop.f32.mrb[0].mxu0
    %v3750 = vpop.f32.mrb[0].mxu0
    %v3751 = vpop.f32.mrb[0].mxu0
    %3752 = vdwg.mxu0
    %v3753 = vadd.f32 %v3364, %v3748
    %v3754 = vxor.u32 %v3753, 2147483648
    %v3755 = vmul.f32 %v3754, 1.442695
    %v3756 = vpow.pop %v3755
    %v3757 = vadd.f32 %v3756, 1.0
    %v3758 = vrcp.pop %v3757
    %v3759 = vmul.f32 1.0, %v3758
    %v3760 = vadd.f32 %v3748, %v378
    %v3763 = vunpack.c.l.s4 1983009808
    %v3764 = vunpack.c.0.s8 %v3763
    %v3765 = vlaneseq
    %v3766 = vshrl.u32 %v3765, 7
    %v3767 = vsub.s32 %v3764, %v3766
    %v3768 = vrot.slane %v3760, %v3767
    %3769 = vrot.lane.b32.xlu0 %v3768, 64
    %v3770 = vpop.permute.xlu0 %3769
    %v3772 = vmul.f32 %v3759, %v3770
    %3774 = vrot.lane.b32.xlu0 %v3772, 64
    %v3775 = vpop.permute.xlu0 %3774
    %v3777 = vadd.f32 %v3364, %v3775
    %v3778 = vtanh.pop %v3777
    %v3779 = vsub.f32 1.0, %v3759
    %3781 = vrot.lane.b32.xlu0 %v3778, 96
    %v3782 = vpop.permute.xlu0 %3781
    %v3784 = vmul.f32 %v3779, %v3782
    %v3785 = vmul.f32 %v3759, %v3705
    %v3786 = vadd.f32 %v3784, %v3785
    %v3787 = vpack.c.bf16 %v3786, %v3786
    %3789 = vrot.lane.b32.xlu0 %v3787, 96
    %v3790 = vpop.permute.xlu0 %3789
    %v3792 = vsel %vm216, %v3790, 0
    %3794 = vmatprep.subr.bf16.mxu0 0
    %3795 = vmatpush1.bf16.msra.mxu0 %v318
    %3796 = vmatprep.subr.bf16.mxu0 0
    %3797 = vmatpush1.bf16.msra.mxu0 %v319
    %3798 = vmatprep.subr.bf16.mxu0 0
    %3799 = vmatpush1.bf16.msra.mxu0 0
    %3800 = vmatprep.subr.bf16.mxu0 0
    %3801 = vmatpush1.bf16.msra.mxu0 0
    %3802 = vmatprep.subr.bf16.mxu0 0
    %3803 = vmatpush1.bf16.msra.mxu0 0
    %3804 = vmatprep.subr.bf16.mxu0 0
    %3805 = vmatpush1.bf16.msra.mxu0 0
    %3806 = vmatprep.subr.bf16.mxu0 0
    %3807 = vmatpush1.bf16.msra.mxu0 0
    %3808 = vmatprep.subr.bf16.mxu0 0
    %3809 = vmatpush1.bf16.msra.mxu0 0
    %3810 = vmatprep.subr.bf16.mxu0 0
    %3811 = vmatpush1.bf16.msra.mxu0 0
    %3812 = vmatprep.subr.bf16.mxu0 0
    %3813 = vmatpush1.bf16.msra.mxu0 0
    %3814 = vmatprep.subr.bf16.mxu0 0
    %3815 = vmatpush1.bf16.msra.mxu0 0
    %3816 = vmatprep.subr.bf16.mxu0 0
    %3817 = vmatpush1.bf16.msra.mxu0 0
    %3818 = vmatprep.subr.bf16.mxu0 0
    %3819 = vmatpush1.bf16.msra.mxu0 0
    %3820 = vmatprep.subr.bf16.mxu0 0
    %3821 = vmatpush1.bf16.msra.mxu0 0
    %3822 = vmatprep.subr.bf16.mxu0 0
    %3823 = vmatpush1.bf16.msra.mxu0 0
    %3824 = vmatprep.subr.bf16.mxu0 0
    %3825 = vmatpush1.bf16.msra.mxu0 0
    %3826 = vmatprep.mubr.bf16.mxu0 0
    %3827 = vmatmul.mubr.bf16.gmra.mrb[0].mxu0 %v3792
    %v3828 = vpop.f32.mrb[0].mxu0
    %v3829 = vadd.f32 0.0, %v3828
    %v3830 = vpop.f32.mrb[0].mxu0
    %v3831 = vpop.f32.mrb[0].mxu0
    %v3832 = vpop.f32.mrb[0].mxu0
    %3833 = vdwg.mxu0
    %v3834 = vadd.f32 %v3372, %v3829
    %v3835 = vxor.u32 %v3834, 2147483648
    %v3836 = vmul.f32 %v3835, 1.442695
    %v3837 = vpow.pop %v3836
    %v3838 = vadd.f32 %v3837, 1.0
    %v3839 = vrcp.pop %v3838
    %v3840 = vmul.f32 1.0, %v3839
    %v3841 = vadd.f32 %v3829, %v378
    %v3844 = vunpack.c.l.s4 1983009808
    %v3845 = vunpack.c.0.s8 %v3844
    %v3846 = vlaneseq
    %v3847 = vshrl.u32 %v3846, 7
    %v3848 = vsub.s32 %v3845, %v3847
    %v3849 = vrot.slane %v3841, %v3848
    %3850 = vrot.lane.b32.xlu0 %v3849, 64
    %v3851 = vpop.permute.xlu0 %3850
    %v3853 = vmul.f32 %v3840, %v3851
    %3855 = vrot.lane.b32.xlu0 %v3853, 64
    %v3856 = vpop.permute.xlu0 %3855
    %v3858 = vadd.f32 %v3372, %v3856
    %v3859 = vtanh.pop %v3858
    %v3860 = vsub.f32 1.0, %v3840
    %3862 = vrot.lane.b32.xlu0 %v3859, 96
    %v3863 = vpop.permute.xlu0 %3862
    %v3865 = vmul.f32 %v3860, %v3863
    %v3866 = vmul.f32 %v3840, %v3786
    %v3867 = vadd.f32 %v3865, %v3866
    %v3868 = vpack.c.bf16 %v3867, %v3867
    %3870 = vrot.lane.b32.xlu0 %v3868, 96
    %v3871 = vpop.permute.xlu0 %3870
    %v3873 = vsel %vm216, %v3871, 0
    %3875 = vmatprep.subr.bf16.mxu0 0
    %3876 = vmatpush1.bf16.msra.mxu0 %v318
    %3877 = vmatprep.subr.bf16.mxu0 0
    %3878 = vmatpush1.bf16.msra.mxu0 %v319
    %3879 = vmatprep.subr.bf16.mxu0 0
    %3880 = vmatpush1.bf16.msra.mxu0 0
    %3881 = vmatprep.subr.bf16.mxu0 0
    %3882 = vmatpush1.bf16.msra.mxu0 0
    %3883 = vmatprep.subr.bf16.mxu0 0
    %3884 = vmatpush1.bf16.msra.mxu0 0
    %3885 = vmatprep.subr.bf16.mxu0 0
    %3886 = vmatpush1.bf16.msra.mxu0 0
    %3887 = vmatprep.subr.bf16.mxu0 0
    %3888 = vmatpush1.bf16.msra.mxu0 0
    %3889 = vmatprep.subr.bf16.mxu0 0
    %3890 = vmatpush1.bf16.msra.mxu0 0
    %3891 = vmatprep.subr.bf16.mxu0 0
    %3892 = vmatpush1.bf16.msra.mxu0 0
    %3893 = vmatprep.subr.bf16.mxu0 0
    %3894 = vmatpush1.bf16.msra.mxu0 0
    %3895 = vmatprep.subr.bf16.mxu0 0
    %3896 = vmatpush1.bf16.msra.mxu0 0
    %3897 = vmatprep.subr.bf16.mxu0 0
    %3898 = vmatpush1.bf16.msra.mxu0 0
    %3899 = vmatprep.subr.bf16.mxu0 0
    %3900 = vmatpush1.bf16.msra.mxu0 0
    %3901 = vmatprep.subr.bf16.mxu0 0
    %3902 = vmatpush1.bf16.msra.mxu0 0
    %3903 = vmatprep.subr.bf16.mxu0 0
    %3904 = vmatpush1.bf16.msra.mxu0 0
    %3905 = vmatprep.subr.bf16.mxu0 0
    %3906 = vmatpush1.bf16.msra.mxu0 0
    %3907 = vmatprep.mubr.bf16.mxu0 0
    %3908 = vmatmul.mubr.bf16.gmra.mrb[0].mxu0 %v3873
    %v3909 = vpop.f32.mrb[0].mxu0
    %v3910 = vadd.f32 0.0, %v3909
    %v3911 = vpop.f32.mrb[0].mxu0
    %v3912 = vpop.f32.mrb[0].mxu0
    %v3913 = vpop.f32.mrb[0].mxu0
    %3914 = vdwg.mxu0
    %v3915 = vadd.f32 %v3371, %v3910
    %v3916 = vxor.u32 %v3915, 2147483648
    %v3917 = vmul.f32 %v3916, 1.442695
    %v3918 = vpow.pop %v3917
    %v3919 = vadd.f32 %v3918, 1.0
    %v3920 = vrcp.pop %v3919
    %v3921 = vmul.f32 1.0, %v3920
    %v3922 = vadd.f32 %v3910, %v378
    %v3925 = vunpack.c.l.s4 1983009808
    %v3926 = vunpack.c.0.s8 %v3925
    %v3927 = vlaneseq
    %v3928 = vshrl.u32 %v3927, 7
    %v3929 = vsub.s32 %v3926, %v3928
    %v3930 = vrot.slane %v3922, %v3929
    %3931 = vrot.lane.b32.xlu0 %v3930, 64
    %v3932 = vpop.permute.xlu0 %3931
    %v3934 = vmul.f32 %v3921, %v3932
    %3936 = vrot.lane.b32.xlu0 %v3934, 64
    %v3937 = vpop.permute.xlu0 %3936
    %v3939 = vadd.f32 %v3371, %v3937
    %v3940 = vtanh.pop %v3939
    %v3941 = vsub.f32 1.0, %v3921
    %3943 = vrot.lane.b32.xlu0 %v3940, 96
    %v3944 = vpop.permute.xlu0 %3943
    %v3946 = vmul.f32 %v3941, %v3944
    %v3947 = vmul.f32 %v3921, %v3867
    %v3948 = vadd.f32 %v3946, %v3947
    %v3949 = vpack.c.bf16 %v3948, %v3948
    %3951 = vrot.lane.b32.xlu0 %v3949, 96
    %v3952 = vpop.permute.xlu0 %3951
    %v3954 = vsel %vm216, %v3952, 0
    %3956 = vmatprep.subr.bf16.mxu0 0
    %3957 = vmatpush1.bf16.msra.mxu0 %v318
    %3958 = vmatprep.subr.bf16.mxu0 0
    %3959 = vmatpush1.bf16.msra.mxu0 %v319
    %3960 = vmatprep.subr.bf16.mxu0 0
    %3961 = vmatpush1.bf16.msra.mxu0 0
    %3962 = vmatprep.subr.bf16.mxu0 0
    %3963 = vmatpush1.bf16.msra.mxu0 0
    %3964 = vmatprep.subr.bf16.mxu0 0
    %3965 = vmatpush1.bf16.msra.mxu0 0
    %3966 = vmatprep.subr.bf16.mxu0 0
    %3967 = vmatpush1.bf16.msra.mxu0 0
    %3968 = vmatprep.subr.bf16.mxu0 0
    %3969 = vmatpush1.bf16.msra.mxu0 0
    %3970 = vmatprep.subr.bf16.mxu0 0
    %3971 = vmatpush1.bf16.msra.mxu0 0
    %3972 = vmatprep.subr.bf16.mxu0 0
    %3973 = vmatpush1.bf16.msra.mxu0 0
    %3974 = vmatprep.subr.bf16.mxu0 0
    %3975 = vmatpush1.bf16.msra.mxu0 0
    %3976 = vmatprep.subr.bf16.mxu0 0
    %3977 = vmatpush1.bf16.msra.mxu0 0
    %3978 = vmatprep.subr.bf16.mxu0 0
    %3979 = vmatpush1.bf16.msra.mxu0 0
    %3980 = vmatprep.subr.bf16.mxu0 0
    %3981 = vmatpush1.bf16.msra.mxu0 0
    %3982 = vmatprep.subr.bf16.mxu0 0
    %3983 = vmatpush1.bf16.msra.mxu0 0
    %3984 = vmatprep.subr.bf16.mxu0 0
    %3985 = vmatpush1.bf16.msra.mxu0 0
    %3986 = vmatprep.subr.bf16.mxu0 0
    %3987 = vmatpush1.bf16.msra.mxu0 0
    %3988 = vmatprep.mubr.bf16.mxu0 0
    %3989 = vmatmul.mubr.bf16.gmra.mrb[0].mxu0 %v3954
    %v3990 = vpop.f32.mrb[0].mxu0
    %v3991 = vadd.f32 0.0, %v3990
    %v3992 = vpop.f32.mrb[0].mxu0
    %v3993 = vpop.f32.mrb[0].mxu0
    %v3994 = vpop.f32.mrb[0].mxu0
    %3995 = vdwg.mxu0
    %v3996 = vadd.f32 %v3373, %v3991
    %v3997 = vxor.u32 %v3996, 2147483648
    %v3998 = vmul.f32 %v3997, 1.442695
    %v3999 = vpow.pop %v3998
    %v4000 = vadd.f32 %v3999, 1.0
    %v4001 = vrcp.pop %v4000
    %v4002 = vmul.f32 1.0, %v4001
    %v4003 = vadd.f32 %v3991, %v378
    %v4006 = vunpack.c.l.s4 1983009808
    %v4007 = vunpack.c.0.s8 %v4006
    %v4008 = vlaneseq
    %v4009 = vshrl.u32 %v4008, 7
    %v4010 = vsub.s32 %v4007, %v4009
    %v4011 = vrot.slane %v4003, %v4010
    %4012 = vrot.lane.b32.xlu0 %v4011, 64
    %v4013 = vpop.permute.xlu0 %4012
    %v4015 = vmul.f32 %v4002, %v4013
    %4017 = vrot.lane.b32.xlu0 %v4015, 64
    %v4018 = vpop.permute.xlu0 %4017
    %v4020 = vadd.f32 %v3373, %v4018
    %v4021 = vtanh.pop %v4020
    %v4022 = vsub.f32 1.0, %v4002
    %4024 = vrot.lane.b32.xlu0 %v4021, 96
    %v4025 = vpop.permute.xlu0 %4024
    %v4027 = vmul.f32 %v4022, %v4025
    %v4028 = vmul.f32 %v4002, %v3948
    %v4029 = vadd.f32 %v4027, %v4028
    %v4031 = vcombine.low %v3543, %v3543
    %v4033 = vunpack.c.l.s4 1983009808
    %v4034 = vunpack.c.0.s8 %v4033
    %v4035 = vlaneseq
    %v4036 = vshrl.u32 %v4035, 7
    %v4037 = vsub.s32 %v4034, %v4036
    %v4038 = vrot.slane %v4031, %v4037
    %v4042 = vunpack.c.l.s4 1983009808
    %v4043 = vunpack.c.0.s8 %v4042
    %v4044 = vlaneseq
    %v4045 = vshrl.u32 %v4044, 7
    %v4046 = vsub.s32 %v4043, %v4045
    %v4047 = vrot.slane %v3624, %v4046
    %v4048 = vcombine.low %v4047, %v4047
    %v4051 = vcombine.low %v3705, %v3705
    %v4053 = vunpack.c.l.s4 1983009808
    %v4054 = vunpack.c.0.s8 %v4053
    %v4055 = vlaneseq
    %v4056 = vshrl.u32 %v4055, 7
    %v4057 = vsub.s32 %v4054, %v4056
    %v4058 = vrot.slane %v4051, %v4057
    %v4059 = vcombine.low %v4058, %v4058
    %v4062 = vcombine.low %v3867, %v3867
    %v4064 = vunpack.c.l.s4 1983009808
    %v4065 = vunpack.c.0.s8 %v4064
    %v4066 = vlaneseq
    %v4067 = vshrl.u32 %v4066, 7
    %v4068 = vsub.s32 %v4065, %v4067
    %v4069 = vrot.slane %v4062, %v4068
    %v4073 = vunpack.c.l.s4 1983009808
    %v4074 = vunpack.c.0.s8 %v4073
    %v4075 = vlaneseq
    %v4076 = vshrl.u32 %v4075, 7
    %v4077 = vsub.s32 %v4074, %v4076
    %v4078 = vrot.slane %v3948, %v4077
    %v4079 = vcombine.low %v4078, %v4078
    %v4082 = vcombine.low %v4029, %v4029
    %v4084 = vunpack.c.l.s4 1983009808
    %v4085 = vunpack.c.0.s8 %v4084
    %v4086 = vlaneseq
    %v4087 = vshrl.u32 %v4086, 7
    %v4088 = vsub.s32 %v4085, %v4087
    %v4089 = vrot.slane %v4082, %v4088
    %v4090 = vcombine.low %v4089, %v4089
    %v4092 = vsel %vm1036, %v3462, %v4038
    %v4093 = vsel %vm1038, %v4092, %v4048
    %v4094 = vsel %vm1040, %v4093, %v4059
    %v4095 = vsel %vm1036, %v3786, %v4069
    %v4096 = vsel %vm1038, %v4095, %v4079
    %v4097 = vsel %vm1040, %v4096, %v4090
    %v4098 = vpack.c.bf16 %v4097, %v4094
    %4100 = vrot.lane.b32.xlu0 %v4098, 96
    %v4101 = vpop.permute.xlu0 %4100
    %v4103 = vsel %vm216, %v4101, 0
    %4105 = vmatprep.subr.bf16.mxu0 0
    %4106 = vmatpush1.bf16.msra.mxu0 %v1070
    %4107 = vmatprep.subr.bf16.mxu0 0
    %4108 = vmatpush1.bf16.msra.mxu0 %v1071
    %4109 = vmatprep.subr.bf16.mxu0 0
    %4110 = vmatpush1.bf16.msra.mxu0 0
    %4111 = vmatprep.subr.bf16.mxu0 0
    %4112 = vmatpush1.bf16.msra.mxu0 0
    %4113 = vmatprep.subr.bf16.mxu0 0
    %4114 = vmatpush1.bf16.msra.mxu0 0
    %4115 = vmatprep.subr.bf16.mxu0 0
    %4116 = vmatpush1.bf16.msra.mxu0 0
    %4117 = vmatprep.subr.bf16.mxu0 0
    %4118 = vmatpush1.bf16.msra.mxu0 0
    %4119 = vmatprep.subr.bf16.mxu0 0
    %4120 = vmatpush1.bf16.msra.mxu0 0
    %4121 = vmatprep.subr.bf16.mxu0 0
    %4122 = vmatpush1.bf16.msra.mxu0 0
    %4123 = vmatprep.subr.bf16.mxu0 0
    %4124 = vmatpush1.bf16.msra.mxu0 0
    %4125 = vmatprep.subr.bf16.mxu0 0
    %4126 = vmatpush1.bf16.msra.mxu0 0
    %4127 = vmatprep.subr.bf16.mxu0 0
    %4128 = vmatpush1.bf16.msra.mxu0 0
    %4129 = vmatprep.subr.bf16.mxu0 0
    %4130 = vmatpush1.bf16.msra.mxu0 0
    %4131 = vmatprep.subr.bf16.mxu0 0
    %4132 = vmatpush1.bf16.msra.mxu0 0
    %4133 = vmatprep.subr.bf16.mxu0 0
    %4134 = vmatpush1.bf16.msra.mxu0 0
    %4135 = vmatprep.subr.bf16.mxu0 0
    %4136 = vmatpush1.bf16.msra.mxu0 0
    %4137 = vmatprep.mubr.bf16.mxu0 0
    %4138 = vmatmul.mubr.bf16.gmra.mrb[0].mxu0 %v4103
    %v4139 = vpop.f32.mrb[0].mxu0
    %v4140 = vadd.f32 %v1057, %v4139
    %v4141 = vpop.f32.mrb[0].mxu0
    %v4142 = vpop.f32.mrb[0].mxu0
    %v4143 = vadd.f32 %v1057, %v4142
    %v4144 = vpop.f32.mrb[0].mxu0
    %4145 = vdwg.mxu0
    %v4148 = vcombine.high %v4140, %v4140
    %v4150 = vunpack.c.l.s4 1983009808
    %v4151 = vunpack.c.0.s8 %v4150
    %v4152 = vlaneseq
    %v4153 = vshrl.u32 %v4152, 7
    %v4154 = vsub.s32 %v4151, %v4153
    %v4155 = vrot.slane %v4140, %v4154
    %v4157 = vunpack.c.l.s4 1983009808
    %v4158 = vunpack.c.0.s8 %v4157
    %v4159 = vlaneseq
    %v4160 = vshrl.u32 %v4159, 7
    %v4161 = vsub.s32 %v4158, %v4160
    %v4162 = vrot.slane %v4148, %v4161
    %v4163 = vcombine.high %v4155, %v4155
    %v4164 = vcombine.high %v4162, %v4162
    %v4165 = vcombine.high %v4143, %v4143
    %v4167 = vunpack.c.l.s4 1983009808
    %v4168 = vunpack.c.0.s8 %v4167
    %v4169 = vlaneseq
    %v4170 = vshrl.u32 %v4169, 7
    %v4171 = vsub.s32 %v4168, %v4170
    %v4172 = vrot.slane %v4143, %v4171
    %v4174 = vunpack.c.l.s4 1983009808
    %v4175 = vunpack.c.0.s8 %v4174
    %v4176 = vlaneseq
    %v4177 = vshrl.u32 %v4176, 7
    %v4178 = vsub.s32 %v4175, %v4177
    %v4179 = vrot.slane %v4165, %v4178
    %v4180 = vcombine.high %v4172, %v4172
    %v4181 = vcombine.high %v4179, %v4179
    %v4190 = vpack.c.bf16 %v1829, %v1829
    %4192 = vrot.lane.b32.xlu0 %v4190, 96
    %v4193 = vpop.permute.xlu0 %4192
    %v4195 = vsel %vm216, %v4193, 0
    %4197 = vmatprep.subr.bf16.mxu0 0
    %4198 = vmatpush1.bf16.msra.mxu0 %v1177
    %4199 = vmatprep.subr.bf16.mxu0 0
    %4200 = vmatpush1.bf16.msra.mxu0 %v1178
    %4201 = vmatprep.subr.bf16.mxu0 0
    %4202 = vmatpush1.bf16.msra.mxu0 0
    %4203 = vmatprep.subr.bf16.mxu0 0
    %4204 = vmatpush1.bf16.msra.mxu0 0
    %4205 = vmatprep.subr.bf16.mxu0 0
    %4206 = vmatpush1.bf16.msra.mxu0 0
    %4207 = vmatprep.subr.bf16.mxu0 0
    %4208 = vmatpush1.bf16.msra.mxu0 0
    %4209 = vmatprep.subr.bf16.mxu0 0
    %4210 = vmatpush1.bf16.msra.mxu0 0
    %4211 = vmatprep.subr.bf16.mxu0 0
    %4212 = vmatpush1.bf16.msra.mxu0 0
    %4213 = vmatprep.subr.bf16.mxu0 0
    %4214 = vmatpush1.bf16.msra.mxu0 0
    %4215 = vmatprep.subr.bf16.mxu0 0
    %4216 = vmatpush1.bf16.msra.mxu0 0
    %4217 = vmatprep.subr.bf16.mxu0 0
    %4218 = vmatpush1.bf16.msra.mxu0 0
    %4219 = vmatprep.subr.bf16.mxu0 0
    %4220 = vmatpush1.bf16.msra.mxu0 0
    %4221 = vmatprep.subr.bf16.mxu0 0
    %4222 = vmatpush1.bf16.msra.mxu0 0
    %4223 = vmatprep.subr.bf16.mxu0 0
    %4224 = vmatpush1.bf16.msra.mxu0 0
    %4225 = vmatprep.subr.bf16.mxu0 0
    %4226 = vmatpush1.bf16.msra.mxu0 0
    %4227 = vmatprep.subr.bf16.mxu0 0
    %4228 = vmatpush1.bf16.msra.mxu0 0
    %4229 = vmatprep.mubr.bf16.mxu0 0
    %4230 = vmatmul.mubr.bf16.gmra.mrb[0].mxu0 %v4195
    %v4231 = vpop.f32.mrb[0].mxu0
    %v4232 = vadd.f32 0.0, %v4231
    %v4233 = vpop.f32.mrb[0].mxu0
    %v4234 = vpop.f32.mrb[0].mxu0
    %v4235 = vpop.f32.mrb[0].mxu0
    %4236 = vdwg.mxu0
    %v4237 = vadd.f32 %v4155, %v4232
    %v4238 = vxor.u32 %v4237, 2147483648
    %v4239 = vmul.f32 %v4238, 1.442695
    %v4240 = vpow.pop %v4239
    %v4241 = vadd.f32 %v4240, 1.0
    %v4242 = vrcp.pop %v4241
    %v4243 = vmul.f32 1.0, %v4242
    %v4244 = vadd.f32 %v4232, %v1234
    %v4247 = vunpack.c.l.s4 1983009808
    %v4248 = vunpack.c.0.s8 %v4247
    %v4249 = vlaneseq
    %v4250 = vshrl.u32 %v4249, 7
    %v4251 = vsub.s32 %v4248, %v4250
    %v4252 = vrot.slane %v4244, %v4251
    %4253 = vrot.lane.b32.xlu0 %v4252, 64
    %v4254 = vpop.permute.xlu0 %4253
    %v4256 = vmul.f32 %v4243, %v4254
    %4258 = vrot.lane.b32.xlu0 %v4256, 64
    %v4259 = vpop.permute.xlu0 %4258
    %v4261 = vadd.f32 %v4155, %v4259
    %v4262 = vtanh.pop %v4261
    %v4263 = vsub.f32 1.0, %v4243
    %4265 = vrot.lane.b32.xlu0 %v4262, 96
    %v4266 = vpop.permute.xlu0 %4265
    %v4268 = vmul.f32 %v4263, %v4266
    %v4269 = vmul.f32 %v4243, %v1829
    %v4270 = vadd.f32 %v4268, %v4269
    %v4271 = vpack.c.bf16 %v4270, %v4270
    %4273 = vrot.lane.b32.xlu0 %v4271, 96
    %v4274 = vpop.permute.xlu0 %4273
    %v4276 = vsel %vm216, %v4274, 0
    %4278 = vmatprep.subr.bf16.mxu0 0
    %4279 = vmatpush1.bf16.msra.mxu0 %v1177
    %4280 = vmatprep.subr.bf16.mxu0 0
    %4281 = vmatpush1.bf16.msra.mxu0 %v1178
    %4282 = vmatprep.subr.bf16.mxu0 0
    %4283 = vmatpush1.bf16.msra.mxu0 0
    %4284 = vmatprep.subr.bf16.mxu0 0
    %4285 = vmatpush1.bf16.msra.mxu0 0
    %4286 = vmatprep.subr.bf16.mxu0 0
    %4287 = vmatpush1.bf16.msra.mxu0 0
    %4288 = vmatprep.subr.bf16.mxu0 0
    %4289 = vmatpush1.bf16.msra.mxu0 0
    %4290 = vmatprep.subr.bf16.mxu0 0
    %4291 = vmatpush1.bf16.msra.mxu0 0
    %4292 = vmatprep.subr.bf16.mxu0 0
    %4293 = vmatpush1.bf16.msra.mxu0 0
    %4294 = vmatprep.subr.bf16.mxu0 0
    %4295 = vmatpush1.bf16.msra.mxu0 0
    %4296 = vmatprep.subr.bf16.mxu0 0
    %4297 = vmatpush1.bf16.msra.mxu0 0
    %4298 = vmatprep.subr.bf16.mxu0 0
    %4299 = vmatpush1.bf16.msra.mxu0 0
    %4300 = vmatprep.subr.bf16.mxu0 0
    %4301 = vmatpush1.bf16.msra.mxu0 0
    %4302 = vmatprep.subr.bf16.mxu0 0
    %4303 = vmatpush1.bf16.msra.mxu0 0
    %4304 = vmatprep.subr.bf16.mxu0 0
    %4305 = vmatpush1.bf16.msra.mxu0 0
    %4306 = vmatprep.subr.bf16.mxu0 0
    %4307 = vmatpush1.bf16.msra.mxu0 0
    %4308 = vmatprep.subr.bf16.mxu0 0
    %4309 = vmatpush1.bf16.msra.mxu0 0
    %4310 = vmatprep.mubr.bf16.mxu0 0
    %4311 = vmatmul.mubr.bf16.gmra.mrb[0].mxu0 %v4276
    %v4312 = vpop.f32.mrb[0].mxu0
    %v4313 = vadd.f32 0.0, %v4312
    %v4314 = vpop.f32.mrb[0].mxu0
    %v4315 = vpop.f32.mrb[0].mxu0
    %v4316 = vpop.f32.mrb[0].mxu0
    %4317 = vdwg.mxu0
    %v4318 = vadd.f32 %v4163, %v4313
    %v4319 = vxor.u32 %v4318, 2147483648
    %v4320 = vmul.f32 %v4319, 1.442695
    %v4321 = vpow.pop %v4320
    %v4322 = vadd.f32 %v4321, 1.0
    %v4323 = vrcp.pop %v4322
    %v4324 = vmul.f32 1.0, %v4323
    %v4325 = vadd.f32 %v4313, %v1234
    %v4328 = vunpack.c.l.s4 1983009808
    %v4329 = vunpack.c.0.s8 %v4328
    %v4330 = vlaneseq
    %v4331 = vshrl.u32 %v4330, 7
    %v4332 = vsub.s32 %v4329, %v4331
    %v4333 = vrot.slane %v4325, %v4332
    %4334 = vrot.lane.b32.xlu0 %v4333, 64
    %v4335 = vpop.permute.xlu0 %4334
    %v4337 = vmul.f32 %v4324, %v4335
    %4339 = vrot.lane.b32.xlu0 %v4337, 64
    %v4340 = vpop.permute.xlu0 %4339
    %v4342 = vadd.f32 %v4163, %v4340
    %v4343 = vtanh.pop %v4342
    %v4344 = vsub.f32 1.0, %v4324
    %4346 = vrot.lane.b32.xlu0 %v4343, 96
    %v4347 = vpop.permute.xlu0 %4346
    %v4349 = vmul.f32 %v4344, %v4347
    %v4350 = vmul.f32 %v4324, %v4270
    %v4351 = vadd.f32 %v4349, %v4350
    %v4352 = vpack.c.bf16 %v4351, %v4351
    %4354 = vrot.lane.b32.xlu0 %v4352, 96
    %v4355 = vpop.permute.xlu0 %4354
    %v4357 = vsel %vm216, %v4355, 0
    %4359 = vmatprep.subr.bf16.mxu0 0
    %4360 = vmatpush1.bf16.msra.mxu0 %v1177
    %4361 = vmatprep.subr.bf16.mxu0 0
    %4362 = vmatpush1.bf16.msra.mxu0 %v1178
    %4363 = vmatprep.subr.bf16.mxu0 0
    %4364 = vmatpush1.bf16.msra.mxu0 0
    %4365 = vmatprep.subr.bf16.mxu0 0
    %4366 = vmatpush1.bf16.msra.mxu0 0
    %4367 = vmatprep.subr.bf16.mxu0 0
    %4368 = vmatpush1.bf16.msra.mxu0 0
    %4369 = vmatprep.subr.bf16.mxu0 0
    %4370 = vmatpush1.bf16.msra.mxu0 0
    %4371 = vmatprep.subr.bf16.mxu0 0
    %4372 = vmatpush1.bf16.msra.mxu0 0
    %4373 = vmatprep.subr.bf16.mxu0 0
    %4374 = vmatpush1.bf16.msra.mxu0 0
    %4375 = vmatprep.subr.bf16.mxu0 0
    %4376 = vmatpush1.bf16.msra.mxu0 0
    %4377 = vmatprep.subr.bf16.mxu0 0
    %4378 = vmatpush1.bf16.msra.mxu0 0
    %4379 = vmatprep.subr.bf16.mxu0 0
    %4380 = vmatpush1.bf16.msra.mxu0 0
    %4381 = vmatprep.subr.bf16.mxu0 0
    %4382 = vmatpush1.bf16.msra.mxu0 0
    %4383 = vmatprep.subr.bf16.mxu0 0
    %4384 = vmatpush1.bf16.msra.mxu0 0
    %4385 = vmatprep.subr.bf16.mxu0 0
    %4386 = vmatpush1.bf16.msra.mxu0 0
    %4387 = vmatprep.subr.bf16.mxu0 0
    %4388 = vmatpush1.bf16.msra.mxu0 0
    %4389 = vmatprep.subr.bf16.mxu0 0
    %4390 = vmatpush1.bf16.msra.mxu0 0
    %4391 = vmatprep.mubr.bf16.mxu0 0
    %4392 = vmatmul.mubr.bf16.gmra.mrb[0].mxu0 %v4357
    %v4393 = vpop.f32.mrb[0].mxu0
    %v4394 = vadd.f32 0.0, %v4393
    %v4395 = vpop.f32.mrb[0].mxu0
    %v4396 = vpop.f32.mrb[0].mxu0
    %v4397 = vpop.f32.mrb[0].mxu0
    %4398 = vdwg.mxu0
    %v4399 = vadd.f32 %v4162, %v4394
    %v4400 = vxor.u32 %v4399, 2147483648
    %v4401 = vmul.f32 %v4400, 1.442695
    %v4402 = vpow.pop %v4401
    %v4403 = vadd.f32 %v4402, 1.0
    %v4404 = vrcp.pop %v4403
    %v4405 = vmul.f32 1.0, %v4404
    %v4406 = vadd.f32 %v4394, %v1234
    %v4409 = vunpack.c.l.s4 1983009808
    %v4410 = vunpack.c.0.s8 %v4409
    %v4411 = vlaneseq
    %v4412 = vshrl.u32 %v4411, 7
    %v4413 = vsub.s32 %v4410, %v4412
    %v4414 = vrot.slane %v4406, %v4413
    %4415 = vrot.lane.b32.xlu0 %v4414, 64
    %v4416 = vpop.permute.xlu0 %4415
    %v4418 = vmul.f32 %v4405, %v4416
    %4420 = vrot.lane.b32.xlu0 %v4418, 64
    %v4421 = vpop.permute.xlu0 %4420
    %v4423 = vadd.f32 %v4162, %v4421
    %v4424 = vtanh.pop %v4423
    %v4425 = vsub.f32 1.0, %v4405
    %4427 = vrot.lane.b32.xlu0 %v4424, 96
    %v4428 = vpop.permute.xlu0 %4427
    %v4430 = vmul.f32 %v4425, %v4428
    %v4431 = vmul.f32 %v4405, %v4351
    %v4432 = vadd.f32 %v4430, %v4431
    %v4433 = vpack.c.bf16 %v4432, %v4432
    %4435 = vrot.lane.b32.xlu0 %v4433, 96
    %v4436 = vpop.permute.xlu0 %4435
    %v4438 = vsel %vm216, %v4436, 0
    %4440 = vmatprep.subr.bf16.mxu0 0
    %4441 = vmatpush1.bf16.msra.mxu0 %v1177
    %4442 = vmatprep.subr.bf16.mxu0 0
    %4443 = vmatpush1.bf16.msra.mxu0 %v1178
    %4444 = vmatprep.subr.bf16.mxu0 0
    %4445 = vmatpush1.bf16.msra.mxu0 0
    %4446 = vmatprep.subr.bf16.mxu0 0
    %4447 = vmatpush1.bf16.msra.mxu0 0
    %4448 = vmatprep.subr.bf16.mxu0 0
    %4449 = vmatpush1.bf16.msra.mxu0 0
    %4450 = vmatprep.subr.bf16.mxu0 0
    %4451 = vmatpush1.bf16.msra.mxu0 0
    %4452 = vmatprep.subr.bf16.mxu0 0
    %4453 = vmatpush1.bf16.msra.mxu0 0
    %4454 = vmatprep.subr.bf16.mxu0 0
    %4455 = vmatpush1.bf16.msra.mxu0 0
    %4456 = vmatprep.subr.bf16.mxu0 0
    %4457 = vmatpush1.bf16.msra.mxu0 0
    %4458 = vmatprep.subr.bf16.mxu0 0
    %4459 = vmatpush1.bf16.msra.mxu0 0
    %4460 = vmatprep.subr.bf16.mxu0 0
    %4461 = vmatpush1.bf16.msra.mxu0 0
    %4462 = vmatprep.subr.bf16.mxu0 0
    %4463 = vmatpush1.bf16.msra.mxu0 0
    %4464 = vmatprep.subr.bf16.mxu0 0
    %4465 = vmatpush1.bf16.msra.mxu0 0
    %4466 = vmatprep.subr.bf16.mxu0 0
    %4467 = vmatpush1.bf16.msra.mxu0 0
    %4468 = vmatprep.subr.bf16.mxu0 0
    %4469 = vmatpush1.bf16.msra.mxu0 0
    %4470 = vmatprep.subr.bf16.mxu0 0
    %4471 = vmatpush1.bf16.msra.mxu0 0
    %4472 = vmatprep.mubr.bf16.mxu0 0
    %4473 = vmatmul.mubr.bf16.gmra.mrb[0].mxu0 %v4438
    %v4474 = vpop.f32.mrb[0].mxu0
    %v4475 = vadd.f32 0.0, %v4474
    %v4476 = vpop.f32.mrb[0].mxu0
    %v4477 = vpop.f32.mrb[0].mxu0
    %v4478 = vpop.f32.mrb[0].mxu0
    %4479 = vdwg.mxu0
    %v4480 = vadd.f32 %v4164, %v4475
    %v4481 = vxor.u32 %v4480, 2147483648
    %v4482 = vmul.f32 %v4481, 1.442695
    %v4483 = vpow.pop %v4482
    %v4484 = vadd.f32 %v4483, 1.0
    %v4485 = vrcp.pop %v4484
    %v4486 = vmul.f32 1.0, %v4485
    %v4487 = vadd.f32 %v4475, %v1234
    %v4490 = vunpack.c.l.s4 1983009808
    %v4491 = vunpack.c.0.s8 %v4490
    %v4492 = vlaneseq
    %v4493 = vshrl.u32 %v4492, 7
    %v4494 = vsub.s32 %v4491, %v4493
    %v4495 = vrot.slane %v4487, %v4494
    %4496 = vrot.lane.b32.xlu0 %v4495, 64
    %v4497 = vpop.permute.xlu0 %4496
    %v4499 = vmul.f32 %v4486, %v4497
    %4501 = vrot.lane.b32.xlu0 %v4499, 64
    %v4502 = vpop.permute.xlu0 %4501
    %v4504 = vadd.f32 %v4164, %v4502
    %v4505 = vtanh.pop %v4504
    %v4506 = vsub.f32 1.0, %v4486
    %4508 = vrot.lane.b32.xlu0 %v4505, 96
    %v4509 = vpop.permute.xlu0 %4508
    %v4511 = vmul.f32 %v4506, %v4509
    %v4512 = vmul.f32 %v4486, %v4432
    %v4513 = vadd.f32 %v4511, %v4512
    %v4514 = vpack.c.bf16 %v4513, %v4513
    %4516 = vrot.lane.b32.xlu0 %v4514, 96
    %v4517 = vpop.permute.xlu0 %4516
    %v4519 = vsel %vm216, %v4517, 0
    %4521 = vmatprep.subr.bf16.mxu0 0
    %4522 = vmatpush1.bf16.msra.mxu0 %v1177
    %4523 = vmatprep.subr.bf16.mxu0 0
    %4524 = vmatpush1.bf16.msra.mxu0 %v1178
    %4525 = vmatprep.subr.bf16.mxu0 0
    %4526 = vmatpush1.bf16.msra.mxu0 0
    %4527 = vmatprep.subr.bf16.mxu0 0
    %4528 = vmatpush1.bf16.msra.mxu0 0
    %4529 = vmatprep.subr.bf16.mxu0 0
    %4530 = vmatpush1.bf16.msra.mxu0 0
    %4531 = vmatprep.subr.bf16.mxu0 0
    %4532 = vmatpush1.bf16.msra.mxu0 0
    %4533 = vmatprep.subr.bf16.mxu0 0
    %4534 = vmatpush1.bf16.msra.mxu0 0
    %4535 = vmatprep.subr.bf16.mxu0 0
    %4536 = vmatpush1.bf16.msra.mxu0 0
    %4537 = vmatprep.subr.bf16.mxu0 0
    %4538 = vmatpush1.bf16.msra.mxu0 0
    %4539 = vmatprep.subr.bf16.mxu0 0
    %4540 = vmatpush1.bf16.msra.mxu0 0
    %4541 = vmatprep.subr.bf16.mxu0 0
    %4542 = vmatpush1.bf16.msra.mxu0 0
    %4543 = vmatprep.subr.bf16.mxu0 0
    %4544 = vmatpush1.bf16.msra.mxu0 0
    %4545 = vmatprep.subr.bf16.mxu0 0
    %4546 = vmatpush1.bf16.msra.mxu0 0
    %4547 = vmatprep.subr.bf16.mxu0 0
    %4548 = vmatpush1.bf16.msra.mxu0 0
    %4549 = vmatprep.subr.bf16.mxu0 0
    %4550 = vmatpush1.bf16.msra.mxu0 0
    %4551 = vmatprep.subr.bf16.mxu0 0
    %4552 = vmatpush1.bf16.msra.mxu0 0
    %4553 = vmatprep.mubr.bf16.mxu0 0
    %4554 = vmatmul.mubr.bf16.gmra.mrb[0].mxu0 %v4519
    %v4555 = vpop.f32.mrb[0].mxu0
    %v4556 = vadd.f32 0.0, %v4555
    %v4557 = vpop.f32.mrb[0].mxu0
    %v4558 = vpop.f32.mrb[0].mxu0
    %v4559 = vpop.f32.mrb[0].mxu0
    %4560 = vdwg.mxu0
    %v4561 = vadd.f32 %v4172, %v4556
    %v4562 = vxor.u32 %v4561, 2147483648
    %v4563 = vmul.f32 %v4562, 1.442695
    %v4564 = vpow.pop %v4563
    %v4565 = vadd.f32 %v4564, 1.0
    %v4566 = vrcp.pop %v4565
    %v4567 = vmul.f32 1.0, %v4566
    %v4568 = vadd.f32 %v4556, %v1234
    %v4571 = vunpack.c.l.s4 1983009808
    %v4572 = vunpack.c.0.s8 %v4571
    %v4573 = vlaneseq
    %v4574 = vshrl.u32 %v4573, 7
    %v4575 = vsub.s32 %v4572, %v4574
    %v4576 = vrot.slane %v4568, %v4575
    %4577 = vrot.lane.b32.xlu0 %v4576, 64
    %v4578 = vpop.permute.xlu0 %4577
    %v4580 = vmul.f32 %v4567, %v4578
    %4582 = vrot.lane.b32.xlu0 %v4580, 64
    %v4583 = vpop.permute.xlu0 %4582
    %v4585 = vadd.f32 %v4172, %v4583
    %v4586 = vtanh.pop %v4585
    %v4587 = vsub.f32 1.0, %v4567
    %4589 = vrot.lane.b32.xlu0 %v4586, 96
    %v4590 = vpop.permute.xlu0 %4589
    %v4592 = vmul.f32 %v4587, %v4590
    %v4593 = vmul.f32 %v4567, %v4513
    %v4594 = vadd.f32 %v4592, %v4593
    %v4595 = vpack.c.bf16 %v4594, %v4594
    %4597 = vrot.lane.b32.xlu0 %v4595, 96
    %v4598 = vpop.permute.xlu0 %4597
    %v4600 = vsel %vm216, %v4598, 0
    %4602 = vmatprep.subr.bf16.mxu0 0
    %4603 = vmatpush1.bf16.msra.mxu0 %v1177
    %4604 = vmatprep.subr.bf16.mxu0 0
    %4605 = vmatpush1.bf16.msra.mxu0 %v1178
    %4606 = vmatprep.subr.bf16.mxu0 0
    %4607 = vmatpush1.bf16.msra.mxu0 0
    %4608 = vmatprep.subr.bf16.mxu0 0
    %4609 = vmatpush1.bf16.msra.mxu0 0
    %4610 = vmatprep.subr.bf16.mxu0 0
    %4611 = vmatpush1.bf16.msra.mxu0 0
    %4612 = vmatprep.subr.bf16.mxu0 0
    %4613 = vmatpush1.bf16.msra.mxu0 0
    %4614 = vmatprep.subr.bf16.mxu0 0
    %4615 = vmatpush1.bf16.msra.mxu0 0
    %4616 = vmatprep.subr.bf16.mxu0 0
    %4617 = vmatpush1.bf16.msra.mxu0 0
    %4618 = vmatprep.subr.bf16.mxu0 0
    %4619 = vmatpush1.bf16.msra.mxu0 0
    %4620 = vmatprep.subr.bf16.mxu0 0
    %4621 = vmatpush1.bf16.msra.mxu0 0
    %4622 = vmatprep.subr.bf16.mxu0 0
    %4623 = vmatpush1.bf16.msra.mxu0 0
    %4624 = vmatprep.subr.bf16.mxu0 0
    %4625 = vmatpush1.bf16.msra.mxu0 0
    %4626 = vmatprep.subr.bf16.mxu0 0
    %4627 = vmatpush1.bf16.msra.mxu0 0
    %4628 = vmatprep.subr.bf16.mxu0 0
    %4629 = vmatpush1.bf16.msra.mxu0 0
    %4630 = vmatprep.subr.bf16.mxu0 0
    %4631 = vmatpush1.bf16.msra.mxu0 0
    %4632 = vmatprep.subr.bf16.mxu0 0
    %4633 = vmatpush1.bf16.msra.mxu0 0
    %4634 = vmatprep.mubr.bf16.mxu0 0
    %4635 = vmatmul.mubr.bf16.gmra.mrb[0].mxu0 %v4600
    %v4636 = vpop.f32.mrb[0].mxu0
    %v4637 = vadd.f32 0.0, %v4636
    %v4638 = vpop.f32.mrb[0].mxu0
    %v4639 = vpop.f32.mrb[0].mxu0
    %v4640 = vpop.f32.mrb[0].mxu0
    %4641 = vdwg.mxu0
    %v4642 = vadd.f32 %v4180, %v4637
    %v4643 = vxor.u32 %v4642, 2147483648
    %v4644 = vmul.f32 %v4643, 1.442695
    %v4645 = vpow.pop %v4644
    %v4646 = vadd.f32 %v4645, 1.0
    %v4647 = vrcp.pop %v4646
    %v4648 = vmul.f32 1.0, %v4647
    %v4649 = vadd.f32 %v4637, %v1234
    %v4652 = vunpack.c.l.s4 1983009808
    %v4653 = vunpack.c.0.s8 %v4652
    %v4654 = vlaneseq
    %v4655 = vshrl.u32 %v4654, 7
    %v4656 = vsub.s32 %v4653, %v4655
    %v4657 = vrot.slane %v4649, %v4656
    %4658 = vrot.lane.b32.xlu0 %v4657, 64
    %v4659 = vpop.permute.xlu0 %4658
    %v4661 = vmul.f32 %v4648, %v4659
    %4663 = vrot.lane.b32.xlu0 %v4661, 64
    %v4664 = vpop.permute.xlu0 %4663
    %v4666 = vadd.f32 %v4180, %v4664
    %v4667 = vtanh.pop %v4666
    %v4668 = vsub.f32 1.0, %v4648
    %4670 = vrot.lane.b32.xlu0 %v4667, 96
    %v4671 = vpop.permute.xlu0 %4670
    %v4673 = vmul.f32 %v4668, %v4671
    %v4674 = vmul.f32 %v4648, %v4594
    %v4675 = vadd.f32 %v4673, %v4674
    %v4676 = vpack.c.bf16 %v4675, %v4675
    %4678 = vrot.lane.b32.xlu0 %v4676, 96
    %v4679 = vpop.permute.xlu0 %4678
    %v4681 = vsel %vm216, %v4679, 0
    %4683 = vmatprep.subr.bf16.mxu0 0
    %4684 = vmatpush1.bf16.msra.mxu0 %v1177
    %4685 = vmatprep.subr.bf16.mxu0 0
    %4686 = vmatpush1.bf16.msra.mxu0 %v1178
    %4687 = vmatprep.subr.bf16.mxu0 0
    %4688 = vmatpush1.bf16.msra.mxu0 0
    %4689 = vmatprep.subr.bf16.mxu0 0
    %4690 = vmatpush1.bf16.msra.mxu0 0
    %4691 = vmatprep.subr.bf16.mxu0 0
    %4692 = vmatpush1.bf16.msra.mxu0 0
    %4693 = vmatprep.subr.bf16.mxu0 0
    %4694 = vmatpush1.bf16.msra.mxu0 0
    %4695 = vmatprep.subr.bf16.mxu0 0
    %4696 = vmatpush1.bf16.msra.mxu0 0
    %4697 = vmatprep.subr.bf16.mxu0 0
    %4698 = vmatpush1.bf16.msra.mxu0 0
    %4699 = vmatprep.subr.bf16.mxu0 0
    %4700 = vmatpush1.bf16.msra.mxu0 0
    %4701 = vmatprep.subr.bf16.mxu0 0
    %4702 = vmatpush1.bf16.msra.mxu0 0
    %4703 = vmatprep.subr.bf16.mxu0 0
    %4704 = vmatpush1.bf16.msra.mxu0 0
    %4705 = vmatprep.subr.bf16.mxu0 0
    %4706 = vmatpush1.bf16.msra.mxu0 0
    %4707 = vmatprep.subr.bf16.mxu0 0
    %4708 = vmatpush1.bf16.msra.mxu0 0
    %4709 = vmatprep.subr.bf16.mxu0 0
    %4710 = vmatpush1.bf16.msra.mxu0 0
    %4711 = vmatprep.subr.bf16.mxu0 0
    %4712 = vmatpush1.bf16.msra.mxu0 0
    %4713 = vmatprep.subr.bf16.mxu0 0
    %4714 = vmatpush1.bf16.msra.mxu0 0
    %4715 = vmatprep.mubr.bf16.mxu0 0
    %4716 = vmatmul.mubr.bf16.gmra.mrb[0].mxu0 %v4681
    %v4717 = vpop.f32.mrb[0].mxu0
    %v4718 = vadd.f32 0.0, %v4717
    %v4719 = vpop.f32.mrb[0].mxu0
    %v4720 = vpop.f32.mrb[0].mxu0
    %v4721 = vpop.f32.mrb[0].mxu0
    %4722 = vdwg.mxu0
    %v4723 = vadd.f32 %v4179, %v4718
    %v4724 = vxor.u32 %v4723, 2147483648
    %v4725 = vmul.f32 %v4724, 1.442695
    %v4726 = vpow.pop %v4725
    %v4727 = vadd.f32 %v4726, 1.0
    %v4728 = vrcp.pop %v4727
    %v4729 = vmul.f32 1.0, %v4728
    %v4730 = vadd.f32 %v4718, %v1234
    %v4733 = vunpack.c.l.s4 1983009808
    %v4734 = vunpack.c.0.s8 %v4733
    %v4735 = vlaneseq
    %v4736 = vshrl.u32 %v4735, 7
    %v4737 = vsub.s32 %v4734, %v4736
    %v4738 = vrot.slane %v4730, %v4737
    %4739 = vrot.lane.b32.xlu0 %v4738, 64
    %v4740 = vpop.permute.xlu0 %4739
    %v4742 = vmul.f32 %v4729, %v4740
    %4744 = vrot.lane.b32.xlu0 %v4742, 64
    %v4745 = vpop.permute.xlu0 %4744
    %v4747 = vadd.f32 %v4179, %v4745
    %v4748 = vtanh.pop %v4747
    %v4749 = vsub.f32 1.0, %v4729
    %4751 = vrot.lane.b32.xlu0 %v4748, 96
    %v4752 = vpop.permute.xlu0 %4751
    %v4754 = vmul.f32 %v4749, %v4752
    %v4755 = vmul.f32 %v4729, %v4675
    %v4756 = vadd.f32 %v4754, %v4755
    %v4757 = vpack.c.bf16 %v4756, %v4756
    %4759 = vrot.lane.b32.xlu0 %v4757, 96
    %v4760 = vpop.permute.xlu0 %4759
    %v4762 = vsel %vm216, %v4760, 0
    %4764 = vmatprep.subr.bf16.mxu0 0
    %4765 = vmatpush1.bf16.msra.mxu0 %v1177
    %4766 = vmatprep.subr.bf16.mxu0 0
    %4767 = vmatpush1.bf16.msra.mxu0 %v1178
    %4768 = vmatprep.subr.bf16.mxu0 0
    %4769 = vmatpush1.bf16.msra.mxu0 0
    %4770 = vmatprep.subr.bf16.mxu0 0
    %4771 = vmatpush1.bf16.msra.mxu0 0
    %4772 = vmatprep.subr.bf16.mxu0 0
    %4773 = vmatpush1.bf16.msra.mxu0 0
    %4774 = vmatprep.subr.bf16.mxu0 0
    %4775 = vmatpush1.bf16.msra.mxu0 0
    %4776 = vmatprep.subr.bf16.mxu0 0
    %4777 = vmatpush1.bf16.msra.mxu0 0
    %4778 = vmatprep.subr.bf16.mxu0 0
    %4779 = vmatpush1.bf16.msra.mxu0 0
    %4780 = vmatprep.subr.bf16.mxu0 0
    %4781 = vmatpush1.bf16.msra.mxu0 0
    %4782 = vmatprep.subr.bf16.mxu0 0
    %4783 = vmatpush1.bf16.msra.mxu0 0
    %4784 = vmatprep.subr.bf16.mxu0 0
    %4785 = vmatpush1.bf16.msra.mxu0 0
    %4786 = vmatprep.subr.bf16.mxu0 0
    %4787 = vmatpush1.bf16.msra.mxu0 0
    %4788 = vmatprep.subr.bf16.mxu0 0
    %4789 = vmatpush1.bf16.msra.mxu0 0
    %4790 = vmatprep.subr.bf16.mxu0 0
    %4791 = vmatpush1.bf16.msra.mxu0 0
    %4792 = vmatprep.subr.bf16.mxu0 0
    %4793 = vmatpush1.bf16.msra.mxu0 0
    %4794 = vmatprep.subr.bf16.mxu0 0
    %4795 = vmatpush1.bf16.msra.mxu0 0
    %4796 = vmatprep.mubr.bf16.mxu0 0
    %4797 = vmatmul.mubr.bf16.gmra.mrb[0].mxu0 %v4762
    %v4798 = vpop.f32.mrb[0].mxu0
    %v4799 = vadd.f32 0.0, %v4798
    %v4800 = vpop.f32.mrb[0].mxu0
    %v4801 = vpop.f32.mrb[0].mxu0
    %v4802 = vpop.f32.mrb[0].mxu0
    %4803 = vdwg.mxu0
    %v4804 = vadd.f32 %v4181, %v4799
    %v4805 = vxor.u32 %v4804, 2147483648
    %v4806 = vmul.f32 %v4805, 1.442695
    %v4807 = vpow.pop %v4806
    %v4808 = vadd.f32 %v4807, 1.0
    %v4809 = vrcp.pop %v4808
    %v4810 = vmul.f32 1.0, %v4809
    %v4811 = vadd.f32 %v4799, %v1234
    %v4814 = vunpack.c.l.s4 1983009808
    %v4815 = vunpack.c.0.s8 %v4814
    %v4816 = vlaneseq
    %v4817 = vshrl.u32 %v4816, 7
    %v4818 = vsub.s32 %v4815, %v4817
    %v4819 = vrot.slane %v4811, %v4818
    %4820 = vrot.lane.b32.xlu0 %v4819, 64
    %v4821 = vpop.permute.xlu0 %4820
    %v4823 = vmul.f32 %v4810, %v4821
    %4825 = vrot.lane.b32.xlu0 %v4823, 64
    %v4826 = vpop.permute.xlu0 %4825
    %v4828 = vadd.f32 %v4181, %v4826
    %v4829 = vtanh.pop %v4828
    %v4830 = vsub.f32 1.0, %v4810
    %4832 = vrot.lane.b32.xlu0 %v4829, 96
    %v4833 = vpop.permute.xlu0 %4832
    %v4835 = vmul.f32 %v4830, %v4833
    %v4836 = vmul.f32 %v4810, %v4756
    %v4837 = vadd.f32 %v4835, %v4836
    %v4839 = vcombine.low %v4351, %v4351
    %v4841 = vunpack.c.l.s4 1983009808
    %v4842 = vunpack.c.0.s8 %v4841
    %v4843 = vlaneseq
    %v4844 = vshrl.u32 %v4843, 7
    %v4845 = vsub.s32 %v4842, %v4844
    %v4846 = vrot.slane %v4839, %v4845
    %v4850 = vunpack.c.l.s4 1983009808
    %v4851 = vunpack.c.0.s8 %v4850
    %v4852 = vlaneseq
    %v4853 = vshrl.u32 %v4852, 7
    %v4854 = vsub.s32 %v4851, %v4853
    %v4855 = vrot.slane %v4432, %v4854
    %v4856 = vcombine.low %v4855, %v4855
    %v4859 = vcombine.low %v4513, %v4513
    %v4861 = vunpack.c.l.s4 1983009808
    %v4862 = vunpack.c.0.s8 %v4861
    %v4863 = vlaneseq
    %v4864 = vshrl.u32 %v4863, 7
    %v4865 = vsub.s32 %v4862, %v4864
    %v4866 = vrot.slane %v4859, %v4865
    %v4867 = vcombine.low %v4866, %v4866
    %v4870 = vcombine.low %v4675, %v4675
    %v4872 = vunpack.c.l.s4 1983009808
    %v4873 = vunpack.c.0.s8 %v4872
    %v4874 = vlaneseq
    %v4875 = vshrl.u32 %v4874, 7
    %v4876 = vsub.s32 %v4873, %v4875
    %v4877 = vrot.slane %v4870, %v4876
    %v4881 = vunpack.c.l.s4 1983009808
    %v4882 = vunpack.c.0.s8 %v4881
    %v4883 = vlaneseq
    %v4884 = vshrl.u32 %v4883, 7
    %v4885 = vsub.s32 %v4882, %v4884
    %v4886 = vrot.slane %v4756, %v4885
    %v4887 = vcombine.low %v4886, %v4886
    %v4890 = vcombine.low %v4837, %v4837
    %v4892 = vunpack.c.l.s4 1983009808
    %v4893 = vunpack.c.0.s8 %v4892
    %v4894 = vlaneseq
    %v4895 = vshrl.u32 %v4894, 7
    %v4896 = vsub.s32 %v4893, %v4895
    %v4897 = vrot.slane %v4890, %v4896
    %v4898 = vcombine.low %v4897, %v4897
    %v4900 = vsel %vm1036, %v4270, %v4846
    %v4901 = vsel %vm1038, %v4900, %v4856
    %v4902 = vsel %vm1040, %v4901, %v4867
    %v4903 = vsel %vm1036, %v4594, %v4877
    %v4904 = vsel %vm1038, %v4903, %v4887
    %v4905 = vsel %vm1040, %v4904, %v4898
    %v4908 = vcombine.high %v4902, %v4902
    %v4910 = vunpack.c.l.s4 1983009808
    %v4911 = vunpack.c.0.s8 %v4910
    %v4912 = vlaneseq
    %v4913 = vshrl.u32 %v4912, 7
    %v4914 = vsub.s32 %v4911, %v4913
    %v4915 = vrot.slane %v4902, %v4914
    %v4917 = vunpack.c.l.s4 1983009808
    %v4918 = vunpack.c.0.s8 %v4917
    %v4919 = vlaneseq
    %v4920 = vshrl.u32 %v4919, 7
    %v4921 = vsub.s32 %v4918, %v4920
    %v4922 = vrot.slane %v4908, %v4921
    %v4923 = vcombine.high %v4915, %v4915
    %v4924 = vcombine.high %v4922, %v4922
    %v4925 = vcombine.high %v4905, %v4905
    %v4927 = vunpack.c.l.s4 1983009808
    %v4928 = vunpack.c.0.s8 %v4927
    %v4929 = vlaneseq
    %v4930 = vshrl.u32 %v4929, 7
    %v4931 = vsub.s32 %v4928, %v4930
    %v4932 = vrot.slane %v4905, %v4931
    %v4934 = vunpack.c.l.s4 1983009808
    %v4935 = vunpack.c.0.s8 %v4934
    %v4936 = vlaneseq
    %v4937 = vshrl.u32 %v4936, 7
    %v4938 = vsub.s32 %v4935, %v4937
    %v4939 = vrot.slane %v4925, %v4938
    %v4940 = vcombine.high %v4932, %v4932
    %v4941 = vcombine.high %v4939, %v4939
    %v4950 = vpack.c.bf16 %v4915, %v4915
    %v4951 = vpack.c.bf16 %v4923, %v4923
    %v4952 = vpack.c.bf16 %v4922, %v4922
    %v4953 = vpack.c.bf16 %v4924, %v4924
    %v4954 = vpack.c.bf16 %v4932, %v4932
    %v4955 = vpack.c.bf16 %v4940, %v4940
    %v4956 = vpack.c.bf16 %v4939, %v4939
    %v4957 = vpack.c.bf16 %v4941, %v4941
    %v4958 = vld [vmem:[%s9] sm:$0xf]
    %v4959 = vld [vmem:[%s9 + $0x4] sm:$0xf]
    %v4960 = vld [vmem:[%s9 + $0x8] sm:$0xf]
    %v4961 = vld [vmem:[%s9 + $0xc] sm:$0xf]
    %v4962 = vld [vmem:[%s9 + $0x10] sm:$0xf]
    %v4963 = vld [vmem:[%s9 + $0x14] sm:$0xf]
    %v4964 = vld [vmem:[%s9 + $0x18] sm:$0xf]
    %v4965 = vld [vmem:[%s9 + $0x1c] sm:$0xf]
    %v4966 = vld [vmem:[%s9 + $0x20] sm:$0xf]
    %v4967 = vld [vmem:[%s9 + $0x24] sm:$0xf]
    %v4968 = vld [vmem:[%s9 + $0x28] sm:$0xf]
    %v4969 = vld [vmem:[%s9 + $0x2c] sm:$0xf]
    %v4970 = vld [vmem:[%s9 + $0x30] sm:$0xf]
    %v4971 = vld [vmem:[%s9 + $0x34] sm:$0xf]
    %v4972 = vld [vmem:[%s9 + $0x38] sm:$0xf]
    %v4973 = vld [vmem:[%s9 + $0x3c] sm:$0xf]
    %4975 = vrot.lane.b32.xlu0 %v4950, 96
    %v4976 = vpop.permute.xlu0 %4975
    %v4979 = vunpack.c.l.b16 %v4958
    %v4980 = vunpack.c.l.b16 %v4959
    %v4981 = vpack.c.b16 %v4980, %v4979
    %v4983 = vsel %vm216, %v4976, 0
    %v4986 = vsel %vm216, %v4981, 0
    %4988 = vmatprep.subr.bf16.mxu0 0
    %4989 = vmatpush1.bf16.xpose.msra.mxu0 %v4986
    %4990 = vmatprep.subr.bf16.mxu0 0
    %4991 = vmatpush1.bf16.xpose.msra.mxu0 0
    %4992 = vmatprep.subr.bf16.mxu0 0
    %4993 = vmatpush1.bf16.xpose.msra.mxu0 0
    %4994 = vmatprep.subr.bf16.mxu0 0
    %4995 = vmatpush1.bf16.xpose.msra.mxu0 0
    %4996 = vmatprep.subr.bf16.mxu0 0
    %4997 = vmatpush1.bf16.xpose.msra.mxu0 0
    %4998 = vmatprep.subr.bf16.mxu0 0
    %4999 = vmatpush1.bf16.xpose.msra.mxu0 0
    %5000 = vmatprep.subr.bf16.mxu0 0
    %5001 = vmatpush1.bf16.xpose.msra.mxu0 0
    %5002 = vmatprep.subr.bf16.mxu0 0
    %5003 = vmatpush1.bf16.xpose.msra.mxu0 0
    %5004 = vmatprep.subr.bf16.mxu0 0
    %5005 = vmatpush1.bf16.xpose.msra.mxu0 0
    %5006 = vmatprep.subr.bf16.mxu0 0
    %5007 = vmatpush1.bf16.xpose.msra.mxu0 0
    %5008 = vmatprep.subr.bf16.mxu0 0
    %5009 = vmatpush1.bf16.xpose.msra.mxu0 0
    %5010 = vmatprep.subr.bf16.mxu0 0
    %5011 = vmatpush1.bf16.xpose.msra.mxu0 0
    %5012 = vmatprep.subr.bf16.mxu0 0
    %5013 = vmatpush1.bf16.xpose.msra.mxu0 0
    %5014 = vmatprep.subr.bf16.mxu0 0
    %5015 = vmatpush1.bf16.xpose.msra.mxu0 0
    %5016 = vmatprep.subr.bf16.mxu0 0
    %5017 = vmatpush1.bf16.xpose.msra.mxu0 0
    %5018 = vmatprep.subr.bf16.mxu0 0
    %5019 = vmatpush1.bf16.xpose.msra.mxu0 0
    %5020 = vmatprep.mubr.bf16.mxu0 0
    %5021 = vmatmul.mubr.bf16.gmra.mrb[0].mxu0 %v4983
    %v5022 = vpop.f32.mrb[0].mxu0
    %v5023 = vadd.f32 0.0, %v5022
    %v5024 = vpop.f32.mrb[0].mxu0
    %v5025 = vpop.f32.mrb[0].mxu0
    %v5026 = vpop.f32.mrb[0].mxu0
    %5027 = vdwg.mxu0
    %5029 = vrot.lane.b32.xlu0 %v4951, 96
    %v5030 = vpop.permute.xlu0 %5029
    %v5033 = vunpack.c.l.b16 %v4960
    %v5034 = vunpack.c.l.b16 %v4961
    %v5035 = vpack.c.b16 %v5034, %v5033
    %v5037 = vsel %vm216, %v5030, 0
    %v5040 = vsel %vm216, %v5035, 0
    %5042 = vmatprep.subr.bf16.mxu0 0
    %5043 = vmatpush1.bf16.xpose.msra.mxu0 %v5040
    %5044 = vmatprep.subr.bf16.mxu0 0
    %5045 = vmatpush1.bf16.xpose.msra.mxu0 0
    %5046 = vmatprep.subr.bf16.mxu0 0
    %5047 = vmatpush1.bf16.xpose.msra.mxu0 0
    %5048 = vmatprep.subr.bf16.mxu0 0
    %5049 = vmatpush1.bf16.xpose.msra.mxu0 0
    %5050 = vmatprep.subr.bf16.mxu0 0
    %5051 = vmatpush1.bf16.xpose.msra.mxu0 0
    %5052 = vmatprep.subr.bf16.mxu0 0
    %5053 = vmatpush1.bf16.xpose.msra.mxu0 0
    %5054 = vmatprep.subr.bf16.mxu0 0
    %5055 = vmatpush1.bf16.xpose.msra.mxu0 0
    %5056 = vmatprep.subr.bf16.mxu0 0
    %5057 = vmatpush1.bf16.xpose.msra.mxu0 0
    %5058 = vmatprep.subr.bf16.mxu0 0
    %5059 = vmatpush1.bf16.xpose.msra.mxu0 0
    %5060 = vmatprep.subr.bf16.mxu0 0
    %5061 = vmatpush1.bf16.xpose.msra.mxu0 0
    %5062 = vmatprep.subr.bf16.mxu0 0
    %5063 = vmatpush1.bf16.xpose.msra.mxu0 0
    %5064 = vmatprep.subr.bf16.mxu0 0
    %5065 = vmatpush1.bf16.xpose.msra.mxu0 0
    %5066 = vmatprep.subr.bf16.mxu0 0
    %5067 = vmatpush1.bf16.xpose.msra.mxu0 0
    %5068 = vmatprep.subr.bf16.mxu0 0
    %5069 = vmatpush1.bf16.xpose.msra.mxu0 0
    %5070 = vmatprep.subr.bf16.mxu0 0
    %5071 = vmatpush1.bf16.xpose.msra.mxu0 0
    %5072 = vmatprep.subr.bf16.mxu0 0
    %5073 = vmatpush1.bf16.xpose.msra.mxu0 0
    %5074 = vmatprep.mubr.bf16.mxu0 0
    %5075 = vmatmul.mubr.bf16.gmra.mrb[0].mxu0 %v5037
    %v5076 = vpop.f32.mrb[0].mxu0
    %v5077 = vadd.f32 0.0, %v5076
    %v5078 = vpop.f32.mrb[0].mxu0
    %v5079 = vpop.f32.mrb[0].mxu0
    %v5080 = vpop.f32.mrb[0].mxu0
    %5081 = vdwg.mxu0
    %5083 = vrot.lane.b32.xlu0 %v4952, 96
    %v5084 = vpop.permute.xlu0 %5083
    %v5087 = vunpack.c.l.b16 %v4962
    %v5088 = vunpack.c.l.b16 %v4963
    %v5089 = vpack.c.b16 %v5088, %v5087
    %v5091 = vsel %vm216, %v5084, 0
    %v5094 = vsel %vm216, %v5089, 0
    %5096 = vmatprep.subr.bf16.mxu0 0
    %5097 = vmatpush1.bf16.xpose.msra.mxu0 %v5094
    %5098 = vmatprep.subr.bf16.mxu0 0
    %5099 = vmatpush1.bf16.xpose.msra.mxu0 0
    %5100 = vmatprep.subr.bf16.mxu0 0
    %5101 = vmatpush1.bf16.xpose.msra.mxu0 0
    %5102 = vmatprep.subr.bf16.mxu0 0
    %5103 = vmatpush1.bf16.xpose.msra.mxu0 0
    %5104 = vmatprep.subr.bf16.mxu0 0
    %5105 = vmatpush1.bf16.xpose.msra.mxu0 0
    %5106 = vmatprep.subr.bf16.mxu0 0
    %5107 = vmatpush1.bf16.xpose.msra.mxu0 0
    %5108 = vmatprep.subr.bf16.mxu0 0
    %5109 = vmatpush1.bf16.xpose.msra.mxu0 0
    %5110 = vmatprep.subr.bf16.mxu0 0
    %5111 = vmatpush1.bf16.xpose.msra.mxu0 0
    %5112 = vmatprep.subr.bf16.mxu0 0
    %5113 = vmatpush1.bf16.xpose.msra.mxu0 0
    %5114 = vmatprep.subr.bf16.mxu0 0
    %5115 = vmatpush1.bf16.xpose.msra.mxu0 0
    %5116 = vmatprep.subr.bf16.mxu0 0
    %5117 = vmatpush1.bf16.xpose.msra.mxu0 0
    %5118 = vmatprep.subr.bf16.mxu0 0
    %5119 = vmatpush1.bf16.xpose.msra.mxu0 0
    %5120 = vmatprep.subr.bf16.mxu0 0
    %5121 = vmatpush1.bf16.xpose.msra.mxu0 0
    %5122 = vmatprep.subr.bf16.mxu0 0
    %5123 = vmatpush1.bf16.xpose.msra.mxu0 0
    %5124 = vmatprep.subr.bf16.mxu0 0
    %5125 = vmatpush1.bf16.xpose.msra.mxu0 0
    %5126 = vmatprep.subr.bf16.mxu0 0
    %5127 = vmatpush1.bf16.xpose.msra.mxu0 0
    %5128 = vmatprep.mubr.bf16.mxu0 0
    %5129 = vmatmul.mubr.bf16.gmra.mrb[0].mxu0 %v5091
    %v5130 = vpop.f32.mrb[0].mxu0
    %v5131 = vadd.f32 0.0, %v5130
    %v5132 = vpop.f32.mrb[0].mxu0
    %v5133 = vpop.f32.mrb[0].mxu0
    %v5134 = vpop.f32.mrb[0].mxu0
    %5135 = vdwg.mxu0
    %5137 = vrot.lane.b32.xlu0 %v4953, 96
    %v5138 = vpop.permute.xlu0 %5137
    %v5141 = vunpack.c.l.b16 %v4964
    %v5142 = vunpack.c.l.b16 %v4965
    %v5143 = vpack.c.b16 %v5142, %v5141
    %v5145 = vsel %vm216, %v5138, 0
    %v5148 = vsel %vm216, %v5143, 0
    %5150 = vmatprep.subr.bf16.mxu0 0
    %5151 = vmatpush1.bf16.xpose.msra.mxu0 %v5148
    %5152 = vmatprep.subr.bf16.mxu0 0
    %5153 = vmatpush1.bf16.xpose.msra.mxu0 0
    %5154 = vmatprep.subr.bf16.mxu0 0
    %5155 = vmatpush1.bf16.xpose.msra.mxu0 0
    %5156 = vmatprep.subr.bf16.mxu0 0
    %5157 = vmatpush1.bf16.xpose.msra.mxu0 0
    %5158 = vmatprep.subr.bf16.mxu0 0
    %5159 = vmatpush1.bf16.xpose.msra.mxu0 0
    %5160 = vmatprep.subr.bf16.mxu0 0
    %5161 = vmatpush1.bf16.xpose.msra.mxu0 0
    %5162 = vmatprep.subr.bf16.mxu0 0
    %5163 = vmatpush1.bf16.xpose.msra.mxu0 0
    %5164 = vmatprep.subr.bf16.mxu0 0
    %5165 = vmatpush1.bf16.xpose.msra.mxu0 0
    %5166 = vmatprep.subr.bf16.mxu0 0
    %5167 = vmatpush1.bf16.xpose.msra.mxu0 0
    %5168 = vmatprep.subr.bf16.mxu0 0
    %5169 = vmatpush1.bf16.xpose.msra.mxu0 0
    %5170 = vmatprep.subr.bf16.mxu0 0
    %5171 = vmatpush1.bf16.xpose.msra.mxu0 0
    %5172 = vmatprep.subr.bf16.mxu0 0
    %5173 = vmatpush1.bf16.xpose.msra.mxu0 0
    %5174 = vmatprep.subr.bf16.mxu0 0
    %5175 = vmatpush1.bf16.xpose.msra.mxu0 0
    %5176 = vmatprep.subr.bf16.mxu0 0
    %5177 = vmatpush1.bf16.xpose.msra.mxu0 0
    %5178 = vmatprep.subr.bf16.mxu0 0
    %5179 = vmatpush1.bf16.xpose.msra.mxu0 0
    %5180 = vmatprep.subr.bf16.mxu0 0
    %5181 = vmatpush1.bf16.xpose.msra.mxu0 0
    %5182 = vmatprep.mubr.bf16.mxu0 0
    %5183 = vmatmul.mubr.bf16.gmra.mrb[0].mxu0 %v5145
    %v5184 = vpop.f32.mrb[0].mxu0
    %v5185 = vadd.f32 0.0, %v5184
    %v5186 = vpop.f32.mrb[0].mxu0
    %v5187 = vpop.f32.mrb[0].mxu0
    %v5188 = vpop.f32.mrb[0].mxu0
    %5189 = vdwg.mxu0
    %5191 = vrot.lane.b32.xlu0 %v4954, 96
    %v5192 = vpop.permute.xlu0 %5191
    %v5195 = vunpack.c.l.b16 %v4966
    %v5196 = vunpack.c.l.b16 %v4967
    %v5197 = vpack.c.b16 %v5196, %v5195
    %v5199 = vsel %vm216, %v5192, 0
    %v5202 = vsel %vm216, %v5197, 0
    %5204 = vmatprep.subr.bf16.mxu0 0
    %5205 = vmatpush1.bf16.xpose.msra.mxu0 %v5202
    %5206 = vmatprep.subr.bf16.mxu0 0
    %5207 = vmatpush1.bf16.xpose.msra.mxu0 0
    %5208 = vmatprep.subr.bf16.mxu0 0
    %5209 = vmatpush1.bf16.xpose.msra.mxu0 0
    %5210 = vmatprep.subr.bf16.mxu0 0
    %5211 = vmatpush1.bf16.xpose.msra.mxu0 0
    %5212 = vmatprep.subr.bf16.mxu0 0
    %5213 = vmatpush1.bf16.xpose.msra.mxu0 0
    %5214 = vmatprep.subr.bf16.mxu0 0
    %5215 = vmatpush1.bf16.xpose.msra.mxu0 0
    %5216 = vmatprep.subr.bf16.mxu0 0
    %5217 = vmatpush1.bf16.xpose.msra.mxu0 0
    %5218 = vmatprep.subr.bf16.mxu0 0
    %5219 = vmatpush1.bf16.xpose.msra.mxu0 0
    %5220 = vmatprep.subr.bf16.mxu0 0
    %5221 = vmatpush1.bf16.xpose.msra.mxu0 0
    %5222 = vmatprep.subr.bf16.mxu0 0
    %5223 = vmatpush1.bf16.xpose.msra.mxu0 0
    %5224 = vmatprep.subr.bf16.mxu0 0
    %5225 = vmatpush1.bf16.xpose.msra.mxu0 0
    %5226 = vmatprep.subr.bf16.mxu0 0
    %5227 = vmatpush1.bf16.xpose.msra.mxu0 0
    %5228 = vmatprep.subr.bf16.mxu0 0
    %5229 = vmatpush1.bf16.xpose.msra.mxu0 0
    %5230 = vmatprep.subr.bf16.mxu0 0
    %5231 = vmatpush1.bf16.xpose.msra.mxu0 0
    %5232 = vmatprep.subr.bf16.mxu0 0
    %5233 = vmatpush1.bf16.xpose.msra.mxu0 0
    %5234 = vmatprep.subr.bf16.mxu0 0
    %5235 = vmatpush1.bf16.xpose.msra.mxu0 0
    %5236 = vmatprep.mubr.bf16.mxu0 0
    %5237 = vmatmul.mubr.bf16.gmra.mrb[0].mxu0 %v5199
    %v5238 = vpop.f32.mrb[0].mxu0
    %v5239 = vadd.f32 0.0, %v5238
    %v5240 = vpop.f32.mrb[0].mxu0
    %v5241 = vpop.f32.mrb[0].mxu0
    %v5242 = vpop.f32.mrb[0].mxu0
    %5243 = vdwg.mxu0
    %5245 = vrot.lane.b32.xlu0 %v4955, 96
    %v5246 = vpop.permute.xlu0 %5245
    %v5249 = vunpack.c.l.b16 %v4968
    %v5250 = vunpack.c.l.b16 %v4969
    %v5251 = vpack.c.b16 %v5250, %v5249
    %v5253 = vsel %vm216, %v5246, 0
    %v5256 = vsel %vm216, %v5251, 0
    %5258 = vmatprep.subr.bf16.mxu0 0
    %5259 = vmatpush1.bf16.xpose.msra.mxu0 %v5256
    %5260 = vmatprep.subr.bf16.mxu0 0
    %5261 = vmatpush1.bf16.xpose.msra.mxu0 0
    %5262 = vmatprep.subr.bf16.mxu0 0
    %5263 = vmatpush1.bf16.xpose.msra.mxu0 0
    %5264 = vmatprep.subr.bf16.mxu0 0
    %5265 = vmatpush1.bf16.xpose.msra.mxu0 0
    %5266 = vmatprep.subr.bf16.mxu0 0
    %5267 = vmatpush1.bf16.xpose.msra.mxu0 0
    %5268 = vmatprep.subr.bf16.mxu0 0
    %5269 = vmatpush1.bf16.xpose.msra.mxu0 0
    %5270 = vmatprep.subr.bf16.mxu0 0
    %5271 = vmatpush1.bf16.xpose.msra.mxu0 0
    %5272 = vmatprep.subr.bf16.mxu0 0
    %5273 = vmatpush1.bf16.xpose.msra.mxu0 0
    %5274 = vmatprep.subr.bf16.mxu0 0
    %5275 = vmatpush1.bf16.xpose.msra.mxu0 0
    %5276 = vmatprep.subr.bf16.mxu0 0
    %5277 = vmatpush1.bf16.xpose.msra.mxu0 0
    %5278 = vmatprep.subr.bf16.mxu0 0
    %5279 = vmatpush1.bf16.xpose.msra.mxu0 0
    %5280 = vmatprep.subr.bf16.mxu0 0
    %5281 = vmatpush1.bf16.xpose.msra.mxu0 0
    %5282 = vmatprep.subr.bf16.mxu0 0
    %5283 = vmatpush1.bf16.xpose.msra.mxu0 0
    %5284 = vmatprep.subr.bf16.mxu0 0
    %5285 = vmatpush1.bf16.xpose.msra.mxu0 0
    %5286 = vmatprep.subr.bf16.mxu0 0
    %5287 = vmatpush1.bf16.xpose.msra.mxu0 0
    %5288 = vmatprep.subr.bf16.mxu0 0
    %5289 = vmatpush1.bf16.xpose.msra.mxu0 0
    %5290 = vmatprep.mubr.bf16.mxu0 0
    %5291 = vmatmul.mubr.bf16.gmra.mrb[0].mxu0 %v5253
    %v5292 = vpop.f32.mrb[0].mxu0
    %v5293 = vadd.f32 0.0, %v5292
    %v5294 = vpop.f32.mrb[0].mxu0
    %v5295 = vpop.f32.mrb[0].mxu0
    %v5296 = vpop.f32.mrb[0].mxu0
    %5297 = vdwg.mxu0
    %5299 = vrot.lane.b32.xlu0 %v4956, 96
    %v5300 = vpop.permute.xlu0 %5299
    %v5303 = vunpack.c.l.b16 %v4970
    %v5304 = vunpack.c.l.b16 %v4971
    %v5305 = vpack.c.b16 %v5304, %v5303
    %v5307 = vsel %vm216, %v5300, 0
    %v5310 = vsel %vm216, %v5305, 0
    %5312 = vmatprep.subr.bf16.mxu0 0
    %5313 = vmatpush1.bf16.xpose.msra.mxu0 %v5310
    %5314 = vmatprep.subr.bf16.mxu0 0
    %5315 = vmatpush1.bf16.xpose.msra.mxu0 0
    %5316 = vmatprep.subr.bf16.mxu0 0
    %5317 = vmatpush1.bf16.xpose.msra.mxu0 0
    %5318 = vmatprep.subr.bf16.mxu0 0
    %5319 = vmatpush1.bf16.xpose.msra.mxu0 0
    %5320 = vmatprep.subr.bf16.mxu0 0
    %5321 = vmatpush1.bf16.xpose.msra.mxu0 0
    %5322 = vmatprep.subr.bf16.mxu0 0
    %5323 = vmatpush1.bf16.xpose.msra.mxu0 0
    %5324 = vmatprep.subr.bf16.mxu0 0
    %5325 = vmatpush1.bf16.xpose.msra.mxu0 0
    %5326 = vmatprep.subr.bf16.mxu0 0
    %5327 = vmatpush1.bf16.xpose.msra.mxu0 0
    %5328 = vmatprep.subr.bf16.mxu0 0
    %5329 = vmatpush1.bf16.xpose.msra.mxu0 0
    %5330 = vmatprep.subr.bf16.mxu0 0
    %5331 = vmatpush1.bf16.xpose.msra.mxu0 0
    %5332 = vmatprep.subr.bf16.mxu0 0
    %5333 = vmatpush1.bf16.xpose.msra.mxu0 0
    %5334 = vmatprep.subr.bf16.mxu0 0
    %5335 = vmatpush1.bf16.xpose.msra.mxu0 0
    %5336 = vmatprep.subr.bf16.mxu0 0
    %5337 = vmatpush1.bf16.xpose.msra.mxu0 0
    %5338 = vmatprep.subr.bf16.mxu0 0
    %5339 = vmatpush1.bf16.xpose.msra.mxu0 0
    %5340 = vmatprep.subr.bf16.mxu0 0
    %5341 = vmatpush1.bf16.xpose.msra.mxu0 0
    %5342 = vmatprep.subr.bf16.mxu0 0
    %5343 = vmatpush1.bf16.xpose.msra.mxu0 0
    %5344 = vmatprep.mubr.bf16.mxu0 0
    %5345 = vmatmul.mubr.bf16.gmra.mrb[0].mxu0 %v5307
    %v5346 = vpop.f32.mrb[0].mxu0
    %v5347 = vadd.f32 0.0, %v5346
    %v5348 = vpop.f32.mrb[0].mxu0
    %v5349 = vpop.f32.mrb[0].mxu0
    %v5350 = vpop.f32.mrb[0].mxu0
    %5351 = vdwg.mxu0
    %5353 = vrot.lane.b32.xlu0 %v4957, 96
    %v5354 = vpop.permute.xlu0 %5353
    %v5357 = vunpack.c.l.b16 %v4972
    %v5358 = vunpack.c.l.b16 %v4973
    %v5359 = vpack.c.b16 %v5358, %v5357
    %v5361 = vsel %vm216, %v5354, 0
    %v5364 = vsel %vm216, %v5359, 0
    %5366 = vmatprep.subr.bf16.mxu0 0
    %5367 = vmatpush1.bf16.xpose.msra.mxu0 %v5364
    %5368 = vmatprep.subr.bf16.mxu0 0
    %5369 = vmatpush1.bf16.xpose.msra.mxu0 0
    %5370 = vmatprep.subr.bf16.mxu0 0
    %5371 = vmatpush1.bf16.xpose.msra.mxu0 0
    %5372 = vmatprep.subr.bf16.mxu0 0
    %5373 = vmatpush1.bf16.xpose.msra.mxu0 0
    %5374 = vmatprep.subr.bf16.mxu0 0
    %5375 = vmatpush1.bf16.xpose.msra.mxu0 0
    %5376 = vmatprep.subr.bf16.mxu0 0
    %5377 = vmatpush1.bf16.xpose.msra.mxu0 0
    %5378 = vmatprep.subr.bf16.mxu0 0
    %5379 = vmatpush1.bf16.xpose.msra.mxu0 0
    %5380 = vmatprep.subr.bf16.mxu0 0
    %5381 = vmatpush1.bf16.xpose.msra.mxu0 0
    %5382 = vmatprep.subr.bf16.mxu0 0
    %5383 = vmatpush1.bf16.xpose.msra.mxu0 0
    %5384 = vmatprep.subr.bf16.mxu0 0
    %5385 = vmatpush1.bf16.xpose.msra.mxu0 0
    %5386 = vmatprep.subr.bf16.mxu0 0
    %5387 = vmatpush1.bf16.xpose.msra.mxu0 0
    %5388 = vmatprep.subr.bf16.mxu0 0
    %5389 = vmatpush1.bf16.xpose.msra.mxu0 0
    %5390 = vmatprep.subr.bf16.mxu0 0
    %5391 = vmatpush1.bf16.xpose.msra.mxu0 0
    %5392 = vmatprep.subr.bf16.mxu0 0
    %5393 = vmatpush1.bf16.xpose.msra.mxu0 0
    %5394 = vmatprep.subr.bf16.mxu0 0
    %5395 = vmatpush1.bf16.xpose.msra.mxu0 0
    %5396 = vmatprep.subr.bf16.mxu0 0
    %5397 = vmatpush1.bf16.xpose.msra.mxu0 0
    %5398 = vmatprep.mubr.bf16.mxu0 0
    %5399 = vmatmul.mubr.bf16.gmra.mrb[0].mxu0 %v5361
    %v5400 = vpop.f32.mrb[0].mxu0
    %v5401 = vadd.f32 0.0, %v5400
    %v5402 = vpop.f32.mrb[0].mxu0
    %v5403 = vpop.f32.mrb[0].mxu0
    %v5404 = vpop.f32.mrb[0].mxu0
    %5405 = vdwg.mxu0
    %vm5406 = vcmask 123904
    %v5407 = vsel %vm5406, %v5023, -inf
    %5408 = vmax.xlane.f32.xlu0 %v5407
    %v5409 = vpop.xlane.xlu0 %5408
    %v5410 = vsel %vm5406, %v5077, -inf
    %5411 = vmax.xlane.f32.xlu0 %v5410
    %v5412 = vpop.xlane.xlu0 %5411
    %v5413 = vsel %vm5406, %v5131, -inf
    %5414 = vmax.xlane.f32.xlu0 %v5413
    %v5415 = vpop.xlane.xlu0 %5414
    %v5416 = vsel %vm5406, %v5185, -inf
    %5417 = vmax.xlane.f32.xlu0 %v5416
    %v5418 = vpop.xlane.xlu0 %5417
    %v5419 = vsel %vm5406, %v5239, -inf
    %5420 = vmax.xlane.f32.xlu0 %v5419
    %v5421 = vpop.xlane.xlu0 %5420
    %v5422 = vsel %vm5406, %v5293, -inf
    %5423 = vmax.xlane.f32.xlu0 %v5422
    %v5424 = vpop.xlane.xlu0 %5423
    %v5425 = vsel %vm5406, %v5347, -inf
    %5426 = vmax.xlane.f32.xlu0 %v5425
    %v5427 = vpop.xlane.xlu0 %5426
    %v5428 = vsel %vm5406, %v5401, -inf
    %5429 = vmax.xlane.f32.xlu0 %v5428
    %v5430 = vpop.xlane.xlu0 %5429
    %v5431 = vsub.f32 %v5023, %v5409
    %v5432 = vsub.f32 %v5077, %v5412
    %v5433 = vsub.f32 %v5131, %v5415
    %v5434 = vsub.f32 %v5185, %v5418
    %v5435 = vsub.f32 %v5239, %v5421
    %v5436 = vsub.f32 %v5293, %v5424
    %v5437 = vsub.f32 %v5347, %v5427
    %v5438 = vsub.f32 %v5401, %v5430
    %v5439 = vmul.f32 %v5431, 1.442695
    %v5440 = vpow.pop %v5439
    %v5441 = vmul.f32 %v5432, 1.442695
    %v5442 = vpow.pop %v5441
    %v5443 = vmul.f32 %v5433, 1.442695
    %v5444 = vpow.pop %v5443
    %v5445 = vmul.f32 %v5434, 1.442695
    %v5446 = vpow.pop %v5445
    %v5447 = vmul.f32 %v5435, 1.442695
    %v5448 = vpow.pop %v5447
    %v5449 = vmul.f32 %v5436, 1.442695
    %v5450 = vpow.pop %v5449
    %v5451 = vmul.f32 %v5437, 1.442695
    %v5452 = vpow.pop %v5451
    %v5453 = vmul.f32 %v5438, 1.442695
    %v5454 = vpow.pop %v5453
    %v5455 = vsel %vm5406, %v5440, 0.0
    %5456 = vadd.xlane.f32.xlu0 %v5455
    %v5457 = vpop.xlane.xlu0 %5456
    %v5458 = vsel %vm5406, %v5442, 0.0
    %5459 = vadd.xlane.f32.xlu0 %v5458
    %v5460 = vpop.xlane.xlu0 %5459
    %v5461 = vsel %vm5406, %v5444, 0.0
    %5462 = vadd.xlane.f32.xlu0 %v5461
    %v5463 = vpop.xlane.xlu0 %5462
    %v5464 = vsel %vm5406, %v5446, 0.0
    %5465 = vadd.xlane.f32.xlu0 %v5464
    %v5466 = vpop.xlane.xlu0 %5465
    %v5467 = vsel %vm5406, %v5448, 0.0
    %5468 = vadd.xlane.f32.xlu0 %v5467
    %v5469 = vpop.xlane.xlu0 %5468
    %v5470 = vsel %vm5406, %v5450, 0.0
    %5471 = vadd.xlane.f32.xlu0 %v5470
    %v5472 = vpop.xlane.xlu0 %5471
    %v5473 = vsel %vm5406, %v5452, 0.0
    %5474 = vadd.xlane.f32.xlu0 %v5473
    %v5475 = vpop.xlane.xlu0 %5474
    %v5476 = vsel %vm5406, %v5454, 0.0
    %5477 = vadd.xlane.f32.xlu0 %v5476
    %v5478 = vpop.xlane.xlu0 %5477
    %v5479 = vrcp.pop %v5457
    %v5480 = vmul.f32 %v5440, %v5479
    %v5481 = vrcp.pop %v5460
    %v5482 = vmul.f32 %v5442, %v5481
    %v5483 = vrcp.pop %v5463
    %v5484 = vmul.f32 %v5444, %v5483
    %v5485 = vrcp.pop %v5466
    %v5486 = vmul.f32 %v5446, %v5485
    %v5487 = vrcp.pop %v5469
    %v5488 = vmul.f32 %v5448, %v5487
    %v5489 = vrcp.pop %v5472
    %v5490 = vmul.f32 %v5450, %v5489
    %v5491 = vrcp.pop %v5475
    %v5492 = vmul.f32 %v5452, %v5491
    %v5493 = vrcp.pop %v5478
    %v5494 = vmul.f32 %v5454, %v5493
    %v5495 = vld [vmem:[%s10] sm:$0xff]
    %v5496 = vld [vmem:[%s10 + $0x8] sm:$0xff]
    %v5497 = vld [vmem:[%s10 + $0x10] sm:$0xff]
    %v5498 = vld [vmem:[%s10 + $0x18] sm:$0xff]
    %v5499 = vld [vmem:[%s10 + $0x20] sm:$0xff]
    %v5500 = vld [vmem:[%s10 + $0x28] sm:$0xff]
    %v5501 = vld [vmem:[%s10 + $0x30] sm:$0xff]
    %v5502 = vld [vmem:[%s10 + $0x38] sm:$0xff]
    %v5503 = vld [vmem:[%s10 + $0x40] sm:$0xff]
    %v5504 = vld [vmem:[%s10 + $0x48] sm:$0xff]
    %v5505 = vld [vmem:[%s10 + $0x50] sm:$0xff]
    %v5506 = vld [vmem:[%s10 + $0x58] sm:$0xff]
    %v5507 = vld [vmem:[%s10 + $0x60] sm:$0xff]
    %v5508 = vld [vmem:[%s10 + $0x68] sm:$0xff]
    %v5509 = vld [vmem:[%s10 + $0x70] sm:$0xff]
    %v5510 = vld [vmem:[%s10 + $0x78] sm:$0xff]
    %vm5511 = vcmask 130048
    %v5513 = vsel %vm5511, %v5480, 0
    %5515 = vmatprep.subr.mxu0 0.0
    %5516 = vmatpush1.msra.mxu0 %v5495
    %5517 = vmatprep.subr.mxu0 0.0
    %5518 = vmatpush1.msra.mxu0 %v5496
    %5519 = vmatprep.subr.mxu0 0.0
    %5520 = vmatpush1.msra.mxu0 0.0
    %5521 = vmatprep.subr.mxu0 0.0
    %5522 = vmatpush1.msra.mxu0 0.0
    %5523 = vmatprep.subr.mxu0 0.0
    %5524 = vmatpush1.msra.mxu0 0.0
    %5525 = vmatprep.subr.mxu0 0.0
    %5526 = vmatpush1.msra.mxu0 0.0
    %5527 = vmatprep.subr.mxu0 0.0
    %5528 = vmatpush1.msra.mxu0 0.0
    %5529 = vmatprep.subr.mxu0 0.0
    %5530 = vmatpush1.msra.mxu0 0.0
    %5531 = vmatprep.subr.mxu0 0.0
    %5532 = vmatpush1.msra.mxu0 0.0
    %5533 = vmatprep.subr.mxu0 0.0
    %5534 = vmatpush1.msra.mxu0 0.0
    %5535 = vmatprep.subr.mxu0 0.0
    %5536 = vmatpush1.msra.mxu0 0.0
    %5537 = vmatprep.subr.mxu0 0.0
    %5538 = vmatpush1.msra.mxu0 0.0
    %5539 = vmatprep.subr.mxu0 0.0
    %5540 = vmatpush1.msra.mxu0 0.0
    %5541 = vmatprep.subr.mxu0 0.0
    %5542 = vmatpush1.msra.mxu0 0.0
    %5543 = vmatprep.subr.mxu0 0.0
    %5544 = vmatpush1.msra.mxu0 0.0
    %5545 = vmatprep.subr.mxu0 0.0
    %5546 = vmatpush1.msra.mxu0 0.0
    %5547 = vmatprep.subr.mxu0 0.0
    %5548 = vmatpush1.msra.mxu0 0.0
    %5549 = vmatprep.subr.mxu0 0.0
    %5550 = vmatpush1.msra.mxu0 0.0
    %5551 = vmatprep.subr.mxu0 0.0
    %5552 = vmatpush1.msra.mxu0 0.0
    %5553 = vmatprep.subr.mxu0 0.0
    %5554 = vmatpush1.msra.mxu0 0.0
    %5555 = vmatprep.subr.mxu0 0.0
    %5556 = vmatpush1.msra.mxu0 0.0
    %5557 = vmatprep.subr.mxu0 0.0
    %5558 = vmatpush1.msra.mxu0 0.0
    %5559 = vmatprep.subr.mxu0 0.0
    %5560 = vmatpush1.msra.mxu0 0.0
    %5561 = vmatprep.subr.mxu0 0.0
    %5562 = vmatpush1.msra.mxu0 0.0
    %5563 = vmatprep.subr.mxu0 0.0
    %5564 = vmatpush1.msra.mxu0 0.0
    %5565 = vmatprep.subr.mxu0 0.0
    %5566 = vmatpush1.msra.mxu0 0.0
    %5567 = vmatprep.subr.mxu0 0.0
    %5568 = vmatpush1.msra.mxu0 0.0
    %5569 = vmatprep.subr.mxu0 0.0
    %5570 = vmatpush1.msra.mxu0 0.0
    %5571 = vmatprep.subr.mxu0 0.0
    %5572 = vmatpush1.msra.mxu0 0.0
    %5573 = vmatprep.subr.mxu0 0.0
    %5574 = vmatpush1.msra.mxu0 0.0
    %5575 = vmatprep.subr.mxu0 0.0
    %5576 = vmatpush1.msra.mxu0 0.0
    %5577 = vmatprep.subr.mxu0 0.0
    %5578 = vmatpush1.msra.mxu0 0.0
    %5579 = vmatprep.mubr.f32.mxu0 0.0
    %5580 = vmatmul.mubr.f32.gmra.mrb[0].mxu0 %v5513
    %v5581 = vpop.f32.mrb[0].mxu0
    %v5582 = vadd.f32 0.0, %v5581
    %v5583 = vpop.f32.mrb[0].mxu0
    %5584 = vdwg.mxu0
    %v5586 = vsel %vm5511, %v5482, 0
    %5588 = vmatprep.subr.mxu0 0.0
    %5589 = vmatpush1.msra.mxu0 %v5497
    %5590 = vmatprep.subr.mxu0 0.0
    %5591 = vmatpush1.msra.mxu0 %v5498
    %5592 = vmatprep.subr.mxu0 0.0
    %5593 = vmatpush1.msra.mxu0 0.0
    %5594 = vmatprep.subr.mxu0 0.0
    %5595 = vmatpush1.msra.mxu0 0.0
    %5596 = vmatprep.subr.mxu0 0.0
    %5597 = vmatpush1.msra.mxu0 0.0
    %5598 = vmatprep.subr.mxu0 0.0
    %5599 = vmatpush1.msra.mxu0 0.0
    %5600 = vmatprep.subr.mxu0 0.0
    %5601 = vmatpush1.msra.mxu0 0.0
    %5602 = vmatprep.subr.mxu0 0.0
    %5603 = vmatpush1.msra.mxu0 0.0
    %5604 = vmatprep.subr.mxu0 0.0
    %5605 = vmatpush1.msra.mxu0 0.0
    %5606 = vmatprep.subr.mxu0 0.0
    %5607 = vmatpush1.msra.mxu0 0.0
    %5608 = vmatprep.subr.mxu0 0.0
    %5609 = vmatpush1.msra.mxu0 0.0
    %5610 = vmatprep.subr.mxu0 0.0
    %5611 = vmatpush1.msra.mxu0 0.0
    %5612 = vmatprep.subr.mxu0 0.0
    %5613 = vmatpush1.msra.mxu0 0.0
    %5614 = vmatprep.subr.mxu0 0.0
    %5615 = vmatpush1.msra.mxu0 0.0
    %5616 = vmatprep.subr.mxu0 0.0
    %5617 = vmatpush1.msra.mxu0 0.0
    %5618 = vmatprep.subr.mxu0 0.0
    %5619 = vmatpush1.msra.mxu0 0.0
    %5620 = vmatprep.subr.mxu0 0.0
    %5621 = vmatpush1.msra.mxu0 0.0
    %5622 = vmatprep.subr.mxu0 0.0
    %5623 = vmatpush1.msra.mxu0 0.0
    %5624 = vmatprep.subr.mxu0 0.0
    %5625 = vmatpush1.msra.mxu0 0.0
    %5626 = vmatprep.subr.mxu0 0.0
    %5627 = vmatpush1.msra.mxu0 0.0
    %5628 = vmatprep.subr.mxu0 0.0
    %5629 = vmatpush1.msra.mxu0 0.0
    %5630 = vmatprep.subr.mxu0 0.0
    %5631 = vmatpush1.msra.mxu0 0.0
    %5632 = vmatprep.subr.mxu0 0.0
    %5633 = vmatpush1.msra.mxu0 0.0
    %5634 = vmatprep.subr.mxu0 0.0
    %5635 = vmatpush1.msra.mxu0 0.0
    %5636 = vmatprep.subr.mxu0 0.0
    %5637 = vmatpush1.msra.mxu0 0.0
    %5638 = vmatprep.subr.mxu0 0.0
    %5639 = vmatpush1.msra.mxu0 0.0
    %5640 = vmatprep.subr.mxu0 0.0
    %5641 = vmatpush1.msra.mxu0 0.0
    %5642 = vmatprep.subr.mxu0 0.0
    %5643 = vmatpush1.msra.mxu0 0.0
    %5644 = vmatprep.subr.mxu0 0.0
    %5645 = vmatpush1.msra.mxu0 0.0
    %5646 = vmatprep.subr.mxu0 0.0
    %5647 = vmatpush1.msra.mxu0 0.0
    %5648 = vmatprep.subr.mxu0 0.0
    %5649 = vmatpush1.msra.mxu0 0.0
    %5650 = vmatprep.subr.mxu0 0.0
    %5651 = vmatpush1.msra.mxu0 0.0
    %5652 = vmatprep.mubr.f32.mxu0 0.0
    %5653 = vmatmul.mubr.f32.gmra.mrb[0].mxu0 %v5586
    %v5654 = vpop.f32.mrb[0].mxu0
    %v5655 = vadd.f32 0.0, %v5654
    %v5656 = vpop.f32.mrb[0].mxu0
    %5657 = vdwg.mxu0
    %v5659 = vsel %vm5511, %v5484, 0
    %5661 = vmatprep.subr.mxu0 0.0
    %5662 = vmatpush1.msra.mxu0 %v5499
    %5663 = vmatprep.subr.mxu0 0.0
    %5664 = vmatpush1.msra.mxu0 %v5500
    %5665 = vmatprep.subr.mxu0 0.0
    %5666 = vmatpush1.msra.mxu0 0.0
    %5667 = vmatprep.subr.mxu0 0.0
    %5668 = vmatpush1.msra.mxu0 0.0
    %5669 = vmatprep.subr.mxu0 0.0
    %5670 = vmatpush1.msra.mxu0 0.0
    %5671 = vmatprep.subr.mxu0 0.0
    %5672 = vmatpush1.msra.mxu0 0.0
    %5673 = vmatprep.subr.mxu0 0.0
    %5674 = vmatpush1.msra.mxu0 0.0
    %5675 = vmatprep.subr.mxu0 0.0
    %5676 = vmatpush1.msra.mxu0 0.0
    %5677 = vmatprep.subr.mxu0 0.0
    %5678 = vmatpush1.msra.mxu0 0.0
    %5679 = vmatprep.subr.mxu0 0.0
    %5680 = vmatpush1.msra.mxu0 0.0
    %5681 = vmatprep.subr.mxu0 0.0
    %5682 = vmatpush1.msra.mxu0 0.0
    %5683 = vmatprep.subr.mxu0 0.0
    %5684 = vmatpush1.msra.mxu0 0.0
    %5685 = vmatprep.subr.mxu0 0.0
    %5686 = vmatpush1.msra.mxu0 0.0
    %5687 = vmatprep.subr.mxu0 0.0
    %5688 = vmatpush1.msra.mxu0 0.0
    %5689 = vmatprep.subr.mxu0 0.0
    %5690 = vmatpush1.msra.mxu0 0.0
    %5691 = vmatprep.subr.mxu0 0.0
    %5692 = vmatpush1.msra.mxu0 0.0
    %5693 = vmatprep.subr.mxu0 0.0
    %5694 = vmatpush1.msra.mxu0 0.0
    %5695 = vmatprep.subr.mxu0 0.0
    %5696 = vmatpush1.msra.mxu0 0.0
    %5697 = vmatprep.subr.mxu0 0.0
    %5698 = vmatpush1.msra.mxu0 0.0
    %5699 = vmatprep.subr.mxu0 0.0
    %5700 = vmatpush1.msra.mxu0 0.0
    %5701 = vmatprep.subr.mxu0 0.0
    %5702 = vmatpush1.msra.mxu0 0.0
    %5703 = vmatprep.subr.mxu0 0.0
    %5704 = vmatpush1.msra.mxu0 0.0
    %5705 = vmatprep.subr.mxu0 0.0
    %5706 = vmatpush1.msra.mxu0 0.0
    %5707 = vmatprep.subr.mxu0 0.0
    %5708 = vmatpush1.msra.mxu0 0.0
    %5709 = vmatprep.subr.mxu0 0.0
    %5710 = vmatpush1.msra.mxu0 0.0
    %5711 = vmatprep.subr.mxu0 0.0
    %5712 = vmatpush1.msra.mxu0 0.0
    %5713 = vmatprep.subr.mxu0 0.0
    %5714 = vmatpush1.msra.mxu0 0.0
    %5715 = vmatprep.subr.mxu0 0.0
    %5716 = vmatpush1.msra.mxu0 0.0
    %5717 = vmatprep.subr.mxu0 0.0
    %5718 = vmatpush1.msra.mxu0 0.0
    %5719 = vmatprep.subr.mxu0 0.0
    %5720 = vmatpush1.msra.mxu0 0.0
    %5721 = vmatprep.subr.mxu0 0.0
    %5722 = vmatpush1.msra.mxu0 0.0
    %5723 = vmatprep.subr.mxu0 0.0
    %5724 = vmatpush1.msra.mxu0 0.0
    %5725 = vmatprep.mubr.f32.mxu0 0.0
    %5726 = vmatmul.mubr.f32.gmra.mrb[0].mxu0 %v5659
    %v5727 = vpop.f32.mrb[0].mxu0
    %v5728 = vadd.f32 0.0, %v5727
    %v5729 = vpop.f32.mrb[0].mxu0
    %5730 = vdwg.mxu0
    %v5732 = vsel %vm5511, %v5486, 0
    %5734 = vmatprep.subr.mxu0 0.0
    %5735 = vmatpush1.msra.mxu0 %v5501
    %5736 = vmatprep.subr.mxu0 0.0
    %5737 = vmatpush1.msra.mxu0 %v5502
    %5738 = vmatprep.subr.mxu0 0.0
    %5739 = vmatpush1.msra.mxu0 0.0
    %5740 = vmatprep.subr.mxu0 0.0
    %5741 = vmatpush1.msra.mxu0 0.0
    %5742 = vmatprep.subr.mxu0 0.0
    %5743 = vmatpush1.msra.mxu0 0.0
    %5744 = vmatprep.subr.mxu0 0.0
    %5745 = vmatpush1.msra.mxu0 0.0
    %5746 = vmatprep.subr.mxu0 0.0
    %5747 = vmatpush1.msra.mxu0 0.0
    %5748 = vmatprep.subr.mxu0 0.0
    %5749 = vmatpush1.msra.mxu0 0.0
    %5750 = vmatprep.subr.mxu0 0.0
    %5751 = vmatpush1.msra.mxu0 0.0
    %5752 = vmatprep.subr.mxu0 0.0
    %5753 = vmatpush1.msra.mxu0 0.0
    %5754 = vmatprep.subr.mxu0 0.0
    %5755 = vmatpush1.msra.mxu0 0.0
    %5756 = vmatprep.subr.mxu0 0.0
    %5757 = vmatpush1.msra.mxu0 0.0
    %5758 = vmatprep.subr.mxu0 0.0
    %5759 = vmatpush1.msra.mxu0 0.0
    %5760 = vmatprep.subr.mxu0 0.0
    %5761 = vmatpush1.msra.mxu0 0.0
    %5762 = vmatprep.subr.mxu0 0.0
    %5763 = vmatpush1.msra.mxu0 0.0
    %5764 = vmatprep.subr.mxu0 0.0
    %5765 = vmatpush1.msra.mxu0 0.0
    %5766 = vmatprep.subr.mxu0 0.0
    %5767 = vmatpush1.msra.mxu0 0.0
    %5768 = vmatprep.subr.mxu0 0.0
    %5769 = vmatpush1.msra.mxu0 0.0
    %5770 = vmatprep.subr.mxu0 0.0
    %5771 = vmatpush1.msra.mxu0 0.0
    %5772 = vmatprep.subr.mxu0 0.0
    %5773 = vmatpush1.msra.mxu0 0.0
    %5774 = vmatprep.subr.mxu0 0.0
    %5775 = vmatpush1.msra.mxu0 0.0
    %5776 = vmatprep.subr.mxu0 0.0
    %5777 = vmatpush1.msra.mxu0 0.0
    %5778 = vmatprep.subr.mxu0 0.0
    %5779 = vmatpush1.msra.mxu0 0.0
    %5780 = vmatprep.subr.mxu0 0.0
    %5781 = vmatpush1.msra.mxu0 0.0
    %5782 = vmatprep.subr.mxu0 0.0
    %5783 = vmatpush1.msra.mxu0 0.0
    %5784 = vmatprep.subr.mxu0 0.0
    %5785 = vmatpush1.msra.mxu0 0.0
    %5786 = vmatprep.subr.mxu0 0.0
    %5787 = vmatpush1.msra.mxu0 0.0
    %5788 = vmatprep.subr.mxu0 0.0
    %5789 = vmatpush1.msra.mxu0 0.0
    %5790 = vmatprep.subr.mxu0 0.0
    %5791 = vmatpush1.msra.mxu0 0.0
    %5792 = vmatprep.subr.mxu0 0.0
    %5793 = vmatpush1.msra.mxu0 0.0
    %5794 = vmatprep.subr.mxu0 0.0
    %5795 = vmatpush1.msra.mxu0 0.0
    %5796 = vmatprep.subr.mxu0 0.0
    %5797 = vmatpush1.msra.mxu0 0.0
    %5798 = vmatprep.mubr.f32.mxu0 0.0
    %5799 = vmatmul.mubr.f32.gmra.mrb[0].mxu0 %v5732
    %v5800 = vpop.f32.mrb[0].mxu0
    %v5801 = vadd.f32 0.0, %v5800
    %v5802 = vpop.f32.mrb[0].mxu0
    %5803 = vdwg.mxu0
    %v5805 = vsel %vm5511, %v5488, 0
    %5807 = vmatprep.subr.mxu0 0.0
    %5808 = vmatpush1.msra.mxu0 %v5503
    %5809 = vmatprep.subr.mxu0 0.0
    %5810 = vmatpush1.msra.mxu0 %v5504
    %5811 = vmatprep.subr.mxu0 0.0
    %5812 = vmatpush1.msra.mxu0 0.0
    %5813 = vmatprep.subr.mxu0 0.0
    %5814 = vmatpush1.msra.mxu0 0.0
    %5815 = vmatprep.subr.mxu0 0.0
    %5816 = vmatpush1.msra.mxu0 0.0
    %5817 = vmatprep.subr.mxu0 0.0
    %5818 = vmatpush1.msra.mxu0 0.0
    %5819 = vmatprep.subr.mxu0 0.0
    %5820 = vmatpush1.msra.mxu0 0.0
    %5821 = vmatprep.subr.mxu0 0.0
    %5822 = vmatpush1.msra.mxu0 0.0
    %5823 = vmatprep.subr.mxu0 0.0
    %5824 = vmatpush1.msra.mxu0 0.0
    %5825 = vmatprep.subr.mxu0 0.0
    %5826 = vmatpush1.msra.mxu0 0.0
    %5827 = vmatprep.subr.mxu0 0.0
    %5828 = vmatpush1.msra.mxu0 0.0
    %5829 = vmatprep.subr.mxu0 0.0
    %5830 = vmatpush1.msra.mxu0 0.0
    %5831 = vmatprep.subr.mxu0 0.0
    %5832 = vmatpush1.msra.mxu0 0.0
    %5833 = vmatprep.subr.mxu0 0.0
    %5834 = vmatpush1.msra.mxu0 0.0
    %5835 = vmatprep.subr.mxu0 0.0
    %5836 = vmatpush1.msra.mxu0 0.0
    %5837 = vmatprep.subr.mxu0 0.0
    %5838 = vmatpush1.msra.mxu0 0.0
    %5839 = vmatprep.subr.mxu0 0.0
    %5840 = vmatpush1.msra.mxu0 0.0
    %5841 = vmatprep.subr.mxu0 0.0
    %5842 = vmatpush1.msra.mxu0 0.0
    %5843 = vmatprep.subr.mxu0 0.0
    %5844 = vmatpush1.msra.mxu0 0.0
    %5845 = vmatprep.subr.mxu0 0.0
    %5846 = vmatpush1.msra.mxu0 0.0
    %5847 = vmatprep.subr.mxu0 0.0
    %5848 = vmatpush1.msra.mxu0 0.0
    %5849 = vmatprep.subr.mxu0 0.0
    %5850 = vmatpush1.msra.mxu0 0.0
    %5851 = vmatprep.subr.mxu0 0.0
    %5852 = vmatpush1.msra.mxu0 0.0
    %5853 = vmatprep.subr.mxu0 0.0
    %5854 = vmatpush1.msra.mxu0 0.0
    %5855 = vmatprep.subr.mxu0 0.0
    %5856 = vmatpush1.msra.mxu0 0.0
    %5857 = vmatprep.subr.mxu0 0.0
    %5858 = vmatpush1.msra.mxu0 0.0
    %5859 = vmatprep.subr.mxu0 0.0
    %5860 = vmatpush1.msra.mxu0 0.0
    %5861 = vmatprep.subr.mxu0 0.0
    %5862 = vmatpush1.msra.mxu0 0.0
    %5863 = vmatprep.subr.mxu0 0.0
    %5864 = vmatpush1.msra.mxu0 0.0
    %5865 = vmatprep.subr.mxu0 0.0
    %5866 = vmatpush1.msra.mxu0 0.0
    %5867 = vmatprep.subr.mxu0 0.0
    %5868 = vmatpush1.msra.mxu0 0.0
    %5869 = vmatprep.subr.mxu0 0.0
    %5870 = vmatpush1.msra.mxu0 0.0
    %5871 = vmatprep.mubr.f32.mxu0 0.0
    %5872 = vmatmul.mubr.f32.gmra.mrb[0].mxu0 %v5805
    %v5873 = vpop.f32.mrb[0].mxu0
    %v5874 = vadd.f32 0.0, %v5873
    %v5875 = vpop.f32.mrb[0].mxu0
    %5876 = vdwg.mxu0
    %v5878 = vsel %vm5511, %v5490, 0
    %5880 = vmatprep.subr.mxu0 0.0
    %5881 = vmatpush1.msra.mxu0 %v5505
    %5882 = vmatprep.subr.mxu0 0.0
    %5883 = vmatpush1.msra.mxu0 %v5506
    %5884 = vmatprep.subr.mxu0 0.0
    %5885 = vmatpush1.msra.mxu0 0.0
    %5886 = vmatprep.subr.mxu0 0.0
    %5887 = vmatpush1.msra.mxu0 0.0
    %5888 = vmatprep.subr.mxu0 0.0
    %5889 = vmatpush1.msra.mxu0 0.0
    %5890 = vmatprep.subr.mxu0 0.0
    %5891 = vmatpush1.msra.mxu0 0.0
    %5892 = vmatprep.subr.mxu0 0.0
    %5893 = vmatpush1.msra.mxu0 0.0
    %5894 = vmatprep.subr.mxu0 0.0
    %5895 = vmatpush1.msra.mxu0 0.0
    %5896 = vmatprep.subr.mxu0 0.0
    %5897 = vmatpush1.msra.mxu0 0.0
    %5898 = vmatprep.subr.mxu0 0.0
    %5899 = vmatpush1.msra.mxu0 0.0
    %5900 = vmatprep.subr.mxu0 0.0
    %5901 = vmatpush1.msra.mxu0 0.0
    %5902 = vmatprep.subr.mxu0 0.0
    %5903 = vmatpush1.msra.mxu0 0.0
    %5904 = vmatprep.subr.mxu0 0.0
    %5905 = vmatpush1.msra.mxu0 0.0
    %5906 = vmatprep.subr.mxu0 0.0
    %5907 = vmatpush1.msra.mxu0 0.0
    %5908 = vmatprep.subr.mxu0 0.0
    %5909 = vmatpush1.msra.mxu0 0.0
    %5910 = vmatprep.subr.mxu0 0.0
    %5911 = vmatpush1.msra.mxu0 0.0
    %5912 = vmatprep.subr.mxu0 0.0
    %5913 = vmatpush1.msra.mxu0 0.0
    %5914 = vmatprep.subr.mxu0 0.0
    %5915 = vmatpush1.msra.mxu0 0.0
    %5916 = vmatprep.subr.mxu0 0.0
    %5917 = vmatpush1.msra.mxu0 0.0
    %5918 = vmatprep.subr.mxu0 0.0
    %5919 = vmatpush1.msra.mxu0 0.0
    %5920 = vmatprep.subr.mxu0 0.0
    %5921 = vmatpush1.msra.mxu0 0.0
    %5922 = vmatprep.subr.mxu0 0.0
    %5923 = vmatpush1.msra.mxu0 0.0
    %5924 = vmatprep.subr.mxu0 0.0
    %5925 = vmatpush1.msra.mxu0 0.0
    %5926 = vmatprep.subr.mxu0 0.0
    %5927 = vmatpush1.msra.mxu0 0.0
    %5928 = vmatprep.subr.mxu0 0.0
    %5929 = vmatpush1.msra.mxu0 0.0
    %5930 = vmatprep.subr.mxu0 0.0
    %5931 = vmatpush1.msra.mxu0 0.0
    %5932 = vmatprep.subr.mxu0 0.0
    %5933 = vmatpush1.msra.mxu0 0.0
    %5934 = vmatprep.subr.mxu0 0.0
    %5935 = vmatpush1.msra.mxu0 0.0
    %5936 = vmatprep.subr.mxu0 0.0
    %5937 = vmatpush1.msra.mxu0 0.0
    %5938 = vmatprep.subr.mxu0 0.0
    %5939 = vmatpush1.msra.mxu0 0.0
    %5940 = vmatprep.subr.mxu0 0.0
    %5941 = vmatpush1.msra.mxu0 0.0
    %5942 = vmatprep.subr.mxu0 0.0
    %5943 = vmatpush1.msra.mxu0 0.0
    %5944 = vmatprep.mubr.f32.mxu0 0.0
    %5945 = vmatmul.mubr.f32.gmra.mrb[0].mxu0 %v5878
    %v5946 = vpop.f32.mrb[0].mxu0
    %v5947 = vadd.f32 0.0, %v5946
    %v5948 = vpop.f32.mrb[0].mxu0
    %5949 = vdwg.mxu0
    %v5951 = vsel %vm5511, %v5492, 0
    %5953 = vmatprep.subr.mxu0 0.0
    %5954 = vmatpush1.msra.mxu0 %v5507
    %5955 = vmatprep.subr.mxu0 0.0
    %5956 = vmatpush1.msra.mxu0 %v5508
    %5957 = vmatprep.subr.mxu0 0.0
    %5958 = vmatpush1.msra.mxu0 0.0
    %5959 = vmatprep.subr.mxu0 0.0
    %5960 = vmatpush1.msra.mxu0 0.0
    %5961 = vmatprep.subr.mxu0 0.0
    %5962 = vmatpush1.msra.mxu0 0.0
    %5963 = vmatprep.subr.mxu0 0.0
    %5964 = vmatpush1.msra.mxu0 0.0
    %5965 = vmatprep.subr.mxu0 0.0
    %5966 = vmatpush1.msra.mxu0 0.0
    %5967 = vmatprep.subr.mxu0 0.0
    %5968 = vmatpush1.msra.mxu0 0.0
    %5969 = vmatprep.subr.mxu0 0.0
    %5970 = vmatpush1.msra.mxu0 0.0
    %5971 = vmatprep.subr.mxu0 0.0
    %5972 = vmatpush1.msra.mxu0 0.0
    %5973 = vmatprep.subr.mxu0 0.0
    %5974 = vmatpush1.msra.mxu0 0.0
    %5975 = vmatprep.subr.mxu0 0.0
    %5976 = vmatpush1.msra.mxu0 0.0
    %5977 = vmatprep.subr.mxu0 0.0
    %5978 = vmatpush1.msra.mxu0 0.0
    %5979 = vmatprep.subr.mxu0 0.0
    %5980 = vmatpush1.msra.mxu0 0.0
    %5981 = vmatprep.subr.mxu0 0.0
    %5982 = vmatpush1.msra.mxu0 0.0
    %5983 = vmatprep.subr.mxu0 0.0
    %5984 = vmatpush1.msra.mxu0 0.0
    %5985 = vmatprep.subr.mxu0 0.0
    %5986 = vmatpush1.msra.mxu0 0.0
    %5987 = vmatprep.subr.mxu0 0.0
    %5988 = vmatpush1.msra.mxu0 0.0
    %5989 = vmatprep.subr.mxu0 0.0
    %5990 = vmatpush1.msra.mxu0 0.0
    %5991 = vmatprep.subr.mxu0 0.0
    %5992 = vmatpush1.msra.mxu0 0.0
    %5993 = vmatprep.subr.mxu0 0.0
    %5994 = vmatpush1.msra.mxu0 0.0
    %5995 = vmatprep.subr.mxu0 0.0
    %5996 = vmatpush1.msra.mxu0 0.0
    %5997 = vmatprep.subr.mxu0 0.0
    %5998 = vmatpush1.msra.mxu0 0.0
    %5999 = vmatprep.subr.mxu0 0.0
    %6000 = vmatpush1.msra.mxu0 0.0
    %6001 = vmatprep.subr.mxu0 0.0
    %6002 = vmatpush1.msra.mxu0 0.0
    %6003 = vmatprep.subr.mxu0 0.0
    %6004 = vmatpush1.msra.mxu0 0.0
    %6005 = vmatprep.subr.mxu0 0.0
    %6006 = vmatpush1.msra.mxu0 0.0
    %6007 = vmatprep.subr.mxu0 0.0
    %6008 = vmatpush1.msra.mxu0 0.0
    %6009 = vmatprep.subr.mxu0 0.0
    %6010 = vmatpush1.msra.mxu0 0.0
    %6011 = vmatprep.subr.mxu0 0.0
    %6012 = vmatpush1.msra.mxu0 0.0
    %6013 = vmatprep.subr.mxu0 0.0
    %6014 = vmatpush1.msra.mxu0 0.0
    %6015 = vmatprep.subr.mxu0 0.0
    %6016 = vmatpush1.msra.mxu0 0.0
    %6017 = vmatprep.mubr.f32.mxu0 0.0
    %6018 = vmatmul.mubr.f32.gmra.mrb[0].mxu0 %v5951
    %v6019 = vpop.f32.mrb[0].mxu0
    %v6020 = vadd.f32 0.0, %v6019
    %v6021 = vpop.f32.mrb[0].mxu0
    %6022 = vdwg.mxu0
    %v6024 = vsel %vm5511, %v5494, 0
    %6026 = vmatprep.subr.mxu0 0.0
    %6027 = vmatpush1.msra.mxu0 %v5509
    %6028 = vmatprep.subr.mxu0 0.0
    %6029 = vmatpush1.msra.mxu0 %v5510
    %6030 = vmatprep.subr.mxu0 0.0
    %6031 = vmatpush1.msra.mxu0 0.0
    %6032 = vmatprep.subr.mxu0 0.0
    %6033 = vmatpush1.msra.mxu0 0.0
    %6034 = vmatprep.subr.mxu0 0.0
    %6035 = vmatpush1.msra.mxu0 0.0
    %6036 = vmatprep.subr.mxu0 0.0
    %6037 = vmatpush1.msra.mxu0 0.0
    %6038 = vmatprep.subr.mxu0 0.0
    %6039 = vmatpush1.msra.mxu0 0.0
    %6040 = vmatprep.subr.mxu0 0.0
    %6041 = vmatpush1.msra.mxu0 0.0
    %6042 = vmatprep.subr.mxu0 0.0
    %6043 = vmatpush1.msra.mxu0 0.0
    %6044 = vmatprep.subr.mxu0 0.0
    %6045 = vmatpush1.msra.mxu0 0.0
    %6046 = vmatprep.subr.mxu0 0.0
    %6047 = vmatpush1.msra.mxu0 0.0
    %6048 = vmatprep.subr.mxu0 0.0
    %6049 = vmatpush1.msra.mxu0 0.0
    %6050 = vmatprep.subr.mxu0 0.0
    %6051 = vmatpush1.msra.mxu0 0.0
    %6052 = vmatprep.subr.mxu0 0.0
    %6053 = vmatpush1.msra.mxu0 0.0
    %6054 = vmatprep.subr.mxu0 0.0
    %6055 = vmatpush1.msra.mxu0 0.0
    %6056 = vmatprep.subr.mxu0 0.0
    %6057 = vmatpush1.msra.mxu0 0.0
    %6058 = vmatprep.subr.mxu0 0.0
    %6059 = vmatpush1.msra.mxu0 0.0
    %6060 = vmatprep.subr.mxu0 0.0
    %6061 = vmatpush1.msra.mxu0 0.0
    %6062 = vmatprep.subr.mxu0 0.0
    %6063 = vmatpush1.msra.mxu0 0.0
    %6064 = vmatprep.subr.mxu0 0.0
    %6065 = vmatpush1.msra.mxu0 0.0
    %6066 = vmatprep.subr.mxu0 0.0
    %6067 = vmatpush1.msra.mxu0 0.0
    %6068 = vmatprep.subr.mxu0 0.0
    %6069 = vmatpush1.msra.mxu0 0.0
    %6070 = vmatprep.subr.mxu0 0.0
    %6071 = vmatpush1.msra.mxu0 0.0
    %6072 = vmatprep.subr.mxu0 0.0
    %6073 = vmatpush1.msra.mxu0 0.0
    %6074 = vmatprep.subr.mxu0 0.0
    %6075 = vmatpush1.msra.mxu0 0.0
    %6076 = vmatprep.subr.mxu0 0.0
    %6077 = vmatpush1.msra.mxu0 0.0
    %6078 = vmatprep.subr.mxu0 0.0
    %6079 = vmatpush1.msra.mxu0 0.0
    %6080 = vmatprep.subr.mxu0 0.0
    %6081 = vmatpush1.msra.mxu0 0.0
    %6082 = vmatprep.subr.mxu0 0.0
    %6083 = vmatpush1.msra.mxu0 0.0
    %6084 = vmatprep.subr.mxu0 0.0
    %6085 = vmatpush1.msra.mxu0 0.0
    %6086 = vmatprep.subr.mxu0 0.0
    %6087 = vmatpush1.msra.mxu0 0.0
    %6088 = vmatprep.subr.mxu0 0.0
    %6089 = vmatpush1.msra.mxu0 0.0
    %6090 = vmatprep.mubr.f32.mxu0 0.0
    %6091 = vmatmul.mubr.f32.gmra.mrb[0].mxu0 %v6024
    %v6092 = vpop.f32.mrb[0].mxu0
    %v6093 = vadd.f32 0.0, %v6092
    %v6094 = vpop.f32.mrb[0].mxu0
    %6095 = vdwg.mxu0
    %v6104 = vcombine.low %v5582, %v5655
    %v6105 = vcombine.low %v5728, %v5801
    %v6107 = vunpack.c.l.s4 1983009808
    %v6108 = vunpack.c.0.s8 %v6107
    %v6109 = vlaneseq
    %v6110 = vshrl.u32 %v6109, 7
    %v6111 = vsub.s32 %v6108, %v6110
    %v6112 = vrot.slane %v6104, %v6111
    %v6114 = vunpack.c.l.s4 1983009808
    %v6115 = vunpack.c.0.s8 %v6114
    %v6116 = vlaneseq
    %v6117 = vshrl.u32 %v6116, 7
    %v6118 = vsub.s32 %v6115, %v6117
    %v6119 = vrot.slane %v6105, %v6118
    %v6120 = vcombine.low %v6112, %v6119
    %v6121 = vcombine.low %v5874, %v5947
    %v6122 = vcombine.low %v6020, %v6093
    %v6124 = vunpack.c.l.s4 1983009808
    %v6125 = vunpack.c.0.s8 %v6124
    %v6126 = vlaneseq
    %v6127 = vshrl.u32 %v6126, 7
    %v6128 = vsub.s32 %v6125, %v6127
    %v6129 = vrot.slane %v6121, %v6128
    %v6131 = vunpack.c.l.s4 1983009808
    %v6132 = vunpack.c.0.s8 %v6131
    %v6133 = vlaneseq
    %v6134 = vshrl.u32 %v6133, 7
    %v6135 = vsub.s32 %v6132, %v6134
    %v6136 = vrot.slane %v6122, %v6135
    %v6137 = vcombine.low %v6129, %v6136
    %vm6140 = vcmask 23552
    %6141 = vst.msk [vmem:[%s19] sm:$0xff] %vm6140, %v6120
    %6142 = vst.msk [vmem:[%s19 + $0x8] sm:$0xff] %vm6140, %v6137
    %v6143 = vld [vmem:[%s6] sm:$0xf]
    %v6144 = vld [vmem:[%s6 + $0x4] sm:$0xf]
    %v6145 = vld [vmem:[%s6 + $0x8] sm:$0xf]
    %v6146 = vld [vmem:[%s6 + $0xc] sm:$0xf]
    %v6147 = vld [vmem:[%s8] sm:$0x1]
    %v6149 = vlaneseq
    %v6150 = vshrl.u32 %v6149, 7
    %v6151 = vsub.s32 0, %v6150
    %v6152 = vrot.slane %v6147, %v6151
    %v6158 = vunpack.c.l.b16 %v6143
    %v6159 = vunpack.c.l.b16 %v6144
    %v6160 = vunpack.c.l.b16 %v6145
    %v6161 = vunpack.c.l.b16 %v6146
    %v6162 = vpack.c.b16 %v6159, %v6158
    %v6163 = vpack.c.b16 %v6161, %v6160
    %6166 = vmatprep.subr.bf16.mxu0 0
    %6167 = vmatpush1.bf16.msra.mxu0 %v6162
    %6168 = vmatprep.subr.bf16.mxu0 0
    %6169 = vmatpush1.bf16.msra.mxu0 %v6163
    %6170 = vmatprep.subr.bf16.mxu0 0
    %6171 = vmatpush1.bf16.msra.mxu0 0
    %6172 = vmatprep.subr.bf16.mxu0 0
    %6173 = vmatpush1.bf16.msra.mxu0 0
    %6174 = vmatprep.subr.bf16.mxu0 0
    %6175 = vmatpush1.bf16.msra.mxu0 0
    %6176 = vmatprep.subr.bf16.mxu0 0
    %6177 = vmatpush1.bf16.msra.mxu0 0
    %6178 = vmatprep.subr.bf16.mxu0 0
    %6179 = vmatpush1.bf16.msra.mxu0 0
    %6180 = vmatprep.subr.bf16.mxu0 0
    %6181 = vmatpush1.bf16.msra.mxu0 0
    %6182 = vmatprep.subr.bf16.mxu0 0
    %6183 = vmatpush1.bf16.msra.mxu0 0
    %6184 = vmatprep.subr.bf16.mxu0 0
    %6185 = vmatpush1.bf16.msra.mxu0 0
    %6186 = vmatprep.subr.bf16.mxu0 0
    %6187 = vmatpush1.bf16.msra.mxu0 0
    %6188 = vmatprep.subr.bf16.mxu0 0
    %6189 = vmatpush1.bf16.msra.mxu0 0
    %6190 = vmatprep.subr.bf16.mxu0 0
    %6191 = vmatpush1.bf16.msra.mxu0 0
    %6192 = vmatprep.subr.bf16.mxu0 0
    %6193 = vmatpush1.bf16.msra.mxu0 0
    %6194 = vmatprep.subr.bf16.mxu0 0
    %6195 = vmatpush1.bf16.msra.mxu0 0
    %6196 = vmatprep.subr.bf16.mxu0 0
    %6197 = vmatpush1.bf16.msra.mxu0 0
    %6198 = vmatprep.mubr.bf16.mxu0 0
    %6199 = vmatmul.mubr.bf16.gmra.mrb[0].mxu0 %v3295
    %v6200 = vpop.f32.mrb[0].mxu0
    %v6201 = vadd.f32 %v6152, %v6200
    %v6202 = vpop.f32.mrb[0].mxu0
    %v6203 = vpop.f32.mrb[0].mxu0
    %v6204 = vadd.f32 %v6152, %v6203
    %v6205 = vpop.f32.mrb[0].mxu0
    %6206 = vdwg.mxu0
    %v6209 = vcombine.high %v6201, %v6201
    %v6211 = vunpack.c.l.s4 1983009808
    %v6212 = vunpack.c.0.s8 %v6211
    %v6213 = vlaneseq
    %v6214 = vshrl.u32 %v6213, 7
    %v6215 = vsub.s32 %v6212, %v6214
    %v6216 = vrot.slane %v6201, %v6215
    %v6218 = vunpack.c.l.s4 1983009808
    %v6219 = vunpack.c.0.s8 %v6218
    %v6220 = vlaneseq
    %v6221 = vshrl.u32 %v6220, 7
    %v6222 = vsub.s32 %v6219, %v6221
    %v6223 = vrot.slane %v6209, %v6222
    %v6224 = vcombine.high %v6216, %v6216
    %v6225 = vcombine.high %v6223, %v6223
    %v6226 = vcombine.high %v6204, %v6204
    %v6228 = vunpack.c.l.s4 1983009808
    %v6229 = vunpack.c.0.s8 %v6228
    %v6230 = vlaneseq
    %v6231 = vshrl.u32 %v6230, 7
    %v6232 = vsub.s32 %v6229, %v6231
    %v6233 = vrot.slane %v6204, %v6232
    %v6235 = vunpack.c.l.s4 1983009808
    %v6236 = vunpack.c.0.s8 %v6235
    %v6237 = vlaneseq
    %v6238 = vshrl.u32 %v6237, 7
    %v6239 = vsub.s32 %v6236, %v6238
    %v6240 = vrot.slane %v6226, %v6239
    %v6241 = vcombine.high %v6233, %v6233
    %v6242 = vcombine.high %v6240, %v6240
    %v6251 = vld [vmem:[%s7] sm:$0xf]
    %v6252 = vld [vmem:[%s7 + $0x4] sm:$0xf]
    %v6253 = vld [vmem:[%s7 + $0x8] sm:$0xf]
    %v6254 = vld [vmem:[%s7 + $0xc] sm:$0xf]
    %v6255 = vpack.c.bf16 %v2522, %v2522
    %6257 = vrot.lane.b32.xlu0 %v6255, 32
    %v6258 = vpop.permute.xlu0 %6257
    %v6263 = vunpack.c.l.b16 %v6251
    %v6264 = vunpack.c.l.b16 %v6252
    %v6265 = vunpack.c.l.b16 %v6253
    %v6266 = vunpack.c.l.b16 %v6254
    %v6267 = vpack.c.b16 %v6264, %v6263
    %v6268 = vpack.c.b16 %v6266, %v6265
    %v6272 = vsel %vm216, %v6258, 0
    %6274 = vmatprep.subr.bf16.mxu0 0
    %6275 = vmatpush1.bf16.msra.mxu0 %v6267
    %6276 = vmatprep.subr.bf16.mxu0 0
    %6277 = vmatpush1.bf16.msra.mxu0 %v6268
    %6278 = vmatprep.subr.bf16.mxu0 0
    %6279 = vmatpush1.bf16.msra.mxu0 0
    %6280 = vmatprep.subr.bf16.mxu0 0
    %6281 = vmatpush1.bf16.msra.mxu0 0
    %6282 = vmatprep.subr.bf16.mxu0 0
    %6283 = vmatpush1.bf16.msra.mxu0 0
    %6284 = vmatprep.subr.bf16.mxu0 0
    %6285 = vmatpush1.bf16.msra.mxu0 0
    %6286 = vmatprep.subr.bf16.mxu0 0
    %6287 = vmatpush1.bf16.msra.mxu0 0
    %6288 = vmatprep.subr.bf16.mxu0 0
    %6289 = vmatpush1.bf16.msra.mxu0 0
    %6290 = vmatprep.subr.bf16.mxu0 0
    %6291 = vmatpush1.bf16.msra.mxu0 0
    %6292 = vmatprep.subr.bf16.mxu0 0
    %6293 = vmatpush1.bf16.msra.mxu0 0
    %6294 = vmatprep.subr.bf16.mxu0 0
    %6295 = vmatpush1.bf16.msra.mxu0 0
    %6296 = vmatprep.subr.bf16.mxu0 0
    %6297 = vmatpush1.bf16.msra.mxu0 0
    %6298 = vmatprep.subr.bf16.mxu0 0
    %6299 = vmatpush1.bf16.msra.mxu0 0
    %6300 = vmatprep.subr.bf16.mxu0 0
    %6301 = vmatpush1.bf16.msra.mxu0 0
    %6302 = vmatprep.subr.bf16.mxu0 0
    %6303 = vmatpush1.bf16.msra.mxu0 0
    %6304 = vmatprep.subr.bf16.mxu0 0
    %6305 = vmatpush1.bf16.msra.mxu0 0
    %6306 = vmatprep.mubr.bf16.mxu0 0
    %6307 = vmatmul.mubr.bf16.gmra.mrb[0].mxu0 %v6272
    %v6308 = vpop.f32.mrb[0].mxu0
    %v6309 = vadd.f32 0.0, %v6308
    %v6310 = vpop.f32.mrb[0].mxu0
    %v6311 = vpop.f32.mrb[0].mxu0
    %v6312 = vpop.f32.mrb[0].mxu0
    %6313 = vdwg.mxu0
    %v6314 = vadd.f32 %v6216, %v6309
    %v6315 = vxor.u32 %v6314, 2147483648
    %v6316 = vmul.f32 %v6315, 1.442695
    %v6317 = vpow.pop %v6316
    %v6318 = vadd.f32 %v6317, 1.0
    %v6319 = vrcp.pop %v6318
    %v6320 = vmul.f32 1.0, %v6319
    %v6321 = vtanh.pop %v6314
    %v6322 = vmul.f32 %v6320, %v2516
    %6324 = vrot.lane.b32.xlu0 %v6321, 64
    %v6325 = vpop.permute.xlu0 %6324
    %v6327 = vmul.f32 %v6320, %v6325
    %6329 = vrot.lane.b32.xlu0 %v6327, 32
    %v6330 = vpop.permute.xlu0 %6329
    %v6332 = vadd.f32 %v6322, %v6330
    %v6333 = vtanh.pop %v6332
    %6335 = vrot.lane.b32.xlu0 %v6333, 64
    %v6336 = vpop.permute.xlu0 %6335
    %v6338 = vmul.f32 %v6320, %v6336
    %v6339 = vpack.c.bf16 %v6338, %v6338
    %6341 = vrot.lane.b32.xlu0 %v6339, 32
    %v6342 = vpop.permute.xlu0 %6341
    %v6344 = vsel %vm216, %v6342, 0
    %6346 = vmatprep.subr.bf16.mxu0 0
    %6347 = vmatpush1.bf16.msra.mxu0 %v6267
    %6348 = vmatprep.subr.bf16.mxu0 0
    %6349 = vmatpush1.bf16.msra.mxu0 %v6268
    %6350 = vmatprep.subr.bf16.mxu0 0
    %6351 = vmatpush1.bf16.msra.mxu0 0
    %6352 = vmatprep.subr.bf16.mxu0 0
    %6353 = vmatpush1.bf16.msra.mxu0 0
    %6354 = vmatprep.subr.bf16.mxu0 0
    %6355 = vmatpush1.bf16.msra.mxu0 0
    %6356 = vmatprep.subr.bf16.mxu0 0
    %6357 = vmatpush1.bf16.msra.mxu0 0
    %6358 = vmatprep.subr.bf16.mxu0 0
    %6359 = vmatpush1.bf16.msra.mxu0 0
    %6360 = vmatprep.subr.bf16.mxu0 0
    %6361 = vmatpush1.bf16.msra.mxu0 0
    %6362 = vmatprep.subr.bf16.mxu0 0
    %6363 = vmatpush1.bf16.msra.mxu0 0
    %6364 = vmatprep.subr.bf16.mxu0 0
    %6365 = vmatpush1.bf16.msra.mxu0 0
    %6366 = vmatprep.subr.bf16.mxu0 0
    %6367 = vmatpush1.bf16.msra.mxu0 0
    %6368 = vmatprep.subr.bf16.mxu0 0
    %6369 = vmatpush1.bf16.msra.mxu0 0
    %6370 = vmatprep.subr.bf16.mxu0 0
    %6371 = vmatpush1.bf16.msra.mxu0 0
    %6372 = vmatprep.subr.bf16.mxu0 0
    %6373 = vmatpush1.bf16.msra.mxu0 0
    %6374 = vmatprep.subr.bf16.mxu0 0
    %6375 = vmatpush1.bf16.msra.mxu0 0
    %6376 = vmatprep.subr.bf16.mxu0 0
    %6377 = vmatpush1.bf16.msra.mxu0 0
    %6378 = vmatprep.mubr.bf16.mxu0 0
    %6379 = vmatmul.mubr.bf16.gmra.mrb[0].mxu0 %v6344
    %v6380 = vpop.f32.mrb[0].mxu0
    %v6381 = vadd.f32 0.0, %v6380
    %v6382 = vpop.f32.mrb[0].mxu0
    %v6383 = vpop.f32.mrb[0].mxu0
    %v6384 = vpop.f32.mrb[0].mxu0
    %6385 = vdwg.mxu0
    %v6386 = vadd.f32 %v6224, %v6381
    %v6387 = vxor.u32 %v6386, 2147483648
    %v6388 = vmul.f32 %v6387, 1.442695
    %v6389 = vpow.pop %v6388
    %v6390 = vadd.f32 %v6389, 1.0
    %v6391 = vrcp.pop %v6390
    %v6392 = vmul.f32 1.0, %v6391
    %v6393 = vtanh.pop %v6386
    %v6394 = vmul.f32 %v6392, %v6332
    %6396 = vrot.lane.b32.xlu0 %v6393, 64
    %v6397 = vpop.permute.xlu0 %6396
    %v6399 = vmul.f32 %v6392, %v6397
    %6401 = vrot.lane.b32.xlu0 %v6399, 32
    %v6402 = vpop.permute.xlu0 %6401
    %v6404 = vadd.f32 %v6394, %v6402
    %v6405 = vtanh.pop %v6404
    %6407 = vrot.lane.b32.xlu0 %v6405, 64
    %v6408 = vpop.permute.xlu0 %6407
    %v6410 = vmul.f32 %v6392, %v6408
    %v6411 = vpack.c.bf16 %v6410, %v6410
    %6413 = vrot.lane.b32.xlu0 %v6411, 32
    %v6414 = vpop.permute.xlu0 %6413
    %v6416 = vsel %vm216, %v6414, 0
    %6418 = vmatprep.subr.bf16.mxu0 0
    %6419 = vmatpush1.bf16.msra.mxu0 %v6267
    %6420 = vmatprep.subr.bf16.mxu0 0
    %6421 = vmatpush1.bf16.msra.mxu0 %v6268
    %6422 = vmatprep.subr.bf16.mxu0 0
    %6423 = vmatpush1.bf16.msra.mxu0 0
    %6424 = vmatprep.subr.bf16.mxu0 0
    %6425 = vmatpush1.bf16.msra.mxu0 0
    %6426 = vmatprep.subr.bf16.mxu0 0
    %6427 = vmatpush1.bf16.msra.mxu0 0
    %6428 = vmatprep.subr.bf16.mxu0 0
    %6429 = vmatpush1.bf16.msra.mxu0 0
    %6430 = vmatprep.subr.bf16.mxu0 0
    %6431 = vmatpush1.bf16.msra.mxu0 0
    %6432 = vmatprep.subr.bf16.mxu0 0
    %6433 = vmatpush1.bf16.msra.mxu0 0
    %6434 = vmatprep.subr.bf16.mxu0 0
    %6435 = vmatpush1.bf16.msra.mxu0 0
    %6436 = vmatprep.subr.bf16.mxu0 0
    %6437 = vmatpush1.bf16.msra.mxu0 0
    %6438 = vmatprep.subr.bf16.mxu0 0
    %6439 = vmatpush1.bf16.msra.mxu0 0
    %6440 = vmatprep.subr.bf16.mxu0 0
    %6441 = vmatpush1.bf16.msra.mxu0 0
    %6442 = vmatprep.subr.bf16.mxu0 0
    %6443 = vmatpush1.bf16.msra.mxu0 0
    %6444 = vmatprep.subr.bf16.mxu0 0
    %6445 = vmatpush1.bf16.msra.mxu0 0
    %6446 = vmatprep.subr.bf16.mxu0 0
    %6447 = vmatpush1.bf16.msra.mxu0 0
    %6448 = vmatprep.subr.bf16.mxu0 0
    %6449 = vmatpush1.bf16.msra.mxu0 0
    %6450 = vmatprep.mubr.bf16.mxu0 0
    %6451 = vmatmul.mubr.bf16.gmra.mrb[0].mxu0 %v6416
    %v6452 = vpop.f32.mrb[0].mxu0
    %v6453 = vadd.f32 0.0, %v6452
    %v6454 = vpop.f32.mrb[0].mxu0
    %v6455 = vpop.f32.mrb[0].mxu0
    %v6456 = vpop.f32.mrb[0].mxu0
    %6457 = vdwg.mxu0
    %v6458 = vadd.f32 %v6223, %v6453
    %v6459 = vxor.u32 %v6458, 2147483648
    %v6460 = vmul.f32 %v6459, 1.442695
    %v6461 = vpow.pop %v6460
    %v6462 = vadd.f32 %v6461, 1.0
    %v6463 = vrcp.pop %v6462
    %v6464 = vmul.f32 1.0, %v6463
    %v6465 = vtanh.pop %v6458
    %v6466 = vmul.f32 %v6464, %v6404
    %6468 = vrot.lane.b32.xlu0 %v6465, 64
    %v6469 = vpop.permute.xlu0 %6468
    %v6471 = vmul.f32 %v6464, %v6469
    %6473 = vrot.lane.b32.xlu0 %v6471, 32
    %v6474 = vpop.permute.xlu0 %6473
    %v6476 = vadd.f32 %v6466, %v6474
    %v6477 = vtanh.pop %v6476
    %6479 = vrot.lane.b32.xlu0 %v6477, 64
    %v6480 = vpop.permute.xlu0 %6479
    %v6482 = vmul.f32 %v6464, %v6480
    %v6483 = vpack.c.bf16 %v6482, %v6482
    %6485 = vrot.lane.b32.xlu0 %v6483, 32
    %v6486 = vpop.permute.xlu0 %6485
    %v6488 = vsel %vm216, %v6486, 0
    %6490 = vmatprep.subr.bf16.mxu0 0
    %6491 = vmatpush1.bf16.msra.mxu0 %v6267
    %6492 = vmatprep.subr.bf16.mxu0 0
    %6493 = vmatpush1.bf16.msra.mxu0 %v6268
    %6494 = vmatprep.subr.bf16.mxu0 0
    %6495 = vmatpush1.bf16.msra.mxu0 0
    %6496 = vmatprep.subr.bf16.mxu0 0
    %6497 = vmatpush1.bf16.msra.mxu0 0
    %6498 = vmatprep.subr.bf16.mxu0 0
    %6499 = vmatpush1.bf16.msra.mxu0 0
    %6500 = vmatprep.subr.bf16.mxu0 0
    %6501 = vmatpush1.bf16.msra.mxu0 0
    %6502 = vmatprep.subr.bf16.mxu0 0
    %6503 = vmatpush1.bf16.msra.mxu0 0
    %6504 = vmatprep.subr.bf16.mxu0 0
    %6505 = vmatpush1.bf16.msra.mxu0 0
    %6506 = vmatprep.subr.bf16.mxu0 0
    %6507 = vmatpush1.bf16.msra.mxu0 0
    %6508 = vmatprep.subr.bf16.mxu0 0
    %6509 = vmatpush1.bf16.msra.mxu0 0
    %6510 = vmatprep.subr.bf16.mxu0 0
    %6511 = vmatpush1.bf16.msra.mxu0 0
    %6512 = vmatprep.subr.bf16.mxu0 0
    %6513 = vmatpush1.bf16.msra.mxu0 0
    %6514 = vmatprep.subr.bf16.mxu0 0
    %6515 = vmatpush1.bf16.msra.mxu0 0
    %6516 = vmatprep.subr.bf16.mxu0 0
    %6517 = vmatpush1.bf16.msra.mxu0 0
    %6518 = vmatprep.subr.bf16.mxu0 0
    %6519 = vmatpush1.bf16.msra.mxu0 0
    %6520 = vmatprep.subr.bf16.mxu0 0
    %6521 = vmatpush1.bf16.msra.mxu0 0
    %6522 = vmatprep.mubr.bf16.mxu0 0
    %6523 = vmatmul.mubr.bf16.gmra.mrb[0].mxu0 %v6488
    %v6524 = vpop.f32.mrb[0].mxu0
    %v6525 = vadd.f32 0.0, %v6524
    %v6526 = vpop.f32.mrb[0].mxu0
    %v6527 = vpop.f32.mrb[0].mxu0
    %v6528 = vpop.f32.mrb[0].mxu0
    %6529 = vdwg.mxu0
    %v6530 = vadd.f32 %v6225, %v6525
    %v6531 = vxor.u32 %v6530, 2147483648
    %v6532 = vmul.f32 %v6531, 1.442695
    %v6533 = vpow.pop %v6532
    %v6534 = vadd.f32 %v6533, 1.0
    %v6535 = vrcp.pop %v6534
    %v6536 = vmul.f32 1.0, %v6535
    %v6537 = vtanh.pop %v6530
    %v6538 = vmul.f32 %v6536, %v6476
    %6540 = vrot.lane.b32.xlu0 %v6537, 64
    %v6541 = vpop.permute.xlu0 %6540
    %v6543 = vmul.f32 %v6536, %v6541
    %6545 = vrot.lane.b32.xlu0 %v6543, 32
    %v6546 = vpop.permute.xlu0 %6545
    %v6548 = vadd.f32 %v6538, %v6546
    %v6549 = vtanh.pop %v6548
    %6551 = vrot.lane.b32.xlu0 %v6549, 64
    %v6552 = vpop.permute.xlu0 %6551
    %v6554 = vmul.f32 %v6536, %v6552
    %v6555 = vpack.c.bf16 %v6554, %v6554
    %6557 = vrot.lane.b32.xlu0 %v6555, 32
    %v6558 = vpop.permute.xlu0 %6557
    %v6560 = vsel %vm216, %v6558, 0
    %6562 = vmatprep.subr.bf16.mxu0 0
    %6563 = vmatpush1.bf16.msra.mxu0 %v6267
    %6564 = vmatprep.subr.bf16.mxu0 0
    %6565 = vmatpush1.bf16.msra.mxu0 %v6268
    %6566 = vmatprep.subr.bf16.mxu0 0
    %6567 = vmatpush1.bf16.msra.mxu0 0
    %6568 = vmatprep.subr.bf16.mxu0 0
    %6569 = vmatpush1.bf16.msra.mxu0 0
    %6570 = vmatprep.subr.bf16.mxu0 0
    %6571 = vmatpush1.bf16.msra.mxu0 0
    %6572 = vmatprep.subr.bf16.mxu0 0
    %6573 = vmatpush1.bf16.msra.mxu0 0
    %6574 = vmatprep.subr.bf16.mxu0 0
    %6575 = vmatpush1.bf16.msra.mxu0 0
    %6576 = vmatprep.subr.bf16.mxu0 0
    %6577 = vmatpush1.bf16.msra.mxu0 0
    %6578 = vmatprep.subr.bf16.mxu0 0
    %6579 = vmatpush1.bf16.msra.mxu0 0
    %6580 = vmatprep.subr.bf16.mxu0 0
    %6581 = vmatpush1.bf16.msra.mxu0 0
    %6582 = vmatprep.subr.bf16.mxu0 0
    %6583 = vmatpush1.bf16.msra.mxu0 0
    %6584 = vmatprep.subr.bf16.mxu0 0
    %6585 = vmatpush1.bf16.msra.mxu0 0
    %6586 = vmatprep.subr.bf16.mxu0 0
    %6587 = vmatpush1.bf16.msra.mxu0 0
    %6588 = vmatprep.subr.bf16.mxu0 0
    %6589 = vmatpush1.bf16.msra.mxu0 0
    %6590 = vmatprep.subr.bf16.mxu0 0
    %6591 = vmatpush1.bf16.msra.mxu0 0
    %6592 = vmatprep.subr.bf16.mxu0 0
    %6593 = vmatpush1.bf16.msra.mxu0 0
    %6594 = vmatprep.mubr.bf16.mxu0 0
    %6595 = vmatmul.mubr.bf16.gmra.mrb[0].mxu0 %v6560
    %v6596 = vpop.f32.mrb[0].mxu0
    %v6597 = vadd.f32 0.0, %v6596
    %v6598 = vpop.f32.mrb[0].mxu0
    %v6599 = vpop.f32.mrb[0].mxu0
    %v6600 = vpop.f32.mrb[0].mxu0
    %6601 = vdwg.mxu0
    %v6602 = vadd.f32 %v6233, %v6597
    %v6603 = vxor.u32 %v6602, 2147483648
    %v6604 = vmul.f32 %v6603, 1.442695
    %v6605 = vpow.pop %v6604
    %v6606 = vadd.f32 %v6605, 1.0
    %v6607 = vrcp.pop %v6606
    %v6608 = vmul.f32 1.0, %v6607
    %v6609 = vtanh.pop %v6602
    %v6610 = vmul.f32 %v6608, %v6548
    %6612 = vrot.lane.b32.xlu0 %v6609, 64
    %v6613 = vpop.permute.xlu0 %6612
    %v6615 = vmul.f32 %v6608, %v6613
    %6617 = vrot.lane.b32.xlu0 %v6615, 32
    %v6618 = vpop.permute.xlu0 %6617
    %v6620 = vadd.f32 %v6610, %v6618
    %v6621 = vtanh.pop %v6620
    %6623 = vrot.lane.b32.xlu0 %v6621, 64
    %v6624 = vpop.permute.xlu0 %6623
    %v6626 = vmul.f32 %v6608, %v6624
    %v6627 = vpack.c.bf16 %v6626, %v6626
    %6629 = vrot.lane.b32.xlu0 %v6627, 32
    %v6630 = vpop.permute.xlu0 %6629
    %v6632 = vsel %vm216, %v6630, 0
    %6634 = vmatprep.subr.bf16.mxu0 0
    %6635 = vmatpush1.bf16.msra.mxu0 %v6267
    %6636 = vmatprep.subr.bf16.mxu0 0
    %6637 = vmatpush1.bf16.msra.mxu0 %v6268
    %6638 = vmatprep.subr.bf16.mxu0 0
    %6639 = vmatpush1.bf16.msra.mxu0 0
    %6640 = vmatprep.subr.bf16.mxu0 0
    %6641 = vmatpush1.bf16.msra.mxu0 0
    %6642 = vmatprep.subr.bf16.mxu0 0
    %6643 = vmatpush1.bf16.msra.mxu0 0
    %6644 = vmatprep.subr.bf16.mxu0 0
    %6645 = vmatpush1.bf16.msra.mxu0 0
    %6646 = vmatprep.subr.bf16.mxu0 0
    %6647 = vmatpush1.bf16.msra.mxu0 0
    %6648 = vmatprep.subr.bf16.mxu0 0
    %6649 = vmatpush1.bf16.msra.mxu0 0
    %6650 = vmatprep.subr.bf16.mxu0 0
    %6651 = vmatpush1.bf16.msra.mxu0 0
    %6652 = vmatprep.subr.bf16.mxu0 0
    %6653 = vmatpush1.bf16.msra.mxu0 0
    %6654 = vmatprep.subr.bf16.mxu0 0
    %6655 = vmatpush1.bf16.msra.mxu0 0
    %6656 = vmatprep.subr.bf16.mxu0 0
    %6657 = vmatpush1.bf16.msra.mxu0 0
    %6658 = vmatprep.subr.bf16.mxu0 0
    %6659 = vmatpush1.bf16.msra.mxu0 0
    %6660 = vmatprep.subr.bf16.mxu0 0
    %6661 = vmatpush1.bf16.msra.mxu0 0
    %6662 = vmatprep.subr.bf16.mxu0 0
    %6663 = vmatpush1.bf16.msra.mxu0 0
    %6664 = vmatprep.subr.bf16.mxu0 0
    %6665 = vmatpush1.bf16.msra.mxu0 0
    %6666 = vmatprep.mubr.bf16.mxu0 0
    %6667 = vmatmul.mubr.bf16.gmra.mrb[0].mxu0 %v6632
    %v6668 = vpop.f32.mrb[0].mxu0
    %v6669 = vadd.f32 0.0, %v6668
    %v6670 = vpop.f32.mrb[0].mxu0
    %v6671 = vpop.f32.mrb[0].mxu0
    %v6672 = vpop.f32.mrb[0].mxu0
    %6673 = vdwg.mxu0
    %v6674 = vadd.f32 %v6241, %v6669
    %v6675 = vxor.u32 %v6674, 2147483648
    %v6676 = vmul.f32 %v6675, 1.442695
    %v6677 = vpow.pop %v6676
    %v6678 = vadd.f32 %v6677, 1.0
    %v6679 = vrcp.pop %v6678
    %v6680 = vmul.f32 1.0, %v6679
    %v6681 = vtanh.pop %v6674
    %v6682 = vmul.f32 %v6680, %v6620
    %6684 = vrot.lane.b32.xlu0 %v6681, 64
    %v6685 = vpop.permute.xlu0 %6684
    %v6687 = vmul.f32 %v6680, %v6685
    %6689 = vrot.lane.b32.xlu0 %v6687, 32
    %v6690 = vpop.permute.xlu0 %6689
    %v6692 = vadd.f32 %v6682, %v6690
    %v6693 = vtanh.pop %v6692
    %6695 = vrot.lane.b32.xlu0 %v6693, 64
    %v6696 = vpop.permute.xlu0 %6695
    %v6698 = vmul.f32 %v6680, %v6696
    %v6699 = vpack.c.bf16 %v6698, %v6698
    %6701 = vrot.lane.b32.xlu0 %v6699, 32
    %v6702 = vpop.permute.xlu0 %6701
    %v6704 = vsel %vm216, %v6702, 0
    %6706 = vmatprep.subr.bf16.mxu0 0
    %6707 = vmatpush1.bf16.msra.mxu0 %v6267
    %6708 = vmatprep.subr.bf16.mxu0 0
    %6709 = vmatpush1.bf16.msra.mxu0 %v6268
    %6710 = vmatprep.subr.bf16.mxu0 0
    %6711 = vmatpush1.bf16.msra.mxu0 0
    %6712 = vmatprep.subr.bf16.mxu0 0
    %6713 = vmatpush1.bf16.msra.mxu0 0
    %6714 = vmatprep.subr.bf16.mxu0 0
    %6715 = vmatpush1.bf16.msra.mxu0 0
    %6716 = vmatprep.subr.bf16.mxu0 0
    %6717 = vmatpush1.bf16.msra.mxu0 0
    %6718 = vmatprep.subr.bf16.mxu0 0
    %6719 = vmatpush1.bf16.msra.mxu0 0
    %6720 = vmatprep.subr.bf16.mxu0 0
    %6721 = vmatpush1.bf16.msra.mxu0 0
    %6722 = vmatprep.subr.bf16.mxu0 0
    %6723 = vmatpush1.bf16.msra.mxu0 0
    %6724 = vmatprep.subr.bf16.mxu0 0
    %6725 = vmatpush1.bf16.msra.mxu0 0
    %6726 = vmatprep.subr.bf16.mxu0 0
    %6727 = vmatpush1.bf16.msra.mxu0 0
    %6728 = vmatprep.subr.bf16.mxu0 0
    %6729 = vmatpush1.bf16.msra.mxu0 0
    %6730 = vmatprep.subr.bf16.mxu0 0
    %6731 = vmatpush1.bf16.msra.mxu0 0
    %6732 = vmatprep.subr.bf16.mxu0 0
    %6733 = vmatpush1.bf16.msra.mxu0 0
    %6734 = vmatprep.subr.bf16.mxu0 0
    %6735 = vmatpush1.bf16.msra.mxu0 0
    %6736 = vmatprep.subr.bf16.mxu0 0
    %6737 = vmatpush1.bf16.msra.mxu0 0
    %6738 = vmatprep.mubr.bf16.mxu0 0
    %6739 = vmatmul.mubr.bf16.gmra.mrb[0].mxu0 %v6704
    %v6740 = vpop.f32.mrb[0].mxu0
    %v6741 = vadd.f32 0.0, %v6740
    %v6742 = vpop.f32.mrb[0].mxu0
    %v6743 = vpop.f32.mrb[0].mxu0
    %v6744 = vpop.f32.mrb[0].mxu0
    %6745 = vdwg.mxu0
    %v6746 = vadd.f32 %v6240, %v6741
    %v6747 = vxor.u32 %v6746, 2147483648
    %v6748 = vmul.f32 %v6747, 1.442695
    %v6749 = vpow.pop %v6748
    %v6750 = vadd.f32 %v6749, 1.0
    %v6751 = vrcp.pop %v6750
    %v6752 = vmul.f32 1.0, %v6751
    %v6753 = vtanh.pop %v6746
    %v6754 = vmul.f32 %v6752, %v6692
    %6756 = vrot.lane.b32.xlu0 %v6753, 64
    %v6757 = vpop.permute.xlu0 %6756
    %v6759 = vmul.f32 %v6752, %v6757
    %6761 = vrot.lane.b32.xlu0 %v6759, 32
    %v6762 = vpop.permute.xlu0 %6761
    %v6764 = vadd.f32 %v6754, %v6762
    %v6765 = vtanh.pop %v6764
    %6767 = vrot.lane.b32.xlu0 %v6765, 64
    %v6768 = vpop.permute.xlu0 %6767
    %v6770 = vmul.f32 %v6752, %v6768
    %v6771 = vpack.c.bf16 %v6770, %v6770
    %6773 = vrot.lane.b32.xlu0 %v6771, 32
    %v6774 = vpop.permute.xlu0 %6773
    %v6776 = vsel %vm216, %v6774, 0
    %6778 = vmatprep.subr.bf16.mxu0 0
    %6779 = vmatpush1.bf16.msra.mxu0 %v6267
    %6780 = vmatprep.subr.bf16.mxu0 0
    %6781 = vmatpush1.bf16.msra.mxu0 %v6268
    %6782 = vmatprep.subr.bf16.mxu0 0
    %6783 = vmatpush1.bf16.msra.mxu0 0
    %6784 = vmatprep.subr.bf16.mxu0 0
    %6785 = vmatpush1.bf16.msra.mxu0 0
    %6786 = vmatprep.subr.bf16.mxu0 0
    %6787 = vmatpush1.bf16.msra.mxu0 0
    %6788 = vmatprep.subr.bf16.mxu0 0
    %6789 = vmatpush1.bf16.msra.mxu0 0
    %6790 = vmatprep.subr.bf16.mxu0 0
    %6791 = vmatpush1.bf16.msra.mxu0 0
    %6792 = vmatprep.subr.bf16.mxu0 0
    %6793 = vmatpush1.bf16.msra.mxu0 0
    %6794 = vmatprep.subr.bf16.mxu0 0
    %6795 = vmatpush1.bf16.msra.mxu0 0
    %6796 = vmatprep.subr.bf16.mxu0 0
    %6797 = vmatpush1.bf16.msra.mxu0 0
    %6798 = vmatprep.subr.bf16.mxu0 0
    %6799 = vmatpush1.bf16.msra.mxu0 0
    %6800 = vmatprep.subr.bf16.mxu0 0
    %6801 = vmatpush1.bf16.msra.mxu0 0
    %6802 = vmatprep.subr.bf16.mxu0 0
    %6803 = vmatpush1.bf16.msra.mxu0 0
    %6804 = vmatprep.subr.bf16.mxu0 0
    %6805 = vmatpush1.bf16.msra.mxu0 0
    %6806 = vmatprep.subr.bf16.mxu0 0
    %6807 = vmatpush1.bf16.msra.mxu0 0
    %6808 = vmatprep.subr.bf16.mxu0 0
    %6809 = vmatpush1.bf16.msra.mxu0 0
    %6810 = vmatprep.mubr.bf16.mxu0 0
    %6811 = vmatmul.mubr.bf16.gmra.mrb[0].mxu0 %v6776
    %v6812 = vpop.f32.mrb[0].mxu0
    %v6813 = vadd.f32 0.0, %v6812
    %v6814 = vpop.f32.mrb[0].mxu0
    %v6815 = vpop.f32.mrb[0].mxu0
    %v6816 = vpop.f32.mrb[0].mxu0
    %6817 = vdwg.mxu0
    %v6818 = vadd.f32 %v6242, %v6813
    %v6819 = vxor.u32 %v6818, 2147483648
    %v6820 = vmul.f32 %v6819, 1.442695
    %v6821 = vpow.pop %v6820
    %v6822 = vadd.f32 %v6821, 1.0
    %v6823 = vrcp.pop %v6822
    %v6824 = vmul.f32 1.0, %v6823
    %v6825 = vtanh.pop %v6818
    %v6826 = vmul.f32 %v6824, %v6764
    %6828 = vrot.lane.b32.xlu0 %v6825, 64
    %v6829 = vpop.permute.xlu0 %6828
    %v6831 = vmul.f32 %v6824, %v6829
    %6833 = vrot.lane.b32.xlu0 %v6831, 32
    %v6834 = vpop.permute.xlu0 %6833
    %v6836 = vadd.f32 %v6826, %v6834
    %v6837 = vtanh.pop %v6836
    %6839 = vrot.lane.b32.xlu0 %v6837, 64
    %v6840 = vpop.permute.xlu0 %6839
    %v6842 = vmul.f32 %v6824, %v6840
    %v6844 = vcombine.low %v6410, %v6410
    %v6846 = vunpack.c.l.s4 1983009808
    %v6847 = vunpack.c.0.s8 %v6846
    %v6848 = vlaneseq
    %v6849 = vshrl.u32 %v6848, 7
    %v6850 = vsub.s32 %v6847, %v6849
    %v6851 = vrot.slane %v6844, %v6850
    %v6855 = vunpack.c.l.s4 1983009808
    %v6856 = vunpack.c.0.s8 %v6855
    %v6857 = vlaneseq
    %v6858 = vshrl.u32 %v6857, 7
    %v6859 = vsub.s32 %v6856, %v6858
    %v6860 = vrot.slane %v6482, %v6859
    %v6861 = vcombine.low %v6860, %v6860
    %v6864 = vcombine.low %v6554, %v6554
    %v6866 = vunpack.c.l.s4 1983009808
    %v6867 = vunpack.c.0.s8 %v6866
    %v6868 = vlaneseq
    %v6869 = vshrl.u32 %v6868, 7
    %v6870 = vsub.s32 %v6867, %v6869
    %v6871 = vrot.slane %v6864, %v6870
    %v6872 = vcombine.low %v6871, %v6871
    %v6875 = vcombine.low %v6698, %v6698
    %v6877 = vunpack.c.l.s4 1983009808
    %v6878 = vunpack.c.0.s8 %v6877
    %v6879 = vlaneseq
    %v6880 = vshrl.u32 %v6879, 7
    %v6881 = vsub.s32 %v6878, %v6880
    %v6882 = vrot.slane %v6875, %v6881
    %v6886 = vunpack.c.l.s4 1983009808
    %v6887 = vunpack.c.0.s8 %v6886
    %v6888 = vlaneseq
    %v6889 = vshrl.u32 %v6888, 7
    %v6890 = vsub.s32 %v6887, %v6889
    %v6891 = vrot.slane %v6770, %v6890
    %v6892 = vcombine.low %v6891, %v6891
    %v6895 = vcombine.low %v6842, %v6842
    %v6897 = vunpack.c.l.s4 1983009808
    %v6898 = vunpack.c.0.s8 %v6897
    %v6899 = vlaneseq
    %v6900 = vshrl.u32 %v6899, 7
    %v6901 = vsub.s32 %v6898, %v6900
    %v6902 = vrot.slane %v6895, %v6901
    %v6903 = vcombine.low %v6902, %v6902
    %v6905 = vsel %vm1036, %v6338, %v6851
    %v6906 = vsel %vm1038, %v6905, %v6861
    %v6907 = vsel %vm1040, %v6906, %v6872
    %v6908 = vsel %vm1036, %v6626, %v6882
    %v6909 = vsel %vm1038, %v6908, %v6892
    %v6910 = vsel %vm1040, %v6909, %v6903
    %v6911 = vpack.c.bf16 %v6910, %v6907
    %v6912 = vld [vmem:[%s2592] sm:$0xf]
    %v6913 = vld [vmem:[%s2592 + $0x4] sm:$0xf]
    %v6914 = vld [vmem:[%s2592 + $0x8] sm:$0xf]
    %v6915 = vld [vmem:[%s2592 + $0xc] sm:$0xf]
    %v6916 = vld [vmem:[%s2597] sm:$0x1]
    %v6918 = vlaneseq
    %v6919 = vshrl.u32 %v6918, 7
    %v6920 = vsub.s32 0, %v6919
    %v6921 = vrot.slane %v6916, %v6920
    %6924 = vrot.lane.b32.xlu0 %v6911, 32
    %v6925 = vpop.permute.xlu0 %6924
    %v6930 = vunpack.c.l.b16 %v6912
    %v6931 = vunpack.c.l.b16 %v6913
    %v6932 = vunpack.c.l.b16 %v6914
    %v6933 = vunpack.c.l.b16 %v6915
    %v6934 = vpack.c.b16 %v6931, %v6930
    %v6935 = vpack.c.b16 %v6933, %v6932
    %v6939 = vsel %vm216, %v6925, 0
    %6941 = vmatprep.subr.bf16.mxu0 0
    %6942 = vmatpush1.bf16.msra.mxu0 %v6934
    %6943 = vmatprep.subr.bf16.mxu0 0
    %6944 = vmatpush1.bf16.msra.mxu0 %v6935
    %6945 = vmatprep.subr.bf16.mxu0 0
    %6946 = vmatpush1.bf16.msra.mxu0 0
    %6947 = vmatprep.subr.bf16.mxu0 0
    %6948 = vmatpush1.bf16.msra.mxu0 0
    %6949 = vmatprep.subr.bf16.mxu0 0
    %6950 = vmatpush1.bf16.msra.mxu0 0
    %6951 = vmatprep.subr.bf16.mxu0 0
    %6952 = vmatpush1.bf16.msra.mxu0 0
    %6953 = vmatprep.subr.bf16.mxu0 0
    %6954 = vmatpush1.bf16.msra.mxu0 0
    %6955 = vmatprep.subr.bf16.mxu0 0
    %6956 = vmatpush1.bf16.msra.mxu0 0
    %6957 = vmatprep.subr.bf16.mxu0 0
    %6958 = vmatpush1.bf16.msra.mxu0 0
    %6959 = vmatprep.subr.bf16.mxu0 0
    %6960 = vmatpush1.bf16.msra.mxu0 0
    %6961 = vmatprep.subr.bf16.mxu0 0
    %6962 = vmatpush1.bf16.msra.mxu0 0
    %6963 = vmatprep.subr.bf16.mxu0 0
    %6964 = vmatpush1.bf16.msra.mxu0 0
    %6965 = vmatprep.subr.bf16.mxu0 0
    %6966 = vmatpush1.bf16.msra.mxu0 0
    %6967 = vmatprep.subr.bf16.mxu0 0
    %6968 = vmatpush1.bf16.msra.mxu0 0
    %6969 = vmatprep.subr.bf16.mxu0 0
    %6970 = vmatpush1.bf16.msra.mxu0 0
    %6971 = vmatprep.subr.bf16.mxu0 0
    %6972 = vmatpush1.bf16.msra.mxu0 0
    %6973 = vmatprep.mubr.bf16.mxu0 0
    %6974 = vmatmul.mubr.bf16.gmra.mrb[0].mxu0 %v6939
    %v6975 = vpop.f32.mrb[0].mxu0
    %v6976 = vadd.f32 %v6921, %v6975
    %v6977 = vpop.f32.mrb[0].mxu0
    %v6978 = vpop.f32.mrb[0].mxu0
    %v6979 = vadd.f32 %v6921, %v6978
    %v6980 = vpop.f32.mrb[0].mxu0
    %6981 = vdwg.mxu0
    %v6984 = vcombine.high %v6976, %v6976
    %v6986 = vunpack.c.l.s4 1983009808
    %v6987 = vunpack.c.0.s8 %v6986
    %v6988 = vlaneseq
    %v6989 = vshrl.u32 %v6988, 7
    %v6990 = vsub.s32 %v6987, %v6989
    %v6991 = vrot.slane %v6976, %v6990
    %v6993 = vunpack.c.l.s4 1983009808
    %v6994 = vunpack.c.0.s8 %v6993
    %v6995 = vlaneseq
    %v6996 = vshrl.u32 %v6995, 7
    %v6997 = vsub.s32 %v6994, %v6996
    %v6998 = vrot.slane %v6984, %v6997
    %v6999 = vcombine.high %v6991, %v6991
    %v7000 = vcombine.high %v6998, %v6998
    %v7001 = vcombine.high %v6979, %v6979
    %v7003 = vunpack.c.l.s4 1983009808
    %v7004 = vunpack.c.0.s8 %v7003
    %v7005 = vlaneseq
    %v7006 = vshrl.u32 %v7005, 7
    %v7007 = vsub.s32 %v7004, %v7006
    %v7008 = vrot.slane %v6979, %v7007
    %v7010 = vunpack.c.l.s4 1983009808
    %v7011 = vunpack.c.0.s8 %v7010
    %v7012 = vlaneseq
    %v7013 = vshrl.u32 %v7012, 7
    %v7014 = vsub.s32 %v7011, %v7013
    %v7015 = vrot.slane %v7001, %v7014
    %v7016 = vcombine.high %v7008, %v7008
    %v7017 = vcombine.high %v7015, %v7015
    %v7026 = vld [vmem:[%s2708] sm:$0xf]
    %v7027 = vld [vmem:[%s2708 + $0x4] sm:$0xf]
    %v7028 = vld [vmem:[%s2708 + $0x8] sm:$0xf]
    %v7029 = vld [vmem:[%s2708 + $0xc] sm:$0xf]
    %v7030 = vpack.c.bf16 %v3293, %v3293
    %7032 = vrot.lane.b32.xlu0 %v7030, 32
    %v7033 = vpop.permute.xlu0 %7032
    %v7038 = vunpack.c.l.b16 %v7026
    %v7039 = vunpack.c.l.b16 %v7027
    %v7040 = vunpack.c.l.b16 %v7028
    %v7041 = vunpack.c.l.b16 %v7029
    %v7042 = vpack.c.b16 %v7039, %v7038
    %v7043 = vpack.c.b16 %v7041, %v7040
    %v7047 = vsel %vm216, %v7033, 0
    %7049 = vmatprep.subr.bf16.mxu0 0
    %7050 = vmatpush1.bf16.msra.mxu0 %v7042
    %7051 = vmatprep.subr.bf16.mxu0 0
    %7052 = vmatpush1.bf16.msra.mxu0 %v7043
    %7053 = vmatprep.subr.bf16.mxu0 0
    %7054 = vmatpush1.bf16.msra.mxu0 0
    %7055 = vmatprep.subr.bf16.mxu0 0
    %7056 = vmatpush1.bf16.msra.mxu0 0
    %7057 = vmatprep.subr.bf16.mxu0 0
    %7058 = vmatpush1.bf16.msra.mxu0 0
    %7059 = vmatprep.subr.bf16.mxu0 0
    %7060 = vmatpush1.bf16.msra.mxu0 0
    %7061 = vmatprep.subr.bf16.mxu0 0
    %7062 = vmatpush1.bf16.msra.mxu0 0
    %7063 = vmatprep.subr.bf16.mxu0 0
    %7064 = vmatpush1.bf16.msra.mxu0 0
    %7065 = vmatprep.subr.bf16.mxu0 0
    %7066 = vmatpush1.bf16.msra.mxu0 0
    %7067 = vmatprep.subr.bf16.mxu0 0
    %7068 = vmatpush1.bf16.msra.mxu0 0
    %7069 = vmatprep.subr.bf16.mxu0 0
    %7070 = vmatpush1.bf16.msra.mxu0 0
    %7071 = vmatprep.subr.bf16.mxu0 0
    %7072 = vmatpush1.bf16.msra.mxu0 0
    %7073 = vmatprep.subr.bf16.mxu0 0
    %7074 = vmatpush1.bf16.msra.mxu0 0
    %7075 = vmatprep.subr.bf16.mxu0 0
    %7076 = vmatpush1.bf16.msra.mxu0 0
    %7077 = vmatprep.subr.bf16.mxu0 0
    %7078 = vmatpush1.bf16.msra.mxu0 0
    %7079 = vmatprep.subr.bf16.mxu0 0
    %7080 = vmatpush1.bf16.msra.mxu0 0
    %7081 = vmatprep.mubr.bf16.mxu0 0
    %7082 = vmatmul.mubr.bf16.gmra.mrb[0].mxu0 %v7047
    %v7083 = vpop.f32.mrb[0].mxu0
    %v7084 = vadd.f32 0.0, %v7083
    %v7085 = vpop.f32.mrb[0].mxu0
    %v7086 = vpop.f32.mrb[0].mxu0
    %v7087 = vpop.f32.mrb[0].mxu0
    %7088 = vdwg.mxu0
    %v7089 = vadd.f32 %v6991, %v7084
    %v7090 = vxor.u32 %v7089, 2147483648
    %v7091 = vmul.f32 %v7090, 1.442695
    %v7092 = vpow.pop %v7091
    %v7093 = vadd.f32 %v7092, 1.0
    %v7094 = vrcp.pop %v7093
    %v7095 = vmul.f32 1.0, %v7094
    %v7096 = vtanh.pop %v7089
    %v7097 = vmul.f32 %v7095, %v3287
    %7099 = vrot.lane.b32.xlu0 %v7096, 64
    %v7100 = vpop.permute.xlu0 %7099
    %v7102 = vmul.f32 %v7095, %v7100
    %7104 = vrot.lane.b32.xlu0 %v7102, 32
    %v7105 = vpop.permute.xlu0 %7104
    %v7107 = vadd.f32 %v7097, %v7105
    %v7108 = vtanh.pop %v7107
    %7110 = vrot.lane.b32.xlu0 %v7108, 64
    %v7111 = vpop.permute.xlu0 %7110
    %v7113 = vmul.f32 %v7095, %v7111
    %v7114 = vpack.c.bf16 %v7113, %v7113
    %7116 = vrot.lane.b32.xlu0 %v7114, 32
    %v7117 = vpop.permute.xlu0 %7116
    %v7119 = vsel %vm216, %v7117, 0
    %7121 = vmatprep.subr.bf16.mxu0 0
    %7122 = vmatpush1.bf16.msra.mxu0 %v7042
    %7123 = vmatprep.subr.bf16.mxu0 0
    %7124 = vmatpush1.bf16.msra.mxu0 %v7043
    %7125 = vmatprep.subr.bf16.mxu0 0
    %7126 = vmatpush1.bf16.msra.mxu0 0
    %7127 = vmatprep.subr.bf16.mxu0 0
    %7128 = vmatpush1.bf16.msra.mxu0 0
    %7129 = vmatprep.subr.bf16.mxu0 0
    %7130 = vmatpush1.bf16.msra.mxu0 0
    %7131 = vmatprep.subr.bf16.mxu0 0
    %7132 = vmatpush1.bf16.msra.mxu0 0
    %7133 = vmatprep.subr.bf16.mxu0 0
    %7134 = vmatpush1.bf16.msra.mxu0 0
    %7135 = vmatprep.subr.bf16.mxu0 0
    %7136 = vmatpush1.bf16.msra.mxu0 0
    %7137 = vmatprep.subr.bf16.mxu0 0
    %7138 = vmatpush1.bf16.msra.mxu0 0
    %7139 = vmatprep.subr.bf16.mxu0 0
    %7140 = vmatpush1.bf16.msra.mxu0 0
    %7141 = vmatprep.subr.bf16.mxu0 0
    %7142 = vmatpush1.bf16.msra.mxu0 0
    %7143 = vmatprep.subr.bf16.mxu0 0
    %7144 = vmatpush1.bf16.msra.mxu0 0
    %7145 = vmatprep.subr.bf16.mxu0 0
    %7146 = vmatpush1.bf16.msra.mxu0 0
    %7147 = vmatprep.subr.bf16.mxu0 0
    %7148 = vmatpush1.bf16.msra.mxu0 0
    %7149 = vmatprep.subr.bf16.mxu0 0
    %7150 = vmatpush1.bf16.msra.mxu0 0
    %7151 = vmatprep.subr.bf16.mxu0 0
    %7152 = vmatpush1.bf16.msra.mxu0 0
    %7153 = vmatprep.mubr.bf16.mxu0 0
    %7154 = vmatmul.mubr.bf16.gmra.mrb[0].mxu0 %v7119
    %v7155 = vpop.f32.mrb[0].mxu0
    %v7156 = vadd.f32 0.0, %v7155
    %v7157 = vpop.f32.mrb[0].mxu0
    %v7158 = vpop.f32.mrb[0].mxu0
    %v7159 = vpop.f32.mrb[0].mxu0
    %7160 = vdwg.mxu0
    %v7161 = vadd.f32 %v6999, %v7156
    %v7162 = vxor.u32 %v7161, 2147483648
    %v7163 = vmul.f32 %v7162, 1.442695
    %v7164 = vpow.pop %v7163
    %v7165 = vadd.f32 %v7164, 1.0
    %v7166 = vrcp.pop %v7165
    %v7167 = vmul.f32 1.0, %v7166
    %v7168 = vtanh.pop %v7161
    %v7169 = vmul.f32 %v7167, %v7107
    %7171 = vrot.lane.b32.xlu0 %v7168, 64
    %v7172 = vpop.permute.xlu0 %7171
    %v7174 = vmul.f32 %v7167, %v7172
    %7176 = vrot.lane.b32.xlu0 %v7174, 32
    %v7177 = vpop.permute.xlu0 %7176
    %v7179 = vadd.f32 %v7169, %v7177
    %v7180 = vtanh.pop %v7179
    %7182 = vrot.lane.b32.xlu0 %v7180, 64
    %v7183 = vpop.permute.xlu0 %7182
    %v7185 = vmul.f32 %v7167, %v7183
    %v7186 = vpack.c.bf16 %v7185, %v7185
    %7188 = vrot.lane.b32.xlu0 %v7186, 32
    %v7189 = vpop.permute.xlu0 %7188
    %v7191 = vsel %vm216, %v7189, 0
    %7193 = vmatprep.subr.bf16.mxu0 0
    %7194 = vmatpush1.bf16.msra.mxu0 %v7042
    %7195 = vmatprep.subr.bf16.mxu0 0
    %7196 = vmatpush1.bf16.msra.mxu0 %v7043
    %7197 = vmatprep.subr.bf16.mxu0 0
    %7198 = vmatpush1.bf16.msra.mxu0 0
    %7199 = vmatprep.subr.bf16.mxu0 0
    %7200 = vmatpush1.bf16.msra.mxu0 0
    %7201 = vmatprep.subr.bf16.mxu0 0
    %7202 = vmatpush1.bf16.msra.mxu0 0
    %7203 = vmatprep.subr.bf16.mxu0 0
    %7204 = vmatpush1.bf16.msra.mxu0 0
    %7205 = vmatprep.subr.bf16.mxu0 0
    %7206 = vmatpush1.bf16.msra.mxu0 0
    %7207 = vmatprep.subr.bf16.mxu0 0
    %7208 = vmatpush1.bf16.msra.mxu0 0
    %7209 = vmatprep.subr.bf16.mxu0 0
    %7210 = vmatpush1.bf16.msra.mxu0 0
    %7211 = vmatprep.subr.bf16.mxu0 0
    %7212 = vmatpush1.bf16.msra.mxu0 0
    %7213 = vmatprep.subr.bf16.mxu0 0
    %7214 = vmatpush1.bf16.msra.mxu0 0
    %7215 = vmatprep.subr.bf16.mxu0 0
    %7216 = vmatpush1.bf16.msra.mxu0 0
    %7217 = vmatprep.subr.bf16.mxu0 0
    %7218 = vmatpush1.bf16.msra.mxu0 0
    %7219 = vmatprep.subr.bf16.mxu0 0
    %7220 = vmatpush1.bf16.msra.mxu0 0
    %7221 = vmatprep.subr.bf16.mxu0 0
    %7222 = vmatpush1.bf16.msra.mxu0 0
    %7223 = vmatprep.subr.bf16.mxu0 0
    %7224 = vmatpush1.bf16.msra.mxu0 0
    %7225 = vmatprep.mubr.bf16.mxu0 0
    %7226 = vmatmul.mubr.bf16.gmra.mrb[0].mxu0 %v7191
    %v7227 = vpop.f32.mrb[0].mxu0
    %v7228 = vadd.f32 0.0, %v7227
    %v7229 = vpop.f32.mrb[0].mxu0
    %v7230 = vpop.f32.mrb[0].mxu0
    %v7231 = vpop.f32.mrb[0].mxu0
    %7232 = vdwg.mxu0
    %v7233 = vadd.f32 %v6998, %v7228
    %v7234 = vxor.u32 %v7233, 2147483648
    %v7235 = vmul.f32 %v7234, 1.442695
    %v7236 = vpow.pop %v7235
    %v7237 = vadd.f32 %v7236, 1.0
    %v7238 = vrcp.pop %v7237
    %v7239 = vmul.f32 1.0, %v7238
    %v7240 = vtanh.pop %v7233
    %v7241 = vmul.f32 %v7239, %v7179
    %7243 = vrot.lane.b32.xlu0 %v7240, 64
    %v7244 = vpop.permute.xlu0 %7243
    %v7246 = vmul.f32 %v7239, %v7244
    %7248 = vrot.lane.b32.xlu0 %v7246, 32
    %v7249 = vpop.permute.xlu0 %7248
    %v7251 = vadd.f32 %v7241, %v7249
    %v7252 = vtanh.pop %v7251
    %7254 = vrot.lane.b32.xlu0 %v7252, 64
    %v7255 = vpop.permute.xlu0 %7254
    %v7257 = vmul.f32 %v7239, %v7255
    %v7258 = vpack.c.bf16 %v7257, %v7257
    %7260 = vrot.lane.b32.xlu0 %v7258, 32
    %v7261 = vpop.permute.xlu0 %7260
    %v7263 = vsel %vm216, %v7261, 0
    %7265 = vmatprep.subr.bf16.mxu0 0
    %7266 = vmatpush1.bf16.msra.mxu0 %v7042
    %7267 = vmatprep.subr.bf16.mxu0 0
    %7268 = vmatpush1.bf16.msra.mxu0 %v7043
    %7269 = vmatprep.subr.bf16.mxu0 0
    %7270 = vmatpush1.bf16.msra.mxu0 0
    %7271 = vmatprep.subr.bf16.mxu0 0
    %7272 = vmatpush1.bf16.msra.mxu0 0
    %7273 = vmatprep.subr.bf16.mxu0 0
    %7274 = vmatpush1.bf16.msra.mxu0 0
    %7275 = vmatprep.subr.bf16.mxu0 0
    %7276 = vmatpush1.bf16.msra.mxu0 0
    %7277 = vmatprep.subr.bf16.mxu0 0
    %7278 = vmatpush1.bf16.msra.mxu0 0
    %7279 = vmatprep.subr.bf16.mxu0 0
    %7280 = vmatpush1.bf16.msra.mxu0 0
    %7281 = vmatprep.subr.bf16.mxu0 0
    %7282 = vmatpush1.bf16.msra.mxu0 0
    %7283 = vmatprep.subr.bf16.mxu0 0
    %7284 = vmatpush1.bf16.msra.mxu0 0
    %7285 = vmatprep.subr.bf16.mxu0 0
    %7286 = vmatpush1.bf16.msra.mxu0 0
    %7287 = vmatprep.subr.bf16.mxu0 0
    %7288 = vmatpush1.bf16.msra.mxu0 0
    %7289 = vmatprep.subr.bf16.mxu0 0
    %7290 = vmatpush1.bf16.msra.mxu0 0
    %7291 = vmatprep.subr.bf16.mxu0 0
    %7292 = vmatpush1.bf16.msra.mxu0 0
    %7293 = vmatprep.subr.bf16.mxu0 0
    %7294 = vmatpush1.bf16.msra.mxu0 0
    %7295 = vmatprep.subr.bf16.mxu0 0
    %7296 = vmatpush1.bf16.msra.mxu0 0
    %7297 = vmatprep.mubr.bf16.mxu0 0
    %7298 = vmatmul.mubr.bf16.gmra.mrb[0].mxu0 %v7263
    %v7299 = vpop.f32.mrb[0].mxu0
    %v7300 = vadd.f32 0.0, %v7299
    %v7301 = vpop.f32.mrb[0].mxu0
    %v7302 = vpop.f32.mrb[0].mxu0
    %v7303 = vpop.f32.mrb[0].mxu0
    %7304 = vdwg.mxu0
    %v7305 = vadd.f32 %v7000, %v7300
    %v7306 = vxor.u32 %v7305, 2147483648
    %v7307 = vmul.f32 %v7306, 1.442695
    %v7308 = vpow.pop %v7307
    %v7309 = vadd.f32 %v7308, 1.0
    %v7310 = vrcp.pop %v7309
    %v7311 = vmul.f32 1.0, %v7310
    %v7312 = vtanh.pop %v7305
    %v7313 = vmul.f32 %v7311, %v7251
    %7315 = vrot.lane.b32.xlu0 %v7312, 64
    %v7316 = vpop.permute.xlu0 %7315
    %v7318 = vmul.f32 %v7311, %v7316
    %7320 = vrot.lane.b32.xlu0 %v7318, 32
    %v7321 = vpop.permute.xlu0 %7320
    %v7323 = vadd.f32 %v7313, %v7321
    %v7324 = vtanh.pop %v7323
    %7326 = vrot.lane.b32.xlu0 %v7324, 64
    %v7327 = vpop.permute.xlu0 %7326
    %v7329 = vmul.f32 %v7311, %v7327
    %v7330 = vpack.c.bf16 %v7329, %v7329
    %7332 = vrot.lane.b32.xlu0 %v7330, 32
    %v7333 = vpop.permute.xlu0 %7332
    %v7335 = vsel %vm216, %v7333, 0
    %7337 = vmatprep.subr.bf16.mxu0 0
    %7338 = vmatpush1.bf16.msra.mxu0 %v7042
    %7339 = vmatprep.subr.bf16.mxu0 0
    %7340 = vmatpush1.bf16.msra.mxu0 %v7043
    %7341 = vmatprep.subr.bf16.mxu0 0
    %7342 = vmatpush1.bf16.msra.mxu0 0
    %7343 = vmatprep.subr.bf16.mxu0 0
    %7344 = vmatpush1.bf16.msra.mxu0 0
    %7345 = vmatprep.subr.bf16.mxu0 0
    %7346 = vmatpush1.bf16.msra.mxu0 0
    %7347 = vmatprep.subr.bf16.mxu0 0
    %7348 = vmatpush1.bf16.msra.mxu0 0
    %7349 = vmatprep.subr.bf16.mxu0 0
    %7350 = vmatpush1.bf16.msra.mxu0 0
    %7351 = vmatprep.subr.bf16.mxu0 0
    %7352 = vmatpush1.bf16.msra.mxu0 0
    %7353 = vmatprep.subr.bf16.mxu0 0
    %7354 = vmatpush1.bf16.msra.mxu0 0
    %7355 = vmatprep.subr.bf16.mxu0 0
    %7356 = vmatpush1.bf16.msra.mxu0 0
    %7357 = vmatprep.subr.bf16.mxu0 0
    %7358 = vmatpush1.bf16.msra.mxu0 0
    %7359 = vmatprep.subr.bf16.mxu0 0
    %7360 = vmatpush1.bf16.msra.mxu0 0
    %7361 = vmatprep.subr.bf16.mxu0 0
    %7362 = vmatpush1.bf16.msra.mxu0 0
    %7363 = vmatprep.subr.bf16.mxu0 0
    %7364 = vmatpush1.bf16.msra.mxu0 0
    %7365 = vmatprep.subr.bf16.mxu0 0
    %7366 = vmatpush1.bf16.msra.mxu0 0
    %7367 = vmatprep.subr.bf16.mxu0 0
    %7368 = vmatpush1.bf16.msra.mxu0 0
    %7369 = vmatprep.mubr.bf16.mxu0 0
    %7370 = vmatmul.mubr.bf16.gmra.mrb[0].mxu0 %v7335
    %v7371 = vpop.f32.mrb[0].mxu0
    %v7372 = vadd.f32 0.0, %v7371
    %v7373 = vpop.f32.mrb[0].mxu0
    %v7374 = vpop.f32.mrb[0].mxu0
    %v7375 = vpop.f32.mrb[0].mxu0
    %7376 = vdwg.mxu0
    %v7377 = vadd.f32 %v7008, %v7372
    %v7378 = vxor.u32 %v7377, 2147483648
    %v7379 = vmul.f32 %v7378, 1.442695
    %v7380 = vpow.pop %v7379
    %v7381 = vadd.f32 %v7380, 1.0
    %v7382 = vrcp.pop %v7381
    %v7383 = vmul.f32 1.0, %v7382
    %v7384 = vtanh.pop %v7377
    %v7385 = vmul.f32 %v7383, %v7323
    %7387 = vrot.lane.b32.xlu0 %v7384, 64
    %v7388 = vpop.permute.xlu0 %7387
    %v7390 = vmul.f32 %v7383, %v7388
    %7392 = vrot.lane.b32.xlu0 %v7390, 32
    %v7393 = vpop.permute.xlu0 %7392
    %v7395 = vadd.f32 %v7385, %v7393
    %v7396 = vtanh.pop %v7395
    %7398 = vrot.lane.b32.xlu0 %v7396, 64
    %v7399 = vpop.permute.xlu0 %7398
    %v7401 = vmul.f32 %v7383, %v7399
    %v7402 = vpack.c.bf16 %v7401, %v7401
    %7404 = vrot.lane.b32.xlu0 %v7402, 32
    %v7405 = vpop.permute.xlu0 %7404
    %v7407 = vsel %vm216, %v7405, 0
    %7409 = vmatprep.subr.bf16.mxu0 0
    %7410 = vmatpush1.bf16.msra.mxu0 %v7042
    %7411 = vmatprep.subr.bf16.mxu0 0
    %7412 = vmatpush1.bf16.msra.mxu0 %v7043
    %7413 = vmatprep.subr.bf16.mxu0 0
    %7414 = vmatpush1.bf16.msra.mxu0 0
    %7415 = vmatprep.subr.bf16.mxu0 0
    %7416 = vmatpush1.bf16.msra.mxu0 0
    %7417 = vmatprep.subr.bf16.mxu0 0
    %7418 = vmatpush1.bf16.msra.mxu0 0
    %7419 = vmatprep.subr.bf16.mxu0 0
    %7420 = vmatpush1.bf16.msra.mxu0 0
    %7421 = vmatprep.subr.bf16.mxu0 0
    %7422 = vmatpush1.bf16.msra.mxu0 0
    %7423 = vmatprep.subr.bf16.mxu0 0
    %7424 = vmatpush1.bf16.msra.mxu0 0
    %7425 = vmatprep.subr.bf16.mxu0 0
    %7426 = vmatpush1.bf16.msra.mxu0 0
    %7427 = vmatprep.subr.bf16.mxu0 0
    %7428 = vmatpush1.bf16.msra.mxu0 0
    %7429 = vmatprep.subr.bf16.mxu0 0
    %7430 = vmatpush1.bf16.msra.mxu0 0
    %7431 = vmatprep.subr.bf16.mxu0 0
    %7432 = vmatpush1.bf16.msra.mxu0 0
    %7433 = vmatprep.subr.bf16.mxu0 0
    %7434 = vmatpush1.bf16.msra.mxu0 0
    %7435 = vmatprep.subr.bf16.mxu0 0
    %7436 = vmatpush1.bf16.msra.mxu0 0
    %7437 = vmatprep.subr.bf16.mxu0 0
    %7438 = vmatpush1.bf16.msra.mxu0 0
    %7439 = vmatprep.subr.bf16.mxu0 0
    %7440 = vmatpush1.bf16.msra.mxu0 0
    %7441 = vmatprep.mubr.bf16.mxu0 0
    %7442 = vmatmul.mubr.bf16.gmra.mrb[0].mxu0 %v7407
    %v7443 = vpop.f32.mrb[0].mxu0
    %v7444 = vadd.f32 0.0, %v7443
    %v7445 = vpop.f32.mrb[0].mxu0
    %v7446 = vpop.f32.mrb[0].mxu0
    %v7447 = vpop.f32.mrb[0].mxu0
    %7448 = vdwg.mxu0
    %v7449 = vadd.f32 %v7016, %v7444
    %v7450 = vxor.u32 %v7449, 2147483648
    %v7451 = vmul.f32 %v7450, 1.442695
    %v7452 = vpow.pop %v7451
    %v7453 = vadd.f32 %v7452, 1.0
    %v7454 = vrcp.pop %v7453
    %v7455 = vmul.f32 1.0, %v7454
    %v7456 = vtanh.pop %v7449
    %v7457 = vmul.f32 %v7455, %v7395
    %7459 = vrot.lane.b32.xlu0 %v7456, 64
    %v7460 = vpop.permute.xlu0 %7459
    %v7462 = vmul.f32 %v7455, %v7460
    %7464 = vrot.lane.b32.xlu0 %v7462, 32
    %v7465 = vpop.permute.xlu0 %7464
    %v7467 = vadd.f32 %v7457, %v7465
    %v7468 = vtanh.pop %v7467
    %7470 = vrot.lane.b32.xlu0 %v7468, 64
    %v7471 = vpop.permute.xlu0 %7470
    %v7473 = vmul.f32 %v7455, %v7471
    %v7474 = vpack.c.bf16 %v7473, %v7473
    %7476 = vrot.lane.b32.xlu0 %v7474, 32
    %v7477 = vpop.permute.xlu0 %7476
    %v7479 = vsel %vm216, %v7477, 0
    %7481 = vmatprep.subr.bf16.mxu0 0
    %7482 = vmatpush1.bf16.msra.mxu0 %v7042
    %7483 = vmatprep.subr.bf16.mxu0 0
    %7484 = vmatpush1.bf16.msra.mxu0 %v7043
    %7485 = vmatprep.subr.bf16.mxu0 0
    %7486 = vmatpush1.bf16.msra.mxu0 0
    %7487 = vmatprep.subr.bf16.mxu0 0
    %7488 = vmatpush1.bf16.msra.mxu0 0
    %7489 = vmatprep.subr.bf16.mxu0 0
    %7490 = vmatpush1.bf16.msra.mxu0 0
    %7491 = vmatprep.subr.bf16.mxu0 0
    %7492 = vmatpush1.bf16.msra.mxu0 0
    %7493 = vmatprep.subr.bf16.mxu0 0
    %7494 = vmatpush1.bf16.msra.mxu0 0
    %7495 = vmatprep.subr.bf16.mxu0 0
    %7496 = vmatpush1.bf16.msra.mxu0 0
    %7497 = vmatprep.subr.bf16.mxu0 0
    %7498 = vmatpush1.bf16.msra.mxu0 0
    %7499 = vmatprep.subr.bf16.mxu0 0
    %7500 = vmatpush1.bf16.msra.mxu0 0
    %7501 = vmatprep.subr.bf16.mxu0 0
    %7502 = vmatpush1.bf16.msra.mxu0 0
    %7503 = vmatprep.subr.bf16.mxu0 0
    %7504 = vmatpush1.bf16.msra.mxu0 0
    %7505 = vmatprep.subr.bf16.mxu0 0
    %7506 = vmatpush1.bf16.msra.mxu0 0
    %7507 = vmatprep.subr.bf16.mxu0 0
    %7508 = vmatpush1.bf16.msra.mxu0 0
    %7509 = vmatprep.subr.bf16.mxu0 0
    %7510 = vmatpush1.bf16.msra.mxu0 0
    %7511 = vmatprep.subr.bf16.mxu0 0
    %7512 = vmatpush1.bf16.msra.mxu0 0
    %7513 = vmatprep.mubr.bf16.mxu0 0
    %7514 = vmatmul.mubr.bf16.gmra.mrb[0].mxu0 %v7479
    %v7515 = vpop.f32.mrb[0].mxu0
    %v7516 = vadd.f32 0.0, %v7515
    %v7517 = vpop.f32.mrb[0].mxu0
    %v7518 = vpop.f32.mrb[0].mxu0
    %v7519 = vpop.f32.mrb[0].mxu0
    %7520 = vdwg.mxu0
    %v7521 = vadd.f32 %v7015, %v7516
    %v7522 = vxor.u32 %v7521, 2147483648
    %v7523 = vmul.f32 %v7522, 1.442695
    %v7524 = vpow.pop %v7523
    %v7525 = vadd.f32 %v7524, 1.0
    %v7526 = vrcp.pop %v7525
    %v7527 = vmul.f32 1.0, %v7526
    %v7528 = vtanh.pop %v7521
    %v7529 = vmul.f32 %v7527, %v7467
    %7531 = vrot.lane.b32.xlu0 %v7528, 64
    %v7532 = vpop.permute.xlu0 %7531
    %v7534 = vmul.f32 %v7527, %v7532
    %7536 = vrot.lane.b32.xlu0 %v7534, 32
    %v7537 = vpop.permute.xlu0 %7536
    %v7539 = vadd.f32 %v7529, %v7537
    %v7540 = vtanh.pop %v7539
    %7542 = vrot.lane.b32.xlu0 %v7540, 64
    %v7543 = vpop.permute.xlu0 %7542
    %v7545 = vmul.f32 %v7527, %v7543
    %v7546 = vpack.c.bf16 %v7545, %v7545
    %7548 = vrot.lane.b32.xlu0 %v7546, 32
    %v7549 = vpop.permute.xlu0 %7548
    %v7551 = vsel %vm216, %v7549, 0
    %7553 = vmatprep.subr.bf16.mxu0 0
    %7554 = vmatpush1.bf16.msra.mxu0 %v7042
    %7555 = vmatprep.subr.bf16.mxu0 0
    %7556 = vmatpush1.bf16.msra.mxu0 %v7043
    %7557 = vmatprep.subr.bf16.mxu0 0
    %7558 = vmatpush1.bf16.msra.mxu0 0
    %7559 = vmatprep.subr.bf16.mxu0 0
    %7560 = vmatpush1.bf16.msra.mxu0 0
    %7561 = vmatprep.subr.bf16.mxu0 0
    %7562 = vmatpush1.bf16.msra.mxu0 0
    %7563 = vmatprep.subr.bf16.mxu0 0
    %7564 = vmatpush1.bf16.msra.mxu0 0
    %7565 = vmatprep.subr.bf16.mxu0 0
    %7566 = vmatpush1.bf16.msra.mxu0 0
    %7567 = vmatprep.subr.bf16.mxu0 0
    %7568 = vmatpush1.bf16.msra.mxu0 0
    %7569 = vmatprep.subr.bf16.mxu0 0
    %7570 = vmatpush1.bf16.msra.mxu0 0
    %7571 = vmatprep.subr.bf16.mxu0 0
    %7572 = vmatpush1.bf16.msra.mxu0 0
    %7573 = vmatprep.subr.bf16.mxu0 0
    %7574 = vmatpush1.bf16.msra.mxu0 0
    %7575 = vmatprep.subr.bf16.mxu0 0
    %7576 = vmatpush1.bf16.msra.mxu0 0
    %7577 = vmatprep.subr.bf16.mxu0 0
    %7578 = vmatpush1.bf16.msra.mxu0 0
    %7579 = vmatprep.subr.bf16.mxu0 0
    %7580 = vmatpush1.bf16.msra.mxu0 0
    %7581 = vmatprep.subr.bf16.mxu0 0
    %7582 = vmatpush1.bf16.msra.mxu0 0
    %7583 = vmatprep.subr.bf16.mxu0 0
    %7584 = vmatpush1.bf16.msra.mxu0 0
    %7585 = vmatprep.mubr.bf16.mxu0 0
    %7586 = vmatmul.mubr.bf16.gmra.mrb[0].mxu0 %v7551
    %v7587 = vpop.f32.mrb[0].mxu0
    %v7588 = vadd.f32 0.0, %v7587
    %v7589 = vpop.f32.mrb[0].mxu0
    %v7590 = vpop.f32.mrb[0].mxu0
    %v7591 = vpop.f32.mrb[0].mxu0
    %7592 = vdwg.mxu0
    %v7593 = vadd.f32 %v7017, %v7588
    %v7594 = vxor.u32 %v7593, 2147483648
    %v7595 = vmul.f32 %v7594, 1.442695
    %v7596 = vpow.pop %v7595
    %v7597 = vadd.f32 %v7596, 1.0
    %v7598 = vrcp.pop %v7597
    %v7599 = vmul.f32 1.0, %v7598
    %v7600 = vtanh.pop %v7593
    %v7601 = vmul.f32 %v7599, %v7539
    %7603 = vrot.lane.b32.xlu0 %v7600, 64
    %v7604 = vpop.permute.xlu0 %7603
    %v7606 = vmul.f32 %v7599, %v7604
    %7608 = vrot.lane.b32.xlu0 %v7606, 32
    %v7609 = vpop.permute.xlu0 %7608
    %v7611 = vadd.f32 %v7601, %v7609
    %v7612 = vtanh.pop %v7611
    %7614 = vrot.lane.b32.xlu0 %v7612, 64
    %v7615 = vpop.permute.xlu0 %7614
    %v7617 = vmul.f32 %v7599, %v7615
    %v7619 = vcombine.low %v7185, %v7185
    %v7621 = vunpack.c.l.s4 1983009808
    %v7622 = vunpack.c.0.s8 %v7621
    %v7623 = vlaneseq
    %v7624 = vshrl.u32 %v7623, 7
    %v7625 = vsub.s32 %v7622, %v7624
    %v7626 = vrot.slane %v7619, %v7625
    %v7630 = vunpack.c.l.s4 1983009808
    %v7631 = vunpack.c.0.s8 %v7630
    %v7632 = vlaneseq
    %v7633 = vshrl.u32 %v7632, 7
    %v7634 = vsub.s32 %v7631, %v7633
    %v7635 = vrot.slane %v7257, %v7634
    %v7636 = vcombine.low %v7635, %v7635
    %v7639 = vcombine.low %v7329, %v7329
    %v7641 = vunpack.c.l.s4 1983009808
    %v7642 = vunpack.c.0.s8 %v7641
    %v7643 = vlaneseq
    %v7644 = vshrl.u32 %v7643, 7
    %v7645 = vsub.s32 %v7642, %v7644
    %v7646 = vrot.slane %v7639, %v7645
    %v7647 = vcombine.low %v7646, %v7646
    %v7650 = vcombine.low %v7473, %v7473
    %v7652 = vunpack.c.l.s4 1983009808
    %v7653 = vunpack.c.0.s8 %v7652
    %v7654 = vlaneseq
    %v7655 = vshrl.u32 %v7654, 7
    %v7656 = vsub.s32 %v7653, %v7655
    %v7657 = vrot.slane %v7650, %v7656
    %v7661 = vunpack.c.l.s4 1983009808
    %v7662 = vunpack.c.0.s8 %v7661
    %v7663 = vlaneseq
    %v7664 = vshrl.u32 %v7663, 7
    %v7665 = vsub.s32 %v7662, %v7664
    %v7666 = vrot.slane %v7545, %v7665
    %v7667 = vcombine.low %v7666, %v7666
    %v7670 = vcombine.low %v7617, %v7617
    %v7672 = vunpack.c.l.s4 1983009808
    %v7673 = vunpack.c.0.s8 %v7672
    %v7674 = vlaneseq
    %v7675 = vshrl.u32 %v7674, 7
    %v7676 = vsub.s32 %v7673, %v7675
    %v7677 = vrot.slane %v7670, %v7676
    %v7678 = vcombine.low %v7677, %v7677
    %v7680 = vsel %vm1036, %v7113, %v7626
    %v7681 = vsel %vm1038, %v7680, %v7636
    %v7682 = vsel %vm1040, %v7681, %v7647
    %v7683 = vsel %vm1036, %v7401, %v7657
    %v7684 = vsel %vm1038, %v7683, %v7667
    %v7685 = vsel %vm1040, %v7684, %v7678
    %v7686 = vpack.c.bf16 %v7685, %v7682
    %v7687 = vld [vmem:[%s11] sm:$0xf]
    %v7688 = vld [vmem:[%s11 + $0x4] sm:$0xf]
    %v7689 = vld [vmem:[%s11 + $0x8] sm:$0xf]
    %v7690 = vld [vmem:[%s11 + $0xc] sm:$0xf]
    %v7691 = vld [vmem:[#allocation3] sm:$0x1]
    %v7693 = vlaneseq
    %v7694 = vshrl.u32 %v7693, 7
    %v7695 = vsub.s32 0, %v7694
    %v7696 = vrot.slane %v7691, %v7695
    %7699 = vrot.lane.b32.xlu0 %v7686, 32
    %v7700 = vpop.permute.xlu0 %7699
    %v7705 = vunpack.c.l.b16 %v7687
    %v7706 = vunpack.c.l.b16 %v7688
    %v7707 = vunpack.c.l.b16 %v7689
    %v7708 = vunpack.c.l.b16 %v7690
    %v7709 = vpack.c.b16 %v7706, %v7705
    %v7710 = vpack.c.b16 %v7708, %v7707
    %v7714 = vsel %vm216, %v7700, 0
    %7716 = vmatprep.subr.bf16.mxu0 0
    %7717 = vmatpush1.bf16.msra.mxu0 %v7709
    %7718 = vmatprep.subr.bf16.mxu0 0
    %7719 = vmatpush1.bf16.msra.mxu0 %v7710
    %7720 = vmatprep.subr.bf16.mxu0 0
    %7721 = vmatpush1.bf16.msra.mxu0 0
    %7722 = vmatprep.subr.bf16.mxu0 0
    %7723 = vmatpush1.bf16.msra.mxu0 0
    %7724 = vmatprep.subr.bf16.mxu0 0
    %7725 = vmatpush1.bf16.msra.mxu0 0
    %7726 = vmatprep.subr.bf16.mxu0 0
    %7727 = vmatpush1.bf16.msra.mxu0 0
    %7728 = vmatprep.subr.bf16.mxu0 0
    %7729 = vmatpush1.bf16.msra.mxu0 0
    %7730 = vmatprep.subr.bf16.mxu0 0
    %7731 = vmatpush1.bf16.msra.mxu0 0
    %7732 = vmatprep.subr.bf16.mxu0 0
    %7733 = vmatpush1.bf16.msra.mxu0 0
    %7734 = vmatprep.subr.bf16.mxu0 0
    %7735 = vmatpush1.bf16.msra.mxu0 0
    %7736 = vmatprep.subr.bf16.mxu0 0
    %7737 = vmatpush1.bf16.msra.mxu0 0
    %7738 = vmatprep.subr.bf16.mxu0 0
    %7739 = vmatpush1.bf16.msra.mxu0 0
    %7740 = vmatprep.subr.bf16.mxu0 0
    %7741 = vmatpush1.bf16.msra.mxu0 0
    %7742 = vmatprep.subr.bf16.mxu0 0
    %7743 = vmatpush1.bf16.msra.mxu0 0
    %7744 = vmatprep.subr.bf16.mxu0 0
    %7745 = vmatpush1.bf16.msra.mxu0 0
    %7746 = vmatprep.subr.bf16.mxu0 0
    %7747 = vmatpush1.bf16.msra.mxu0 0
    %7748 = vmatprep.mubr.bf16.mxu0 0
    %7749 = vmatmul.mubr.bf16.gmra.mrb[0].mxu0 %v7714
    %v7750 = vpop.f32.mrb[0].mxu0
    %v7751 = vadd.f32 %v7696, %v7750
    %v7752 = vpop.f32.mrb[0].mxu0
    %v7753 = vpop.f32.mrb[0].mxu0
    %v7754 = vadd.f32 %v7696, %v7753
    %v7755 = vpop.f32.mrb[0].mxu0
    %7756 = vdwg.mxu0
    %v7757 = vsel %vm216, %v7751, 0.0
    %v7758 = vsel %vm216, %v7754, 0.0
    %v7759 = vadd.f32 %v7757, %v7758
    %v7760 = vrot.slane %v7759, 4
    %v7761 = vadd.f32 %v7759, %v7760
    %v7762 = vrot.slane %v7761, 2
    %v7763 = vadd.f32 %v7761, %v7762
    %v7764 = vrot.slane %v7763, 1
    %v7765 = vadd.f32 %v7763, %v7764
    %v7766 = vrcp.pop 16.0
    %v7767 = vmul.f32 %v7765, %v7766
    %v7768 = vsub.f32 %v7751, %v7767
    %v7769 = vsub.f32 %v7754, %v7767
    %v7770 = vmul.f32 %v7768, %v7768
    %v7771 = vmul.f32 %v7769, %v7769
    %v7772 = vsel %vm216, %v7770, 0.0
    %v7773 = vsel %vm216, %v7771, 0.0
    %v7774 = vadd.f32 %v7772, %v7773
    %v7775 = vrot.slane %v7774, 4
    %v7776 = vadd.f32 %v7774, %v7775
    %v7777 = vrot.slane %v7776, 2
    %v7778 = vadd.f32 %v7776, %v7777
    %v7779 = vrot.slane %v7778, 1
    %v7780 = vadd.f32 %v7778, %v7779
    %v7781 = vmul.f32 %v7780, %v7766
    %v7782 = vadd.f32 %v7781, 1e-05
    %v7783 = vrsqrt.pop %v7782
    %v7784 = vmul.f32 %v7768, %v7783
    %v7785 = vmul.f32 %v7769, %v7783
    %v7786 = vld [vmem:[%s13] sm:$0x1]
    %v7788 = vlaneseq
    %v7789 = vshrl.u32 %v7788, 7
    %v7790 = vsub.s32 0, %v7789
    %v7791 = vrot.slane %v7786, %v7790
    %v7793 = vmul.f32 %v7784, %v7791
    %v7794 = vmul.f32 %v7785, %v7791
    %v7795 = vld [vmem:[%s14] sm:$0x1]
    %v7797 = vlaneseq
    %v7798 = vshrl.u32 %v7797, 7
    %v7799 = vsub.s32 0, %v7798
    %v7800 = vrot.slane %v7795, %v7799
    %v7802 = vadd.f32 %v7793, %v7800
    %v7803 = vadd.f32 %v7794, %v7800
    %v7804 = vmax.f32 %v7802, 0.0
    %v7805 = vmax.f32 %v7803, 0.0
    %v7806 = vpack.c.bf16 %v7805, %v7804
    %v7807 = vld [vmem:[%s15] sm:$0xf]
    %v7808 = vld [vmem:[%s15 + $0x4] sm:$0xf]
    %v7809 = vld [vmem:[%s15 + $0x8] sm:$0xf]
    %v7810 = vld [vmem:[%s15 + $0xc] sm:$0xf]
    %v7811 = vld [vmem:[#allocation5] sm:$0x1]
    %v7813 = vlaneseq
    %v7814 = vshrl.u32 %v7813, 7
    %v7815 = vsub.s32 0, %v7814
    %v7816 = vrot.slane %v7811, %v7815
    %v7822 = vunpack.c.l.b16 %v7807
    %v7823 = vunpack.c.l.b16 %v7808
    %v7824 = vunpack.c.l.b16 %v7809
    %v7825 = vunpack.c.l.b16 %v7810
    %v7826 = vpack.c.b16 %v7823, %v7822
    %v7827 = vpack.c.b16 %v7825, %v7824
    %v7831 = vsel %vm216, %v7806, 0
    %7833 = vmatprep.subr.bf16.mxu0 0
    %7834 = vmatpush1.bf16.msra.mxu0 %v7826
    %7835 = vmatprep.subr.bf16.mxu0 0
    %7836 = vmatpush1.bf16.msra.mxu0 %v7827
    %7837 = vmatprep.subr.bf16.mxu0 0
    %7838 = vmatpush1.bf16.msra.mxu0 0
    %7839 = vmatprep.subr.bf16.mxu0 0
    %7840 = vmatpush1.bf16.msra.mxu0 0
    %7841 = vmatprep.subr.bf16.mxu0 0
    %7842 = vmatpush1.bf16.msra.mxu0 0
    %7843 = vmatprep.subr.bf16.mxu0 0
    %7844 = vmatpush1.bf16.msra.mxu0 0
    %7845 = vmatprep.subr.bf16.mxu0 0
    %7846 = vmatpush1.bf16.msra.mxu0 0
    %7847 = vmatprep.subr.bf16.mxu0 0
    %7848 = vmatpush1.bf16.msra.mxu0 0
    %7849 = vmatprep.subr.bf16.mxu0 0
    %7850 = vmatpush1.bf16.msra.mxu0 0
    %7851 = vmatprep.subr.bf16.mxu0 0
    %7852 = vmatpush1.bf16.msra.mxu0 0
    %7853 = vmatprep.subr.bf16.mxu0 0
    %7854 = vmatpush1.bf16.msra.mxu0 0
    %7855 = vmatprep.subr.bf16.mxu0 0
    %7856 = vmatpush1.bf16.msra.mxu0 0
    %7857 = vmatprep.subr.bf16.mxu0 0
    %7858 = vmatpush1.bf16.msra.mxu0 0
    %7859 = vmatprep.subr.bf16.mxu0 0
    %7860 = vmatpush1.bf16.msra.mxu0 0
    %7861 = vmatprep.subr.bf16.mxu0 0
    %7862 = vmatpush1.bf16.msra.mxu0 0
    %7863 = vmatprep.subr.bf16.mxu0 0
    %7864 = vmatpush1.bf16.msra.mxu0 0
    %7865 = vmatprep.mubr.bf16.mxu0 0
    %7866 = vmatmul.mubr.bf16.gmra.mrb[0].mxu0 %v7831
    %v7867 = vpop.f32.mrb[0].mxu0
    %v7868 = vadd.f32 %v7816, %v7867
    %v7869 = vpop.f32.mrb[0].mxu0
    %v7870 = vpop.f32.mrb[0].mxu0
    %v7871 = vadd.f32 %v7816, %v7870
    %v7872 = vpop.f32.mrb[0].mxu0
    %7873 = vdwg.mxu0
    %7874 = vrot.lane.b32.xlu0 %v5582, 2
    %v7875 = vpop.permute.xlu0 %7874
    %7876 = vrot.lane.b32.xlu0 %v5655, 2
    %v7877 = vpop.permute.xlu0 %7876
    %7878 = vrot.lane.b32.xlu0 %v5728, 2
    %v7879 = vpop.permute.xlu0 %7878
    %7880 = vrot.lane.b32.xlu0 %v5801, 2
    %v7881 = vpop.permute.xlu0 %7880
    %7882 = vrot.lane.b32.xlu0 %v5874, 2
    %v7883 = vpop.permute.xlu0 %7882
    %7884 = vrot.lane.b32.xlu0 %v5947, 2
    %v7885 = vpop.permute.xlu0 %7884
    %7886 = vrot.lane.b32.xlu0 %v6020, 2
    %v7887 = vpop.permute.xlu0 %7886
    %7888 = vrot.lane.b32.xlu0 %v6093, 2
    %v7889 = vpop.permute.xlu0 %7888
    %v7898 = vsub.f32 %v5582, %v7875
    %v7899 = vsub.f32 %v5655, %v7877
    %v7900 = vsub.f32 %v5728, %v7879
    %v7901 = vsub.f32 %v5801, %v7881
    %v7902 = vsub.f32 %v5874, %v7883
    %v7903 = vsub.f32 %v5947, %v7885
    %v7904 = vsub.f32 %v6020, %v7887
    %v7905 = vsub.f32 %v6093, %v7889
    %s7906 = sld [smem:[#allocation2]]
    %v7907 = vstv %s7906
    %v7908 = vmul.f32 %v7907, %v7898
    %v7909 = vmul.f32 %v7907, %v7899
    %v7910 = vmul.f32 %v7907, %v7900
    %v7911 = vmul.f32 %v7907, %v7901
    %v7912 = vmul.f32 %v7907, %v7902
    %v7913 = vmul.f32 %v7907, %v7903
    %v7914 = vmul.f32 %v7907, %v7904
    %v7915 = vmul.f32 %v7907, %v7905
    %7917 = vset.pattern.permute.xlu0 2
    %7918 = vperm.xlu0 %7917, %v7908
    %v7919 = vpop.permute.xlu0 %7918
    %v7922 = vunpack.c.l.s4 269488144
    %v7923 = vunpack.c.0.s8 %v7922
    %v7924 = vlaneseq
    %v7925 = vshrl.u32 %v7924, 7
    %v7926 = vsub.s32 %v7923, %v7925
    %v7927 = vrot.slane %v7919, %v7926
    %7929 = vset.pattern.permute.xlu0 2
    %7930 = vperm.xlu0 %7929, %v7909
    %v7931 = vpop.permute.xlu0 %7930
    %v7934 = vunpack.c.l.s4 269488144
    %v7935 = vunpack.c.0.s8 %v7934
    %v7936 = vlaneseq
    %v7937 = vshrl.u32 %v7936, 7
    %v7938 = vsub.s32 %v7935, %v7937
    %v7939 = vrot.slane %v7931, %v7938
    %7941 = vset.pattern.permute.xlu0 2
    %7942 = vperm.xlu0 %7941, %v7910
    %v7943 = vpop.permute.xlu0 %7942
    %v7946 = vunpack.c.l.s4 269488144
    %v7947 = vunpack.c.0.s8 %v7946
    %v7948 = vlaneseq
    %v7949 = vshrl.u32 %v7948, 7
    %v7950 = vsub.s32 %v7947, %v7949
    %v7951 = vrot.slane %v7943, %v7950
    %7953 = vset.pattern.permute.xlu0 2
    %7954 = vperm.xlu0 %7953, %v7911
    %v7955 = vpop.permute.xlu0 %7954
    %v7958 = vunpack.c.l.s4 269488144
    %v7959 = vunpack.c.0.s8 %v7958
    %v7960 = vlaneseq
    %v7961 = vshrl.u32 %v7960, 7
    %v7962 = vsub.s32 %v7959, %v7961
    %v7963 = vrot.slane %v7955, %v7962
    %7965 = vset.pattern.permute.xlu0 2
    %7966 = vperm.xlu0 %7965, %v7912
    %v7967 = vpop.permute.xlu0 %7966
    %v7970 = vunpack.c.l.s4 269488144
    %v7971 = vunpack.c.0.s8 %v7970
    %v7972 = vlaneseq
    %v7973 = vshrl.u32 %v7972, 7
    %v7974 = vsub.s32 %v7971, %v7973
    %v7975 = vrot.slane %v7967, %v7974
    %7977 = vset.pattern.permute.xlu0 2
    %7978 = vperm.xlu0 %7977, %v7913
    %v7979 = vpop.permute.xlu0 %7978
    %v7982 = vunpack.c.l.s4 269488144
    %v7983 = vunpack.c.0.s8 %v7982
    %v7984 = vlaneseq
    %v7985 = vshrl.u32 %v7984, 7
    %v7986 = vsub.s32 %v7983, %v7985
    %v7987 = vrot.slane %v7979, %v7986
    %7989 = vset.pattern.permute.xlu0 2
    %7990 = vperm.xlu0 %7989, %v7914
    %v7991 = vpop.permute.xlu0 %7990
    %v7994 = vunpack.c.l.s4 269488144
    %v7995 = vunpack.c.0.s8 %v7994
    %v7996 = vlaneseq
    %v7997 = vshrl.u32 %v7996, 7
    %v7998 = vsub.s32 %v7995, %v7997
    %v7999 = vrot.slane %v7991, %v7998
    %8001 = vset.pattern.permute.xlu0 2
    %8002 = vperm.xlu0 %8001, %v7915
    %v8003 = vpop.permute.xlu0 %8002
    %v8006 = vunpack.c.l.s4 269488144
    %v8007 = vunpack.c.0.s8 %v8006
    %v8008 = vlaneseq
    %v8009 = vshrl.u32 %v8008, 7
    %v8010 = vsub.s32 %v8007, %v8009
    %v8011 = vrot.slane %v8003, %v8010
    %v8020 = vcombine.low %v7927, %v7939
    %v8021 = vcombine.low %v7951, %v7963
    %v8023 = vunpack.c.l.s4 1983009808
    %v8024 = vunpack.c.0.s8 %v8023
    %v8025 = vlaneseq
    %v8026 = vshrl.u32 %v8025, 7
    %v8027 = vsub.s32 %v8024, %v8026
    %v8028 = vrot.slane %v8020, %v8027
    %v8030 = vunpack.c.l.s4 1983009808
    %v8031 = vunpack.c.0.s8 %v8030
    %v8032 = vlaneseq
    %v8033 = vshrl.u32 %v8032, 7
    %v8034 = vsub.s32 %v8031, %v8033
    %v8035 = vrot.slane %v8021, %v8034
    %v8036 = vcombine.low %v8028, %v8035
    %v8037 = vcombine.low %v7975, %v7987
    %v8038 = vcombine.low %v7999, %v8011
    %v8040 = vunpack.c.l.s4 1983009808
    %v8041 = vunpack.c.0.s8 %v8040
    %v8042 = vlaneseq
    %v8043 = vshrl.u32 %v8042, 7
    %v8044 = vsub.s32 %v8041, %v8043
    %v8045 = vrot.slane %v8037, %v8044
    %v8047 = vunpack.c.l.s4 1983009808
    %v8048 = vunpack.c.0.s8 %v8047
    %v8049 = vlaneseq
    %v8050 = vshrl.u32 %v8049, 7
    %v8051 = vsub.s32 %v8048, %v8050
    %v8052 = vrot.slane %v8038, %v8051
    %v8053 = vcombine.low %v8045, %v8052
    %v8056 = vadd.f32 %v7868, %v8036
    %v8057 = vadd.f32 %v7871, %v8053
    %vm8058 = vcmask 31744
    %8059 = vst.msk [vmem:[%s18] sm:$0xff] %vm8058, %v8056
    %8060 = vst.msk [vmem:[%s18 + $0x8] sm:$0xff] %vm8058, %v8057
    // Predicated region
    $region82: #{memnn_forward.1} parent=1 // pred_check
      _
    $region83: #{memnn_forward.1} parent=1 // pred_check_branch
      %8062 = sbr.rel (0) target = $region85
    $region84: #{memnn_forward.1} parent=1 // pred_region
      _
    $region85: #{memnn_forward.1} parent=1 // pred_fallthru
      _
    // Predicated region
    $region86: #{memnn_forward.1} parent=1 // pred_check
      _
    $region87: #{memnn_forward.1} parent=1 // pred_check_branch
      %8064 = sbr.rel (0) target = $region89
    $region88: #{memnn_forward.1} parent=1 // pred_region
      _
    $region89: #{memnn_forward.1} parent=1 // pred_fallthru
      _
    // Predicated region
    $region90: #{memnn_forward.1} parent=1 // pred_check
      _
    $region91: #{memnn_forward.1} parent=1 // pred_check_branch
      %8066 = sbr.rel (0) target = $region93
    $region92: #{memnn_forward.1} parent=1 // pred_region
      _
    $region93: #{memnn_forward.1} parent=1 // pred_fallthru
      _
    // Predicated region
    $region94: #{memnn_forward.1} parent=1 // pred_check
      _
    $region95: #{memnn_forward.1} parent=1 // pred_check_branch
      %8068 = sbr.rel (0) target = $region97
    $region96: #{memnn_forward.1} parent=1 // pred_region
      _
    $region97: #{memnn_forward.1} parent=1 // pred_fallthru
      _
    %8069 = vsyncpa [#allocation4], 1
    %8070 = vsyncpa [#allocation6], 1

</llo_original>
